<compile_context>
chip_gen: v7x
topology: tpu7x:2x2x1
jax: 0.10.0
libtpu: 0.0.40
codegen_flags: <defaults>
</compile_context>

<pallas_src>
import functools

import jax
import jax.numpy as jnp
from jax import lax
from jax.experimental import pallas as pl
from jax.experimental.pallas import tpu as pltpu


# ----------------------------- Pallas kernels -----------------------------

def _mm_bias_act_kernel(w_ref, x_ref, b_ref, o_ref, *, activation, neg_slope):
    # (N, K) @ (K, tm) on the MXU, f32 accumulation; bias + activation epilogue.
    acc = jnp.dot(w_ref[...], x_ref[...], preferred_element_type=jnp.float32)
    acc = acc + b_ref[...]                          # (N, 1) lane-broadcast
    if activation == "leaky_relu":
        acc = jnp.where(acc > 0, acc, neg_slope * acc)
    elif activation == "sigmoid":
        acc = jax.nn.sigmoid(acc)
    o_ref[...] = acc.astype(o_ref.dtype)


def _pick_tm(M, K, N, budget=8 << 20):
    """Lane-tile of M.  Single full-M step whenever it fits a conservative
    (v5e-safe, far below v7x's 64 MiB VMEM) budget; otherwise the largest
    128-multiple divisor of M.  At batch=2 this is always the full M."""
    def need(tm):
        # double-buffered bf16 patch tile + resident weight/bias + double-buffered f32 out tile
        return 2 * (K * tm * 2) + (N * K * 2 + N * 4) + 2 * (N * tm * 4)
    if need(M) <= budget:
        return M
    for tm in (4096, 2048, 1024, 512, 256, 128):
        if M % tm == 0 and need(tm) <= budget:
            return tm
    return M


def pallas_matmul_bias_act(w2d, xT, b, activation="none", neg_slope=0.2):
    """Fused out(N, M) = w2d(N, K) @ xT(K, M) + b, then activation.

    Operands are cast to bf16 for the MXU; bias add, accumulation and the
    activation stay f32.  M (= batch*spatial) is the output's last dim, so
    the big layers store full 128-lane vregs and the result reshapes directly
    into the next layer's feature-major input.
    """
    N, K = w2d.shape
    K2, M = xT.shape
    assert K == K2
    tm = _pick_tm(M, K, N)
    grid = (M // tm,)
    return pl.pallas_call(
        functools.partial(_mm_bias_act_kernel, activation=activation,
                          neg_slope=neg_slope),
        out_shape=jax.ShapeDtypeStruct((N, M), jnp.float32),
        grid=grid,
        in_specs=[
            pl.BlockSpec((N, K), lambda i: (0, 0)),    # weight: resident
            pl.BlockSpec((K, tm), lambda i: (0, i)),   # patches: tiled over lanes
            pl.BlockSpec((N, 1), lambda i: (0, 0)),    # bias
        ],
        out_specs=pl.BlockSpec((N, tm), lambda i: (0, i)),
        compiler_params=pltpu.CompilerParams(dimension_semantics=("parallel",)),
    )(w2d.astype(jnp.bfloat16), xT.astype(jnp.bfloat16),
      b.reshape(N, 1).astype(jnp.float32))


def _latent_kernel(e_ref, wm_ref, wlv_ref, bm_ref, blv_ref, noise_ref,
                   wr_ref, br_ref, mean_ref, logvar_ref, d_ref):
    # fc_mean + fc_log_var + reparameterize + recover, fused in one kernel (f32).
    e = e_ref[...]
    mean = jnp.dot(e, wm_ref[...], preferred_element_type=jnp.float32) + bm_ref[...]
    log_var = jnp.dot(e, wlv_ref[...], preferred_element_type=jnp.float32) + blv_ref[...]
    z = mean + jnp.exp(0.5 * log_var) * noise_ref[...]        # exp -> EUP slot
    d = jnp.dot(z, wr_ref[...], preferred_element_type=jnp.float32) + br_ref[...]
    mean_ref[...] = mean
    logvar_ref[...] = log_var
    d_ref[...] = d


def pallas_latent_block(e, w_mean, b_mean, w_logvar, b_logvar, noise, w_rec, b_rec):
    """One pallas_call for the whole latent bottleneck (replaces 4 launches)."""
    B, F = e.shape
    L = w_mean.shape[0]

    def full(shape):
        return pl.BlockSpec(shape, lambda i: (0, 0))

    return pl.pallas_call(
        _latent_kernel,
        out_shape=(jax.ShapeDtypeStruct((B, L), jnp.float32),
                   jax.ShapeDtypeStruct((B, L), jnp.float32),
                   jax.ShapeDtypeStruct((B, F), jnp.float32)),
        grid=(1,),
        in_specs=[full((B, F)), full((F, L)), full((F, L)), full((1, L)),
                  full((1, L)), full((B, L)), full((L, F)), full((1, F))],
        out_specs=(full((B, L)), full((B, L)), full((B, F))),
        compiler_params=pltpu.CompilerParams(dimension_semantics=("arbitrary",)),
    )(e, w_mean.T, w_logvar.T, b_mean.reshape(1, L), b_logvar.reshape(1, L),
      noise, w_rec.T, b_rec.reshape(1, F))


# ----------------------------- im2col glue (plain JAX) -----------------------------

def _im2col_cm(xp, k, stride):
    """Feature-major im2col.  xp: (C, B, Hp, Wp), already padded/dilated.
    Returns patches (C*k*k, B*Ho*Wo) whose row order (c, kh, kw) matches
    PyTorch's weight.reshape(Cout, -1), plus (Ho, Wo)."""
    C, B, H, W = xp.shape
    Ho = (H - k) // stride + 1
    Wo = (W - k) // stride + 1
    # TODO(synk): fold this 3x3 patch extraction into the matmul kernel
    # (9 accumulated dots over strided VMEM views) to remove the 9x patch
    # materialization; at batch=2 the copies are tiny, so it stays as glue.
    cols = []
    for i in range(k):
        for j in range(k):
            cols.append(xp[:, :, i:i + stride * Ho:stride, j:j + stride * Wo:stride])
    p = jnp.stack(cols, axis=1)                      # (C, k*k, B, Ho, Wo)
    p = p.reshape(C * k * k, B * Ho * Wo)
    return p, Ho, Wo


def conv2d_s2(x_cm, w, b, activation):
    """PyTorch Conv2d(k=3, s=2, p=1) on a feature-major (Cin, B, H, W) activation.
    w: (Cout, Cin, 3, 3).  Returns (Cout, B, Ho, Wo)."""
    C, B, H, W = x_cm.shape
    Cout = w.shape[0]
    xp = jnp.pad(x_cm, ((0, 0), (0, 0), (1, 1), (1, 1)))
    patches, Ho, Wo = _im2col_cm(xp, 3, 2)
    out = pallas_matmul_bias_act(w.reshape(Cout, -1), patches, b, activation)
    return out.reshape(Cout, B, Ho, Wo)


def conv_transpose2d_s2(x_cm, w, b, activation):
    """PyTorch ConvTranspose2d(k=3, s=2, p=1, output_padding=1) on a feature-major
    (Cin, B, H, W) activation, rewritten as a stride-1 conv over a zero-dilated,
    asymmetrically padded input with the flipped/transposed kernel.
    w: (Cin, Cout, 3, 3).  Returns (Cout, B, 2H, 2W)."""
    C, B, H, W = x_cm.shape
    Cout = w.shape[1]
    xd = jnp.zeros((C, B, 2 * H - 1, 2 * W - 1), x_cm.dtype).at[:, :, ::2, ::2].set(x_cm)
    xp = jnp.pad(xd, ((0, 0), (0, 0), (1, 2), (1, 2)))     # lo=k-1-p, hi=k-1-p+out_pad
    wc = jnp.flip(w, axis=(2, 3)).transpose(1, 0, 2, 3)    # (Cout, Cin, 3, 3)
    patches, Ho, Wo = _im2col_cm(xp, 3, 1)
    out = pallas_matmul_bias_act(wc.reshape(Cout, -1), patches, b, activation)
    return out.reshape(Cout, B, Ho, Wo)


# ----------------------------- VAE parameters + forward -----------------------------

def init_params(key, image_channels=3, latent_dim=20):
    keys = jax.random.split(key, 30)
    ki = iter(keys)

    def mk(shape, fan_in):
        return jax.random.normal(next(ki), shape, jnp.float32) / jnp.sqrt(fan_in)

    p = {}
    # encoder: Conv2d weights (Cout, Cin, 3, 3)
    enc = [(image_channels, 32), (32, 64), (64, 128), (128, 256)]
    for n, (cin, cout) in enumerate(enc, 1):
        p[f"we{n}"] = mk((cout, cin, 3, 3), cin * 9)
        p[f"be{n}"] = mk((cout,), cin * 9)
    # fc_mean / fc_log_var / recover: Linear weights (out, in)
    p["w_mean"] = mk((latent_dim, 256 * 2 * 2), 256 * 2 * 2)
    p["b_mean"] = mk((latent_dim,), 256 * 2 * 2)
    p["w_logvar"] = mk((latent_dim, 256 * 2 * 2), 256 * 2 * 2)
    p["b_logvar"] = mk((latent_dim,), 256 * 2 * 2)
    p["w_rec"] = mk((256 * 2 * 2, latent_dim), latent_dim)
    p["b_rec"] = mk((256 * 2 * 2,), latent_dim)
    # decoder: ConvTranspose2d weights (Cin, Cout, 3, 3)
    dec = [(256, 128), (128, 64), (64, 32), (32, image_channels)]
    for n, (cin, cout) in enumerate(dec, 1):
        p[f"wd{n}"] = mk((cin, cout, 3, 3), cin * 9)
        p[f"bd{n}"] = mk((cout,), cin * 9)
    return p


def vae_forward(params, x, noise):
    B = x.shape[0]
    # encoder (feature-major layout (C, B, H, W) through the whole conv stack)
    h = x.transpose(1, 0, 2, 3)                              # NCHW -> CNHW, once
    h = conv2d_s2(h, params["we1"], params["be1"], "leaky_relu")
    h = conv2d_s2(h, params["we2"], params["be2"], "leaky_relu")
    h = conv2d_s2(h, params["we3"], params["be3"], "leaky_relu")
    h = conv2d_s2(h, params["we4"], params["be4"], "leaky_relu")
    # nn.Flatten on NCHW ordering (c, h, w) -- one tiny (8 KiB) transpose
    e = h.transpose(1, 0, 2, 3).reshape(B, -1)
    # fused fc_mean + fc_log_var + reparameterize + recover (single kernel)
    mean, log_var, d = pallas_latent_block(
        e, params["w_mean"], params["b_mean"], params["w_logvar"],
        params["b_logvar"], noise, params["w_rec"], params["b_rec"])
    # decoder
    d = d.reshape(B, 256, 2, 2).transpose(1, 0, 2, 3)        # back to feature-major
    r = conv_transpose2d_s2(d, params["wd1"], params["bd1"], "leaky_relu")
    r = conv_transpose2d_s2(r, params["wd2"], params["bd2"], "leaky_relu")
    r = conv_transpose2d_s2(r, params["wd3"], params["bd3"], "leaky_relu")
    r = conv_transpose2d_s2(r, params["wd4"], params["bd4"], "sigmoid")
    recon_x = r.transpose(1, 0, 2, 3)                        # CNHW -> NCHW, once
    return recon_x, mean, log_var


# ----------------------------- pure-JAX reference (for self-check) -----------------------------

def _ref_forward(params, x, noise):
    """Reference with the same precision policy as the Pallas path:
    bf16 matmul operands, f32 accumulation / bias / activation."""
    lrelu = lambda v: jnp.where(v > 0, v, 0.2 * v)
    dn = ("NCHW", "OIHW", "NCHW")
    bf16 = jnp.bfloat16

    def conv(v, w, b):
        y = lax.conv_general_dilated(v.astype(bf16), w.astype(bf16), (2, 2),
                                     ((1, 1), (1, 1)), dimension_numbers=dn,
                                     preferred_element_type=jnp.float32)
        return y + b.reshape(1, -1, 1, 1)

    def deconv(v, w, b):
        wc = jnp.flip(w, axis=(2, 3)).transpose(1, 0, 2, 3)
        y = lax.conv_general_dilated(v.astype(bf16), wc.astype(bf16), (1, 1),
                                     ((1, 2), (1, 2)), lhs_dilation=(2, 2),
                                     dimension_numbers=dn,
                                     preferred_element_type=jnp.float32)
        return y + b.reshape(1, -1, 1, 1)

    h = lrelu(conv(x, params["we1"], params["be1"]))
    h = lrelu(conv(h, params["we2"], params["be2"]))
    h = lrelu(conv(h, params["we3"], params["be3"]))
    h = lrelu(conv(h, params["we4"], params["be4"]))
    e = h.reshape(h.shape[0], -1)
    mean = e @ params["w_mean"].T + params["b_mean"]
    log_var = e @ params["w_logvar"].T + params["b_logvar"]
    z = mean + jnp.exp(0.5 * log_var) * noise
    d = (z @ params["w_rec"].T + params["b_rec"]).reshape(-1, 256, 2, 2)
    r = lrelu(deconv(d, params["wd1"], params["bd1"]))
    r = lrelu(deconv(r, params["wd2"], params["bd2"]))
    r = lrelu(deconv(r, params["wd3"], params["bd3"]))
    recon_x = jax.nn.sigmoid(deconv(r, params["wd4"], params["bd4"]))
    return recon_x, mean, log_var


# ----------------------------- main -----------------------------

if __name__ == "__main__":
    key = jax.random.PRNGKey(0)
    k_param, k_x, k_noise = jax.random.split(key, 3)

    image_channels, latent_dim, batch = 3, 20, 2
    # Conv path hard-codes 256*2*2 after four stride-2 convs -> input must be 32x32.
    x = jax.random.normal(k_x, (batch, image_channels, 32, 32), jnp.float32)
    # torch.randn_like noise of the reparameterization, generated deterministically.
    noise = jax.random.normal(k_noise, (batch, latent_dim), jnp.float32)

    params = init_params(k_param, image_channels, latent_dim)

    fwd = jax.jit(vae_forward)
    recon_x, mean, log_var = fwd(params, x, noise)
    jax.block_until_ready((recon_x, mean, log_var))

    assert recon_x.shape == (batch, image_channels, 32, 32)
    assert mean.shape == (batch, latent_dim) and log_var.shape == (batch, latent_dim)

    # Self-check against a pure-JAX (XLA conv) reference using the same
    # bf16-operand / f32-accumulate policy.  Tolerance allows for bf16
    # re-quantization amplifying f32 accumulation-order differences through
    # the 8-layer conv stack (worst case ~4e-3; logic bugs would be O(1)).
    r_ref, m_ref, lv_ref = _ref_forward(params, x, noise)
    assert jnp.allclose(recon_x, r_ref, rtol=1e-2, atol=1e-2)
    assert jnp.allclose(mean, m_ref, rtol=1e-2, atol=1e-2)
    assert jnp.allclose(log_var, lv_ref, rtol=1e-2, atol=1e-2)

    print("KERNEL_OK")
</pallas_src>

<mosaic_0001>
module attributes {stable_mosaic.version = 11 : i64} {
  func.func @_mm_bias_act_kernel(%arg0: i32, %arg1: memref<32x27xbf16, #tpu.memory_space<vmem>>, %arg2: memref<27x512xbf16, #tpu.memory_space<vmem>>, %arg3: memref<32x1xf32, #tpu.memory_space<vmem>>, %arg4: memref<32x512xf32, #tpu.memory_space<vmem>>) attributes {dimension_semantics = [#tpu.dimension_semantics<parallel>], iteration_bounds = array<i64: 1>, scalar_prefetch = 0 : i64, scratch_operands = 0 : i64, tpu.core_type = #tpu.core_type<tc>, window_params = [{pipeline_mode = #tpu.pipeline_mode<synchronous>, transform_indices = @transform_0, window_bounds = array<i64: 32, 27>}, {transform_indices = @transform_1, window_bounds = array<i64: 27, 512>}, {pipeline_mode = #tpu.pipeline_mode<synchronous>, transform_indices = @transform_2, window_bounds = array<i64: 32, 1>}, {transform_indices = @transform_3, window_bounds = array<i64: 32, 512>}]} {
    %c0 = arith.constant 0 : index
    %c0_0 = arith.constant 0 : index
    %0 = vector.load %arg1[%c0, %c0_0] : memref<32x27xbf16, #tpu.memory_space<vmem>>, vector<32x27xbf16>
    %c0_1 = arith.constant 0 : index
    %c0_2 = arith.constant 0 : index
    %1 = vector.load %arg2[%c0_1, %c0_2] : memref<27x512xbf16, #tpu.memory_space<vmem>>, vector<27x512xbf16>
    %cst = arith.constant dense<0.000000e+00> : vector<32x512xf32>
    %2 = tpu.matmul %0, %1, %cst {dimension_numbers = #tpu.dot_dimension_numbers<[1], [0], [0], [1], [0, 0, 1, 1], [], []>} : vector<32x27xbf16>, vector<27x512xbf16>, vector<32x512xf32> -> vector<32x512xf32>
    %c0_3 = arith.constant 0 : index
    %c0_4 = arith.constant 0 : index
    %3 = vector.load %arg3[%c0_3, %c0_4] : memref<32x1xf32, #tpu.memory_space<vmem>>, vector<32x1xf32>
    %4 = vector.broadcast %3 : vector<32x1xf32> to vector<32x512xf32>
    %5 = arith.addf %2, %4 : vector<32x512xf32>
    %cst_5 = arith.constant 0.000000e+00 : f32
    %6 = vector.broadcast %cst_5 : f32 to vector<32x512xf32>
    %7 = arith.cmpf ogt, %5, %6 : vector<32x512xf32>
    %cst_6 = arith.constant 2.000000e-01 : f32
    %8 = vector.broadcast %cst_6 : f32 to vector<32x512xf32>
    %9 = arith.mulf %8, %5 : vector<32x512xf32>
    %10 = arith.select %7, %5, %9 : vector<32x512xi1>, vector<32x512xf32>
    %c0_7 = arith.constant 0 : index
    %c0_8 = arith.constant 0 : index
    %11 = vector.load %arg4[%c0_7, %c0_8] : memref<32x512xf32, #tpu.memory_space<vmem>>, vector<32x512xf32>
    tpu.vector_store %arg4[%c0_7, %c0_8], %10 {strides = array<i32>} : memref<32x512xf32, #tpu.memory_space<vmem>>, vector<32x512xf32>,
    return
  }
  func.func @transform_0(%arg0: i32) -> (i32, i32) {
    %c0_i32 = arith.constant 0 : i32
    %c0_i32_0 = arith.constant 0 : i32
    %c0_i32_1 = arith.constant 0 : i32
    return %c0_i32, %c0_i32_0 : i32, i32
  }
  func.func @transform_1(%arg0: i32) -> (i32, i32) {
    %c0_i32 = arith.constant 0 : i32
    %c0_i32_0 = arith.constant 0 : i32
    return %c0_i32, %arg0 : i32, i32
  }
  func.func @transform_2(%arg0: i32) -> (i32, i32) {
    %c0_i32 = arith.constant 0 : i32
    %c0_i32_0 = arith.constant 0 : i32
    %c0_i32_1 = arith.constant 0 : i32
    return %c0_i32, %c0_i32_0 : i32, i32
  }
  func.func @transform_3(%arg0: i32) -> (i32, i32) {
    %c0_i32 = arith.constant 0 : i32
    %c0_i32_0 = arith.constant 0 : i32
    return %c0_i32, %arg0 : i32, i32
  }
}

module attributes {stable_mosaic.version = 11 : i64} {
  func.func @_mm_bias_act_kernel(%arg0: i32, %arg1: memref<64x288xbf16, #tpu.memory_space<vmem>>, %arg2: memref<288x128xbf16, #tpu.memory_space<vmem>>, %arg3: memref<64x1xf32, #tpu.memory_space<vmem>>, %arg4: memref<64x128xf32, #tpu.memory_space<vmem>>) attributes {dimension_semantics = [#tpu.dimension_semantics<parallel>], iteration_bounds = array<i64: 1>, scalar_prefetch = 0 : i64, scratch_operands = 0 : i64, tpu.core_type = #tpu.core_type<tc>, window_params = [{pipeline_mode = #tpu.pipeline_mode<synchronous>, transform_indices = @transform_0, window_bounds = array<i64: 64, 288>}, {transform_indices = @transform_1, window_bounds = array<i64: 288, 128>}, {pipeline_mode = #tpu.pipeline_mode<synchronous>, transform_indices = @transform_2, window_bounds = array<i64: 64, 1>}, {transform_indices = @transform_3, window_bounds = array<i64: 64, 128>}]} {
    %c0 = arith.constant 0 : index
    %c0_0 = arith.constant 0 : index
    %0 = vector.load %arg1[%c0, %c0_0] : memref<64x288xbf16, #tpu.memory_space<vmem>>, vector<64x288xbf16>
    %c0_1 = arith.constant 0 : index
    %c0_2 = arith.constant 0 : index
    %1 = vector.load %arg2[%c0_1, %c0_2] : memref<288x128xbf16, #tpu.memory_space<vmem>>, vector<288x128xbf16>
    %cst = arith.constant dense<0.000000e+00> : vector<64x128xf32>
    %2 = tpu.matmul %0, %1, %cst {dimension_numbers = #tpu.dot_dimension_numbers<[1], [0], [0], [1], [0, 0, 1, 1], [], []>} : vector<64x288xbf16>, vector<288x128xbf16>, vector<64x128xf32> -> vector<64x128xf32>
    %c0_3 = arith.constant 0 : index
    %c0_4 = arith.constant 0 : index
    %3 = vector.load %arg3[%c0_3, %c0_4] : memref<64x1xf32, #tpu.memory_space<vmem>>, vector<64x1xf32>
    %4 = vector.broadcast %3 : vector<64x1xf32> to vector<64x128xf32>
    %5 = arith.addf %2, %4 : vector<64x128xf32>
    %cst_5 = arith.constant 0.000000e+00 : f32
    %6 = vector.broadcast %cst_5 : f32 to vector<64x128xf32>
    %7 = arith.cmpf ogt, %5, %6 : vector<64x128xf32>
    %cst_6 = arith.constant 2.000000e-01 : f32
    %8 = vector.broadcast %cst_6 : f32 to vector<64x128xf32>
    %9 = arith.mulf %8, %5 : vector<64x128xf32>
    %10 = arith.select %7, %5, %9 : vector<64x128xi1>, vector<64x128xf32>
    %c0_7 = arith.constant 0 : index
    %c0_8 = arith.constant 0 : index
    %11 = vector.load %arg4[%c0_7, %c0_8] : memref<64x128xf32, #tpu.memory_space<vmem>>, vector<64x128xf32>
    tpu.vector_store %arg4[%c0_7, %c0_8], %10 {strides = array<i32>} : memref<64x128xf32, #tpu.memory_space<vmem>>, vector<64x128xf32>,
    return
  }
  func.func @transform_0(%arg0: i32) -> (i32, i32) {
    %c0_i32 = arith.constant 0 : i32
    %c0_i32_0 = arith.constant 0 : i32
    %c0_i32_1 = arith.constant 0 : i32
    return %c0_i32, %c0_i32_0 : i32, i32
  }
  func.func @transform_1(%arg0: i32) -> (i32, i32) {
    %c0_i32 = arith.constant 0 : i32
    %c0_i32_0 = arith.constant 0 : i32
    return %c0_i32, %arg0 : i32, i32
  }
  func.func @transform_2(%arg0: i32) -> (i32, i32) {
    %c0_i32 = arith.constant 0 : i32
    %c0_i32_0 = arith.constant 0 : i32
    %c0_i32_1 = arith.constant 0 : i32
    return %c0_i32, %c0_i32_0 : i32, i32
  }
  func.func @transform_3(%arg0: i32) -> (i32, i32) {
    %c0_i32 = arith.constant 0 : i32
    %c0_i32_0 = arith.constant 0 : i32
    return %c0_i32, %arg0 : i32, i32
  }
}

module attributes {stable_mosaic.version = 11 : i64} {
  func.func @_mm_bias_act_kernel(%arg0: i32, %arg1: memref<128x576xbf16, #tpu.memory_space<vmem>>, %arg2: memref<576x32xbf16, #tpu.memory_space<vmem>>, %arg3: memref<128x1xf32, #tpu.memory_space<vmem>>, %arg4: memref<128x32xf32, #tpu.memory_space<vmem>>) attributes {dimension_semantics = [#tpu.dimension_semantics<parallel>], iteration_bounds = array<i64: 1>, scalar_prefetch = 0 : i64, scratch_operands = 0 : i64, tpu.core_type = #tpu.core_type<tc>, window_params = [{pipeline_mode = #tpu.pipeline_mode<synchronous>, transform_indices = @transform_0, window_bounds = array<i64: 128, 576>}, {transform_indices = @transform_1, window_bounds = array<i64: 576, 32>}, {pipeline_mode = #tpu.pipeline_mode<synchronous>, transform_indices = @transform_2, window_bounds = array<i64: 128, 1>}, {transform_indices = @transform_3, window_bounds = array<i64: 128, 32>}]} {
    %c0 = arith.constant 0 : index
    %c0_0 = arith.constant 0 : index
    %0 = vector.load %arg1[%c0, %c0_0] : memref<128x576xbf16, #tpu.memory_space<vmem>>, vector<128x576xbf16>
    %c0_1 = arith.constant 0 : index
    %c0_2 = arith.constant 0 : index
    %1 = vector.load %arg2[%c0_1, %c0_2] : memref<576x32xbf16, #tpu.memory_space<vmem>>, vector<576x32xbf16>
    %cst = arith.constant dense<0.000000e+00> : vector<128x32xf32>
    %2 = tpu.matmul %0, %1, %cst {dimension_numbers = #tpu.dot_dimension_numbers<[1], [0], [0], [1], [0, 0, 1, 1], [], []>} : vector<128x576xbf16>, vector<576x32xbf16>, vector<128x32xf32> -> vector<128x32xf32>
    %c0_3 = arith.constant 0 : index
    %c0_4 = arith.constant 0 : index
    %3 = vector.load %arg3[%c0_3, %c0_4] : memref<128x1xf32, #tpu.memory_space<vmem>>, vector<128x1xf32>
    %4 = vector.broadcast %3 : vector<128x1xf32> to vector<128x32xf32>
    %5 = arith.addf %2, %4 : vector<128x32xf32>
    %cst_5 = arith.constant 0.000000e+00 : f32
    %6 = vector.broadcast %cst_5 : f32 to vector<128x32xf32>
    %7 = arith.cmpf ogt, %5, %6 : vector<128x32xf32>
    %cst_6 = arith.constant 2.000000e-01 : f32
    %8 = vector.broadcast %cst_6 : f32 to vector<128x32xf32>
    %9 = arith.mulf %8, %5 : vector<128x32xf32>
    %10 = arith.select %7, %5, %9 : vector<128x32xi1>, vector<128x32xf32>
    %c0_7 = arith.constant 0 : index
    %c0_8 = arith.constant 0 : index
    %11 = vector.load %arg4[%c0_7, %c0_8] : memref<128x32xf32, #tpu.memory_space<vmem>>, vector<128x32xf32>
    tpu.vector_store %arg4[%c0_7, %c0_8], %10 {strides = array<i32>} : memref<128x32xf32, #tpu.memory_space<vmem>>, vector<128x32xf32>,
    return
  }
  func.func @transform_0(%arg0: i32) -> (i32, i32) {
    %c0_i32 = arith.constant 0 : i32
    %c0_i32_0 = arith.constant 0 : i32
    %c0_i32_1 = arith.constant 0 : i32
    return %c0_i32, %c0_i32_0 : i32, i32
  }
  func.func @transform_1(%arg0: i32) -> (i32, i32) {
    %c0_i32 = arith.constant 0 : i32
    %c0_i32_0 = arith.constant 0 : i32
    return %c0_i32, %arg0 : i32, i32
  }
  func.func @transform_2(%arg0: i32) -> (i32, i32) {
    %c0_i32 = arith.constant 0 : i32
    %c0_i32_0 = arith.constant 0 : i32
    %c0_i32_1 = arith.constant 0 : i32
    return %c0_i32, %c0_i32_0 : i32, i32
  }
  func.func @transform_3(%arg0: i32) -> (i32, i32) {
    %c0_i32 = arith.constant 0 : i32
    %c0_i32_0 = arith.constant 0 : i32
    return %c0_i32, %arg0 : i32, i32
  }
}

module attributes {stable_mosaic.version = 11 : i64} {
  func.func @_mm_bias_act_kernel(%arg0: i32, %arg1: memref<256x1152xbf16, #tpu.memory_space<vmem>>, %arg2: memref<1152x8xbf16, #tpu.memory_space<vmem>>, %arg3: memref<256x1xf32, #tpu.memory_space<vmem>>, %arg4: memref<256x8xf32, #tpu.memory_space<vmem>>) attributes {dimension_semantics = [#tpu.dimension_semantics<parallel>], iteration_bounds = array<i64: 1>, scalar_prefetch = 0 : i64, scratch_operands = 0 : i64, tpu.core_type = #tpu.core_type<tc>, window_params = [{pipeline_mode = #tpu.pipeline_mode<synchronous>, transform_indices = @transform_0, window_bounds = array<i64: 256, 1152>}, {transform_indices = @transform_1, window_bounds = array<i64: 1152, 8>}, {pipeline_mode = #tpu.pipeline_mode<synchronous>, transform_indices = @transform_2, window_bounds = array<i64: 256, 1>}, {transform_indices = @transform_3, window_bounds = array<i64: 256, 8>}]} {
    %c0 = arith.constant 0 : index
    %c0_0 = arith.constant 0 : index
    %0 = vector.load %arg1[%c0, %c0_0] : memref<256x1152xbf16, #tpu.memory_space<vmem>>, vector<256x1152xbf16>
    %c0_1 = arith.constant 0 : index
    %c0_2 = arith.constant 0 : index
    %1 = vector.load %arg2[%c0_1, %c0_2] : memref<1152x8xbf16, #tpu.memory_space<vmem>>, vector<1152x8xbf16>
    %cst = arith.constant dense<0.000000e+00> : vector<256x8xf32>
    %2 = tpu.matmul %0, %1, %cst {dimension_numbers = #tpu.dot_dimension_numbers<[1], [0], [0], [1], [0, 0, 1, 1], [], []>} : vector<256x1152xbf16>, vector<1152x8xbf16>, vector<256x8xf32> -> vector<256x8xf32>
    %c0_3 = arith.constant 0 : index
    %c0_4 = arith.constant 0 : index
    %3 = vector.load %arg3[%c0_3, %c0_4] : memref<256x1xf32, #tpu.memory_space<vmem>>, vector<256x1xf32>
    %4 = vector.broadcast %3 : vector<256x1xf32> to vector<256x8xf32>
    %5 = arith.addf %2, %4 : vector<256x8xf32>
    %cst_5 = arith.constant 0.000000e+00 : f32
    %6 = vector.broadcast %cst_5 : f32 to vector<256x8xf32>
    %7 = arith.cmpf ogt, %5, %6 : vector<256x8xf32>
    %cst_6 = arith.constant 2.000000e-01 : f32
    %8 = vector.broadcast %cst_6 : f32 to vector<256x8xf32>
    %9 = arith.mulf %8, %5 : vector<256x8xf32>
    %10 = arith.select %7, %5, %9 : vector<256x8xi1>, vector<256x8xf32>
    %c0_7 = arith.constant 0 : index
    %c0_8 = arith.constant 0 : index
    %11 = vector.load %arg4[%c0_7, %c0_8] : memref<256x8xf32, #tpu.memory_space<vmem>>, vector<256x8xf32>
    tpu.vector_store %arg4[%c0_7, %c0_8], %10 {strides = array<i32>} : memref<256x8xf32, #tpu.memory_space<vmem>>, vector<256x8xf32>,
    return
  }
  func.func @transform_0(%arg0: i32) -> (i32, i32) {
    %c0_i32 = arith.constant 0 : i32
    %c0_i32_0 = arith.constant 0 : i32
    %c0_i32_1 = arith.constant 0 : i32
    return %c0_i32, %c0_i32_0 : i32, i32
  }
  func.func @transform_1(%arg0: i32) -> (i32, i32) {
    %c0_i32 = arith.constant 0 : i32
    %c0_i32_0 = arith.constant 0 : i32
    return %c0_i32, %arg0 : i32, i32
  }
  func.func @transform_2(%arg0: i32) -> (i32, i32) {
    %c0_i32 = arith.constant 0 : i32
    %c0_i32_0 = arith.constant 0 : i32
    %c0_i32_1 = arith.constant 0 : i32
    return %c0_i32, %c0_i32_0 : i32, i32
  }
  func.func @transform_3(%arg0: i32) -> (i32, i32) {
    %c0_i32 = arith.constant 0 : i32
    %c0_i32_0 = arith.constant 0 : i32
    return %c0_i32, %arg0 : i32, i32
  }
}

module attributes {stable_mosaic.version = 11 : i64} {
  func.func @_latent_kernel(%arg0: i32, %arg1: memref<2x1024xf32, #tpu.memory_space<vmem>>, %arg2: memref<1024x20xf32, #tpu.memory_space<vmem>>, %arg3: memref<1024x20xf32, #tpu.memory_space<vmem>>, %arg4: memref<1x20xf32, #tpu.memory_space<vmem>>, %arg5: memref<1x20xf32, #tpu.memory_space<vmem>>, %arg6: memref<2x20xf32, #tpu.memory_space<vmem>>, %arg7: memref<20x1024xf32, #tpu.memory_space<vmem>>, %arg8: memref<1x1024xf32, #tpu.memory_space<vmem>>, %arg9: memref<2x20xf32, #tpu.memory_space<vmem>>, %arg10: memref<2x20xf32, #tpu.memory_space<vmem>>, %arg11: memref<2x1024xf32, #tpu.memory_space<vmem>>) attributes {dimension_semantics = [#tpu.dimension_semantics<arbitrary>], iteration_bounds = array<i64: 1>, scalar_prefetch = 0 : i64, scratch_operands = 0 : i64, tpu.core_type = #tpu.core_type<tc>, window_params = [{pipeline_mode = #tpu.pipeline_mode<synchronous>, transform_indices = @transform_0, window_bounds = array<i64: 2, 1024>}, {pipeline_mode = #tpu.pipeline_mode<synchronous>, transform_indices = @transform_1, window_bounds = array<i64: 1024, 20>}, {pipeline_mode = #tpu.pipeline_mode<synchronous>, transform_indices = @transform_2, window_bounds = array<i64: 1024, 20>}, {pipeline_mode = #tpu.pipeline_mode<synchronous>, transform_indices = @transform_3, window_bounds = array<i64: 1, 20>}, {pipeline_mode = #tpu.pipeline_mode<synchronous>, transform_indices = @transform_4, window_bounds = array<i64: 1, 20>}, {pipeline_mode = #tpu.pipeline_mode<synchronous>, transform_indices = @transform_5, window_bounds = array<i64: 2, 20>}, {pipeline_mode = #tpu.pipeline_mode<synchronous>, transform_indices = @transform_6, window_bounds = array<i64: 20, 1024>}, {pipeline_mode = #tpu.pipeline_mode<synchronous>, transform_indices = @transform_7, window_bounds = array<i64: 1, 1024>}, {pipeline_mode = #tpu.pipeline_mode<synchronous>, transform_indices = @transform_8, window_bounds = array<i64: 2, 20>}, {pipeline_mode = #tpu.pipeline_mode<synchronous>, transform_indices = @transform_9, window_bounds = array<i64: 2, 20>}, {pipeline_mode = #tpu.pipeline_mode<synchronous>, transform_indices = @transform_10, window_bounds = array<i64: 2, 1024>}]} {
    %c0 = arith.constant 0 : index
    %c0_0 = arith.constant 0 : index
    %0 = vector.load %arg1[%c0, %c0_0] : memref<2x1024xf32, #tpu.memory_space<vmem>>, vector<2x1024xf32>
    %c0_1 = arith.constant 0 : index
    %c0_2 = arith.constant 0 : index
    %1 = vector.load %arg2[%c0_1, %c0_2] : memref<1024x20xf32, #tpu.memory_space<vmem>>, vector<1024x20xf32>
    %cst = arith.constant dense<0.000000e+00> : vector<2x20xf32>
    %2 = tpu.matmul %0, %1, %cst {dimension_numbers = #tpu.dot_dimension_numbers<[1], [0], [0], [1], [0, 0, 1, 1], [], []>} : vector<2x1024xf32>, vector<1024x20xf32>, vector<2x20xf32> -> vector<2x20xf32>
    %c0_3 = arith.constant 0 : index
    %c0_4 = arith.constant 0 : index
    %3 = vector.load %arg4[%c0_3, %c0_4] : memref<1x20xf32, #tpu.memory_space<vmem>>, vector<1x20xf32>
    %4 = vector.broadcast %3 : vector<1x20xf32> to vector<2x20xf32>
    %5 = arith.addf %2, %4 : vector<2x20xf32>
    %c0_5 = arith.constant 0 : index
    %c0_6 = arith.constant 0 : index
    %6 = vector.load %arg3[%c0_5, %c0_6] : memref<1024x20xf32, #tpu.memory_space<vmem>>, vector<1024x20xf32>
    %cst_7 = arith.constant dense<0.000000e+00> : vector<2x20xf32>
    %7 = tpu.matmul %0, %6, %cst_7 {dimension_numbers = #tpu.dot_dimension_numbers<[1], [0], [0], [1], [0, 0, 1, 1], [], []>} : vector<2x1024xf32>, vector<1024x20xf32>, vector<2x20xf32> -> vector<2x20xf32>
    %c0_8 = arith.constant 0 : index
    %c0_9 = arith.constant 0 : index
    %8 = vector.load %arg5[%c0_8, %c0_9] : memref<1x20xf32, #tpu.memory_space<vmem>>, vector<1x20xf32>
    %9 = vector.broadcast %8 : vector<1x20xf32> to vector<2x20xf32>
    %10 = arith.addf %7, %9 : vector<2x20xf32>
    %cst_10 = arith.constant 5.000000e-01 : f32
    %11 = vector.broadcast %cst_10 : f32 to vector<2x20xf32>
    %12 = arith.mulf %11, %10 : vector<2x20xf32>
    %13 = math.exp %12 : vector<2x20xf32>
    %c0_11 = arith.constant 0 : index
    %c0_12 = arith.constant 0 : index
    %14 = vector.load %arg6[%c0_11, %c0_12] : memref<2x20xf32, #tpu.memory_space<vmem>>, vector<2x20xf32>
    %15 = arith.mulf %13, %14 : vector<2x20xf32>
    %16 = arith.addf %5, %15 : vector<2x20xf32>
    %c0_13 = arith.constant 0 : index
    %c0_14 = arith.constant 0 : index
    %17 = vector.load %arg7[%c0_13, %c0_14] : memref<20x1024xf32, #tpu.memory_space<vmem>>, vector<20x1024xf32>
    %cst_15 = arith.constant dense<0.000000e+00> : vector<2x1024xf32>
    %18 = tpu.matmul %16, %17, %cst_15 {dimension_numbers = #tpu.dot_dimension_numbers<[1], [0], [0], [1], [0, 0, 1, 1], [], []>} : vector<2x20xf32>, vector<20x1024xf32>, vector<2x1024xf32> -> vector<2x1024xf32>
    %c0_16 = arith.constant 0 : index
    %c0_17 = arith.constant 0 : index
    %19 = vector.load %arg8[%c0_16, %c0_17] : memref<1x1024xf32, #tpu.memory_space<vmem>>, vector<1x1024xf32>
    %20 = vector.broadcast %19 : vector<1x1024xf32> to vector<2x1024xf32>
    %21 = arith.addf %18, %20 : vector<2x1024xf32>
    %c0_18 = arith.constant 0 : index
    %c0_19 = arith.constant 0 : index
    %22 = vector.load %arg9[%c0_18, %c0_19] : memref<2x20xf32, #tpu.memory_space<vmem>>, vector<2x20xf32>
    tpu.vector_store %arg9[%c0_18, %c0_19], %5 {strides = array<i32>} : memref<2x20xf32, #tpu.memory_space<vmem>>, vector<2x20xf32>,
    %c0_20 = arith.constant 0 : index
    %c0_21 = arith.constant 0 : index
    %23 = vector.load %arg10[%c0_20, %c0_21] : memref<2x20xf32, #tpu.memory_space<vmem>>, vector<2x20xf32>
    tpu.vector_store %arg10[%c0_20, %c0_21], %10 {strides = array<i32>} : memref<2x20xf32, #tpu.memory_space<vmem>>, vector<2x20xf32>,
    %c0_22 = arith.constant 0 : index
    %c0_23 = arith.constant 0 : index
    %24 = vector.load %arg11[%c0_22, %c0_23] : memref<2x1024xf32, #tpu.memory_space<vmem>>, vector<2x1024xf32>
    tpu.vector_store %arg11[%c0_22, %c0_23], %21 {strides = array<i32>} : memref<2x1024xf32, #tpu.memory_space<vmem>>, vector<2x1024xf32>,
    return
  }
  func.func @transform_0(%arg0: i32) -> (i32, i32) {
    %c0_i32 = arith.constant 0 : i32
    %c0_i32_0 = arith.constant 0 : i32
    %c0_i32_1 = arith.constant 0 : i32
    return %c0_i32, %c0_i32_0 : i32, i32
  }
  func.func @transform_1(%arg0: i32) -> (i32, i32) {
    %c0_i32 = arith.constant 0 : i32
    %c0_i32_0 = arith.constant 0 : i32
    %c0_i32_1 = arith.constant 0 : i32
    return %c0_i32, %c0_i32_0 : i32, i32
  }
  func.func @transform_2(%arg0: i32) -> (i32, i32) {
    %c0_i32 = arith.constant 0 : i32
    %c0_i32_0 = arith.constant 0 : i32
    %c0_i32_1 = arith.constant 0 : i32
    return %c0_i32, %c0_i32_0 : i32, i32
  }
  func.func @transform_3(%arg0: i32) -> (i32, i32) {
    %c0_i32 = arith.constant 0 : i32
    %c0_i32_0 = arith.constant 0 : i32
    %c0_i32_1 = arith.constant 0 : i32
    return %c0_i32, %c0_i32_0 : i32, i32
  }
  func.func @transform_4(%arg0: i32) -> (i32, i32) {
    %c0_i32 = arith.constant 0 : i32
    %c0_i32_0 = arith.constant 0 : i32
    %c0_i32_1 = arith.constant 0 : i32
    return %c0_i32, %c0_i32_0 : i32, i32
  }
  func.func @transform_5(%arg0: i32) -> (i32, i32) {
    %c0_i32 = arith.constant 0 : i32
    %c0_i32_0 = arith.constant 0 : i32
    %c0_i32_1 = arith.constant 0 : i32
    return %c0_i32, %c0_i32_0 : i32, i32
  }
  func.func @transform_6(%arg0: i32) -> (i32, i32) {
    %c0_i32 = arith.constant 0 : i32
    %c0_i32_0 = arith.constant 0 : i32
    %c0_i32_1 = arith.constant 0 : i32
    return %c0_i32, %c0_i32_0 : i32, i32
  }
  func.func @transform_7(%arg0: i32) -> (i32, i32) {
    %c0_i32 = arith.constant 0 : i32
    %c0_i32_0 = arith.constant 0 : i32
    %c0_i32_1 = arith.constant 0 : i32
    return %c0_i32, %c0_i32_0 : i32, i32
  }
  func.func @transform_8(%arg0: i32) -> (i32, i32) {
    %c0_i32 = arith.constant 0 : i32
    %c0_i32_0 = arith.constant 0 : i32
    %c0_i32_1 = arith.constant 0 : i32
    return %c0_i32, %c0_i32_0 : i32, i32
  }
  func.func @transform_9(%arg0: i32) -> (i32, i32) {
    %c0_i32 = arith.constant 0 : i32
    %c0_i32_0 = arith.constant 0 : i32
    %c0_i32_1 = arith.constant 0 : i32
    return %c0_i32, %c0_i32_0 : i32, i32
  }
  func.func @transform_10(%arg0: i32) -> (i32, i32) {
    %c0_i32 = arith.constant 0 : i32
    %c0_i32_0 = arith.constant 0 : i32
    %c0_i32_1 = arith.constant 0 : i32
    return %c0_i32, %c0_i32_0 : i32, i32
  }
}

module attributes {stable_mosaic.version = 11 : i64} {
  func.func @_mm_bias_act_kernel(%arg0: i32, %arg1: memref<128x2304xbf16, #tpu.memory_space<vmem>>, %arg2: memref<2304x32xbf16, #tpu.memory_space<vmem>>, %arg3: memref<128x1xf32, #tpu.memory_space<vmem>>, %arg4: memref<128x32xf32, #tpu.memory_space<vmem>>) attributes {dimension_semantics = [#tpu.dimension_semantics<parallel>], iteration_bounds = array<i64: 1>, scalar_prefetch = 0 : i64, scratch_operands = 0 : i64, tpu.core_type = #tpu.core_type<tc>, window_params = [{pipeline_mode = #tpu.pipeline_mode<synchronous>, transform_indices = @transform_0, window_bounds = array<i64: 128, 2304>}, {transform_indices = @transform_1, window_bounds = array<i64: 2304, 32>}, {pipeline_mode = #tpu.pipeline_mode<synchronous>, transform_indices = @transform_2, window_bounds = array<i64: 128, 1>}, {transform_indices = @transform_3, window_bounds = array<i64: 128, 32>}]} {
    %c0 = arith.constant 0 : index
    %c0_0 = arith.constant 0 : index
    %0 = vector.load %arg1[%c0, %c0_0] : memref<128x2304xbf16, #tpu.memory_space<vmem>>, vector<128x2304xbf16>
    %c0_1 = arith.constant 0 : index
    %c0_2 = arith.constant 0 : index
    %1 = vector.load %arg2[%c0_1, %c0_2] : memref<2304x32xbf16, #tpu.memory_space<vmem>>, vector<2304x32xbf16>
    %cst = arith.constant dense<0.000000e+00> : vector<128x32xf32>
    %2 = tpu.matmul %0, %1, %cst {dimension_numbers = #tpu.dot_dimension_numbers<[1], [0], [0], [1], [0, 0, 1, 1], [], []>} : vector<128x2304xbf16>, vector<2304x32xbf16>, vector<128x32xf32> -> vector<128x32xf32>
    %c0_3 = arith.constant 0 : index
    %c0_4 = arith.constant 0 : index
    %3 = vector.load %arg3[%c0_3, %c0_4] : memref<128x1xf32, #tpu.memory_space<vmem>>, vector<128x1xf32>
    %4 = vector.broadcast %3 : vector<128x1xf32> to vector<128x32xf32>
    %5 = arith.addf %2, %4 : vector<128x32xf32>
    %cst_5 = arith.constant 0.000000e+00 : f32
    %6 = vector.broadcast %cst_5 : f32 to vector<128x32xf32>
    %7 = arith.cmpf ogt, %5, %6 : vector<128x32xf32>
    %cst_6 = arith.constant 2.000000e-01 : f32
    %8 = vector.broadcast %cst_6 : f32 to vector<128x32xf32>
    %9 = arith.mulf %8, %5 : vector<128x32xf32>
    %10 = arith.select %7, %5, %9 : vector<128x32xi1>, vector<128x32xf32>
    %c0_7 = arith.constant 0 : index
    %c0_8 = arith.constant 0 : index
    %11 = vector.load %arg4[%c0_7, %c0_8] : memref<128x32xf32, #tpu.memory_space<vmem>>, vector<128x32xf32>
    tpu.vector_store %arg4[%c0_7, %c0_8], %10 {strides = array<i32>} : memref<128x32xf32, #tpu.memory_space<vmem>>, vector<128x32xf32>,
    return
  }
  func.func @transform_0(%arg0: i32) -> (i32, i32) {
    %c0_i32 = arith.constant 0 : i32
    %c0_i32_0 = arith.constant 0 : i32
    %c0_i32_1 = arith.constant 0 : i32
    return %c0_i32, %c0_i32_0 : i32, i32
  }
  func.func @transform_1(%arg0: i32) -> (i32, i32) {
    %c0_i32 = arith.constant 0 : i32
    %c0_i32_0 = arith.constant 0 : i32
    return %c0_i32, %arg0 : i32, i32
  }
  func.func @transform_2(%arg0: i32) -> (i32, i32) {
    %c0_i32 = arith.constant 0 : i32
    %c0_i32_0 = arith.constant 0 : i32
    %c0_i32_1 = arith.constant 0 : i32
    return %c0_i32, %c0_i32_0 : i32, i32
  }
  func.func @transform_3(%arg0: i32) -> (i32, i32) {
    %c0_i32 = arith.constant 0 : i32
    %c0_i32_0 = arith.constant 0 : i32
    return %c0_i32, %arg0 : i32, i32
  }
}

module attributes {stable_mosaic.version = 11 : i64} {
  func.func @_mm_bias_act_kernel(%arg0: i32, %arg1: memref<64x1152xbf16, #tpu.memory_space<vmem>>, %arg2: memref<1152x128xbf16, #tpu.memory_space<vmem>>, %arg3: memref<64x1xf32, #tpu.memory_space<vmem>>, %arg4: memref<64x128xf32, #tpu.memory_space<vmem>>) attributes {dimension_semantics = [#tpu.dimension_semantics<parallel>], iteration_bounds = array<i64: 1>, scalar_prefetch = 0 : i64, scratch_operands = 0 : i64, tpu.core_type = #tpu.core_type<tc>, window_params = [{pipeline_mode = #tpu.pipeline_mode<synchronous>, transform_indices = @transform_0, window_bounds = array<i64: 64, 1152>}, {transform_indices = @transform_1, window_bounds = array<i64: 1152, 128>}, {pipeline_mode = #tpu.pipeline_mode<synchronous>, transform_indices = @transform_2, window_bounds = array<i64: 64, 1>}, {transform_indices = @transform_3, window_bounds = array<i64: 64, 128>}]} {
    %c0 = arith.constant 0 : index
    %c0_0 = arith.constant 0 : index
    %0 = vector.load %arg1[%c0, %c0_0] : memref<64x1152xbf16, #tpu.memory_space<vmem>>, vector<64x1152xbf16>
    %c0_1 = arith.constant 0 : index
    %c0_2 = arith.constant 0 : index
    %1 = vector.load %arg2[%c0_1, %c0_2] : memref<1152x128xbf16, #tpu.memory_space<vmem>>, vector<1152x128xbf16>
    %cst = arith.constant dense<0.000000e+00> : vector<64x128xf32>
    %2 = tpu.matmul %0, %1, %cst {dimension_numbers = #tpu.dot_dimension_numbers<[1], [0], [0], [1], [0, 0, 1, 1], [], []>} : vector<64x1152xbf16>, vector<1152x128xbf16>, vector<64x128xf32> -> vector<64x128xf32>
    %c0_3 = arith.constant 0 : index
    %c0_4 = arith.constant 0 : index
    %3 = vector.load %arg3[%c0_3, %c0_4] : memref<64x1xf32, #tpu.memory_space<vmem>>, vector<64x1xf32>
    %4 = vector.broadcast %3 : vector<64x1xf32> to vector<64x128xf32>
    %5 = arith.addf %2, %4 : vector<64x128xf32>
    %cst_5 = arith.constant 0.000000e+00 : f32
    %6 = vector.broadcast %cst_5 : f32 to vector<64x128xf32>
    %7 = arith.cmpf ogt, %5, %6 : vector<64x128xf32>
    %cst_6 = arith.constant 2.000000e-01 : f32
    %8 = vector.broadcast %cst_6 : f32 to vector<64x128xf32>
    %9 = arith.mulf %8, %5 : vector<64x128xf32>
    %10 = arith.select %7, %5, %9 : vector<64x128xi1>, vector<64x128xf32>
    %c0_7 = arith.constant 0 : index
    %c0_8 = arith.constant 0 : index
    %11 = vector.load %arg4[%c0_7, %c0_8] : memref<64x128xf32, #tpu.memory_space<vmem>>, vector<64x128xf32>
    tpu.vector_store %arg4[%c0_7, %c0_8], %10 {strides = array<i32>} : memref<64x128xf32, #tpu.memory_space<vmem>>, vector<64x128xf32>,
    return
  }
  func.func @transform_0(%arg0: i32) -> (i32, i32) {
    %c0_i32 = arith.constant 0 : i32
    %c0_i32_0 = arith.constant 0 : i32
    %c0_i32_1 = arith.constant 0 : i32
    return %c0_i32, %c0_i32_0 : i32, i32
  }
  func.func @transform_1(%arg0: i32) -> (i32, i32) {
    %c0_i32 = arith.constant 0 : i32
    %c0_i32_0 = arith.constant 0 : i32
    return %c0_i32, %arg0 : i32, i32
  }
  func.func @transform_2(%arg0: i32) -> (i32, i32) {
    %c0_i32 = arith.constant 0 : i32
    %c0_i32_0 = arith.constant 0 : i32
    %c0_i32_1 = arith.constant 0 : i32
    return %c0_i32, %c0_i32_0 : i32, i32
  }
  func.func @transform_3(%arg0: i32) -> (i32, i32) {
    %c0_i32 = arith.constant 0 : i32
    %c0_i32_0 = arith.constant 0 : i32
    return %c0_i32, %arg0 : i32, i32
  }
}

module attributes {stable_mosaic.version = 11 : i64} {
  func.func @_mm_bias_act_kernel(%arg0: i32, %arg1: memref<32x576xbf16, #tpu.memory_space<vmem>>, %arg2: memref<576x512xbf16, #tpu.memory_space<vmem>>, %arg3: memref<32x1xf32, #tpu.memory_space<vmem>>, %arg4: memref<32x512xf32, #tpu.memory_space<vmem>>) attributes {dimension_semantics = [#tpu.dimension_semantics<parallel>], iteration_bounds = array<i64: 1>, scalar_prefetch = 0 : i64, scratch_operands = 0 : i64, tpu.core_type = #tpu.core_type<tc>, window_params = [{pipeline_mode = #tpu.pipeline_mode<synchronous>, transform_indices = @transform_0, window_bounds = array<i64: 32, 576>}, {transform_indices = @transform_1, window_bounds = array<i64: 576, 512>}, {pipeline_mode = #tpu.pipeline_mode<synchronous>, transform_indices = @transform_2, window_bounds = array<i64: 32, 1>}, {transform_indices = @transform_3, window_bounds = array<i64: 32, 512>}]} {
    %c0 = arith.constant 0 : index
    %c0_0 = arith.constant 0 : index
    %0 = vector.load %arg1[%c0, %c0_0] : memref<32x576xbf16, #tpu.memory_space<vmem>>, vector<32x576xbf16>
    %c0_1 = arith.constant 0 : index
    %c0_2 = arith.constant 0 : index
    %1 = vector.load %arg2[%c0_1, %c0_2] : memref<576x512xbf16, #tpu.memory_space<vmem>>, vector<576x512xbf16>
    %cst = arith.constant dense<0.000000e+00> : vector<32x512xf32>
    %2 = tpu.matmul %0, %1, %cst {dimension_numbers = #tpu.dot_dimension_numbers<[1], [0], [0], [1], [0, 0, 1, 1], [], []>} : vector<32x576xbf16>, vector<576x512xbf16>, vector<32x512xf32> -> vector<32x512xf32>
    %c0_3 = arith.constant 0 : index
    %c0_4 = arith.constant 0 : index
    %3 = vector.load %arg3[%c0_3, %c0_4] : memref<32x1xf32, #tpu.memory_space<vmem>>, vector<32x1xf32>
    %4 = vector.broadcast %3 : vector<32x1xf32> to vector<32x512xf32>
    %5 = arith.addf %2, %4 : vector<32x512xf32>
    %cst_5 = arith.constant 0.000000e+00 : f32
    %6 = vector.broadcast %cst_5 : f32 to vector<32x512xf32>
    %7 = arith.cmpf ogt, %5, %6 : vector<32x512xf32>
    %cst_6 = arith.constant 2.000000e-01 : f32
    %8 = vector.broadcast %cst_6 : f32 to vector<32x512xf32>
    %9 = arith.mulf %8, %5 : vector<32x512xf32>
    %10 = arith.select %7, %5, %9 : vector<32x512xi1>, vector<32x512xf32>
    %c0_7 = arith.constant 0 : index
    %c0_8 = arith.constant 0 : index
    %11 = vector.load %arg4[%c0_7, %c0_8] : memref<32x512xf32, #tpu.memory_space<vmem>>, vector<32x512xf32>
    tpu.vector_store %arg4[%c0_7, %c0_8], %10 {strides = array<i32>} : memref<32x512xf32, #tpu.memory_space<vmem>>, vector<32x512xf32>,
    return
  }
  func.func @transform_0(%arg0: i32) -> (i32, i32) {
    %c0_i32 = arith.constant 0 : i32
    %c0_i32_0 = arith.constant 0 : i32
    %c0_i32_1 = arith.constant 0 : i32
    return %c0_i32, %c0_i32_0 : i32, i32
  }
  func.func @transform_1(%arg0: i32) -> (i32, i32) {
    %c0_i32 = arith.constant 0 : i32
    %c0_i32_0 = arith.constant 0 : i32
    return %c0_i32, %arg0 : i32, i32
  }
  func.func @transform_2(%arg0: i32) -> (i32, i32) {
    %c0_i32 = arith.constant 0 : i32
    %c0_i32_0 = arith.constant 0 : i32
    %c0_i32_1 = arith.constant 0 : i32
    return %c0_i32, %c0_i32_0 : i32, i32
  }
  func.func @transform_3(%arg0: i32) -> (i32, i32) {
    %c0_i32 = arith.constant 0 : i32
    %c0_i32_0 = arith.constant 0 : i32
    return %c0_i32, %arg0 : i32, i32
  }
}

module attributes {stable_mosaic.version = 11 : i64} {
  func.func @_mm_bias_act_kernel(%arg0: i32, %arg1: memref<3x288xbf16, #tpu.memory_space<vmem>>, %arg2: memref<288x2048xbf16, #tpu.memory_space<vmem>>, %arg3: memref<3x1xf32, #tpu.memory_space<vmem>>, %arg4: memref<3x2048xf32, #tpu.memory_space<vmem>>) attributes {dimension_semantics = [#tpu.dimension_semantics<parallel>], iteration_bounds = array<i64: 1>, scalar_prefetch = 0 : i64, scratch_operands = 0 : i64, tpu.core_type = #tpu.core_type<tc>, window_params = [{pipeline_mode = #tpu.pipeline_mode<synchronous>, transform_indices = @transform_0, window_bounds = array<i64: 3, 288>}, {transform_indices = @transform_1, window_bounds = array<i64: 288, 2048>}, {pipeline_mode = #tpu.pipeline_mode<synchronous>, transform_indices = @transform_2, window_bounds = array<i64: 3, 1>}, {transform_indices = @transform_3, window_bounds = array<i64: 3, 2048>}]} {
    %c0 = arith.constant 0 : index
    %c0_0 = arith.constant 0 : index
    %0 = vector.load %arg1[%c0, %c0_0] : memref<3x288xbf16, #tpu.memory_space<vmem>>, vector<3x288xbf16>
    %c0_1 = arith.constant 0 : index
    %c0_2 = arith.constant 0 : index
    %1 = vector.load %arg2[%c0_1, %c0_2] : memref<288x2048xbf16, #tpu.memory_space<vmem>>, vector<288x2048xbf16>
    %cst = arith.constant dense<0.000000e+00> : vector<3x2048xf32>
    %2 = tpu.matmul %0, %1, %cst {dimension_numbers = #tpu.dot_dimension_numbers<[1], [0], [0], [1], [0, 0, 1, 1], [], []>} : vector<3x288xbf16>, vector<288x2048xbf16>, vector<3x2048xf32> -> vector<3x2048xf32>
    %c0_3 = arith.constant 0 : index
    %c0_4 = arith.constant 0 : index
    %3 = vector.load %arg3[%c0_3, %c0_4] : memref<3x1xf32, #tpu.memory_space<vmem>>, vector<3x1xf32>
    %4 = vector.broadcast %3 : vector<3x1xf32> to vector<3x2048xf32>
    %5 = arith.addf %2, %4 : vector<3x2048xf32>
    %6 = arith.negf %5 : vector<3x2048xf32>
    %7 = math.exp %6 : vector<3x2048xf32>
    %cst_5 = arith.constant 1.000000e+00 : f32
    %8 = vector.broadcast %cst_5 : f32 to vector<3x2048xf32>
    %9 = arith.addf %8, %7 : vector<3x2048xf32>
    %10 = arith.divf %8, %9 : vector<3x2048xf32>
    %c0_6 = arith.constant 0 : index
    %c0_7 = arith.constant 0 : index
    %11 = vector.load %arg4[%c0_6, %c0_7] : memref<3x2048xf32, #tpu.memory_space<vmem>>, vector<3x2048xf32>
    tpu.vector_store %arg4[%c0_6, %c0_7], %10 {strides = array<i32>} : memref<3x2048xf32, #tpu.memory_space<vmem>>, vector<3x2048xf32>,
    return
  }
  func.func @transform_0(%arg0: i32) -> (i32, i32) {
    %c0_i32 = arith.constant 0 : i32
    %c0_i32_0 = arith.constant 0 : i32
    %c0_i32_1 = arith.constant 0 : i32
    return %c0_i32, %c0_i32_0 : i32, i32
  }
  func.func @transform_1(%arg0: i32) -> (i32, i32) {
    %c0_i32 = arith.constant 0 : i32
    %c0_i32_0 = arith.constant 0 : i32
    return %c0_i32, %arg0 : i32, i32
  }
  func.func @transform_2(%arg0: i32) -> (i32, i32) {
    %c0_i32 = arith.constant 0 : i32
    %c0_i32_0 = arith.constant 0 : i32
    %c0_i32_1 = arith.constant 0 : i32
    return %c0_i32, %c0_i32_0 : i32, i32
  }
  func.func @transform_3(%arg0: i32) -> (i32, i32) {
    %c0_i32 = arith.constant 0 : i32
    %c0_i32_0 = arith.constant 0 : i32
    return %c0_i32, %arg0 : i32, i32
  }
}

</mosaic_0001>

<llo_original>
// kernel: vae_forward.9
$region0: #{vae_forward.9}
  #allocation0 [shape = 'u32[]', space=smem, size = 0x4, offset = 0x4, fixed_abs, tag = 'smem constant byte address 0x4 - core index']
  #allocation1 [shape = 'u32[144,128]{1,0:T(1,128)}', space=vmem, size = 0x12000, scoped, tag = 'internal scratch']
  %s0 = inlined_call_operand.vmem [shape: bf16[32,27], index: 0, kind: input, shape index: {}]
  %s1 = inlined_call_operand.vmem [shape: bf16[27,512], index: 1, kind: input, shape index: {}]
  %s2 = inlined_call_operand.vmem [shape: f32[32,1], index: 2, kind: input, shape index: {}]
  %s3 = inlined_call_operand.vmem [shape: f32[32,512], index: 3, kind: output, shape index: {}]
  %s4 = sld [smem:[#allocation0]]
  $region22: #{vae_forward.9} parent=0
    _
  %s6 = ssub.s32 1, %s4
  %s7 = scalar_select 0, %s6, %s4
  // Predicated region
  $region2: #{vae_forward.9} parent=0 // pred_check
    _
  $region3: #{vae_forward.9} parent=0 // pred_check_branch
    %9 = sbr.rel (0) target = $region5
  $region4: #{vae_forward.9} parent=0 // pred_region
    _
  $region5: #{vae_forward.9} parent=0 // pred_fallthru
    _
  // Predicated region
  $region6: #{vae_forward.9} parent=0 // pred_check
    _
  $region7: #{vae_forward.9} parent=0 // pred_check_branch
    %11 = sbr.rel (0) target = $region9
  $region8: #{vae_forward.9} parent=0 // pred_region
    _
  $region9: #{vae_forward.9} parent=0 // pred_fallthru
    _
  // Predicated region
  $region10: #{vae_forward.9} parent=0 // pred_check
    _
  $region11: #{vae_forward.9} parent=0 // pred_check_branch
    %13 = sbr.rel (0) target = $region13
  $region12: #{vae_forward.9} parent=0 // pred_region
    _
  $region13: #{vae_forward.9} parent=0 // pred_fallthru
    _
  %v15 = vld [vmem:[%s0] sm:$0xf]
  %v16 = vld [vmem:[%s0 + $0x4] sm:$0xf]
  %v17 = vld [vmem:[%s0 + $0x8] sm:$0xf]
  %v18 = vld [vmem:[%s0 + $0xc] sm:$0xf]
  %v19 = vld [vmem:[%s1] sm:$0xff]
  %v20 = vld [vmem:[%s1 + $0x8] sm:$0xff]
  %v21 = vld [vmem:[%s1 + $0x10] sm:$0xff]
  %v22 = vld [vmem:[%s1 + $0x18] sm:$0xff]
  %v23 = vld [vmem:[%s1 + $0x20] sm:$0xff]
  %v24 = vld [vmem:[%s1 + $0x28] sm:$0xff]
  %v25 = vld [vmem:[%s1 + $0x30] sm:$0x33]
  %v26 = vld [vmem:[%s1 + $0x38] sm:$0x33]
  %v27 = vld [vmem:[%s2] sm:$0xff]
  %v28 = vld [vmem:[%s2 + $0x8] sm:$0xff]
  %v29 = vld [vmem:[%s2 + $0x10] sm:$0xff]
  %v30 = vld [vmem:[%s2 + $0x18] sm:$0xff]
  %32 = vset.pattern.permute.xlu0 0
  %33 = vperm.xlu0 %32, %v27
  %v34 = vpop.permute.xlu0 %33
  %37 = vset.pattern.permute.xlu0 0
  %38 = vperm.xlu0 %37, %v28
  %v39 = vpop.permute.xlu0 %38
  %42 = vset.pattern.permute.xlu0 0
  %43 = vperm.xlu0 %42, %v29
  %v44 = vpop.permute.xlu0 %43
  %47 = vset.pattern.permute.xlu0 0
  %48 = vperm.xlu0 %47, %v30
  %v49 = vpop.permute.xlu0 %48
  %v55 = vunpack.c.l.b16 %v15
  %v56 = vunpack.c.l.b16 %v16
  %v57 = vunpack.c.l.b16 %v17
  %v58 = vunpack.c.l.b16 %v18
  %v59 = vpack.c.b16 %v56, %v55
  %v60 = vpack.c.b16 %v58, %v57
  %v69 = vunpack.c.l.b16 %v19
  %v70 = vunpack.c.h.b16 %v19
  %v71 = vunpack.c.l.b16 %v20
  %v72 = vunpack.c.h.b16 %v20
  %v73 = vunpack.c.l.b16 %v21
  %v74 = vunpack.c.h.b16 %v21
  %v75 = vunpack.c.l.b16 %v22
  %v76 = vunpack.c.h.b16 %v22
  %v77 = vunpack.c.l.b16 %v23
  %v78 = vunpack.c.h.b16 %v23
  %v79 = vunpack.c.l.b16 %v24
  %v80 = vunpack.c.h.b16 %v24
  %v81 = vunpack.c.l.b16 %v25
  %v82 = vunpack.c.h.b16 %v25
  %v83 = vunpack.c.l.b16 %v26
  %v84 = vunpack.c.h.b16 %v26
  %v85 = vpack.c.b16 %v73, %v69
  %v86 = vpack.c.b16 %v74, %v70
  %v87 = vpack.c.b16 %v75, %v71
  %v88 = vpack.c.b16 %v76, %v72
  %v89 = vpack.c.b16 %v81, %v77
  %v90 = vpack.c.b16 %v82, %v78
  %v91 = vpack.c.b16 %v83, %v79
  %v92 = vpack.c.b16 %v84, %v80
  %vm97 = vcmask 220160
  %v99 = vsel %vm97, %v59, 0
  %v102 = vsel %vm97, %v60, 0
  %vm104 = vcmask 1044480
  %vm105 = vcmask 1045504
  %v106 = vsel %vm104, 4294967295, 65535
  %v107 = vsel %vm105, %v106, 0
  %v109 = vand.u32 %v89, %v107
  %v112 = vand.u32 %v90, %v107
  %v115 = vand.u32 %v91, %v107
  %v118 = vand.u32 %v92, %v107
  %120 = vmatprep.subr.bf16.mxu0 %v86
  %121 = vmatpush1.bf16.msra.mxu0 %v85
  %122 = vmatprep.subr.bf16.mxu0 %v112
  %123 = vmatpush1.bf16.msra.mxu0 %v109
  %124 = vmatprep.subr.bf16.mxu0 0
  %125 = vmatpush1.bf16.msra.mxu0 0
  %126 = vmatprep.subr.bf16.mxu0 0
  %127 = vmatpush1.bf16.msra.mxu0 0
  %128 = vmatprep.subr.bf16.mxu0 0
  %129 = vmatpush1.bf16.msra.mxu0 0
  %130 = vmatprep.subr.bf16.mxu0 0
  %131 = vmatpush1.bf16.msra.mxu0 0
  %132 = vmatprep.subr.bf16.mxu0 0
  %133 = vmatpush1.bf16.msra.mxu0 0
  %134 = vmatprep.subr.bf16.mxu0 0
  %135 = vmatpush1.bf16.msra.mxu0 0
  %136 = vmatprep.subr.bf16.mxu0 0
  %137 = vmatpush1.bf16.msra.mxu0 0
  %138 = vmatprep.subr.bf16.mxu0 0
  %139 = vmatpush1.bf16.msra.mxu0 0
  %140 = vmatprep.subr.bf16.mxu0 0
  %141 = vmatpush1.bf16.msra.mxu0 0
  %142 = vmatprep.subr.bf16.mxu0 0
  %143 = vmatpush1.bf16.msra.mxu0 0
  %144 = vmatprep.subr.bf16.mxu0 0
  %145 = vmatpush1.bf16.msra.mxu0 0
  %146 = vmatprep.subr.bf16.mxu0 0
  %147 = vmatpush1.bf16.msra.mxu0 0
  %148 = vmatprep.subr.bf16.mxu0 0
  %149 = vmatpush1.bf16.msra.mxu0 0
  %150 = vmatprep.subr.bf16.mxu0 0
  %151 = vmatpush1.bf16.msra.mxu0 0
  %152 = vmatprep.mubr.bf16.mxu0 0
  %153 = vmatmul.mubr.bf16.gmra.mrb[0].mxu0 %v99
  %v154 = vpop.f32.mrb[0].mxu0
  %v155 = vadd.f32 %v34, %v154
  %v156 = vpop.f32.mrb[0].mxu0
  %v157 = vadd.f32 %v34, %v156
  %v158 = vpop.f32.mrb[0].mxu0
  %v159 = vadd.f32 %v39, %v158
  %v160 = vpop.f32.mrb[0].mxu0
  %v161 = vadd.f32 %v39, %v160
  %162 = vmatprep.mubr.bf16.mxu0 0
  %163 = vmatmul.mubr.bf16.gmra.mrb[0].mxu0 %v102
  %v164 = vpop.f32.mrb[0].mxu0
  %v165 = vadd.f32 %v44, %v164
  %v166 = vpop.f32.mrb[0].mxu0
  %v167 = vadd.f32 %v44, %v166
  %v168 = vpop.f32.mrb[0].mxu0
  %v169 = vadd.f32 %v49, %v168
  %v170 = vpop.f32.mrb[0].mxu0
  %v171 = vadd.f32 %v49, %v170
  %172 = vdwg.mxu0
  %173 = vmatprep.subr.bf16.mxu0 %v88
  %174 = vmatpush1.bf16.msra.mxu0 %v87
  %175 = vmatprep.subr.bf16.mxu0 %v118
  %176 = vmatpush1.bf16.msra.mxu0 %v115
  %177 = vmatprep.subr.bf16.mxu0 0
  %178 = vmatpush1.bf16.msra.mxu0 0
  %179 = vmatprep.subr.bf16.mxu0 0
  %180 = vmatpush1.bf16.msra.mxu0 0
  %181 = vmatprep.subr.bf16.mxu0 0
  %182 = vmatpush1.bf16.msra.mxu0 0
  %183 = vmatprep.subr.bf16.mxu0 0
  %184 = vmatpush1.bf16.msra.mxu0 0
  %185 = vmatprep.subr.bf16.mxu0 0
  %186 = vmatpush1.bf16.msra.mxu0 0
  %187 = vmatprep.subr.bf16.mxu0 0
  %188 = vmatpush1.bf16.msra.mxu0 0
  %189 = vmatprep.subr.bf16.mxu0 0
  %190 = vmatpush1.bf16.msra.mxu0 0
  %191 = vmatprep.subr.bf16.mxu0 0
  %192 = vmatpush1.bf16.msra.mxu0 0
  %193 = vmatprep.subr.bf16.mxu0 0
  %194 = vmatpush1.bf16.msra.mxu0 0
  %195 = vmatprep.subr.bf16.mxu0 0
  %196 = vmatpush1.bf16.msra.mxu0 0
  %197 = vmatprep.subr.bf16.mxu0 0
  %198 = vmatpush1.bf16.msra.mxu0 0
  %199 = vmatprep.subr.bf16.mxu0 0
  %200 = vmatpush1.bf16.msra.mxu0 0
  %201 = vmatprep.subr.bf16.mxu0 0
  %202 = vmatpush1.bf16.msra.mxu0 0
  %203 = vmatprep.subr.bf16.mxu0 0
  %204 = vmatpush1.bf16.msra.mxu0 0
  %205 = vmatprep.mubr.bf16.mxu0 0
  %206 = vmatmul.mubr.bf16.gmra.mrb[0].mxu0 %v99
  %v207 = vpop.f32.mrb[0].mxu0
  %v208 = vadd.f32 %v34, %v207
  %v209 = vpop.f32.mrb[0].mxu0
  %v210 = vadd.f32 %v34, %v209
  %v211 = vpop.f32.mrb[0].mxu0
  %v212 = vadd.f32 %v39, %v211
  %v213 = vpop.f32.mrb[0].mxu0
  %v214 = vadd.f32 %v39, %v213
  %215 = vmatprep.mubr.bf16.mxu0 0
  %216 = vmatmul.mubr.bf16.gmra.mrb[0].mxu0 %v102
  %v217 = vpop.f32.mrb[0].mxu0
  %v218 = vadd.f32 %v44, %v217
  %v219 = vpop.f32.mrb[0].mxu0
  %v220 = vadd.f32 %v44, %v219
  %v221 = vpop.f32.mrb[0].mxu0
  %v222 = vadd.f32 %v49, %v221
  %v223 = vpop.f32.mrb[0].mxu0
  %v224 = vadd.f32 %v49, %v223
  %225 = vdwg.mxu0
  %vm226 = vcmp.gt.f32.partialorder %v155, 0.0
  %vm227 = vcmp.gt.f32.partialorder %v157, 0.0
  %vm228 = vcmp.gt.f32.partialorder %v208, 0.0
  %vm229 = vcmp.gt.f32.partialorder %v210, 0.0
  %vm230 = vcmp.gt.f32.partialorder %v159, 0.0
  %vm231 = vcmp.gt.f32.partialorder %v161, 0.0
  %vm232 = vcmp.gt.f32.partialorder %v212, 0.0
  %vm233 = vcmp.gt.f32.partialorder %v214, 0.0
  %vm234 = vcmp.gt.f32.partialorder %v165, 0.0
  %vm235 = vcmp.gt.f32.partialorder %v167, 0.0
  %vm236 = vcmp.gt.f32.partialorder %v218, 0.0
  %vm237 = vcmp.gt.f32.partialorder %v220, 0.0
  %vm238 = vcmp.gt.f32.partialorder %v169, 0.0
  %vm239 = vcmp.gt.f32.partialorder %v171, 0.0
  %vm240 = vcmp.gt.f32.partialorder %v222, 0.0
  %vm241 = vcmp.gt.f32.partialorder %v224, 0.0
  %v242 = vmul.f32 %v155, 0.2
  %v243 = vmul.f32 %v157, 0.2
  %v244 = vmul.f32 %v208, 0.2
  %v245 = vmul.f32 %v210, 0.2
  %v246 = vmul.f32 %v159, 0.2
  %v247 = vmul.f32 %v161, 0.2
  %v248 = vmul.f32 %v212, 0.2
  %v249 = vmul.f32 %v214, 0.2
  %v250 = vmul.f32 %v165, 0.2
  %v251 = vmul.f32 %v167, 0.2
  %v252 = vmul.f32 %v218, 0.2
  %v253 = vmul.f32 %v220, 0.2
  %v254 = vmul.f32 %v169, 0.2
  %v255 = vmul.f32 %v171, 0.2
  %v256 = vmul.f32 %v222, 0.2
  %v257 = vmul.f32 %v224, 0.2
  %v258 = vsel %vm226, %v155, %v242
  %v259 = vsel %vm227, %v157, %v243
  %v260 = vsel %vm228, %v208, %v244
  %v261 = vsel %vm229, %v210, %v245
  %v262 = vsel %vm230, %v159, %v246
  %v263 = vsel %vm231, %v161, %v247
  %v264 = vsel %vm232, %v212, %v248
  %v265 = vsel %vm233, %v214, %v249
  %v266 = vsel %vm234, %v165, %v250
  %v267 = vsel %vm235, %v167, %v251
  %v268 = vsel %vm236, %v218, %v252
  %v269 = vsel %vm237, %v220, %v253
  %v270 = vsel %vm238, %v169, %v254
  %v271 = vsel %vm239, %v171, %v255
  %v272 = vsel %vm240, %v222, %v256
  %v273 = vsel %vm241, %v224, %v257
  %274 = vst [vmem:[%s3] sm:$0xff] %v258
  %275 = vst [vmem:[%s3 + $0x8] sm:$0xff] %v259
  %276 = vst [vmem:[%s3 + $0x10] sm:$0xff] %v260
  %277 = vst [vmem:[%s3 + $0x18] sm:$0xff] %v261
  %278 = vst [vmem:[%s3 + $0x20] sm:$0xff] %v262
  %279 = vst [vmem:[%s3 + $0x28] sm:$0xff] %v263
  %280 = vst [vmem:[%s3 + $0x30] sm:$0xff] %v264
  %281 = vst [vmem:[%s3 + $0x38] sm:$0xff] %v265
  %282 = vst [vmem:[%s3 + $0x40] sm:$0xff] %v266
  %283 = vst [vmem:[%s3 + $0x48] sm:$0xff] %v267
  %284 = vst [vmem:[%s3 + $0x50] sm:$0xff] %v268
  %285 = vst [vmem:[%s3 + $0x58] sm:$0xff] %v269
  %286 = vst [vmem:[%s3 + $0x60] sm:$0xff] %v270
  %287 = vst [vmem:[%s3 + $0x68] sm:$0xff] %v271
  %288 = vst [vmem:[%s3 + $0x70] sm:$0xff] %v272
  %289 = vst [vmem:[%s3 + $0x78] sm:$0xff] %v273
  // Predicated region
  $region14: #{vae_forward.9} parent=0 // pred_check
    _
  $region15: #{vae_forward.9} parent=0 // pred_check_branch
    %291 = sbr.rel (0) target = $region17
  $region16: #{vae_forward.9} parent=0 // pred_region
    _
  $region17: #{vae_forward.9} parent=0 // pred_fallthru
    _
  // Predicated region
  $region18: #{vae_forward.9} parent=0 // pred_check
    _
  $region19: #{vae_forward.9} parent=0 // pred_check_branch
    %293 = sbr.rel (0) target = $region21
  $region20: #{vae_forward.9} parent=0 // pred_region
    _
  $region21: #{vae_forward.9} parent=0 // pred_fallthru
    _

// kernel: vae_forward.10
$region0: #{vae_forward.10}
  #allocation0 [shape = 'u32[]', space=smem, size = 0x4, offset = 0x4, fixed_abs, tag = 'smem constant byte address 0x4 - core index']
  #allocation1 [shape = 'u32[144,128]{1,0:T(1,128)}', space=vmem, size = 0x12000, scoped, tag = 'internal scratch']
  %s0 = inlined_call_operand.vmem [shape: bf16[64,288], index: 0, kind: input, shape index: {}]
  %s1 = inlined_call_operand.vmem [shape: bf16[288,128], index: 1, kind: input, shape index: {}]
  %s2 = inlined_call_operand.vmem [shape: f32[64,1], index: 2, kind: input, shape index: {}]
  %s3 = inlined_call_operand.vmem [shape: f32[64,128], index: 3, kind: output, shape index: {}]
  %s4 = sld [smem:[#allocation0]]
  $region22: #{vae_forward.10} parent=0
    _
  %s6 = ssub.s32 1, %s4
  %s7 = scalar_select 0, %s6, %s4
  // Predicated region
  $region2: #{vae_forward.10} parent=0 // pred_check
    _
  $region3: #{vae_forward.10} parent=0 // pred_check_branch
    %9 = sbr.rel (0) target = $region5
  $region4: #{vae_forward.10} parent=0 // pred_region
    _
  $region5: #{vae_forward.10} parent=0 // pred_fallthru
    _
  // Predicated region
  $region6: #{vae_forward.10} parent=0 // pred_check
    _
  $region7: #{vae_forward.10} parent=0 // pred_check_branch
    %11 = sbr.rel (0) target = $region9
  $region8: #{vae_forward.10} parent=0 // pred_region
    _
  $region9: #{vae_forward.10} parent=0 // pred_fallthru
    _
  // Predicated region
  $region10: #{vae_forward.10} parent=0 // pred_check
    _
  $region11: #{vae_forward.10} parent=0 // pred_check_branch
    %13 = sbr.rel (0) target = $region13
  $region12: #{vae_forward.10} parent=0 // pred_region
    _
  $region13: #{vae_forward.10} parent=0 // pred_fallthru
    _
  %v15 = vld [vmem:[%s0] sm:$0xff]
  %v16 = vld [vmem:[%s0 + $0x8] sm:$0xf]
  %v17 = vld [vmem:[%s0 + $0xc] sm:$0xff]
  %v18 = vld [vmem:[%s0 + $0x14] sm:$0xf]
  %v19 = vld [vmem:[%s0 + $0x18] sm:$0xff]
  %v20 = vld [vmem:[%s0 + $0x20] sm:$0xf]
  %v21 = vld [vmem:[%s0 + $0x24] sm:$0xff]
  %v22 = vld [vmem:[%s0 + $0x2c] sm:$0xf]
  %v23 = vld [vmem:[%s0 + $0x30] sm:$0xff]
  %v24 = vld [vmem:[%s0 + $0x38] sm:$0xf]
  %v25 = vld [vmem:[%s0 + $0x3c] sm:$0xff]
  %v26 = vld [vmem:[%s0 + $0x44] sm:$0xf]
  %v27 = vld [vmem:[%s0 + $0x48] sm:$0xff]
  %v28 = vld [vmem:[%s0 + $0x50] sm:$0xf]
  %v29 = vld [vmem:[%s0 + $0x54] sm:$0xff]
  %v30 = vld [vmem:[%s0 + $0x5c] sm:$0xf]
  %v31 = vld [vmem:[%s1] sm:$0xf]
  %v32 = vld [vmem:[%s1 + $0x4] sm:$0xf]
  %v33 = vld [vmem:[%s1 + $0x8] sm:$0xf]
  %v34 = vld [vmem:[%s1 + $0xc] sm:$0xf]
  %v35 = vld [vmem:[%s1 + $0x10] sm:$0xf]
  %v36 = vld [vmem:[%s1 + $0x14] sm:$0xf]
  %v37 = vld [vmem:[%s1 + $0x18] sm:$0xf]
  %v38 = vld [vmem:[%s1 + $0x1c] sm:$0xf]
  %v39 = vld [vmem:[%s1 + $0x20] sm:$0xf]
  %v40 = vld [vmem:[%s1 + $0x24] sm:$0xf]
  %v41 = vld [vmem:[%s1 + $0x28] sm:$0xf]
  %v42 = vld [vmem:[%s1 + $0x2c] sm:$0xf]
  %v43 = vld [vmem:[%s1 + $0x30] sm:$0xf]
  %v44 = vld [vmem:[%s1 + $0x34] sm:$0xf]
  %v45 = vld [vmem:[%s1 + $0x38] sm:$0xf]
  %v46 = vld [vmem:[%s1 + $0x3c] sm:$0xf]
  %v47 = vld [vmem:[%s1 + $0x40] sm:$0xf]
  %v48 = vld [vmem:[%s1 + $0x44] sm:$0xf]
  %v49 = vld [vmem:[%s1 + $0x48] sm:$0xf]
  %v50 = vld [vmem:[%s1 + $0x4c] sm:$0xf]
  %v51 = vld [vmem:[%s1 + $0x50] sm:$0xf]
  %v52 = vld [vmem:[%s1 + $0x54] sm:$0xf]
  %v53 = vld [vmem:[%s1 + $0x58] sm:$0xf]
  %v54 = vld [vmem:[%s1 + $0x5c] sm:$0xf]
  %v55 = vld [vmem:[%s1 + $0x60] sm:$0xf]
  %v56 = vld [vmem:[%s1 + $0x64] sm:$0xf]
  %v57 = vld [vmem:[%s1 + $0x68] sm:$0xf]
  %v58 = vld [vmem:[%s1 + $0x6c] sm:$0xf]
  %v59 = vld [vmem:[%s1 + $0x70] sm:$0xf]
  %v60 = vld [vmem:[%s1 + $0x74] sm:$0xf]
  %v61 = vld [vmem:[%s1 + $0x78] sm:$0xf]
  %v62 = vld [vmem:[%s1 + $0x7c] sm:$0xf]
  %v63 = vld [vmem:[%s1 + $0x80] sm:$0xf]
  %v64 = vld [vmem:[%s1 + $0x84] sm:$0xf]
  %v65 = vld [vmem:[%s1 + $0x88] sm:$0xf]
  %v66 = vld [vmem:[%s1 + $0x8c] sm:$0xf]
  %v67 = vld [vmem:[%s2] sm:$0xff]
  %v68 = vld [vmem:[%s2 + $0x8] sm:$0xff]
  %v69 = vld [vmem:[%s2 + $0x10] sm:$0xff]
  %v70 = vld [vmem:[%s2 + $0x18] sm:$0xff]
  %v71 = vld [vmem:[%s2 + $0x20] sm:$0xff]
  %v72 = vld [vmem:[%s2 + $0x28] sm:$0xff]
  %v73 = vld [vmem:[%s2 + $0x30] sm:$0xff]
  %v74 = vld [vmem:[%s2 + $0x38] sm:$0xff]
  %76 = vset.pattern.permute.xlu0 0
  %77 = vperm.xlu0 %76, %v67
  %v78 = vpop.permute.xlu0 %77
  %81 = vset.pattern.permute.xlu0 0
  %82 = vperm.xlu0 %81, %v68
  %v83 = vpop.permute.xlu0 %82
  %86 = vset.pattern.permute.xlu0 0
  %87 = vperm.xlu0 %86, %v69
  %v88 = vpop.permute.xlu0 %87
  %91 = vset.pattern.permute.xlu0 0
  %92 = vperm.xlu0 %91, %v70
  %v93 = vpop.permute.xlu0 %92
  %96 = vset.pattern.permute.xlu0 0
  %97 = vperm.xlu0 %96, %v71
  %v98 = vpop.permute.xlu0 %97
  %101 = vset.pattern.permute.xlu0 0
  %102 = vperm.xlu0 %101, %v72
  %v103 = vpop.permute.xlu0 %102
  %106 = vset.pattern.permute.xlu0 0
  %107 = vperm.xlu0 %106, %v73
  %v108 = vpop.permute.xlu0 %107
  %111 = vset.pattern.permute.xlu0 0
  %112 = vperm.xlu0 %111, %v74
  %v113 = vpop.permute.xlu0 %112
  %v131 = vunpack.c.l.b16 %v15
  %v132 = vunpack.c.h.b16 %v15
  %v133 = vunpack.c.l.b16 %v16
  %v134 = vunpack.c.l.b16 %v17
  %v135 = vunpack.c.h.b16 %v17
  %v136 = vunpack.c.l.b16 %v18
  %v137 = vunpack.c.l.b16 %v19
  %v138 = vunpack.c.h.b16 %v19
  %v139 = vunpack.c.l.b16 %v20
  %v140 = vunpack.c.l.b16 %v21
  %v141 = vunpack.c.h.b16 %v21
  %v142 = vunpack.c.l.b16 %v22
  %v143 = vunpack.c.l.b16 %v23
  %v144 = vunpack.c.h.b16 %v23
  %v145 = vunpack.c.l.b16 %v24
  %v146 = vunpack.c.l.b16 %v25
  %v147 = vunpack.c.h.b16 %v25
  %v148 = vunpack.c.l.b16 %v26
  %v149 = vunpack.c.l.b16 %v27
  %v150 = vunpack.c.h.b16 %v27
  %v151 = vunpack.c.l.b16 %v28
  %v152 = vunpack.c.l.b16 %v29
  %v153 = vunpack.c.h.b16 %v29
  %v154 = vunpack.c.l.b16 %v30
  %v155 = vpack.c.b16 %v134, %v131
  %v156 = vpack.c.b16 %v135, %v132
  %v157 = vpack.c.b16 %v136, %v133
  %v158 = vpack.c.b16 %v140, %v137
  %v159 = vpack.c.b16 %v141, %v138
  %v160 = vpack.c.b16 %v142, %v139
  %v161 = vpack.c.b16 %v146, %v143
  %v162 = vpack.c.b16 %v147, %v144
  %v163 = vpack.c.b16 %v148, %v145
  %v164 = vpack.c.b16 %v152, %v149
  %v165 = vpack.c.b16 %v153, %v150
  %v166 = vpack.c.b16 %v154, %v151
  %v211 = vunpack.c.l.b16 %v31
  %v212 = vunpack.c.l.b16 %v32
  %v213 = vunpack.c.l.b16 %v33
  %v214 = vunpack.c.l.b16 %v34
  %v215 = vunpack.c.l.b16 %v35
  %v216 = vunpack.c.l.b16 %v36
  %v217 = vunpack.c.l.b16 %v37
  %v218 = vunpack.c.l.b16 %v38
  %v219 = vunpack.c.l.b16 %v39
  %v220 = vunpack.c.l.b16 %v40
  %v221 = vunpack.c.l.b16 %v41
  %v222 = vunpack.c.l.b16 %v42
  %v223 = vunpack.c.l.b16 %v43
  %v224 = vunpack.c.l.b16 %v44
  %v225 = vunpack.c.l.b16 %v45
  %v226 = vunpack.c.l.b16 %v46
  %v227 = vunpack.c.l.b16 %v47
  %v228 = vunpack.c.l.b16 %v48
  %v229 = vunpack.c.l.b16 %v49
  %v230 = vunpack.c.l.b16 %v50
  %v231 = vunpack.c.l.b16 %v51
  %v232 = vunpack.c.l.b16 %v52
  %v233 = vunpack.c.l.b16 %v53
  %v234 = vunpack.c.l.b16 %v54
  %v235 = vunpack.c.l.b16 %v55
  %v236 = vunpack.c.l.b16 %v56
  %v237 = vunpack.c.l.b16 %v57
  %v238 = vunpack.c.l.b16 %v58
  %v239 = vunpack.c.l.b16 %v59
  %v240 = vunpack.c.l.b16 %v60
  %v241 = vunpack.c.l.b16 %v61
  %v242 = vunpack.c.l.b16 %v62
  %v243 = vunpack.c.l.b16 %v63
  %v244 = vunpack.c.l.b16 %v64
  %v245 = vunpack.c.l.b16 %v65
  %v246 = vunpack.c.l.b16 %v66
  %v247 = vpack.c.b16 %v212, %v211
  %v248 = vpack.c.b16 %v214, %v213
  %v249 = vpack.c.b16 %v216, %v215
  %v250 = vpack.c.b16 %v218, %v217
  %v251 = vpack.c.b16 %v220, %v219
  %v252 = vpack.c.b16 %v222, %v221
  %v253 = vpack.c.b16 %v224, %v223
  %v254 = vpack.c.b16 %v226, %v225
  %v255 = vpack.c.b16 %v228, %v227
  %v256 = vpack.c.b16 %v230, %v229
  %v257 = vpack.c.b16 %v232, %v231
  %v258 = vpack.c.b16 %v234, %v233
  %v259 = vpack.c.b16 %v236, %v235
  %v260 = vpack.c.b16 %v238, %v237
  %v261 = vpack.c.b16 %v240, %v239
  %v262 = vpack.c.b16 %v242, %v241
  %v263 = vpack.c.b16 %v244, %v243
  %v264 = vpack.c.b16 %v246, %v245
  %vm283 = vcmask 261120
  %v285 = vsel %vm283, %v157, 0
  %v288 = vsel %vm283, %v160, 0
  %v291 = vsel %vm283, %v163, 0
  %v294 = vsel %vm283, %v166, 0
  %296 = vmatprep.subr.bf16.mxu0 0
  %297 = vmatpush1.bf16.msra.mxu0 %v247
  %298 = vmatprep.subr.bf16.mxu0 0
  %299 = vmatpush1.bf16.msra.mxu0 %v248
  %300 = vmatprep.subr.bf16.mxu0 0
  %301 = vmatpush1.bf16.msra.mxu0 %v249
  %302 = vmatprep.subr.bf16.mxu0 0
  %303 = vmatpush1.bf16.msra.mxu0 %v250
  %304 = vmatprep.subr.bf16.mxu0 0
  %305 = vmatpush1.bf16.msra.mxu0 %v251
  %306 = vmatprep.subr.bf16.mxu0 0
  %307 = vmatpush1.bf16.msra.mxu0 %v252
  %308 = vmatprep.subr.bf16.mxu0 0
  %309 = vmatpush1.bf16.msra.mxu0 %v253
  %310 = vmatprep.subr.bf16.mxu0 0
  %311 = vmatpush1.bf16.msra.mxu0 %v254
  %312 = vmatprep.subr.bf16.mxu0 0
  %313 = vmatpush1.bf16.msra.mxu0 %v255
  %314 = vmatprep.subr.bf16.mxu0 0
  %315 = vmatpush1.bf16.msra.mxu0 %v256
  %316 = vmatprep.subr.bf16.mxu0 0
  %317 = vmatpush1.bf16.msra.mxu0 %v257
  %318 = vmatprep.subr.bf16.mxu0 0
  %319 = vmatpush1.bf16.msra.mxu0 %v258
  %320 = vmatprep.subr.bf16.mxu0 0
  %321 = vmatpush1.bf16.msra.mxu0 %v259
  %322 = vmatprep.subr.bf16.mxu0 0
  %323 = vmatpush1.bf16.msra.mxu0 %v260
  %324 = vmatprep.subr.bf16.mxu0 0
  %325 = vmatpush1.bf16.msra.mxu0 %v261
  %326 = vmatprep.subr.bf16.mxu0 0
  %327 = vmatpush1.bf16.msra.mxu0 %v262
  %328 = vmatprep.mubr.bf16.mxu0 %v156
  %329 = vmatmul.mubr.bf16.gmra.mrb[0].mxu0 %v155
  %v330 = vpop.f32.mrb[0].mxu0
  %v331 = vadd.f32 %v78, %v330
  %v332 = vpop.f32.mrb[0].mxu0
  %v333 = vpop.f32.mrb[0].mxu0
  %v334 = vadd.f32 %v83, %v333
  %v335 = vpop.f32.mrb[0].mxu0
  %336 = vmatprep.mubr.bf16.mxu0 %v159
  %337 = vmatmul.mubr.bf16.gmra.mrb[0].mxu0 %v158
  %v338 = vpop.f32.mrb[0].mxu0
  %v339 = vadd.f32 %v88, %v338
  %v340 = vpop.f32.mrb[0].mxu0
  %v341 = vpop.f32.mrb[0].mxu0
  %v342 = vadd.f32 %v93, %v341
  %v343 = vpop.f32.mrb[0].mxu0
  %344 = vmatprep.mubr.bf16.mxu0 %v162
  %345 = vmatmul.mubr.bf16.gmra.mrb[0].mxu0 %v161
  %v346 = vpop.f32.mrb[0].mxu0
  %v347 = vadd.f32 %v98, %v346
  %v348 = vpop.f32.mrb[0].mxu0
  %v349 = vpop.f32.mrb[0].mxu0
  %v350 = vadd.f32 %v103, %v349
  %v351 = vpop.f32.mrb[0].mxu0
  %352 = vmatprep.mubr.bf16.mxu0 %v165
  %353 = vmatmul.mubr.bf16.gmra.mrb[0].mxu0 %v164
  %v354 = vpop.f32.mrb[0].mxu0
  %v355 = vadd.f32 %v108, %v354
  %v356 = vpop.f32.mrb[0].mxu0
  %v357 = vpop.f32.mrb[0].mxu0
  %v358 = vadd.f32 %v113, %v357
  %v359 = vpop.f32.mrb[0].mxu0
  %360 = vdwg.mxu0
  %361 = vmatprep.subr.bf16.mxu0 0
  %362 = vmatpush1.bf16.msra.mxu0 %v263
  %363 = vmatprep.subr.bf16.mxu0 0
  %364 = vmatpush1.bf16.msra.mxu0 %v264
  %365 = vmatprep.subr.bf16.mxu0 0
  %366 = vmatpush1.bf16.msra.mxu0 0
  %367 = vmatprep.subr.bf16.mxu0 0
  %368 = vmatpush1.bf16.msra.mxu0 0
  %369 = vmatprep.subr.bf16.mxu0 0
  %370 = vmatpush1.bf16.msra.mxu0 0
  %371 = vmatprep.subr.bf16.mxu0 0
  %372 = vmatpush1.bf16.msra.mxu0 0
  %373 = vmatprep.subr.bf16.mxu0 0
  %374 = vmatpush1.bf16.msra.mxu0 0
  %375 = vmatprep.subr.bf16.mxu0 0
  %376 = vmatpush1.bf16.msra.mxu0 0
  %377 = vmatprep.subr.bf16.mxu0 0
  %378 = vmatpush1.bf16.msra.mxu0 0
  %379 = vmatprep.subr.bf16.mxu0 0
  %380 = vmatpush1.bf16.msra.mxu0 0
  %381 = vmatprep.subr.bf16.mxu0 0
  %382 = vmatpush1.bf16.msra.mxu0 0
  %383 = vmatprep.subr.bf16.mxu0 0
  %384 = vmatpush1.bf16.msra.mxu0 0
  %385 = vmatprep.subr.bf16.mxu0 0
  %386 = vmatpush1.bf16.msra.mxu0 0
  %387 = vmatprep.subr.bf16.mxu0 0
  %388 = vmatpush1.bf16.msra.mxu0 0
  %389 = vmatprep.subr.bf16.mxu0 0
  %390 = vmatpush1.bf16.msra.mxu0 0
  %391 = vmatprep.subr.bf16.mxu0 0
  %392 = vmatpush1.bf16.msra.mxu0 0
  %393 = vmatprep.mubr.bf16.mxu0 0
  %394 = vmatmul.mubr.bf16.gmra.mrb[0].mxu0 %v285
  %v395 = vpop.f32.mrb[0].mxu0
  %v396 = vadd.f32 %v331, %v395
  %v397 = vpop.f32.mrb[0].mxu0
  %v398 = vpop.f32.mrb[0].mxu0
  %v399 = vadd.f32 %v334, %v398
  %v400 = vpop.f32.mrb[0].mxu0
  %401 = vmatprep.mubr.bf16.mxu0 0
  %402 = vmatmul.mubr.bf16.gmra.mrb[0].mxu0 %v288
  %v403 = vpop.f32.mrb[0].mxu0
  %v404 = vadd.f32 %v339, %v403
  %v405 = vpop.f32.mrb[0].mxu0
  %v406 = vpop.f32.mrb[0].mxu0
  %v407 = vadd.f32 %v342, %v406
  %v408 = vpop.f32.mrb[0].mxu0
  %409 = vmatprep.mubr.bf16.mxu0 0
  %410 = vmatmul.mubr.bf16.gmra.mrb[0].mxu0 %v291
  %v411 = vpop.f32.mrb[0].mxu0
  %v412 = vadd.f32 %v347, %v411
  %v413 = vpop.f32.mrb[0].mxu0
  %v414 = vpop.f32.mrb[0].mxu0
  %v415 = vadd.f32 %v350, %v414
  %v416 = vpop.f32.mrb[0].mxu0
  %417 = vmatprep.mubr.bf16.mxu0 0
  %418 = vmatmul.mubr.bf16.gmra.mrb[0].mxu0 %v294
  %v419 = vpop.f32.mrb[0].mxu0
  %v420 = vadd.f32 %v355, %v419
  %v421 = vpop.f32.mrb[0].mxu0
  %v422 = vpop.f32.mrb[0].mxu0
  %v423 = vadd.f32 %v358, %v422
  %v424 = vpop.f32.mrb[0].mxu0
  %425 = vdwg.mxu0
  %vm426 = vcmp.gt.f32.partialorder %v396, 0.0
  %vm427 = vcmp.gt.f32.partialorder %v399, 0.0
  %vm428 = vcmp.gt.f32.partialorder %v404, 0.0
  %vm429 = vcmp.gt.f32.partialorder %v407, 0.0
  %vm430 = vcmp.gt.f32.partialorder %v412, 0.0
  %vm431 = vcmp.gt.f32.partialorder %v415, 0.0
  %vm432 = vcmp.gt.f32.partialorder %v420, 0.0
  %vm433 = vcmp.gt.f32.partialorder %v423, 0.0
  %v434 = vmul.f32 %v396, 0.2
  %v435 = vmul.f32 %v399, 0.2
  %v436 = vmul.f32 %v404, 0.2
  %v437 = vmul.f32 %v407, 0.2
  %v438 = vmul.f32 %v412, 0.2
  %v439 = vmul.f32 %v415, 0.2
  %v440 = vmul.f32 %v420, 0.2
  %v441 = vmul.f32 %v423, 0.2
  %v442 = vsel %vm426, %v396, %v434
  %v443 = vsel %vm427, %v399, %v435
  %v444 = vsel %vm428, %v404, %v436
  %v445 = vsel %vm429, %v407, %v437
  %v446 = vsel %vm430, %v412, %v438
  %v447 = vsel %vm431, %v415, %v439
  %v448 = vsel %vm432, %v420, %v440
  %v449 = vsel %vm433, %v423, %v441
  %450 = vst [vmem:[%s3] sm:$0xff] %v442
  %451 = vst [vmem:[%s3 + $0x8] sm:$0xff] %v443
  %452 = vst [vmem:[%s3 + $0x10] sm:$0xff] %v444
  %453 = vst [vmem:[%s3 + $0x18] sm:$0xff] %v445
  %454 = vst [vmem:[%s3 + $0x20] sm:$0xff] %v446
  %455 = vst [vmem:[%s3 + $0x28] sm:$0xff] %v447
  %456 = vst [vmem:[%s3 + $0x30] sm:$0xff] %v448
  %457 = vst [vmem:[%s3 + $0x38] sm:$0xff] %v449
  // Predicated region
  $region14: #{vae_forward.10} parent=0 // pred_check
    _
  $region15: #{vae_forward.10} parent=0 // pred_check_branch
    %459 = sbr.rel (0) target = $region17
  $region16: #{vae_forward.10} parent=0 // pred_region
    _
  $region17: #{vae_forward.10} parent=0 // pred_fallthru
    _
  // Predicated region
  $region18: #{vae_forward.10} parent=0 // pred_check
    _
  $region19: #{vae_forward.10} parent=0 // pred_check_branch
    %461 = sbr.rel (0) target = $region21
  $region20: #{vae_forward.10} parent=0 // pred_region
    _
  $region21: #{vae_forward.10} parent=0 // pred_fallthru
    _

// kernel: vae_forward.11
$region0: #{vae_forward.11}
  #allocation0 [shape = 'u32[]', space=smem, size = 0x4, offset = 0x4, fixed_abs, tag = 'smem constant byte address 0x4 - core index']
  #allocation1 [shape = 'u32[144,128]{1,0:T(1,128)}', space=vmem, size = 0x12000, scoped, tag = 'internal scratch']
  %s0 = inlined_call_operand.vmem [shape: bf16[128,576], index: 0, kind: input, shape index: {}]
  %s1 = inlined_call_operand.vmem [shape: bf16[576,32], index: 1, kind: input, shape index: {}]
  %s2 = inlined_call_operand.vmem [shape: f32[128,1], index: 2, kind: input, shape index: {}]
  %s3 = inlined_call_operand.vmem [shape: f32[128,32], index: 3, kind: output, shape index: {}]
  %s4 = sld [smem:[#allocation0]]
  $region22: #{vae_forward.11} parent=0
    _
  %s6 = ssub.s32 1, %s4
  %s7 = scalar_select 0, %s6, %s4
  // Predicated region
  $region2: #{vae_forward.11} parent=0 // pred_check
    _
  $region3: #{vae_forward.11} parent=0 // pred_check_branch
    %9 = sbr.rel (0) target = $region5
  $region4: #{vae_forward.11} parent=0 // pred_region
    _
  $region5: #{vae_forward.11} parent=0 // pred_fallthru
    _
  // Predicated region
  $region6: #{vae_forward.11} parent=0 // pred_check
    _
  $region7: #{vae_forward.11} parent=0 // pred_check_branch
    %11 = sbr.rel (0) target = $region9
  $region8: #{vae_forward.11} parent=0 // pred_region
    _
  $region9: #{vae_forward.11} parent=0 // pred_fallthru
    _
  // Predicated region
  $region10: #{vae_forward.11} parent=0 // pred_check
    _
  $region11: #{vae_forward.11} parent=0 // pred_check_branch
    %13 = sbr.rel (0) target = $region13
  $region12: #{vae_forward.11} parent=0 // pred_region
    _
  $region13: #{vae_forward.11} parent=0 // pred_fallthru
    _
  %v15 = vld [vmem:[%s0] sm:$0xff]
  %v16 = vld [vmem:[%s0 + $0x8] sm:$0xff]
  %v17 = vld [vmem:[%s0 + $0x10] sm:$0xf]
  %v18 = vld [vmem:[%s0 + $0x14] sm:$0xff]
  %v19 = vld [vmem:[%s0 + $0x1c] sm:$0xff]
  %v20 = vld [vmem:[%s0 + $0x24] sm:$0xf]
  %v21 = vld [vmem:[%s0 + $0x28] sm:$0xff]
  %v22 = vld [vmem:[%s0 + $0x30] sm:$0xff]
  %v23 = vld [vmem:[%s0 + $0x38] sm:$0xf]
  %v24 = vld [vmem:[%s0 + $0x3c] sm:$0xff]
  %v25 = vld [vmem:[%s0 + $0x44] sm:$0xff]
  %v26 = vld [vmem:[%s0 + $0x4c] sm:$0xf]
  %v27 = vld [vmem:[%s0 + $0x50] sm:$0xff]
  %v28 = vld [vmem:[%s0 + $0x58] sm:$0xff]
  %v29 = vld [vmem:[%s0 + $0x60] sm:$0xf]
  %v30 = vld [vmem:[%s0 + $0x64] sm:$0xff]
  %v31 = vld [vmem:[%s0 + $0x6c] sm:$0xff]
  %v32 = vld [vmem:[%s0 + $0x74] sm:$0xf]
  %v33 = vld [vmem:[%s0 + $0x78] sm:$0xff]
  %v34 = vld [vmem:[%s0 + $0x80] sm:$0xff]
  %v35 = vld [vmem:[%s0 + $0x88] sm:$0xf]
  %v36 = vld [vmem:[%s0 + $0x8c] sm:$0xff]
  %v37 = vld [vmem:[%s0 + $0x94] sm:$0xff]
  %v38 = vld [vmem:[%s0 + $0x9c] sm:$0xf]
  %v39 = vld [vmem:[%s0 + $0xa0] sm:$0xff]
  %v40 = vld [vmem:[%s0 + $0xa8] sm:$0xff]
  %v41 = vld [vmem:[%s0 + $0xb0] sm:$0xf]
  %v42 = vld [vmem:[%s0 + $0xb4] sm:$0xff]
  %v43 = vld [vmem:[%s0 + $0xbc] sm:$0xff]
  %v44 = vld [vmem:[%s0 + $0xc4] sm:$0xf]
  %v45 = vld [vmem:[%s0 + $0xc8] sm:$0xff]
  %v46 = vld [vmem:[%s0 + $0xd0] sm:$0xff]
  %v47 = vld [vmem:[%s0 + $0xd8] sm:$0xf]
  %v48 = vld [vmem:[%s0 + $0xdc] sm:$0xff]
  %v49 = vld [vmem:[%s0 + $0xe4] sm:$0xff]
  %v50 = vld [vmem:[%s0 + $0xec] sm:$0xf]
  %v51 = vld [vmem:[%s0 + $0xf0] sm:$0xff]
  %v52 = vld [vmem:[%s0 + $0xf8] sm:$0xff]
  %v53 = vld [vmem:[%s0 + $0x100] sm:$0xf]
  %v54 = vld [vmem:[%s0 + $0x104] sm:$0xff]
  %v55 = vld [vmem:[%s0 + $0x10c] sm:$0xff]
  %v56 = vld [vmem:[%s0 + $0x114] sm:$0xf]
  %v57 = vld [vmem:[%s0 + $0x118] sm:$0xff]
  %v58 = vld [vmem:[%s0 + $0x120] sm:$0xff]
  %v59 = vld [vmem:[%s0 + $0x128] sm:$0xf]
  %v60 = vld [vmem:[%s0 + $0x12c] sm:$0xff]
  %v61 = vld [vmem:[%s0 + $0x134] sm:$0xff]
  %v62 = vld [vmem:[%s0 + $0x13c] sm:$0xf]
  %v63 = vld [vmem:[%s1] sm:$0xf]
  %v64 = vld [vmem:[%s1 + $0x4] sm:$0xf]
  %v65 = vld [vmem:[%s1 + $0x8] sm:$0xf]
  %v66 = vld [vmem:[%s1 + $0xc] sm:$0xf]
  %v67 = vld [vmem:[%s1 + $0x10] sm:$0xf]
  %v68 = vld [vmem:[%s1 + $0x14] sm:$0xf]
  %v69 = vld [vmem:[%s1 + $0x18] sm:$0xf]
  %v70 = vld [vmem:[%s1 + $0x1c] sm:$0xf]
  %v71 = vld [vmem:[%s1 + $0x20] sm:$0xf]
  %v72 = vld [vmem:[%s1 + $0x24] sm:$0xf]
  %v73 = vld [vmem:[%s1 + $0x28] sm:$0xf]
  %v74 = vld [vmem:[%s1 + $0x2c] sm:$0xf]
  %v75 = vld [vmem:[%s1 + $0x30] sm:$0xf]
  %v76 = vld [vmem:[%s1 + $0x34] sm:$0xf]
  %v77 = vld [vmem:[%s1 + $0x38] sm:$0xf]
  %v78 = vld [vmem:[%s1 + $0x3c] sm:$0xf]
  %v79 = vld [vmem:[%s1 + $0x40] sm:$0xf]
  %v80 = vld [vmem:[%s1 + $0x44] sm:$0xf]
  %v81 = vld [vmem:[%s1 + $0x48] sm:$0xf]
  %v82 = vld [vmem:[%s1 + $0x4c] sm:$0xf]
  %v83 = vld [vmem:[%s1 + $0x50] sm:$0xf]
  %v84 = vld [vmem:[%s1 + $0x54] sm:$0xf]
  %v85 = vld [vmem:[%s1 + $0x58] sm:$0xf]
  %v86 = vld [vmem:[%s1 + $0x5c] sm:$0xf]
  %v87 = vld [vmem:[%s1 + $0x60] sm:$0xf]
  %v88 = vld [vmem:[%s1 + $0x64] sm:$0xf]
  %v89 = vld [vmem:[%s1 + $0x68] sm:$0xf]
  %v90 = vld [vmem:[%s1 + $0x6c] sm:$0xf]
  %v91 = vld [vmem:[%s1 + $0x70] sm:$0xf]
  %v92 = vld [vmem:[%s1 + $0x74] sm:$0xf]
  %v93 = vld [vmem:[%s1 + $0x78] sm:$0xf]
  %v94 = vld [vmem:[%s1 + $0x7c] sm:$0xf]
  %v95 = vld [vmem:[%s1 + $0x80] sm:$0xf]
  %v96 = vld [vmem:[%s1 + $0x84] sm:$0xf]
  %v97 = vld [vmem:[%s1 + $0x88] sm:$0xf]
  %v98 = vld [vmem:[%s1 + $0x8c] sm:$0xf]
  %v99 = vld [vmem:[%s1 + $0x90] sm:$0xf]
  %v100 = vld [vmem:[%s1 + $0x94] sm:$0xf]
  %v101 = vld [vmem:[%s1 + $0x98] sm:$0xf]
  %v102 = vld [vmem:[%s1 + $0x9c] sm:$0xf]
  %v103 = vld [vmem:[%s1 + $0xa0] sm:$0xf]
  %v104 = vld [vmem:[%s1 + $0xa4] sm:$0xf]
  %v105 = vld [vmem:[%s1 + $0xa8] sm:$0xf]
  %v106 = vld [vmem:[%s1 + $0xac] sm:$0xf]
  %v107 = vld [vmem:[%s1 + $0xb0] sm:$0xf]
  %v108 = vld [vmem:[%s1 + $0xb4] sm:$0xf]
  %v109 = vld [vmem:[%s1 + $0xb8] sm:$0xf]
  %v110 = vld [vmem:[%s1 + $0xbc] sm:$0xf]
  %v111 = vld [vmem:[%s1 + $0xc0] sm:$0xf]
  %v112 = vld [vmem:[%s1 + $0xc4] sm:$0xf]
  %v113 = vld [vmem:[%s1 + $0xc8] sm:$0xf]
  %v114 = vld [vmem:[%s1 + $0xcc] sm:$0xf]
  %v115 = vld [vmem:[%s1 + $0xd0] sm:$0xf]
  %v116 = vld [vmem:[%s1 + $0xd4] sm:$0xf]
  %v117 = vld [vmem:[%s1 + $0xd8] sm:$0xf]
  %v118 = vld [vmem:[%s1 + $0xdc] sm:$0xf]
  %v119 = vld [vmem:[%s1 + $0xe0] sm:$0xf]
  %v120 = vld [vmem:[%s1 + $0xe4] sm:$0xf]
  %v121 = vld [vmem:[%s1 + $0xe8] sm:$0xf]
  %v122 = vld [vmem:[%s1 + $0xec] sm:$0xf]
  %v123 = vld [vmem:[%s1 + $0xf0] sm:$0xf]
  %v124 = vld [vmem:[%s1 + $0xf4] sm:$0xf]
  %v125 = vld [vmem:[%s1 + $0xf8] sm:$0xf]
  %v126 = vld [vmem:[%s1 + $0xfc] sm:$0xf]
  %v127 = vld [vmem:[%s1 + $0x100] sm:$0xf]
  %v128 = vld [vmem:[%s1 + $0x104] sm:$0xf]
  %v129 = vld [vmem:[%s1 + $0x108] sm:$0xf]
  %v130 = vld [vmem:[%s1 + $0x10c] sm:$0xf]
  %v131 = vld [vmem:[%s1 + $0x110] sm:$0xf]
  %v132 = vld [vmem:[%s1 + $0x114] sm:$0xf]
  %v133 = vld [vmem:[%s1 + $0x118] sm:$0xf]
  %v134 = vld [vmem:[%s1 + $0x11c] sm:$0xf]
  %v135 = vld [vmem:[%s2] sm:$0xff]
  %v136 = vld [vmem:[%s2 + $0x8] sm:$0xff]
  %v137 = vld [vmem:[%s2 + $0x10] sm:$0xff]
  %v138 = vld [vmem:[%s2 + $0x18] sm:$0xff]
  %v139 = vld [vmem:[%s2 + $0x20] sm:$0xff]
  %v140 = vld [vmem:[%s2 + $0x28] sm:$0xff]
  %v141 = vld [vmem:[%s2 + $0x30] sm:$0xff]
  %v142 = vld [vmem:[%s2 + $0x38] sm:$0xff]
  %v143 = vld [vmem:[%s2 + $0x40] sm:$0xff]
  %v144 = vld [vmem:[%s2 + $0x48] sm:$0xff]
  %v145 = vld [vmem:[%s2 + $0x50] sm:$0xff]
  %v146 = vld [vmem:[%s2 + $0x58] sm:$0xff]
  %v147 = vld [vmem:[%s2 + $0x60] sm:$0xff]
  %v148 = vld [vmem:[%s2 + $0x68] sm:$0xff]
  %v149 = vld [vmem:[%s2 + $0x70] sm:$0xff]
  %v150 = vld [vmem:[%s2 + $0x78] sm:$0xff]
  %152 = vset.pattern.permute.xlu0 0
  %153 = vperm.xlu0 %152, %v135
  %v154 = vpop.permute.xlu0 %153
  %157 = vset.pattern.permute.xlu0 0
  %158 = vperm.xlu0 %157, %v136
  %v159 = vpop.permute.xlu0 %158
  %162 = vset.pattern.permute.xlu0 0
  %163 = vperm.xlu0 %162, %v137
  %v164 = vpop.permute.xlu0 %163
  %167 = vset.pattern.permute.xlu0 0
  %168 = vperm.xlu0 %167, %v138
  %v169 = vpop.permute.xlu0 %168
  %172 = vset.pattern.permute.xlu0 0
  %173 = vperm.xlu0 %172, %v139
  %v174 = vpop.permute.xlu0 %173
  %177 = vset.pattern.permute.xlu0 0
  %178 = vperm.xlu0 %177, %v140
  %v179 = vpop.permute.xlu0 %178
  %182 = vset.pattern.permute.xlu0 0
  %183 = vperm.xlu0 %182, %v141
  %v184 = vpop.permute.xlu0 %183
  %187 = vset.pattern.permute.xlu0 0
  %188 = vperm.xlu0 %187, %v142
  %v189 = vpop.permute.xlu0 %188
  %192 = vset.pattern.permute.xlu0 0
  %193 = vperm.xlu0 %192, %v143
  %v194 = vpop.permute.xlu0 %193
  %197 = vset.pattern.permute.xlu0 0
  %198 = vperm.xlu0 %197, %v144
  %v199 = vpop.permute.xlu0 %198
  %202 = vset.pattern.permute.xlu0 0
  %203 = vperm.xlu0 %202, %v145
  %v204 = vpop.permute.xlu0 %203
  %207 = vset.pattern.permute.xlu0 0
  %208 = vperm.xlu0 %207, %v146
  %v209 = vpop.permute.xlu0 %208
  %212 = vset.pattern.permute.xlu0 0
  %213 = vperm.xlu0 %212, %v147
  %v214 = vpop.permute.xlu0 %213
  %217 = vset.pattern.permute.xlu0 0
  %218 = vperm.xlu0 %217, %v148
  %v219 = vpop.permute.xlu0 %218
  %222 = vset.pattern.permute.xlu0 0
  %223 = vperm.xlu0 %222, %v149
  %v224 = vpop.permute.xlu0 %223
  %227 = vset.pattern.permute.xlu0 0
  %228 = vperm.xlu0 %227, %v150
  %v229 = vpop.permute.xlu0 %228
  %v279 = vunpack.c.l.b16 %v15
  %v280 = vunpack.c.h.b16 %v15
  %v281 = vunpack.c.l.b16 %v16
  %v282 = vunpack.c.h.b16 %v16
  %v283 = vunpack.c.l.b16 %v17
  %v284 = vunpack.c.l.b16 %v18
  %v285 = vunpack.c.h.b16 %v18
  %v286 = vunpack.c.l.b16 %v19
  %v287 = vunpack.c.h.b16 %v19
  %v288 = vunpack.c.l.b16 %v20
  %v289 = vunpack.c.l.b16 %v21
  %v290 = vunpack.c.h.b16 %v21
  %v291 = vunpack.c.l.b16 %v22
  %v292 = vunpack.c.h.b16 %v22
  %v293 = vunpack.c.l.b16 %v23
  %v294 = vunpack.c.l.b16 %v24
  %v295 = vunpack.c.h.b16 %v24
  %v296 = vunpack.c.l.b16 %v25
  %v297 = vunpack.c.h.b16 %v25
  %v298 = vunpack.c.l.b16 %v26
  %v299 = vunpack.c.l.b16 %v27
  %v300 = vunpack.c.h.b16 %v27
  %v301 = vunpack.c.l.b16 %v28
  %v302 = vunpack.c.h.b16 %v28
  %v303 = vunpack.c.l.b16 %v29
  %v304 = vunpack.c.l.b16 %v30
  %v305 = vunpack.c.h.b16 %v30
  %v306 = vunpack.c.l.b16 %v31
  %v307 = vunpack.c.h.b16 %v31
  %v308 = vunpack.c.l.b16 %v32
  %v309 = vunpack.c.l.b16 %v33
  %v310 = vunpack.c.h.b16 %v33
  %v311 = vunpack.c.l.b16 %v34
  %v312 = vunpack.c.h.b16 %v34
  %v313 = vunpack.c.l.b16 %v35
  %v314 = vunpack.c.l.b16 %v36
  %v315 = vunpack.c.h.b16 %v36
  %v316 = vunpack.c.l.b16 %v37
  %v317 = vunpack.c.h.b16 %v37
  %v318 = vunpack.c.l.b16 %v38
  %v319 = vunpack.c.l.b16 %v39
  %v320 = vunpack.c.h.b16 %v39
  %v321 = vunpack.c.l.b16 %v40
  %v322 = vunpack.c.h.b16 %v40
  %v323 = vunpack.c.l.b16 %v41
  %v324 = vunpack.c.l.b16 %v42
  %v325 = vunpack.c.h.b16 %v42
  %v326 = vunpack.c.l.b16 %v43
  %v327 = vunpack.c.h.b16 %v43
  %v328 = vunpack.c.l.b16 %v44
  %v329 = vunpack.c.l.b16 %v45
  %v330 = vunpack.c.h.b16 %v45
  %v331 = vunpack.c.l.b16 %v46
  %v332 = vunpack.c.h.b16 %v46
  %v333 = vunpack.c.l.b16 %v47
  %v334 = vunpack.c.l.b16 %v48
  %v335 = vunpack.c.h.b16 %v48
  %v336 = vunpack.c.l.b16 %v49
  %v337 = vunpack.c.h.b16 %v49
  %v338 = vunpack.c.l.b16 %v50
  %v339 = vunpack.c.l.b16 %v51
  %v340 = vunpack.c.h.b16 %v51
  %v341 = vunpack.c.l.b16 %v52
  %v342 = vunpack.c.h.b16 %v52
  %v343 = vunpack.c.l.b16 %v53
  %v344 = vunpack.c.l.b16 %v54
  %v345 = vunpack.c.h.b16 %v54
  %v346 = vunpack.c.l.b16 %v55
  %v347 = vunpack.c.h.b16 %v55
  %v348 = vunpack.c.l.b16 %v56
  %v349 = vunpack.c.l.b16 %v57
  %v350 = vunpack.c.h.b16 %v57
  %v351 = vunpack.c.l.b16 %v58
  %v352 = vunpack.c.h.b16 %v58
  %v353 = vunpack.c.l.b16 %v59
  %v354 = vunpack.c.l.b16 %v60
  %v355 = vunpack.c.h.b16 %v60
  %v356 = vunpack.c.l.b16 %v61
  %v357 = vunpack.c.h.b16 %v61
  %v358 = vunpack.c.l.b16 %v62
  %v359 = vpack.c.b16 %v284, %v279
  %v360 = vpack.c.b16 %v285, %v280
  %v361 = vpack.c.b16 %v286, %v281
  %v362 = vpack.c.b16 %v287, %v282
  %v363 = vpack.c.b16 %v288, %v283
  %v364 = vpack.c.b16 %v294, %v289
  %v365 = vpack.c.b16 %v295, %v290
  %v366 = vpack.c.b16 %v296, %v291
  %v367 = vpack.c.b16 %v297, %v292
  %v368 = vpack.c.b16 %v298, %v293
  %v369 = vpack.c.b16 %v304, %v299
  %v370 = vpack.c.b16 %v305, %v300
  %v371 = vpack.c.b16 %v306, %v301
  %v372 = vpack.c.b16 %v307, %v302
  %v373 = vpack.c.b16 %v308, %v303
  %v374 = vpack.c.b16 %v314, %v309
  %v375 = vpack.c.b16 %v315, %v310
  %v376 = vpack.c.b16 %v316, %v311
  %v377 = vpack.c.b16 %v317, %v312
  %v378 = vpack.c.b16 %v318, %v313
  %v379 = vpack.c.b16 %v324, %v319
  %v380 = vpack.c.b16 %v325, %v320
  %v381 = vpack.c.b16 %v326, %v321
  %v382 = vpack.c.b16 %v327, %v322
  %v383 = vpack.c.b16 %v328, %v323
  %v384 = vpack.c.b16 %v334, %v329
  %v385 = vpack.c.b16 %v335, %v330
  %v386 = vpack.c.b16 %v336, %v331
  %v387 = vpack.c.b16 %v337, %v332
  %v388 = vpack.c.b16 %v338, %v333
  %v389 = vpack.c.b16 %v344, %v339
  %v390 = vpack.c.b16 %v345, %v340
  %v391 = vpack.c.b16 %v346, %v341
  %v392 = vpack.c.b16 %v347, %v342
  %v393 = vpack.c.b16 %v348, %v343
  %v394 = vpack.c.b16 %v354, %v349
  %v395 = vpack.c.b16 %v355, %v350
  %v396 = vpack.c.b16 %v356, %v351
  %v397 = vpack.c.b16 %v357, %v352
  %v398 = vpack.c.b16 %v358, %v353
  %v503 = vunpack.c.l.b16 %v63
  %v504 = vunpack.c.l.b16 %v64
  %v505 = vunpack.c.l.b16 %v65
  %v506 = vunpack.c.l.b16 %v66
  %v507 = vunpack.c.l.b16 %v67
  %v508 = vunpack.c.l.b16 %v68
  %v509 = vunpack.c.l.b16 %v69
  %v510 = vunpack.c.l.b16 %v70
  %v511 = vunpack.c.l.b16 %v71
  %v512 = vunpack.c.l.b16 %v72
  %v513 = vunpack.c.l.b16 %v73
  %v514 = vunpack.c.l.b16 %v74
  %v515 = vunpack.c.l.b16 %v75
  %v516 = vunpack.c.l.b16 %v76
  %v517 = vunpack.c.l.b16 %v77
  %v518 = vunpack.c.l.b16 %v78
  %v519 = vunpack.c.l.b16 %v79
  %v520 = vunpack.c.l.b16 %v80
  %v521 = vunpack.c.l.b16 %v81
  %v522 = vunpack.c.l.b16 %v82
  %v523 = vunpack.c.l.b16 %v83
  %v524 = vunpack.c.l.b16 %v84
  %v525 = vunpack.c.l.b16 %v85
  %v526 = vunpack.c.l.b16 %v86
  %v527 = vunpack.c.l.b16 %v87
  %v528 = vunpack.c.l.b16 %v88
  %v529 = vunpack.c.l.b16 %v89
  %v530 = vunpack.c.l.b16 %v90
  %v531 = vunpack.c.l.b16 %v91
  %v532 = vunpack.c.l.b16 %v92
  %v533 = vunpack.c.l.b16 %v93
  %v534 = vunpack.c.l.b16 %v94
  %v535 = vunpack.c.l.b16 %v95
  %v536 = vunpack.c.l.b16 %v96
  %v537 = vunpack.c.l.b16 %v97
  %v538 = vunpack.c.l.b16 %v98
  %v539 = vunpack.c.l.b16 %v99
  %v540 = vunpack.c.l.b16 %v100
  %v541 = vunpack.c.l.b16 %v101
  %v542 = vunpack.c.l.b16 %v102
  %v543 = vunpack.c.l.b16 %v103
  %v544 = vunpack.c.l.b16 %v104
  %v545 = vunpack.c.l.b16 %v105
  %v546 = vunpack.c.l.b16 %v106
  %v547 = vunpack.c.l.b16 %v107
  %v548 = vunpack.c.l.b16 %v108
  %v549 = vunpack.c.l.b16 %v109
  %v550 = vunpack.c.l.b16 %v110
  %v551 = vunpack.c.l.b16 %v111
  %v552 = vunpack.c.l.b16 %v112
  %v553 = vunpack.c.l.b16 %v113
  %v554 = vunpack.c.l.b16 %v114
  %v555 = vunpack.c.l.b16 %v115
  %v556 = vunpack.c.l.b16 %v116
  %v557 = vunpack.c.l.b16 %v117
  %v558 = vunpack.c.l.b16 %v118
  %v559 = vunpack.c.l.b16 %v119
  %v560 = vunpack.c.l.b16 %v120
  %v561 = vunpack.c.l.b16 %v121
  %v562 = vunpack.c.l.b16 %v122
  %v563 = vunpack.c.l.b16 %v123
  %v564 = vunpack.c.l.b16 %v124
  %v565 = vunpack.c.l.b16 %v125
  %v566 = vunpack.c.l.b16 %v126
  %v567 = vunpack.c.l.b16 %v127
  %v568 = vunpack.c.l.b16 %v128
  %v569 = vunpack.c.l.b16 %v129
  %v570 = vunpack.c.l.b16 %v130
  %v571 = vunpack.c.l.b16 %v131
  %v572 = vunpack.c.l.b16 %v132
  %v573 = vunpack.c.l.b16 %v133
  %v574 = vunpack.c.l.b16 %v134
  %v575 = vpack.c.b16 %v504, %v503
  %v576 = vpack.c.b16 %v506, %v505
  %v577 = vpack.c.b16 %v508, %v507
  %v578 = vpack.c.b16 %v510, %v509
  %v579 = vpack.c.b16 %v512, %v511
  %v580 = vpack.c.b16 %v514, %v513
  %v581 = vpack.c.b16 %v516, %v515
  %v582 = vpack.c.b16 %v518, %v517
  %v583 = vpack.c.b16 %v520, %v519
  %v584 = vpack.c.b16 %v522, %v521
  %v585 = vpack.c.b16 %v524, %v523
  %v586 = vpack.c.b16 %v526, %v525
  %v587 = vpack.c.b16 %v528, %v527
  %v588 = vpack.c.b16 %v530, %v529
  %v589 = vpack.c.b16 %v532, %v531
  %v590 = vpack.c.b16 %v534, %v533
  %v591 = vpack.c.b16 %v536, %v535
  %v592 = vpack.c.b16 %v538, %v537
  %v593 = vpack.c.b16 %v540, %v539
  %v594 = vpack.c.b16 %v542, %v541
  %v595 = vpack.c.b16 %v544, %v543
  %v596 = vpack.c.b16 %v546, %v545
  %v597 = vpack.c.b16 %v548, %v547
  %v598 = vpack.c.b16 %v550, %v549
  %v599 = vpack.c.b16 %v552, %v551
  %v600 = vpack.c.b16 %v554, %v553
  %v601 = vpack.c.b16 %v556, %v555
  %v602 = vpack.c.b16 %v558, %v557
  %v603 = vpack.c.b16 %v560, %v559
  %v604 = vpack.c.b16 %v562, %v561
  %v605 = vpack.c.b16 %v564, %v563
  %v606 = vpack.c.b16 %v566, %v565
  %v607 = vpack.c.b16 %v568, %v567
  %v608 = vpack.c.b16 %v570, %v569
  %v609 = vpack.c.b16 %v572, %v571
  %v610 = vpack.c.b16 %v574, %v573
  %vm647 = vcmask 523264
  %v649 = vsel %vm647, %v363, 0
  %v652 = vsel %vm647, %v368, 0
  %v655 = vsel %vm647, %v373, 0
  %v658 = vsel %vm647, %v378, 0
  %v661 = vsel %vm647, %v383, 0
  %v664 = vsel %vm647, %v388, 0
  %v667 = vsel %vm647, %v393, 0
  %v670 = vsel %vm647, %v398, 0
  %672 = vmatprep.subr.bf16.mxu0 0
  %673 = vmatpush1.bf16.msra.mxu0 %v575
  %674 = vmatprep.subr.bf16.mxu0 0
  %675 = vmatpush1.bf16.msra.mxu0 %v576
  %676 = vmatprep.subr.bf16.mxu0 0
  %677 = vmatpush1.bf16.msra.mxu0 %v577
  %678 = vmatprep.subr.bf16.mxu0 0
  %679 = vmatpush1.bf16.msra.mxu0 %v578
  %680 = vmatprep.subr.bf16.mxu0 0
  %681 = vmatpush1.bf16.msra.mxu0 %v579
  %682 = vmatprep.subr.bf16.mxu0 0
  %683 = vmatpush1.bf16.msra.mxu0 %v580
  %684 = vmatprep.subr.bf16.mxu0 0
  %685 = vmatpush1.bf16.msra.mxu0 %v581
  %686 = vmatprep.subr.bf16.mxu0 0
  %687 = vmatpush1.bf16.msra.mxu0 %v582
  %688 = vmatprep.subr.bf16.mxu0 0
  %689 = vmatpush1.bf16.msra.mxu0 %v583
  %690 = vmatprep.subr.bf16.mxu0 0
  %691 = vmatpush1.bf16.msra.mxu0 %v584
  %692 = vmatprep.subr.bf16.mxu0 0
  %693 = vmatpush1.bf16.msra.mxu0 %v585
  %694 = vmatprep.subr.bf16.mxu0 0
  %695 = vmatpush1.bf16.msra.mxu0 %v586
  %696 = vmatprep.subr.bf16.mxu0 0
  %697 = vmatpush1.bf16.msra.mxu0 %v587
  %698 = vmatprep.subr.bf16.mxu0 0
  %699 = vmatpush1.bf16.msra.mxu0 %v588
  %700 = vmatprep.subr.bf16.mxu0 0
  %701 = vmatpush1.bf16.msra.mxu0 %v589
  %702 = vmatprep.subr.bf16.mxu0 0
  %703 = vmatpush1.bf16.msra.mxu0 %v590
  %704 = vmatprep.mubr.bf16.mxu0 %v360
  %705 = vmatmul.mubr.bf16.gmra.mrb[0].mxu0 %v359
  %v706 = vpop.f32.mrb[0].mxu0
  %v707 = vadd.f32 %v154, %v706
  %v708 = vpop.f32.mrb[0].mxu0
  %v709 = vpop.f32.mrb[0].mxu0
  %v710 = vadd.f32 %v159, %v709
  %v711 = vpop.f32.mrb[0].mxu0
  %712 = vmatprep.mubr.bf16.mxu0 %v365
  %713 = vmatmul.mubr.bf16.gmra.mrb[0].mxu0 %v364
  %v714 = vpop.f32.mrb[0].mxu0
  %v715 = vadd.f32 %v164, %v714
  %v716 = vpop.f32.mrb[0].mxu0
  %v717 = vpop.f32.mrb[0].mxu0
  %v718 = vadd.f32 %v169, %v717
  %v719 = vpop.f32.mrb[0].mxu0
  %720 = vmatprep.mubr.bf16.mxu0 %v370
  %721 = vmatmul.mubr.bf16.gmra.mrb[0].mxu0 %v369
  %v722 = vpop.f32.mrb[0].mxu0
  %v723 = vadd.f32 %v174, %v722
  %v724 = vpop.f32.mrb[0].mxu0
  %v725 = vpop.f32.mrb[0].mxu0
  %v726 = vadd.f32 %v179, %v725
  %v727 = vpop.f32.mrb[0].mxu0
  %728 = vmatprep.mubr.bf16.mxu0 %v375
  %729 = vmatmul.mubr.bf16.gmra.mrb[0].mxu0 %v374
  %v730 = vpop.f32.mrb[0].mxu0
  %v731 = vadd.f32 %v184, %v730
  %v732 = vpop.f32.mrb[0].mxu0
  %v733 = vpop.f32.mrb[0].mxu0
  %v734 = vadd.f32 %v189, %v733
  %v735 = vpop.f32.mrb[0].mxu0
  %736 = vmatprep.mubr.bf16.mxu0 %v380
  %737 = vmatmul.mubr.bf16.gmra.mrb[0].mxu0 %v379
  %v738 = vpop.f32.mrb[0].mxu0
  %v739 = vadd.f32 %v194, %v738
  %v740 = vpop.f32.mrb[0].mxu0
  %v741 = vpop.f32.mrb[0].mxu0
  %v742 = vadd.f32 %v199, %v741
  %v743 = vpop.f32.mrb[0].mxu0
  %744 = vmatprep.mubr.bf16.mxu0 %v385
  %745 = vmatmul.mubr.bf16.gmra.mrb[0].mxu0 %v384
  %v746 = vpop.f32.mrb[0].mxu0
  %v747 = vadd.f32 %v204, %v746
  %v748 = vpop.f32.mrb[0].mxu0
  %v749 = vpop.f32.mrb[0].mxu0
  %v750 = vadd.f32 %v209, %v749
  %v751 = vpop.f32.mrb[0].mxu0
  %752 = vmatprep.mubr.bf16.mxu0 %v390
  %753 = vmatmul.mubr.bf16.gmra.mrb[0].mxu0 %v389
  %v754 = vpop.f32.mrb[0].mxu0
  %v755 = vadd.f32 %v214, %v754
  %v756 = vpop.f32.mrb[0].mxu0
  %v757 = vpop.f32.mrb[0].mxu0
  %v758 = vadd.f32 %v219, %v757
  %v759 = vpop.f32.mrb[0].mxu0
  %760 = vmatprep.mubr.bf16.mxu0 %v395
  %761 = vmatmul.mubr.bf16.gmra.mrb[0].mxu0 %v394
  %v762 = vpop.f32.mrb[0].mxu0
  %v763 = vadd.f32 %v224, %v762
  %v764 = vpop.f32.mrb[0].mxu0
  %v765 = vpop.f32.mrb[0].mxu0
  %v766 = vadd.f32 %v229, %v765
  %v767 = vpop.f32.mrb[0].mxu0
  %768 = vdwg.mxu0
  %769 = vmatprep.subr.bf16.mxu0 0
  %770 = vmatpush1.bf16.msra.mxu0 %v591
  %771 = vmatprep.subr.bf16.mxu0 0
  %772 = vmatpush1.bf16.msra.mxu0 %v592
  %773 = vmatprep.subr.bf16.mxu0 0
  %774 = vmatpush1.bf16.msra.mxu0 %v593
  %775 = vmatprep.subr.bf16.mxu0 0
  %776 = vmatpush1.bf16.msra.mxu0 %v594
  %777 = vmatprep.subr.bf16.mxu0 0
  %778 = vmatpush1.bf16.msra.mxu0 %v595
  %779 = vmatprep.subr.bf16.mxu0 0
  %780 = vmatpush1.bf16.msra.mxu0 %v596
  %781 = vmatprep.subr.bf16.mxu0 0
  %782 = vmatpush1.bf16.msra.mxu0 %v597
  %783 = vmatprep.subr.bf16.mxu0 0
  %784 = vmatpush1.bf16.msra.mxu0 %v598
  %785 = vmatprep.subr.bf16.mxu0 0
  %786 = vmatpush1.bf16.msra.mxu0 %v599
  %787 = vmatprep.subr.bf16.mxu0 0
  %788 = vmatpush1.bf16.msra.mxu0 %v600
  %789 = vmatprep.subr.bf16.mxu0 0
  %790 = vmatpush1.bf16.msra.mxu0 %v601
  %791 = vmatprep.subr.bf16.mxu0 0
  %792 = vmatpush1.bf16.msra.mxu0 %v602
  %793 = vmatprep.subr.bf16.mxu0 0
  %794 = vmatpush1.bf16.msra.mxu0 %v603
  %795 = vmatprep.subr.bf16.mxu0 0
  %796 = vmatpush1.bf16.msra.mxu0 %v604
  %797 = vmatprep.subr.bf16.mxu0 0
  %798 = vmatpush1.bf16.msra.mxu0 %v605
  %799 = vmatprep.subr.bf16.mxu0 0
  %800 = vmatpush1.bf16.msra.mxu0 %v606
  %801 = vmatprep.mubr.bf16.mxu0 %v362
  %802 = vmatmul.mubr.bf16.gmra.mrb[0].mxu0 %v361
  %v803 = vpop.f32.mrb[0].mxu0
  %v804 = vadd.f32 %v707, %v803
  %v805 = vpop.f32.mrb[0].mxu0
  %v806 = vpop.f32.mrb[0].mxu0
  %v807 = vadd.f32 %v710, %v806
  %v808 = vpop.f32.mrb[0].mxu0
  %809 = vmatprep.mubr.bf16.mxu0 %v367
  %810 = vmatmul.mubr.bf16.gmra.mrb[0].mxu0 %v366
  %v811 = vpop.f32.mrb[0].mxu0
  %v812 = vadd.f32 %v715, %v811
  %v813 = vpop.f32.mrb[0].mxu0
  %v814 = vpop.f32.mrb[0].mxu0
  %v815 = vadd.f32 %v718, %v814
  %v816 = vpop.f32.mrb[0].mxu0
  %817 = vmatprep.mubr.bf16.mxu0 %v372
  %818 = vmatmul.mubr.bf16.gmra.mrb[0].mxu0 %v371
  %v819 = vpop.f32.mrb[0].mxu0
  %v820 = vadd.f32 %v723, %v819
  %v821 = vpop.f32.mrb[0].mxu0
  %v822 = vpop.f32.mrb[0].mxu0
  %v823 = vadd.f32 %v726, %v822
  %v824 = vpop.f32.mrb[0].mxu0
  %825 = vmatprep.mubr.bf16.mxu0 %v377
  %826 = vmatmul.mubr.bf16.gmra.mrb[0].mxu0 %v376
  %v827 = vpop.f32.mrb[0].mxu0
  %v828 = vadd.f32 %v731, %v827
  %v829 = vpop.f32.mrb[0].mxu0
  %v830 = vpop.f32.mrb[0].mxu0
  %v831 = vadd.f32 %v734, %v830
  %v832 = vpop.f32.mrb[0].mxu0
  %833 = vmatprep.mubr.bf16.mxu0 %v382
  %834 = vmatmul.mubr.bf16.gmra.mrb[0].mxu0 %v381
  %v835 = vpop.f32.mrb[0].mxu0
  %v836 = vadd.f32 %v739, %v835
  %v837 = vpop.f32.mrb[0].mxu0
  %v838 = vpop.f32.mrb[0].mxu0
  %v839 = vadd.f32 %v742, %v838
  %v840 = vpop.f32.mrb[0].mxu0
  %841 = vmatprep.mubr.bf16.mxu0 %v387
  %842 = vmatmul.mubr.bf16.gmra.mrb[0].mxu0 %v386
  %v843 = vpop.f32.mrb[0].mxu0
  %v844 = vadd.f32 %v747, %v843
  %v845 = vpop.f32.mrb[0].mxu0
  %v846 = vpop.f32.mrb[0].mxu0
  %v847 = vadd.f32 %v750, %v846
  %v848 = vpop.f32.mrb[0].mxu0
  %849 = vmatprep.mubr.bf16.mxu0 %v392
  %850 = vmatmul.mubr.bf16.gmra.mrb[0].mxu0 %v391
  %v851 = vpop.f32.mrb[0].mxu0
  %v852 = vadd.f32 %v755, %v851
  %v853 = vpop.f32.mrb[0].mxu0
  %v854 = vpop.f32.mrb[0].mxu0
  %v855 = vadd.f32 %v758, %v854
  %v856 = vpop.f32.mrb[0].mxu0
  %857 = vmatprep.mubr.bf16.mxu0 %v397
  %858 = vmatmul.mubr.bf16.gmra.mrb[0].mxu0 %v396
  %v859 = vpop.f32.mrb[0].mxu0
  %v860 = vadd.f32 %v763, %v859
  %v861 = vpop.f32.mrb[0].mxu0
  %v862 = vpop.f32.mrb[0].mxu0
  %v863 = vadd.f32 %v766, %v862
  %v864 = vpop.f32.mrb[0].mxu0
  %865 = vdwg.mxu0
  %866 = vmatprep.subr.bf16.mxu0 0
  %867 = vmatpush1.bf16.msra.mxu0 %v607
  %868 = vmatprep.subr.bf16.mxu0 0
  %869 = vmatpush1.bf16.msra.mxu0 %v608
  %870 = vmatprep.subr.bf16.mxu0 0
  %871 = vmatpush1.bf16.msra.mxu0 %v609
  %872 = vmatprep.subr.bf16.mxu0 0
  %873 = vmatpush1.bf16.msra.mxu0 %v610
  %874 = vmatprep.subr.bf16.mxu0 0
  %875 = vmatpush1.bf16.msra.mxu0 0
  %876 = vmatprep.subr.bf16.mxu0 0
  %877 = vmatpush1.bf16.msra.mxu0 0
  %878 = vmatprep.subr.bf16.mxu0 0
  %879 = vmatpush1.bf16.msra.mxu0 0
  %880 = vmatprep.subr.bf16.mxu0 0
  %881 = vmatpush1.bf16.msra.mxu0 0
  %882 = vmatprep.subr.bf16.mxu0 0
  %883 = vmatpush1.bf16.msra.mxu0 0
  %884 = vmatprep.subr.bf16.mxu0 0
  %885 = vmatpush1.bf16.msra.mxu0 0
  %886 = vmatprep.subr.bf16.mxu0 0
  %887 = vmatpush1.bf16.msra.mxu0 0
  %888 = vmatprep.subr.bf16.mxu0 0
  %889 = vmatpush1.bf16.msra.mxu0 0
  %890 = vmatprep.subr.bf16.mxu0 0
  %891 = vmatpush1.bf16.msra.mxu0 0
  %892 = vmatprep.subr.bf16.mxu0 0
  %893 = vmatpush1.bf16.msra.mxu0 0
  %894 = vmatprep.subr.bf16.mxu0 0
  %895 = vmatpush1.bf16.msra.mxu0 0
  %896 = vmatprep.subr.bf16.mxu0 0
  %897 = vmatpush1.bf16.msra.mxu0 0
  %898 = vmatprep.mubr.bf16.mxu0 0
  %899 = vmatmul.mubr.bf16.gmra.mrb[0].mxu0 %v649
  %v900 = vpop.f32.mrb[0].mxu0
  %v901 = vadd.f32 %v804, %v900
  %v902 = vpop.f32.mrb[0].mxu0
  %v903 = vpop.f32.mrb[0].mxu0
  %v904 = vadd.f32 %v807, %v903
  %v905 = vpop.f32.mrb[0].mxu0
  %906 = vmatprep.mubr.bf16.mxu0 0
  %907 = vmatmul.mubr.bf16.gmra.mrb[0].mxu0 %v652
  %v908 = vpop.f32.mrb[0].mxu0
  %v909 = vadd.f32 %v812, %v908
  %v910 = vpop.f32.mrb[0].mxu0
  %v911 = vpop.f32.mrb[0].mxu0
  %v912 = vadd.f32 %v815, %v911
  %v913 = vpop.f32.mrb[0].mxu0
  %914 = vmatprep.mubr.bf16.mxu0 0
  %915 = vmatmul.mubr.bf16.gmra.mrb[0].mxu0 %v655
  %v916 = vpop.f32.mrb[0].mxu0
  %v917 = vadd.f32 %v820, %v916
  %v918 = vpop.f32.mrb[0].mxu0
  %v919 = vpop.f32.mrb[0].mxu0
  %v920 = vadd.f32 %v823, %v919
  %v921 = vpop.f32.mrb[0].mxu0
  %922 = vmatprep.mubr.bf16.mxu0 0
  %923 = vmatmul.mubr.bf16.gmra.mrb[0].mxu0 %v658
  %v924 = vpop.f32.mrb[0].mxu0
  %v925 = vadd.f32 %v828, %v924
  %v926 = vpop.f32.mrb[0].mxu0
  %v927 = vpop.f32.mrb[0].mxu0
  %v928 = vadd.f32 %v831, %v927
  %v929 = vpop.f32.mrb[0].mxu0
  %930 = vmatprep.mubr.bf16.mxu0 0
  %931 = vmatmul.mubr.bf16.gmra.mrb[0].mxu0 %v661
  %v932 = vpop.f32.mrb[0].mxu0
  %v933 = vadd.f32 %v836, %v932
  %v934 = vpop.f32.mrb[0].mxu0
  %v935 = vpop.f32.mrb[0].mxu0
  %v936 = vadd.f32 %v839, %v935
  %v937 = vpop.f32.mrb[0].mxu0
  %938 = vmatprep.mubr.bf16.mxu0 0
  %939 = vmatmul.mubr.bf16.gmra.mrb[0].mxu0 %v664
  %v940 = vpop.f32.mrb[0].mxu0
  %v941 = vadd.f32 %v844, %v940
  %v942 = vpop.f32.mrb[0].mxu0
  %v943 = vpop.f32.mrb[0].mxu0
  %v944 = vadd.f32 %v847, %v943
  %v945 = vpop.f32.mrb[0].mxu0
  %946 = vmatprep.mubr.bf16.mxu0 0
  %947 = vmatmul.mubr.bf16.gmra.mrb[0].mxu0 %v667
  %v948 = vpop.f32.mrb[0].mxu0
  %v949 = vadd.f32 %v852, %v948
  %v950 = vpop.f32.mrb[0].mxu0
  %v951 = vpop.f32.mrb[0].mxu0
  %v952 = vadd.f32 %v855, %v951
  %v953 = vpop.f32.mrb[0].mxu0
  %954 = vmatprep.mubr.bf16.mxu0 0
  %955 = vmatmul.mubr.bf16.gmra.mrb[0].mxu0 %v670
  %v956 = vpop.f32.mrb[0].mxu0
  %v957 = vadd.f32 %v860, %v956
  %v958 = vpop.f32.mrb[0].mxu0
  %v959 = vpop.f32.mrb[0].mxu0
  %v960 = vadd.f32 %v863, %v959
  %v961 = vpop.f32.mrb[0].mxu0
  %962 = vdwg.mxu0
  %vm963 = vcmp.gt.f32.partialorder %v901, 0.0
  %vm964 = vcmp.gt.f32.partialorder %v904, 0.0
  %vm965 = vcmp.gt.f32.partialorder %v909, 0.0
  %vm966 = vcmp.gt.f32.partialorder %v912, 0.0
  %vm967 = vcmp.gt.f32.partialorder %v917, 0.0
  %vm968 = vcmp.gt.f32.partialorder %v920, 0.0
  %vm969 = vcmp.gt.f32.partialorder %v925, 0.0
  %vm970 = vcmp.gt.f32.partialorder %v928, 0.0
  %vm971 = vcmp.gt.f32.partialorder %v933, 0.0
  %vm972 = vcmp.gt.f32.partialorder %v936, 0.0
  %vm973 = vcmp.gt.f32.partialorder %v941, 0.0
  %vm974 = vcmp.gt.f32.partialorder %v944, 0.0
  %vm975 = vcmp.gt.f32.partialorder %v949, 0.0
  %vm976 = vcmp.gt.f32.partialorder %v952, 0.0
  %vm977 = vcmp.gt.f32.partialorder %v957, 0.0
  %vm978 = vcmp.gt.f32.partialorder %v960, 0.0
  %v979 = vmul.f32 %v901, 0.2
  %v980 = vmul.f32 %v904, 0.2
  %v981 = vmul.f32 %v909, 0.2
  %v982 = vmul.f32 %v912, 0.2
  %v983 = vmul.f32 %v917, 0.2
  %v984 = vmul.f32 %v920, 0.2
  %v985 = vmul.f32 %v925, 0.2
  %v986 = vmul.f32 %v928, 0.2
  %v987 = vmul.f32 %v933, 0.2
  %v988 = vmul.f32 %v936, 0.2
  %v989 = vmul.f32 %v941, 0.2
  %v990 = vmul.f32 %v944, 0.2
  %v991 = vmul.f32 %v949, 0.2
  %v992 = vmul.f32 %v952, 0.2
  %v993 = vmul.f32 %v957, 0.2
  %v994 = vmul.f32 %v960, 0.2
  %v995 = vsel %vm963, %v901, %v979
  %v996 = vsel %vm964, %v904, %v980
  %v997 = vsel %vm965, %v909, %v981
  %v998 = vsel %vm966, %v912, %v982
  %v999 = vsel %vm967, %v917, %v983
  %v1000 = vsel %vm968, %v920, %v984
  %v1001 = vsel %vm969, %v925, %v985
  %v1002 = vsel %vm970, %v928, %v986
  %v1003 = vsel %vm971, %v933, %v987
  %v1004 = vsel %vm972, %v936, %v988
  %v1005 = vsel %vm973, %v941, %v989
  %v1006 = vsel %vm974, %v944, %v990
  %v1007 = vsel %vm975, %v949, %v991
  %v1008 = vsel %vm976, %v952, %v992
  %v1009 = vsel %vm977, %v957, %v993
  %v1010 = vsel %vm978, %v960, %v994
  %vm1011 = vcmask 261120
  %1012 = vst.msk [vmem:[%s3] sm:$0xff] %vm1011, %v995
  %1013 = vst.msk [vmem:[%s3 + $0x8] sm:$0xff] %vm1011, %v996
  %1014 = vst.msk [vmem:[%s3 + $0x10] sm:$0xff] %vm1011, %v997
  %1015 = vst.msk [vmem:[%s3 + $0x18] sm:$0xff] %vm1011, %v998
  %1016 = vst.msk [vmem:[%s3 + $0x20] sm:$0xff] %vm1011, %v999
  %1017 = vst.msk [vmem:[%s3 + $0x28] sm:$0xff] %vm1011, %v1000
  %1018 = vst.msk [vmem:[%s3 + $0x30] sm:$0xff] %vm1011, %v1001
  %1019 = vst.msk [vmem:[%s3 + $0x38] sm:$0xff] %vm1011, %v1002
  %1020 = vst.msk [vmem:[%s3 + $0x40] sm:$0xff] %vm1011, %v1003
  %1021 = vst.msk [vmem:[%s3 + $0x48] sm:$0xff] %vm1011, %v1004
  %1022 = vst.msk [vmem:[%s3 + $0x50] sm:$0xff] %vm1011, %v1005
  %1023 = vst.msk [vmem:[%s3 + $0x58] sm:$0xff] %vm1011, %v1006
  %1024 = vst.msk [vmem:[%s3 + $0x60] sm:$0xff] %vm1011, %v1007
  %1025 = vst.msk [vmem:[%s3 + $0x68] sm:$0xff] %vm1011, %v1008
  %1026 = vst.msk [vmem:[%s3 + $0x70] sm:$0xff] %vm1011, %v1009
  %1027 = vst.msk [vmem:[%s3 + $0x78] sm:$0xff] %vm1011, %v1010
  // Predicated region
  $region14: #{vae_forward.11} parent=0 // pred_check
    _
  $region15: #{vae_forward.11} parent=0 // pred_check_branch
    %1029 = sbr.rel (0) target = $region17
  $region16: #{vae_forward.11} parent=0 // pred_region
    _
  $region17: #{vae_forward.11} parent=0 // pred_fallthru
    _
  // Predicated region
  $region18: #{vae_forward.11} parent=0 // pred_check
    _
  $region19: #{vae_forward.11} parent=0 // pred_check_branch
    %1031 = sbr.rel (0) target = $region21
  $region20: #{vae_forward.11} parent=0 // pred_region
    _
  $region21: #{vae_forward.11} parent=0 // pred_fallthru
    _

// kernel: vae_forward.12
$region0: #{vae_forward.12}
  #allocation0 [shape = 'u32[]', space=smem, size = 0x4, offset = 0x4, fixed_abs, tag = 'smem constant byte address 0x4 - core index']
  #allocation1 [shape = 'u32[144,128]{1,0:T(1,128)}', space=vmem, size = 0x12000, scoped, tag = 'internal scratch']
  %s0 = inlined_call_operand.vmem [shape: bf16[256,1152], index: 0, kind: input, shape index: {}]
  %s1 = inlined_call_operand.vmem [shape: bf16[1152,8], index: 1, kind: input, shape index: {}]
  %s2 = inlined_call_operand.vmem [shape: f32[256,1], index: 2, kind: input, shape index: {}]
  %s3 = inlined_call_operand.vmem [shape: f32[256,8], index: 3, kind: output, shape index: {}]
  %s4 = sld [smem:[#allocation0]]
  $region22: #{vae_forward.12} parent=0
    _
  %s6 = ssub.s32 1, %s4
  %s7 = scalar_select 0, %s6, %s4
  // Predicated region
  $region2: #{vae_forward.12} parent=0 // pred_check
    _
  $region3: #{vae_forward.12} parent=0 // pred_check_branch
    %9 = sbr.rel (0) target = $region5
  $region4: #{vae_forward.12} parent=0 // pred_region
    _
  $region5: #{vae_forward.12} parent=0 // pred_fallthru
    _
  // Predicated region
  $region6: #{vae_forward.12} parent=0 // pred_check
    _
  $region7: #{vae_forward.12} parent=0 // pred_check_branch
    %11 = sbr.rel (0) target = $region9
  $region8: #{vae_forward.12} parent=0 // pred_region
    _
  $region9: #{vae_forward.12} parent=0 // pred_fallthru
    _
  // Predicated region
  $region10: #{vae_forward.12} parent=0 // pred_check
    _
  $region11: #{vae_forward.12} parent=0 // pred_check_branch
    %13 = sbr.rel (0) target = $region13
  $region12: #{vae_forward.12} parent=0 // pred_region
    _
  $region13: #{vae_forward.12} parent=0 // pred_fallthru
    _
  %v15 = vld [vmem:[%s0] sm:$0xff]
  %v16 = vld [vmem:[%s0 + $0x8] sm:$0xff]
  %v17 = vld [vmem:[%s0 + $0x10] sm:$0xff]
  %v18 = vld [vmem:[%s0 + $0x18] sm:$0xff]
  %v19 = vld [vmem:[%s0 + $0x20] sm:$0xf]
  %v20 = vld [vmem:[%s0 + $0x24] sm:$0xff]
  %v21 = vld [vmem:[%s0 + $0x2c] sm:$0xff]
  %v22 = vld [vmem:[%s0 + $0x34] sm:$0xff]
  %v23 = vld [vmem:[%s0 + $0x3c] sm:$0xff]
  %v24 = vld [vmem:[%s0 + $0x44] sm:$0xf]
  %v25 = vld [vmem:[%s0 + $0x48] sm:$0xff]
  %v26 = vld [vmem:[%s0 + $0x50] sm:$0xff]
  %v27 = vld [vmem:[%s0 + $0x58] sm:$0xff]
  %v28 = vld [vmem:[%s0 + $0x60] sm:$0xff]
  %v29 = vld [vmem:[%s0 + $0x68] sm:$0xf]
  %v30 = vld [vmem:[%s0 + $0x6c] sm:$0xff]
  %v31 = vld [vmem:[%s0 + $0x74] sm:$0xff]
  %v32 = vld [vmem:[%s0 + $0x7c] sm:$0xff]
  %v33 = vld [vmem:[%s0 + $0x84] sm:$0xff]
  %v34 = vld [vmem:[%s0 + $0x8c] sm:$0xf]
  %v35 = vld [vmem:[%s0 + $0x90] sm:$0xff]
  %v36 = vld [vmem:[%s0 + $0x98] sm:$0xff]
  %v37 = vld [vmem:[%s0 + $0xa0] sm:$0xff]
  %v38 = vld [vmem:[%s0 + $0xa8] sm:$0xff]
  %v39 = vld [vmem:[%s0 + $0xb0] sm:$0xf]
  %v40 = vld [vmem:[%s0 + $0xb4] sm:$0xff]
  %v41 = vld [vmem:[%s0 + $0xbc] sm:$0xff]
  %v42 = vld [vmem:[%s0 + $0xc4] sm:$0xff]
  %v43 = vld [vmem:[%s0 + $0xcc] sm:$0xff]
  %v44 = vld [vmem:[%s0 + $0xd4] sm:$0xf]
  %v45 = vld [vmem:[%s0 + $0xd8] sm:$0xff]
  %v46 = vld [vmem:[%s0 + $0xe0] sm:$0xff]
  %v47 = vld [vmem:[%s0 + $0xe8] sm:$0xff]
  %v48 = vld [vmem:[%s0 + $0xf0] sm:$0xff]
  %v49 = vld [vmem:[%s0 + $0xf8] sm:$0xf]
  %v50 = vld [vmem:[%s0 + $0xfc] sm:$0xff]
  %v51 = vld [vmem:[%s0 + $0x104] sm:$0xff]
  %v52 = vld [vmem:[%s0 + $0x10c] sm:$0xff]
  %v53 = vld [vmem:[%s0 + $0x114] sm:$0xff]
  %v54 = vld [vmem:[%s0 + $0x11c] sm:$0xf]
  %v55 = vld [vmem:[%s0 + $0x120] sm:$0xff]
  %v56 = vld [vmem:[%s0 + $0x128] sm:$0xff]
  %v57 = vld [vmem:[%s0 + $0x130] sm:$0xff]
  %v58 = vld [vmem:[%s0 + $0x138] sm:$0xff]
  %v59 = vld [vmem:[%s0 + $0x140] sm:$0xf]
  %v60 = vld [vmem:[%s0 + $0x144] sm:$0xff]
  %v61 = vld [vmem:[%s0 + $0x14c] sm:$0xff]
  %v62 = vld [vmem:[%s0 + $0x154] sm:$0xff]
  %v63 = vld [vmem:[%s0 + $0x15c] sm:$0xff]
  %v64 = vld [vmem:[%s0 + $0x164] sm:$0xf]
  %v65 = vld [vmem:[%s0 + $0x168] sm:$0xff]
  %v66 = vld [vmem:[%s0 + $0x170] sm:$0xff]
  %v67 = vld [vmem:[%s0 + $0x178] sm:$0xff]
  %v68 = vld [vmem:[%s0 + $0x180] sm:$0xff]
  %v69 = vld [vmem:[%s0 + $0x188] sm:$0xf]
  %v70 = vld [vmem:[%s0 + $0x18c] sm:$0xff]
  %v71 = vld [vmem:[%s0 + $0x194] sm:$0xff]
  %v72 = vld [vmem:[%s0 + $0x19c] sm:$0xff]
  %v73 = vld [vmem:[%s0 + $0x1a4] sm:$0xff]
  %v74 = vld [vmem:[%s0 + $0x1ac] sm:$0xf]
  %v75 = vld [vmem:[%s0 + $0x1b0] sm:$0xff]
  %v76 = vld [vmem:[%s0 + $0x1b8] sm:$0xff]
  %v77 = vld [vmem:[%s0 + $0x1c0] sm:$0xff]
  %v78 = vld [vmem:[%s0 + $0x1c8] sm:$0xff]
  %v79 = vld [vmem:[%s0 + $0x1d0] sm:$0xf]
  %v80 = vld [vmem:[%s0 + $0x1d4] sm:$0xff]
  %v81 = vld [vmem:[%s0 + $0x1dc] sm:$0xff]
  %v82 = vld [vmem:[%s0 + $0x1e4] sm:$0xff]
  %v83 = vld [vmem:[%s0 + $0x1ec] sm:$0xff]
  %v84 = vld [vmem:[%s0 + $0x1f4] sm:$0xf]
  %v85 = vld [vmem:[%s0 + $0x1f8] sm:$0xff]
  %v86 = vld [vmem:[%s0 + $0x200] sm:$0xff]
  %v87 = vld [vmem:[%s0 + $0x208] sm:$0xff]
  %v88 = vld [vmem:[%s0 + $0x210] sm:$0xff]
  %v89 = vld [vmem:[%s0 + $0x218] sm:$0xf]
  %v90 = vld [vmem:[%s0 + $0x21c] sm:$0xff]
  %v91 = vld [vmem:[%s0 + $0x224] sm:$0xff]
  %v92 = vld [vmem:[%s0 + $0x22c] sm:$0xff]
  %v93 = vld [vmem:[%s0 + $0x234] sm:$0xff]
  %v94 = vld [vmem:[%s0 + $0x23c] sm:$0xf]
  %v95 = vld [vmem:[%s0 + $0x240] sm:$0xff]
  %v96 = vld [vmem:[%s0 + $0x248] sm:$0xff]
  %v97 = vld [vmem:[%s0 + $0x250] sm:$0xff]
  %v98 = vld [vmem:[%s0 + $0x258] sm:$0xff]
  %v99 = vld [vmem:[%s0 + $0x260] sm:$0xf]
  %v100 = vld [vmem:[%s0 + $0x264] sm:$0xff]
  %v101 = vld [vmem:[%s0 + $0x26c] sm:$0xff]
  %v102 = vld [vmem:[%s0 + $0x274] sm:$0xff]
  %v103 = vld [vmem:[%s0 + $0x27c] sm:$0xff]
  %v104 = vld [vmem:[%s0 + $0x284] sm:$0xf]
  %v105 = vld [vmem:[%s0 + $0x288] sm:$0xff]
  %v106 = vld [vmem:[%s0 + $0x290] sm:$0xff]
  %v107 = vld [vmem:[%s0 + $0x298] sm:$0xff]
  %v108 = vld [vmem:[%s0 + $0x2a0] sm:$0xff]
  %v109 = vld [vmem:[%s0 + $0x2a8] sm:$0xf]
  %v110 = vld [vmem:[%s0 + $0x2ac] sm:$0xff]
  %v111 = vld [vmem:[%s0 + $0x2b4] sm:$0xff]
  %v112 = vld [vmem:[%s0 + $0x2bc] sm:$0xff]
  %v113 = vld [vmem:[%s0 + $0x2c4] sm:$0xff]
  %v114 = vld [vmem:[%s0 + $0x2cc] sm:$0xf]
  %v115 = vld [vmem:[%s0 + $0x2d0] sm:$0xff]
  %v116 = vld [vmem:[%s0 + $0x2d8] sm:$0xff]
  %v117 = vld [vmem:[%s0 + $0x2e0] sm:$0xff]
  %v118 = vld [vmem:[%s0 + $0x2e8] sm:$0xff]
  %v119 = vld [vmem:[%s0 + $0x2f0] sm:$0xf]
  %v120 = vld [vmem:[%s0 + $0x2f4] sm:$0xff]
  %v121 = vld [vmem:[%s0 + $0x2fc] sm:$0xff]
  %v122 = vld [vmem:[%s0 + $0x304] sm:$0xff]
  %v123 = vld [vmem:[%s0 + $0x30c] sm:$0xff]
  %v124 = vld [vmem:[%s0 + $0x314] sm:$0xf]
  %v125 = vld [vmem:[%s0 + $0x318] sm:$0xff]
  %v126 = vld [vmem:[%s0 + $0x320] sm:$0xff]
  %v127 = vld [vmem:[%s0 + $0x328] sm:$0xff]
  %v128 = vld [vmem:[%s0 + $0x330] sm:$0xff]
  %v129 = vld [vmem:[%s0 + $0x338] sm:$0xf]
  %v130 = vld [vmem:[%s0 + $0x33c] sm:$0xff]
  %v131 = vld [vmem:[%s0 + $0x344] sm:$0xff]
  %v132 = vld [vmem:[%s0 + $0x34c] sm:$0xff]
  %v133 = vld [vmem:[%s0 + $0x354] sm:$0xff]
  %v134 = vld [vmem:[%s0 + $0x35c] sm:$0xf]
  %v135 = vld [vmem:[%s0 + $0x360] sm:$0xff]
  %v136 = vld [vmem:[%s0 + $0x368] sm:$0xff]
  %v137 = vld [vmem:[%s0 + $0x370] sm:$0xff]
  %v138 = vld [vmem:[%s0 + $0x378] sm:$0xff]
  %v139 = vld [vmem:[%s0 + $0x380] sm:$0xf]
  %v140 = vld [vmem:[%s0 + $0x384] sm:$0xff]
  %v141 = vld [vmem:[%s0 + $0x38c] sm:$0xff]
  %v142 = vld [vmem:[%s0 + $0x394] sm:$0xff]
  %v143 = vld [vmem:[%s0 + $0x39c] sm:$0xff]
  %v144 = vld [vmem:[%s0 + $0x3a4] sm:$0xf]
  %v145 = vld [vmem:[%s0 + $0x3a8] sm:$0xff]
  %v146 = vld [vmem:[%s0 + $0x3b0] sm:$0xff]
  %v147 = vld [vmem:[%s0 + $0x3b8] sm:$0xff]
  %v148 = vld [vmem:[%s0 + $0x3c0] sm:$0xff]
  %v149 = vld [vmem:[%s0 + $0x3c8] sm:$0xf]
  %v150 = vld [vmem:[%s0 + $0x3cc] sm:$0xff]
  %v151 = vld [vmem:[%s0 + $0x3d4] sm:$0xff]
  %v152 = vld [vmem:[%s0 + $0x3dc] sm:$0xff]
  %v153 = vld [vmem:[%s0 + $0x3e4] sm:$0xff]
  %v154 = vld [vmem:[%s0 + $0x3ec] sm:$0xf]
  %v155 = vld [vmem:[%s0 + $0x3f0] sm:$0xff]
  %v156 = vld [vmem:[%s0 + $0x3f8] sm:$0xff]
  %v157 = vld [vmem:[%s0 + $0x400] sm:$0xff]
  %v158 = vld [vmem:[%s0 + $0x408] sm:$0xff]
  %v159 = vld [vmem:[%s0 + $0x410] sm:$0xf]
  %v160 = vld [vmem:[%s0 + $0x414] sm:$0xff]
  %v161 = vld [vmem:[%s0 + $0x41c] sm:$0xff]
  %v162 = vld [vmem:[%s0 + $0x424] sm:$0xff]
  %v163 = vld [vmem:[%s0 + $0x42c] sm:$0xff]
  %v164 = vld [vmem:[%s0 + $0x434] sm:$0xf]
  %v165 = vld [vmem:[%s0 + $0x438] sm:$0xff]
  %v166 = vld [vmem:[%s0 + $0x440] sm:$0xff]
  %v167 = vld [vmem:[%s0 + $0x448] sm:$0xff]
  %v168 = vld [vmem:[%s0 + $0x450] sm:$0xff]
  %v169 = vld [vmem:[%s0 + $0x458] sm:$0xf]
  %v170 = vld [vmem:[%s0 + $0x45c] sm:$0xff]
  %v171 = vld [vmem:[%s0 + $0x464] sm:$0xff]
  %v172 = vld [vmem:[%s0 + $0x46c] sm:$0xff]
  %v173 = vld [vmem:[%s0 + $0x474] sm:$0xff]
  %v174 = vld [vmem:[%s0 + $0x47c] sm:$0xf]
  %v175 = vld [vmem:[%s1] sm:$0xf]
  %v176 = vld [vmem:[%s1 + $0x4] sm:$0xf]
  %v177 = vld [vmem:[%s1 + $0x8] sm:$0xf]
  %v178 = vld [vmem:[%s1 + $0xc] sm:$0xf]
  %v179 = vld [vmem:[%s1 + $0x10] sm:$0xf]
  %v180 = vld [vmem:[%s1 + $0x14] sm:$0xf]
  %v181 = vld [vmem:[%s1 + $0x18] sm:$0xf]
  %v182 = vld [vmem:[%s1 + $0x1c] sm:$0xf]
  %v183 = vld [vmem:[%s1 + $0x20] sm:$0xf]
  %v184 = vld [vmem:[%s1 + $0x24] sm:$0xf]
  %v185 = vld [vmem:[%s1 + $0x28] sm:$0xf]
  %v186 = vld [vmem:[%s1 + $0x2c] sm:$0xf]
  %v187 = vld [vmem:[%s1 + $0x30] sm:$0xf]
  %v188 = vld [vmem:[%s1 + $0x34] sm:$0xf]
  %v189 = vld [vmem:[%s1 + $0x38] sm:$0xf]
  %v190 = vld [vmem:[%s1 + $0x3c] sm:$0xf]
  %v191 = vld [vmem:[%s1 + $0x40] sm:$0xf]
  %v192 = vld [vmem:[%s1 + $0x44] sm:$0xf]
  %v193 = vld [vmem:[%s1 + $0x48] sm:$0xf]
  %v194 = vld [vmem:[%s1 + $0x4c] sm:$0xf]
  %v195 = vld [vmem:[%s1 + $0x50] sm:$0xf]
  %v196 = vld [vmem:[%s1 + $0x54] sm:$0xf]
  %v197 = vld [vmem:[%s1 + $0x58] sm:$0xf]
  %v198 = vld [vmem:[%s1 + $0x5c] sm:$0xf]
  %v199 = vld [vmem:[%s1 + $0x60] sm:$0xf]
  %v200 = vld [vmem:[%s1 + $0x64] sm:$0xf]
  %v201 = vld [vmem:[%s1 + $0x68] sm:$0xf]
  %v202 = vld [vmem:[%s1 + $0x6c] sm:$0xf]
  %v203 = vld [vmem:[%s1 + $0x70] sm:$0xf]
  %v204 = vld [vmem:[%s1 + $0x74] sm:$0xf]
  %v205 = vld [vmem:[%s1 + $0x78] sm:$0xf]
  %v206 = vld [vmem:[%s1 + $0x7c] sm:$0xf]
  %v207 = vld [vmem:[%s1 + $0x80] sm:$0xf]
  %v208 = vld [vmem:[%s1 + $0x84] sm:$0xf]
  %v209 = vld [vmem:[%s1 + $0x88] sm:$0xf]
  %v210 = vld [vmem:[%s1 + $0x8c] sm:$0xf]
  %v211 = vld [vmem:[%s1 + $0x90] sm:$0xf]
  %v212 = vld [vmem:[%s1 + $0x94] sm:$0xf]
  %v213 = vld [vmem:[%s1 + $0x98] sm:$0xf]
  %v214 = vld [vmem:[%s1 + $0x9c] sm:$0xf]
  %v215 = vld [vmem:[%s1 + $0xa0] sm:$0xf]
  %v216 = vld [vmem:[%s1 + $0xa4] sm:$0xf]
  %v217 = vld [vmem:[%s1 + $0xa8] sm:$0xf]
  %v218 = vld [vmem:[%s1 + $0xac] sm:$0xf]
  %v219 = vld [vmem:[%s1 + $0xb0] sm:$0xf]
  %v220 = vld [vmem:[%s1 + $0xb4] sm:$0xf]
  %v221 = vld [vmem:[%s1 + $0xb8] sm:$0xf]
  %v222 = vld [vmem:[%s1 + $0xbc] sm:$0xf]
  %v223 = vld [vmem:[%s1 + $0xc0] sm:$0xf]
  %v224 = vld [vmem:[%s1 + $0xc4] sm:$0xf]
  %v225 = vld [vmem:[%s1 + $0xc8] sm:$0xf]
  %v226 = vld [vmem:[%s1 + $0xcc] sm:$0xf]
  %v227 = vld [vmem:[%s1 + $0xd0] sm:$0xf]
  %v228 = vld [vmem:[%s1 + $0xd4] sm:$0xf]
  %v229 = vld [vmem:[%s1 + $0xd8] sm:$0xf]
  %v230 = vld [vmem:[%s1 + $0xdc] sm:$0xf]
  %v231 = vld [vmem:[%s1 + $0xe0] sm:$0xf]
  %v232 = vld [vmem:[%s1 + $0xe4] sm:$0xf]
  %v233 = vld [vmem:[%s1 + $0xe8] sm:$0xf]
  %v234 = vld [vmem:[%s1 + $0xec] sm:$0xf]
  %v235 = vld [vmem:[%s1 + $0xf0] sm:$0xf]
  %v236 = vld [vmem:[%s1 + $0xf4] sm:$0xf]
  %v237 = vld [vmem:[%s1 + $0xf8] sm:$0xf]
  %v238 = vld [vmem:[%s1 + $0xfc] sm:$0xf]
  %v239 = vld [vmem:[%s1 + $0x100] sm:$0xf]
  %v240 = vld [vmem:[%s1 + $0x104] sm:$0xf]
  %v241 = vld [vmem:[%s1 + $0x108] sm:$0xf]
  %v242 = vld [vmem:[%s1 + $0x10c] sm:$0xf]
  %v243 = vld [vmem:[%s1 + $0x110] sm:$0xf]
  %v244 = vld [vmem:[%s1 + $0x114] sm:$0xf]
  %v245 = vld [vmem:[%s1 + $0x118] sm:$0xf]
  %v246 = vld [vmem:[%s1 + $0x11c] sm:$0xf]
  %v247 = vld [vmem:[%s1 + $0x120] sm:$0xf]
  %v248 = vld [vmem:[%s1 + $0x124] sm:$0xf]
  %v249 = vld [vmem:[%s1 + $0x128] sm:$0xf]
  %v250 = vld [vmem:[%s1 + $0x12c] sm:$0xf]
  %v251 = vld [vmem:[%s1 + $0x130] sm:$0xf]
  %v252 = vld [vmem:[%s1 + $0x134] sm:$0xf]
  %v253 = vld [vmem:[%s1 + $0x138] sm:$0xf]
  %v254 = vld [vmem:[%s1 + $0x13c] sm:$0xf]
  %v255 = vld [vmem:[%s1 + $0x140] sm:$0xf]
  %v256 = vld [vmem:[%s1 + $0x144] sm:$0xf]
  %v257 = vld [vmem:[%s1 + $0x148] sm:$0xf]
  %v258 = vld [vmem:[%s1 + $0x14c] sm:$0xf]
  %v259 = vld [vmem:[%s1 + $0x150] sm:$0xf]
  %v260 = vld [vmem:[%s1 + $0x154] sm:$0xf]
  %v261 = vld [vmem:[%s1 + $0x158] sm:$0xf]
  %v262 = vld [vmem:[%s1 + $0x15c] sm:$0xf]
  %v263 = vld [vmem:[%s1 + $0x160] sm:$0xf]
  %v264 = vld [vmem:[%s1 + $0x164] sm:$0xf]
  %v265 = vld [vmem:[%s1 + $0x168] sm:$0xf]
  %v266 = vld [vmem:[%s1 + $0x16c] sm:$0xf]
  %v267 = vld [vmem:[%s1 + $0x170] sm:$0xf]
  %v268 = vld [vmem:[%s1 + $0x174] sm:$0xf]
  %v269 = vld [vmem:[%s1 + $0x178] sm:$0xf]
  %v270 = vld [vmem:[%s1 + $0x17c] sm:$0xf]
  %v271 = vld [vmem:[%s1 + $0x180] sm:$0xf]
  %v272 = vld [vmem:[%s1 + $0x184] sm:$0xf]
  %v273 = vld [vmem:[%s1 + $0x188] sm:$0xf]
  %v274 = vld [vmem:[%s1 + $0x18c] sm:$0xf]
  %v275 = vld [vmem:[%s1 + $0x190] sm:$0xf]
  %v276 = vld [vmem:[%s1 + $0x194] sm:$0xf]
  %v277 = vld [vmem:[%s1 + $0x198] sm:$0xf]
  %v278 = vld [vmem:[%s1 + $0x19c] sm:$0xf]
  %v279 = vld [vmem:[%s1 + $0x1a0] sm:$0xf]
  %v280 = vld [vmem:[%s1 + $0x1a4] sm:$0xf]
  %v281 = vld [vmem:[%s1 + $0x1a8] sm:$0xf]
  %v282 = vld [vmem:[%s1 + $0x1ac] sm:$0xf]
  %v283 = vld [vmem:[%s1 + $0x1b0] sm:$0xf]
  %v284 = vld [vmem:[%s1 + $0x1b4] sm:$0xf]
  %v285 = vld [vmem:[%s1 + $0x1b8] sm:$0xf]
  %v286 = vld [vmem:[%s1 + $0x1bc] sm:$0xf]
  %v287 = vld [vmem:[%s1 + $0x1c0] sm:$0xf]
  %v288 = vld [vmem:[%s1 + $0x1c4] sm:$0xf]
  %v289 = vld [vmem:[%s1 + $0x1c8] sm:$0xf]
  %v290 = vld [vmem:[%s1 + $0x1cc] sm:$0xf]
  %v291 = vld [vmem:[%s1 + $0x1d0] sm:$0xf]
  %v292 = vld [vmem:[%s1 + $0x1d4] sm:$0xf]
  %v293 = vld [vmem:[%s1 + $0x1d8] sm:$0xf]
  %v294 = vld [vmem:[%s1 + $0x1dc] sm:$0xf]
  %v295 = vld [vmem:[%s1 + $0x1e0] sm:$0xf]
  %v296 = vld [vmem:[%s1 + $0x1e4] sm:$0xf]
  %v297 = vld [vmem:[%s1 + $0x1e8] sm:$0xf]
  %v298 = vld [vmem:[%s1 + $0x1ec] sm:$0xf]
  %v299 = vld [vmem:[%s1 + $0x1f0] sm:$0xf]
  %v300 = vld [vmem:[%s1 + $0x1f4] sm:$0xf]
  %v301 = vld [vmem:[%s1 + $0x1f8] sm:$0xf]
  %v302 = vld [vmem:[%s1 + $0x1fc] sm:$0xf]
  %v303 = vld [vmem:[%s1 + $0x200] sm:$0xf]
  %v304 = vld [vmem:[%s1 + $0x204] sm:$0xf]
  %v305 = vld [vmem:[%s1 + $0x208] sm:$0xf]
  %v306 = vld [vmem:[%s1 + $0x20c] sm:$0xf]
  %v307 = vld [vmem:[%s1 + $0x210] sm:$0xf]
  %v308 = vld [vmem:[%s1 + $0x214] sm:$0xf]
  %v309 = vld [vmem:[%s1 + $0x218] sm:$0xf]
  %v310 = vld [vmem:[%s1 + $0x21c] sm:$0xf]
  %v311 = vld [vmem:[%s1 + $0x220] sm:$0xf]
  %v312 = vld [vmem:[%s1 + $0x224] sm:$0xf]
  %v313 = vld [vmem:[%s1 + $0x228] sm:$0xf]
  %v314 = vld [vmem:[%s1 + $0x22c] sm:$0xf]
  %v315 = vld [vmem:[%s1 + $0x230] sm:$0xf]
  %v316 = vld [vmem:[%s1 + $0x234] sm:$0xf]
  %v317 = vld [vmem:[%s1 + $0x238] sm:$0xf]
  %v318 = vld [vmem:[%s1 + $0x23c] sm:$0xf]
  %v319 = vld [vmem:[%s2] sm:$0xff]
  %v320 = vld [vmem:[%s2 + $0x8] sm:$0xff]
  %v321 = vld [vmem:[%s2 + $0x10] sm:$0xff]
  %v322 = vld [vmem:[%s2 + $0x18] sm:$0xff]
  %v323 = vld [vmem:[%s2 + $0x20] sm:$0xff]
  %v324 = vld [vmem:[%s2 + $0x28] sm:$0xff]
  %v325 = vld [vmem:[%s2 + $0x30] sm:$0xff]
  %v326 = vld [vmem:[%s2 + $0x38] sm:$0xff]
  %v327 = vld [vmem:[%s2 + $0x40] sm:$0xff]
  %v328 = vld [vmem:[%s2 + $0x48] sm:$0xff]
  %v329 = vld [vmem:[%s2 + $0x50] sm:$0xff]
  %v330 = vld [vmem:[%s2 + $0x58] sm:$0xff]
  %v331 = vld [vmem:[%s2 + $0x60] sm:$0xff]
  %v332 = vld [vmem:[%s2 + $0x68] sm:$0xff]
  %v333 = vld [vmem:[%s2 + $0x70] sm:$0xff]
  %v334 = vld [vmem:[%s2 + $0x78] sm:$0xff]
  %v335 = vld [vmem:[%s2 + $0x80] sm:$0xff]
  %v336 = vld [vmem:[%s2 + $0x88] sm:$0xff]
  %v337 = vld [vmem:[%s2 + $0x90] sm:$0xff]
  %v338 = vld [vmem:[%s2 + $0x98] sm:$0xff]
  %v339 = vld [vmem:[%s2 + $0xa0] sm:$0xff]
  %v340 = vld [vmem:[%s2 + $0xa8] sm:$0xff]
  %v341 = vld [vmem:[%s2 + $0xb0] sm:$0xff]
  %v342 = vld [vmem:[%s2 + $0xb8] sm:$0xff]
  %v343 = vld [vmem:[%s2 + $0xc0] sm:$0xff]
  %v344 = vld [vmem:[%s2 + $0xc8] sm:$0xff]
  %v345 = vld [vmem:[%s2 + $0xd0] sm:$0xff]
  %v346 = vld [vmem:[%s2 + $0xd8] sm:$0xff]
  %v347 = vld [vmem:[%s2 + $0xe0] sm:$0xff]
  %v348 = vld [vmem:[%s2 + $0xe8] sm:$0xff]
  %v349 = vld [vmem:[%s2 + $0xf0] sm:$0xff]
  %v350 = vld [vmem:[%s2 + $0xf8] sm:$0xff]
  %352 = vset.pattern.permute.xlu0 0
  %353 = vperm.xlu0 %352, %v319
  %v354 = vpop.permute.xlu0 %353
  %357 = vset.pattern.permute.xlu0 0
  %358 = vperm.xlu0 %357, %v320
  %v359 = vpop.permute.xlu0 %358
  %362 = vset.pattern.permute.xlu0 0
  %363 = vperm.xlu0 %362, %v321
  %v364 = vpop.permute.xlu0 %363
  %367 = vset.pattern.permute.xlu0 0
  %368 = vperm.xlu0 %367, %v322
  %v369 = vpop.permute.xlu0 %368
  %372 = vset.pattern.permute.xlu0 0
  %373 = vperm.xlu0 %372, %v323
  %v374 = vpop.permute.xlu0 %373
  %377 = vset.pattern.permute.xlu0 0
  %378 = vperm.xlu0 %377, %v324
  %v379 = vpop.permute.xlu0 %378
  %382 = vset.pattern.permute.xlu0 0
  %383 = vperm.xlu0 %382, %v325
  %v384 = vpop.permute.xlu0 %383
  %387 = vset.pattern.permute.xlu0 0
  %388 = vperm.xlu0 %387, %v326
  %v389 = vpop.permute.xlu0 %388
  %392 = vset.pattern.permute.xlu0 0
  %393 = vperm.xlu0 %392, %v327
  %v394 = vpop.permute.xlu0 %393
  %397 = vset.pattern.permute.xlu0 0
  %398 = vperm.xlu0 %397, %v328
  %v399 = vpop.permute.xlu0 %398
  %402 = vset.pattern.permute.xlu0 0
  %403 = vperm.xlu0 %402, %v329
  %v404 = vpop.permute.xlu0 %403
  %407 = vset.pattern.permute.xlu0 0
  %408 = vperm.xlu0 %407, %v330
  %v409 = vpop.permute.xlu0 %408
  %412 = vset.pattern.permute.xlu0 0
  %413 = vperm.xlu0 %412, %v331
  %v414 = vpop.permute.xlu0 %413
  %417 = vset.pattern.permute.xlu0 0
  %418 = vperm.xlu0 %417, %v332
  %v419 = vpop.permute.xlu0 %418
  %422 = vset.pattern.permute.xlu0 0
  %423 = vperm.xlu0 %422, %v333
  %v424 = vpop.permute.xlu0 %423
  %427 = vset.pattern.permute.xlu0 0
  %428 = vperm.xlu0 %427, %v334
  %v429 = vpop.permute.xlu0 %428
  %432 = vset.pattern.permute.xlu0 0
  %433 = vperm.xlu0 %432, %v335
  %v434 = vpop.permute.xlu0 %433
  %437 = vset.pattern.permute.xlu0 0
  %438 = vperm.xlu0 %437, %v336
  %v439 = vpop.permute.xlu0 %438
  %442 = vset.pattern.permute.xlu0 0
  %443 = vperm.xlu0 %442, %v337
  %v444 = vpop.permute.xlu0 %443
  %447 = vset.pattern.permute.xlu0 0
  %448 = vperm.xlu0 %447, %v338
  %v449 = vpop.permute.xlu0 %448
  %452 = vset.pattern.permute.xlu0 0
  %453 = vperm.xlu0 %452, %v339
  %v454 = vpop.permute.xlu0 %453
  %457 = vset.pattern.permute.xlu0 0
  %458 = vperm.xlu0 %457, %v340
  %v459 = vpop.permute.xlu0 %458
  %462 = vset.pattern.permute.xlu0 0
  %463 = vperm.xlu0 %462, %v341
  %v464 = vpop.permute.xlu0 %463
  %467 = vset.pattern.permute.xlu0 0
  %468 = vperm.xlu0 %467, %v342
  %v469 = vpop.permute.xlu0 %468
  %472 = vset.pattern.permute.xlu0 0
  %473 = vperm.xlu0 %472, %v343
  %v474 = vpop.permute.xlu0 %473
  %477 = vset.pattern.permute.xlu0 0
  %478 = vperm.xlu0 %477, %v344
  %v479 = vpop.permute.xlu0 %478
  %482 = vset.pattern.permute.xlu0 0
  %483 = vperm.xlu0 %482, %v345
  %v484 = vpop.permute.xlu0 %483
  %487 = vset.pattern.permute.xlu0 0
  %488 = vperm.xlu0 %487, %v346
  %v489 = vpop.permute.xlu0 %488
  %492 = vset.pattern.permute.xlu0 0
  %493 = vperm.xlu0 %492, %v347
  %v494 = vpop.permute.xlu0 %493
  %497 = vset.pattern.permute.xlu0 0
  %498 = vperm.xlu0 %497, %v348
  %v499 = vpop.permute.xlu0 %498
  %502 = vset.pattern.permute.xlu0 0
  %503 = vperm.xlu0 %502, %v349
  %v504 = vpop.permute.xlu0 %503
  %507 = vset.pattern.permute.xlu0 0
  %508 = vperm.xlu0 %507, %v350
  %v509 = vpop.permute.xlu0 %508
  %v671 = vunpack.c.l.b16 %v15
  %v672 = vunpack.c.h.b16 %v15
  %v673 = vunpack.c.l.b16 %v16
  %v674 = vunpack.c.h.b16 %v16
  %v675 = vunpack.c.l.b16 %v17
  %v676 = vunpack.c.h.b16 %v17
  %v677 = vunpack.c.l.b16 %v18
  %v678 = vunpack.c.h.b16 %v18
  %v679 = vunpack.c.l.b16 %v19
  %v680 = vunpack.c.l.b16 %v20
  %v681 = vunpack.c.h.b16 %v20
  %v682 = vunpack.c.l.b16 %v21
  %v683 = vunpack.c.h.b16 %v21
  %v684 = vunpack.c.l.b16 %v22
  %v685 = vunpack.c.h.b16 %v22
  %v686 = vunpack.c.l.b16 %v23
  %v687 = vunpack.c.h.b16 %v23
  %v688 = vunpack.c.l.b16 %v24
  %v689 = vunpack.c.l.b16 %v25
  %v690 = vunpack.c.h.b16 %v25
  %v691 = vunpack.c.l.b16 %v26
  %v692 = vunpack.c.h.b16 %v26
  %v693 = vunpack.c.l.b16 %v27
  %v694 = vunpack.c.h.b16 %v27
  %v695 = vunpack.c.l.b16 %v28
  %v696 = vunpack.c.h.b16 %v28
  %v697 = vunpack.c.l.b16 %v29
  %v698 = vunpack.c.l.b16 %v30
  %v699 = vunpack.c.h.b16 %v30
  %v700 = vunpack.c.l.b16 %v31
  %v701 = vunpack.c.h.b16 %v31
  %v702 = vunpack.c.l.b16 %v32
  %v703 = vunpack.c.h.b16 %v32
  %v704 = vunpack.c.l.b16 %v33
  %v705 = vunpack.c.h.b16 %v33
  %v706 = vunpack.c.l.b16 %v34
  %v707 = vunpack.c.l.b16 %v35
  %v708 = vunpack.c.h.b16 %v35
  %v709 = vunpack.c.l.b16 %v36
  %v710 = vunpack.c.h.b16 %v36
  %v711 = vunpack.c.l.b16 %v37
  %v712 = vunpack.c.h.b16 %v37
  %v713 = vunpack.c.l.b16 %v38
  %v714 = vunpack.c.h.b16 %v38
  %v715 = vunpack.c.l.b16 %v39
  %v716 = vunpack.c.l.b16 %v40
  %v717 = vunpack.c.h.b16 %v40
  %v718 = vunpack.c.l.b16 %v41
  %v719 = vunpack.c.h.b16 %v41
  %v720 = vunpack.c.l.b16 %v42
  %v721 = vunpack.c.h.b16 %v42
  %v722 = vunpack.c.l.b16 %v43
  %v723 = vunpack.c.h.b16 %v43
  %v724 = vunpack.c.l.b16 %v44
  %v725 = vunpack.c.l.b16 %v45
  %v726 = vunpack.c.h.b16 %v45
  %v727 = vunpack.c.l.b16 %v46
  %v728 = vunpack.c.h.b16 %v46
  %v729 = vunpack.c.l.b16 %v47
  %v730 = vunpack.c.h.b16 %v47
  %v731 = vunpack.c.l.b16 %v48
  %v732 = vunpack.c.h.b16 %v48
  %v733 = vunpack.c.l.b16 %v49
  %v734 = vunpack.c.l.b16 %v50
  %v735 = vunpack.c.h.b16 %v50
  %v736 = vunpack.c.l.b16 %v51
  %v737 = vunpack.c.h.b16 %v51
  %v738 = vunpack.c.l.b16 %v52
  %v739 = vunpack.c.h.b16 %v52
  %v740 = vunpack.c.l.b16 %v53
  %v741 = vunpack.c.h.b16 %v53
  %v742 = vunpack.c.l.b16 %v54
  %v743 = vunpack.c.l.b16 %v55
  %v744 = vunpack.c.h.b16 %v55
  %v745 = vunpack.c.l.b16 %v56
  %v746 = vunpack.c.h.b16 %v56
  %v747 = vunpack.c.l.b16 %v57
  %v748 = vunpack.c.h.b16 %v57
  %v749 = vunpack.c.l.b16 %v58
  %v750 = vunpack.c.h.b16 %v58
  %v751 = vunpack.c.l.b16 %v59
  %v752 = vunpack.c.l.b16 %v60
  %v753 = vunpack.c.h.b16 %v60
  %v754 = vunpack.c.l.b16 %v61
  %v755 = vunpack.c.h.b16 %v61
  %v756 = vunpack.c.l.b16 %v62
  %v757 = vunpack.c.h.b16 %v62
  %v758 = vunpack.c.l.b16 %v63
  %v759 = vunpack.c.h.b16 %v63
  %v760 = vunpack.c.l.b16 %v64
  %v761 = vunpack.c.l.b16 %v65
  %v762 = vunpack.c.h.b16 %v65
  %v763 = vunpack.c.l.b16 %v66
  %v764 = vunpack.c.h.b16 %v66
  %v765 = vunpack.c.l.b16 %v67
  %v766 = vunpack.c.h.b16 %v67
  %v767 = vunpack.c.l.b16 %v68
  %v768 = vunpack.c.h.b16 %v68
  %v769 = vunpack.c.l.b16 %v69
  %v770 = vunpack.c.l.b16 %v70
  %v771 = vunpack.c.h.b16 %v70
  %v772 = vunpack.c.l.b16 %v71
  %v773 = vunpack.c.h.b16 %v71
  %v774 = vunpack.c.l.b16 %v72
  %v775 = vunpack.c.h.b16 %v72
  %v776 = vunpack.c.l.b16 %v73
  %v777 = vunpack.c.h.b16 %v73
  %v778 = vunpack.c.l.b16 %v74
  %v779 = vunpack.c.l.b16 %v75
  %v780 = vunpack.c.h.b16 %v75
  %v781 = vunpack.c.l.b16 %v76
  %v782 = vunpack.c.h.b16 %v76
  %v783 = vunpack.c.l.b16 %v77
  %v784 = vunpack.c.h.b16 %v77
  %v785 = vunpack.c.l.b16 %v78
  %v786 = vunpack.c.h.b16 %v78
  %v787 = vunpack.c.l.b16 %v79
  %v788 = vunpack.c.l.b16 %v80
  %v789 = vunpack.c.h.b16 %v80
  %v790 = vunpack.c.l.b16 %v81
  %v791 = vunpack.c.h.b16 %v81
  %v792 = vunpack.c.l.b16 %v82
  %v793 = vunpack.c.h.b16 %v82
  %v794 = vunpack.c.l.b16 %v83
  %v795 = vunpack.c.h.b16 %v83
  %v796 = vunpack.c.l.b16 %v84
  %v797 = vunpack.c.l.b16 %v85
  %v798 = vunpack.c.h.b16 %v85
  %v799 = vunpack.c.l.b16 %v86
  %v800 = vunpack.c.h.b16 %v86
  %v801 = vunpack.c.l.b16 %v87
  %v802 = vunpack.c.h.b16 %v87
  %v803 = vunpack.c.l.b16 %v88
  %v804 = vunpack.c.h.b16 %v88
  %v805 = vunpack.c.l.b16 %v89
  %v806 = vunpack.c.l.b16 %v90
  %v807 = vunpack.c.h.b16 %v90
  %v808 = vunpack.c.l.b16 %v91
  %v809 = vunpack.c.h.b16 %v91
  %v810 = vunpack.c.l.b16 %v92
  %v811 = vunpack.c.h.b16 %v92
  %v812 = vunpack.c.l.b16 %v93
  %v813 = vunpack.c.h.b16 %v93
  %v814 = vunpack.c.l.b16 %v94
  %v815 = vunpack.c.l.b16 %v95
  %v816 = vunpack.c.h.b16 %v95
  %v817 = vunpack.c.l.b16 %v96
  %v818 = vunpack.c.h.b16 %v96
  %v819 = vunpack.c.l.b16 %v97
  %v820 = vunpack.c.h.b16 %v97
  %v821 = vunpack.c.l.b16 %v98
  %v822 = vunpack.c.h.b16 %v98
  %v823 = vunpack.c.l.b16 %v99
  %v824 = vunpack.c.l.b16 %v100
  %v825 = vunpack.c.h.b16 %v100
  %v826 = vunpack.c.l.b16 %v101
  %v827 = vunpack.c.h.b16 %v101
  %v828 = vunpack.c.l.b16 %v102
  %v829 = vunpack.c.h.b16 %v102
  %v830 = vunpack.c.l.b16 %v103
  %v831 = vunpack.c.h.b16 %v103
  %v832 = vunpack.c.l.b16 %v104
  %v833 = vunpack.c.l.b16 %v105
  %v834 = vunpack.c.h.b16 %v105
  %v835 = vunpack.c.l.b16 %v106
  %v836 = vunpack.c.h.b16 %v106
  %v837 = vunpack.c.l.b16 %v107
  %v838 = vunpack.c.h.b16 %v107
  %v839 = vunpack.c.l.b16 %v108
  %v840 = vunpack.c.h.b16 %v108
  %v841 = vunpack.c.l.b16 %v109
  %v842 = vunpack.c.l.b16 %v110
  %v843 = vunpack.c.h.b16 %v110
  %v844 = vunpack.c.l.b16 %v111
  %v845 = vunpack.c.h.b16 %v111
  %v846 = vunpack.c.l.b16 %v112
  %v847 = vunpack.c.h.b16 %v112
  %v848 = vunpack.c.l.b16 %v113
  %v849 = vunpack.c.h.b16 %v113
  %v850 = vunpack.c.l.b16 %v114
  %v851 = vunpack.c.l.b16 %v115
  %v852 = vunpack.c.h.b16 %v115
  %v853 = vunpack.c.l.b16 %v116
  %v854 = vunpack.c.h.b16 %v116
  %v855 = vunpack.c.l.b16 %v117
  %v856 = vunpack.c.h.b16 %v117
  %v857 = vunpack.c.l.b16 %v118
  %v858 = vunpack.c.h.b16 %v118
  %v859 = vunpack.c.l.b16 %v119
  %v860 = vunpack.c.l.b16 %v120
  %v861 = vunpack.c.h.b16 %v120
  %v862 = vunpack.c.l.b16 %v121
  %v863 = vunpack.c.h.b16 %v121
  %v864 = vunpack.c.l.b16 %v122
  %v865 = vunpack.c.h.b16 %v122
  %v866 = vunpack.c.l.b16 %v123
  %v867 = vunpack.c.h.b16 %v123
  %v868 = vunpack.c.l.b16 %v124
  %v869 = vunpack.c.l.b16 %v125
  %v870 = vunpack.c.h.b16 %v125
  %v871 = vunpack.c.l.b16 %v126
  %v872 = vunpack.c.h.b16 %v126
  %v873 = vunpack.c.l.b16 %v127
  %v874 = vunpack.c.h.b16 %v127
  %v875 = vunpack.c.l.b16 %v128
  %v876 = vunpack.c.h.b16 %v128
  %v877 = vunpack.c.l.b16 %v129
  %v878 = vunpack.c.l.b16 %v130
  %v879 = vunpack.c.h.b16 %v130
  %v880 = vunpack.c.l.b16 %v131
  %v881 = vunpack.c.h.b16 %v131
  %v882 = vunpack.c.l.b16 %v132
  %v883 = vunpack.c.h.b16 %v132
  %v884 = vunpack.c.l.b16 %v133
  %v885 = vunpack.c.h.b16 %v133
  %v886 = vunpack.c.l.b16 %v134
  %v887 = vunpack.c.l.b16 %v135
  %v888 = vunpack.c.h.b16 %v135
  %v889 = vunpack.c.l.b16 %v136
  %v890 = vunpack.c.h.b16 %v136
  %v891 = vunpack.c.l.b16 %v137
  %v892 = vunpack.c.h.b16 %v137
  %v893 = vunpack.c.l.b16 %v138
  %v894 = vunpack.c.h.b16 %v138
  %v895 = vunpack.c.l.b16 %v139
  %v896 = vunpack.c.l.b16 %v140
  %v897 = vunpack.c.h.b16 %v140
  %v898 = vunpack.c.l.b16 %v141
  %v899 = vunpack.c.h.b16 %v141
  %v900 = vunpack.c.l.b16 %v142
  %v901 = vunpack.c.h.b16 %v142
  %v902 = vunpack.c.l.b16 %v143
  %v903 = vunpack.c.h.b16 %v143
  %v904 = vunpack.c.l.b16 %v144
  %v905 = vunpack.c.l.b16 %v145
  %v906 = vunpack.c.h.b16 %v145
  %v907 = vunpack.c.l.b16 %v146
  %v908 = vunpack.c.h.b16 %v146
  %v909 = vunpack.c.l.b16 %v147
  %v910 = vunpack.c.h.b16 %v147
  %v911 = vunpack.c.l.b16 %v148
  %v912 = vunpack.c.h.b16 %v148
  %v913 = vunpack.c.l.b16 %v149
  %v914 = vunpack.c.l.b16 %v150
  %v915 = vunpack.c.h.b16 %v150
  %v916 = vunpack.c.l.b16 %v151
  %v917 = vunpack.c.h.b16 %v151
  %v918 = vunpack.c.l.b16 %v152
  %v919 = vunpack.c.h.b16 %v152
  %v920 = vunpack.c.l.b16 %v153
  %v921 = vunpack.c.h.b16 %v153
  %v922 = vunpack.c.l.b16 %v154
  %v923 = vunpack.c.l.b16 %v155
  %v924 = vunpack.c.h.b16 %v155
  %v925 = vunpack.c.l.b16 %v156
  %v926 = vunpack.c.h.b16 %v156
  %v927 = vunpack.c.l.b16 %v157
  %v928 = vunpack.c.h.b16 %v157
  %v929 = vunpack.c.l.b16 %v158
  %v930 = vunpack.c.h.b16 %v158
  %v931 = vunpack.c.l.b16 %v159
  %v932 = vunpack.c.l.b16 %v160
  %v933 = vunpack.c.h.b16 %v160
  %v934 = vunpack.c.l.b16 %v161
  %v935 = vunpack.c.h.b16 %v161
  %v936 = vunpack.c.l.b16 %v162
  %v937 = vunpack.c.h.b16 %v162
  %v938 = vunpack.c.l.b16 %v163
  %v939 = vunpack.c.h.b16 %v163
  %v940 = vunpack.c.l.b16 %v164
  %v941 = vunpack.c.l.b16 %v165
  %v942 = vunpack.c.h.b16 %v165
  %v943 = vunpack.c.l.b16 %v166
  %v944 = vunpack.c.h.b16 %v166
  %v945 = vunpack.c.l.b16 %v167
  %v946 = vunpack.c.h.b16 %v167
  %v947 = vunpack.c.l.b16 %v168
  %v948 = vunpack.c.h.b16 %v168
  %v949 = vunpack.c.l.b16 %v169
  %v950 = vunpack.c.l.b16 %v170
  %v951 = vunpack.c.h.b16 %v170
  %v952 = vunpack.c.l.b16 %v171
  %v953 = vunpack.c.h.b16 %v171
  %v954 = vunpack.c.l.b16 %v172
  %v955 = vunpack.c.h.b16 %v172
  %v956 = vunpack.c.l.b16 %v173
  %v957 = vunpack.c.h.b16 %v173
  %v958 = vunpack.c.l.b16 %v174
  %v959 = vpack.c.b16 %v680, %v671
  %v960 = vpack.c.b16 %v681, %v672
  %v961 = vpack.c.b16 %v682, %v673
  %v962 = vpack.c.b16 %v683, %v674
  %v963 = vpack.c.b16 %v684, %v675
  %v964 = vpack.c.b16 %v685, %v676
  %v965 = vpack.c.b16 %v686, %v677
  %v966 = vpack.c.b16 %v687, %v678
  %v967 = vpack.c.b16 %v688, %v679
  %v968 = vpack.c.b16 %v698, %v689
  %v969 = vpack.c.b16 %v699, %v690
  %v970 = vpack.c.b16 %v700, %v691
  %v971 = vpack.c.b16 %v701, %v692
  %v972 = vpack.c.b16 %v702, %v693
  %v973 = vpack.c.b16 %v703, %v694
  %v974 = vpack.c.b16 %v704, %v695
  %v975 = vpack.c.b16 %v705, %v696
  %v976 = vpack.c.b16 %v706, %v697
  %v977 = vpack.c.b16 %v716, %v707
  %v978 = vpack.c.b16 %v717, %v708
  %v979 = vpack.c.b16 %v718, %v709
  %v980 = vpack.c.b16 %v719, %v710
  %v981 = vpack.c.b16 %v720, %v711
  %v982 = vpack.c.b16 %v721, %v712
  %v983 = vpack.c.b16 %v722, %v713
  %v984 = vpack.c.b16 %v723, %v714
  %v985 = vpack.c.b16 %v724, %v715
  %v986 = vpack.c.b16 %v734, %v725
  %v987 = vpack.c.b16 %v735, %v726
  %v988 = vpack.c.b16 %v736, %v727
  %v989 = vpack.c.b16 %v737, %v728
  %v990 = vpack.c.b16 %v738, %v729
  %v991 = vpack.c.b16 %v739, %v730
  %v992 = vpack.c.b16 %v740, %v731
  %v993 = vpack.c.b16 %v741, %v732
  %v994 = vpack.c.b16 %v742, %v733
  %v995 = vpack.c.b16 %v752, %v743
  %v996 = vpack.c.b16 %v753, %v744
  %v997 = vpack.c.b16 %v754, %v745
  %v998 = vpack.c.b16 %v755, %v746
  %v999 = vpack.c.b16 %v756, %v747
  %v1000 = vpack.c.b16 %v757, %v748
  %v1001 = vpack.c.b16 %v758, %v749
  %v1002 = vpack.c.b16 %v759, %v750
  %v1003 = vpack.c.b16 %v760, %v751
  %v1004 = vpack.c.b16 %v770, %v761
  %v1005 = vpack.c.b16 %v771, %v762
  %v1006 = vpack.c.b16 %v772, %v763
  %v1007 = vpack.c.b16 %v773, %v764
  %v1008 = vpack.c.b16 %v774, %v765
  %v1009 = vpack.c.b16 %v775, %v766
  %v1010 = vpack.c.b16 %v776, %v767
  %v1011 = vpack.c.b16 %v777, %v768
  %v1012 = vpack.c.b16 %v778, %v769
  %v1013 = vpack.c.b16 %v788, %v779
  %v1014 = vpack.c.b16 %v789, %v780
  %v1015 = vpack.c.b16 %v790, %v781
  %v1016 = vpack.c.b16 %v791, %v782
  %v1017 = vpack.c.b16 %v792, %v783
  %v1018 = vpack.c.b16 %v793, %v784
  %v1019 = vpack.c.b16 %v794, %v785
  %v1020 = vpack.c.b16 %v795, %v786
  %v1021 = vpack.c.b16 %v796, %v787
  %v1022 = vpack.c.b16 %v806, %v797
  %v1023 = vpack.c.b16 %v807, %v798
  %v1024 = vpack.c.b16 %v808, %v799
  %v1025 = vpack.c.b16 %v809, %v800
  %v1026 = vpack.c.b16 %v810, %v801
  %v1027 = vpack.c.b16 %v811, %v802
  %v1028 = vpack.c.b16 %v812, %v803
  %v1029 = vpack.c.b16 %v813, %v804
  %v1030 = vpack.c.b16 %v814, %v805
  %v1031 = vpack.c.b16 %v824, %v815
  %v1032 = vpack.c.b16 %v825, %v816
  %v1033 = vpack.c.b16 %v826, %v817
  %v1034 = vpack.c.b16 %v827, %v818
  %v1035 = vpack.c.b16 %v828, %v819
  %v1036 = vpack.c.b16 %v829, %v820
  %v1037 = vpack.c.b16 %v830, %v821
  %v1038 = vpack.c.b16 %v831, %v822
  %v1039 = vpack.c.b16 %v832, %v823
  %v1040 = vpack.c.b16 %v842, %v833
  %v1041 = vpack.c.b16 %v843, %v834
  %v1042 = vpack.c.b16 %v844, %v835
  %v1043 = vpack.c.b16 %v845, %v836
  %v1044 = vpack.c.b16 %v846, %v837
  %v1045 = vpack.c.b16 %v847, %v838
  %v1046 = vpack.c.b16 %v848, %v839
  %v1047 = vpack.c.b16 %v849, %v840
  %v1048 = vpack.c.b16 %v850, %v841
  %v1049 = vpack.c.b16 %v860, %v851
  %v1050 = vpack.c.b16 %v861, %v852
  %v1051 = vpack.c.b16 %v862, %v853
  %v1052 = vpack.c.b16 %v863, %v854
  %v1053 = vpack.c.b16 %v864, %v855
  %v1054 = vpack.c.b16 %v865, %v856
  %v1055 = vpack.c.b16 %v866, %v857
  %v1056 = vpack.c.b16 %v867, %v858
  %v1057 = vpack.c.b16 %v868, %v859
  %v1058 = vpack.c.b16 %v878, %v869
  %v1059 = vpack.c.b16 %v879, %v870
  %v1060 = vpack.c.b16 %v880, %v871
  %v1061 = vpack.c.b16 %v881, %v872
  %v1062 = vpack.c.b16 %v882, %v873
  %v1063 = vpack.c.b16 %v883, %v874
  %v1064 = vpack.c.b16 %v884, %v875
  %v1065 = vpack.c.b16 %v885, %v876
  %v1066 = vpack.c.b16 %v886, %v877
  %v1067 = vpack.c.b16 %v896, %v887
  %v1068 = vpack.c.b16 %v897, %v888
  %v1069 = vpack.c.b16 %v898, %v889
  %v1070 = vpack.c.b16 %v899, %v890
  %v1071 = vpack.c.b16 %v900, %v891
  %v1072 = vpack.c.b16 %v901, %v892
  %v1073 = vpack.c.b16 %v902, %v893
  %v1074 = vpack.c.b16 %v903, %v894
  %v1075 = vpack.c.b16 %v904, %v895
  %v1076 = vpack.c.b16 %v914, %v905
  %v1077 = vpack.c.b16 %v915, %v906
  %v1078 = vpack.c.b16 %v916, %v907
  %v1079 = vpack.c.b16 %v917, %v908
  %v1080 = vpack.c.b16 %v918, %v909
  %v1081 = vpack.c.b16 %v919, %v910
  %v1082 = vpack.c.b16 %v920, %v911
  %v1083 = vpack.c.b16 %v921, %v912
  %v1084 = vpack.c.b16 %v922, %v913
  %v1085 = vpack.c.b16 %v932, %v923
  %v1086 = vpack.c.b16 %v933, %v924
  %v1087 = vpack.c.b16 %v934, %v925
  %v1088 = vpack.c.b16 %v935, %v926
  %v1089 = vpack.c.b16 %v936, %v927
  %v1090 = vpack.c.b16 %v937, %v928
  %v1091 = vpack.c.b16 %v938, %v929
  %v1092 = vpack.c.b16 %v939, %v930
  %v1093 = vpack.c.b16 %v940, %v931
  %v1094 = vpack.c.b16 %v950, %v941
  %v1095 = vpack.c.b16 %v951, %v942
  %v1096 = vpack.c.b16 %v952, %v943
  %v1097 = vpack.c.b16 %v953, %v944
  %v1098 = vpack.c.b16 %v954, %v945
  %v1099 = vpack.c.b16 %v955, %v946
  %v1100 = vpack.c.b16 %v956, %v947
  %v1101 = vpack.c.b16 %v957, %v948
  %v1102 = vpack.c.b16 %v958, %v949
  %v1391 = vunpack.c.l.b16 %v175
  %v1392 = vunpack.c.l.b16 %v176
  %v1393 = vunpack.c.l.b16 %v177
  %v1394 = vunpack.c.l.b16 %v178
  %v1395 = vunpack.c.l.b16 %v179
  %v1396 = vunpack.c.l.b16 %v180
  %v1397 = vunpack.c.l.b16 %v181
  %v1398 = vunpack.c.l.b16 %v182
  %v1399 = vunpack.c.l.b16 %v183
  %v1400 = vunpack.c.l.b16 %v184
  %v1401 = vunpack.c.l.b16 %v185
  %v1402 = vunpack.c.l.b16 %v186
  %v1403 = vunpack.c.l.b16 %v187
  %v1404 = vunpack.c.l.b16 %v188
  %v1405 = vunpack.c.l.b16 %v189
  %v1406 = vunpack.c.l.b16 %v190
  %v1407 = vunpack.c.l.b16 %v191
  %v1408 = vunpack.c.l.b16 %v192
  %v1409 = vunpack.c.l.b16 %v193
  %v1410 = vunpack.c.l.b16 %v194
  %v1411 = vunpack.c.l.b16 %v195
  %v1412 = vunpack.c.l.b16 %v196
  %v1413 = vunpack.c.l.b16 %v197
  %v1414 = vunpack.c.l.b16 %v198
  %v1415 = vunpack.c.l.b16 %v199
  %v1416 = vunpack.c.l.b16 %v200
  %v1417 = vunpack.c.l.b16 %v201
  %v1418 = vunpack.c.l.b16 %v202
  %v1419 = vunpack.c.l.b16 %v203
  %v1420 = vunpack.c.l.b16 %v204
  %v1421 = vunpack.c.l.b16 %v205
  %v1422 = vunpack.c.l.b16 %v206
  %v1423 = vunpack.c.l.b16 %v207
  %v1424 = vunpack.c.l.b16 %v208
  %v1425 = vunpack.c.l.b16 %v209
  %v1426 = vunpack.c.l.b16 %v210
  %v1427 = vunpack.c.l.b16 %v211
  %v1428 = vunpack.c.l.b16 %v212
  %v1429 = vunpack.c.l.b16 %v213
  %v1430 = vunpack.c.l.b16 %v214
  %v1431 = vunpack.c.l.b16 %v215
  %v1432 = vunpack.c.l.b16 %v216
  %v1433 = vunpack.c.l.b16 %v217
  %v1434 = vunpack.c.l.b16 %v218
  %v1435 = vunpack.c.l.b16 %v219
  %v1436 = vunpack.c.l.b16 %v220
  %v1437 = vunpack.c.l.b16 %v221
  %v1438 = vunpack.c.l.b16 %v222
  %v1439 = vunpack.c.l.b16 %v223
  %v1440 = vunpack.c.l.b16 %v224
  %v1441 = vunpack.c.l.b16 %v225
  %v1442 = vunpack.c.l.b16 %v226
  %v1443 = vunpack.c.l.b16 %v227
  %v1444 = vunpack.c.l.b16 %v228
  %v1445 = vunpack.c.l.b16 %v229
  %v1446 = vunpack.c.l.b16 %v230
  %v1447 = vunpack.c.l.b16 %v231
  %v1448 = vunpack.c.l.b16 %v232
  %v1449 = vunpack.c.l.b16 %v233
  %v1450 = vunpack.c.l.b16 %v234
  %v1451 = vunpack.c.l.b16 %v235
  %v1452 = vunpack.c.l.b16 %v236
  %v1453 = vunpack.c.l.b16 %v237
  %v1454 = vunpack.c.l.b16 %v238
  %v1455 = vunpack.c.l.b16 %v239
  %v1456 = vunpack.c.l.b16 %v240
  %v1457 = vunpack.c.l.b16 %v241
  %v1458 = vunpack.c.l.b16 %v242
  %v1459 = vunpack.c.l.b16 %v243
  %v1460 = vunpack.c.l.b16 %v244
  %v1461 = vunpack.c.l.b16 %v245
  %v1462 = vunpack.c.l.b16 %v246
  %v1463 = vunpack.c.l.b16 %v247
  %v1464 = vunpack.c.l.b16 %v248
  %v1465 = vunpack.c.l.b16 %v249
  %v1466 = vunpack.c.l.b16 %v250
  %v1467 = vunpack.c.l.b16 %v251
  %v1468 = vunpack.c.l.b16 %v252
  %v1469 = vunpack.c.l.b16 %v253
  %v1470 = vunpack.c.l.b16 %v254
  %v1471 = vunpack.c.l.b16 %v255
  %v1472 = vunpack.c.l.b16 %v256
  %v1473 = vunpack.c.l.b16 %v257
  %v1474 = vunpack.c.l.b16 %v258
  %v1475 = vunpack.c.l.b16 %v259
  %v1476 = vunpack.c.l.b16 %v260
  %v1477 = vunpack.c.l.b16 %v261
  %v1478 = vunpack.c.l.b16 %v262
  %v1479 = vunpack.c.l.b16 %v263
  %v1480 = vunpack.c.l.b16 %v264
  %v1481 = vunpack.c.l.b16 %v265
  %v1482 = vunpack.c.l.b16 %v266
  %v1483 = vunpack.c.l.b16 %v267
  %v1484 = vunpack.c.l.b16 %v268
  %v1485 = vunpack.c.l.b16 %v269
  %v1486 = vunpack.c.l.b16 %v270
  %v1487 = vunpack.c.l.b16 %v271
  %v1488 = vunpack.c.l.b16 %v272
  %v1489 = vunpack.c.l.b16 %v273
  %v1490 = vunpack.c.l.b16 %v274
  %v1491 = vunpack.c.l.b16 %v275
  %v1492 = vunpack.c.l.b16 %v276
  %v1493 = vunpack.c.l.b16 %v277
  %v1494 = vunpack.c.l.b16 %v278
  %v1495 = vunpack.c.l.b16 %v279
  %v1496 = vunpack.c.l.b16 %v280
  %v1497 = vunpack.c.l.b16 %v281
  %v1498 = vunpack.c.l.b16 %v282
  %v1499 = vunpack.c.l.b16 %v283
  %v1500 = vunpack.c.l.b16 %v284
  %v1501 = vunpack.c.l.b16 %v285
  %v1502 = vunpack.c.l.b16 %v286
  %v1503 = vunpack.c.l.b16 %v287
  %v1504 = vunpack.c.l.b16 %v288
  %v1505 = vunpack.c.l.b16 %v289
  %v1506 = vunpack.c.l.b16 %v290
  %v1507 = vunpack.c.l.b16 %v291
  %v1508 = vunpack.c.l.b16 %v292
  %v1509 = vunpack.c.l.b16 %v293
  %v1510 = vunpack.c.l.b16 %v294
  %v1511 = vunpack.c.l.b16 %v295
  %v1512 = vunpack.c.l.b16 %v296
  %v1513 = vunpack.c.l.b16 %v297
  %v1514 = vunpack.c.l.b16 %v298
  %v1515 = vunpack.c.l.b16 %v299
  %v1516 = vunpack.c.l.b16 %v300
  %v1517 = vunpack.c.l.b16 %v301
  %v1518 = vunpack.c.l.b16 %v302
  %v1519 = vunpack.c.l.b16 %v303
  %v1520 = vunpack.c.l.b16 %v304
  %v1521 = vunpack.c.l.b16 %v305
  %v1522 = vunpack.c.l.b16 %v306
  %v1523 = vunpack.c.l.b16 %v307
  %v1524 = vunpack.c.l.b16 %v308
  %v1525 = vunpack.c.l.b16 %v309
  %v1526 = vunpack.c.l.b16 %v310
  %v1527 = vunpack.c.l.b16 %v311
  %v1528 = vunpack.c.l.b16 %v312
  %v1529 = vunpack.c.l.b16 %v313
  %v1530 = vunpack.c.l.b16 %v314
  %v1531 = vunpack.c.l.b16 %v315
  %v1532 = vunpack.c.l.b16 %v316
  %v1533 = vunpack.c.l.b16 %v317
  %v1534 = vunpack.c.l.b16 %v318
  %v1535 = vpack.c.b16 %v1392, %v1391
  %v1536 = vpack.c.b16 %v1394, %v1393
  %v1537 = vpack.c.b16 %v1396, %v1395
  %v1538 = vpack.c.b16 %v1398, %v1397
  %v1539 = vpack.c.b16 %v1400, %v1399
  %v1540 = vpack.c.b16 %v1402, %v1401
  %v1541 = vpack.c.b16 %v1404, %v1403
  %v1542 = vpack.c.b16 %v1406, %v1405
  %v1543 = vpack.c.b16 %v1408, %v1407
  %v1544 = vpack.c.b16 %v1410, %v1409
  %v1545 = vpack.c.b16 %v1412, %v1411
  %v1546 = vpack.c.b16 %v1414, %v1413
  %v1547 = vpack.c.b16 %v1416, %v1415
  %v1548 = vpack.c.b16 %v1418, %v1417
  %v1549 = vpack.c.b16 %v1420, %v1419
  %v1550 = vpack.c.b16 %v1422, %v1421
  %v1551 = vpack.c.b16 %v1424, %v1423
  %v1552 = vpack.c.b16 %v1426, %v1425
  %v1553 = vpack.c.b16 %v1428, %v1427
  %v1554 = vpack.c.b16 %v1430, %v1429
  %v1555 = vpack.c.b16 %v1432, %v1431
  %v1556 = vpack.c.b16 %v1434, %v1433
  %v1557 = vpack.c.b16 %v1436, %v1435
  %v1558 = vpack.c.b16 %v1438, %v1437
  %v1559 = vpack.c.b16 %v1440, %v1439
  %v1560 = vpack.c.b16 %v1442, %v1441
  %v1561 = vpack.c.b16 %v1444, %v1443
  %v1562 = vpack.c.b16 %v1446, %v1445
  %v1563 = vpack.c.b16 %v1448, %v1447
  %v1564 = vpack.c.b16 %v1450, %v1449
  %v1565 = vpack.c.b16 %v1452, %v1451
  %v1566 = vpack.c.b16 %v1454, %v1453
  %v1567 = vpack.c.b16 %v1456, %v1455
  %v1568 = vpack.c.b16 %v1458, %v1457
  %v1569 = vpack.c.b16 %v1460, %v1459
  %v1570 = vpack.c.b16 %v1462, %v1461
  %v1571 = vpack.c.b16 %v1464, %v1463
  %v1572 = vpack.c.b16 %v1466, %v1465
  %v1573 = vpack.c.b16 %v1468, %v1467
  %v1574 = vpack.c.b16 %v1470, %v1469
  %v1575 = vpack.c.b16 %v1472, %v1471
  %v1576 = vpack.c.b16 %v1474, %v1473
  %v1577 = vpack.c.b16 %v1476, %v1475
  %v1578 = vpack.c.b16 %v1478, %v1477
  %v1579 = vpack.c.b16 %v1480, %v1479
  %v1580 = vpack.c.b16 %v1482, %v1481
  %v1581 = vpack.c.b16 %v1484, %v1483
  %v1582 = vpack.c.b16 %v1486, %v1485
  %v1583 = vpack.c.b16 %v1488, %v1487
  %v1584 = vpack.c.b16 %v1490, %v1489
  %v1585 = vpack.c.b16 %v1492, %v1491
  %v1586 = vpack.c.b16 %v1494, %v1493
  %v1587 = vpack.c.b16 %v1496, %v1495
  %v1588 = vpack.c.b16 %v1498, %v1497
  %v1589 = vpack.c.b16 %v1500, %v1499
  %v1590 = vpack.c.b16 %v1502, %v1501
  %v1591 = vpack.c.b16 %v1504, %v1503
  %v1592 = vpack.c.b16 %v1506, %v1505
  %v1593 = vpack.c.b16 %v1508, %v1507
  %v1594 = vpack.c.b16 %v1510, %v1509
  %v1595 = vpack.c.b16 %v1512, %v1511
  %v1596 = vpack.c.b16 %v1514, %v1513
  %v1597 = vpack.c.b16 %v1516, %v1515
  %v1598 = vpack.c.b16 %v1518, %v1517
  %v1599 = vpack.c.b16 %v1520, %v1519
  %v1600 = vpack.c.b16 %v1522, %v1521
  %v1601 = vpack.c.b16 %v1524, %v1523
  %v1602 = vpack.c.b16 %v1526, %v1525
  %v1603 = vpack.c.b16 %v1528, %v1527
  %v1604 = vpack.c.b16 %v1530, %v1529
  %v1605 = vpack.c.b16 %v1532, %v1531
  %v1606 = vpack.c.b16 %v1534, %v1533
  %1679 = vmatprep.subr.bf16.mxu0 0
  %1680 = vmatpush1.bf16.msra.mxu0 %v1535
  %1681 = vmatprep.subr.bf16.mxu0 0
  %1682 = vmatpush1.bf16.msra.mxu0 %v1536
  %1683 = vmatprep.subr.bf16.mxu0 0
  %1684 = vmatpush1.bf16.msra.mxu0 %v1537
  %1685 = vmatprep.subr.bf16.mxu0 0
  %1686 = vmatpush1.bf16.msra.mxu0 %v1538
  %1687 = vmatprep.subr.bf16.mxu0 0
  %1688 = vmatpush1.bf16.msra.mxu0 %v1539
  %1689 = vmatprep.subr.bf16.mxu0 0
  %1690 = vmatpush1.bf16.msra.mxu0 %v1540
  %1691 = vmatprep.subr.bf16.mxu0 0
  %1692 = vmatpush1.bf16.msra.mxu0 %v1541
  %1693 = vmatprep.subr.bf16.mxu0 0
  %1694 = vmatpush1.bf16.msra.mxu0 %v1542
  %1695 = vmatprep.subr.bf16.mxu0 0
  %1696 = vmatpush1.bf16.msra.mxu0 %v1543
  %1697 = vmatprep.subr.bf16.mxu0 0
  %1698 = vmatpush1.bf16.msra.mxu0 %v1544
  %1699 = vmatprep.subr.bf16.mxu0 0
  %1700 = vmatpush1.bf16.msra.mxu0 %v1545
  %1701 = vmatprep.subr.bf16.mxu0 0
  %1702 = vmatpush1.bf16.msra.mxu0 %v1546
  %1703 = vmatprep.subr.bf16.mxu0 0
  %1704 = vmatpush1.bf16.msra.mxu0 %v1547
  %1705 = vmatprep.subr.bf16.mxu0 0
  %1706 = vmatpush1.bf16.msra.mxu0 %v1548
  %1707 = vmatprep.subr.bf16.mxu0 0
  %1708 = vmatpush1.bf16.msra.mxu0 %v1549
  %1709 = vmatprep.subr.bf16.mxu0 0
  %1710 = vmatpush1.bf16.msra.mxu0 %v1550
  %1711 = vmatprep.mubr.bf16.mxu0 %v960
  %1712 = vmatmul.mubr.bf16.gmra.mrb[0].mxu0 %v959
  %v1713 = vpop.f32.mrb[0].mxu0
  %v1714 = vadd.f32 %v354, %v1713
  %v1715 = vpop.f32.mrb[0].mxu0
  %v1716 = vpop.f32.mrb[0].mxu0
  %v1717 = vadd.f32 %v359, %v1716
  %v1718 = vpop.f32.mrb[0].mxu0
  %1719 = vmatprep.mubr.bf16.mxu0 %v969
  %1720 = vmatmul.mubr.bf16.gmra.mrb[0].mxu0 %v968
  %v1721 = vpop.f32.mrb[0].mxu0
  %v1722 = vadd.f32 %v364, %v1721
  %v1723 = vpop.f32.mrb[0].mxu0
  %v1724 = vpop.f32.mrb[0].mxu0
  %v1725 = vadd.f32 %v369, %v1724
  %v1726 = vpop.f32.mrb[0].mxu0
  %1727 = vmatprep.mubr.bf16.mxu0 %v978
  %1728 = vmatmul.mubr.bf16.gmra.mrb[0].mxu0 %v977
  %v1729 = vpop.f32.mrb[0].mxu0
  %v1730 = vadd.f32 %v374, %v1729
  %v1731 = vpop.f32.mrb[0].mxu0
  %v1732 = vpop.f32.mrb[0].mxu0
  %v1733 = vadd.f32 %v379, %v1732
  %v1734 = vpop.f32.mrb[0].mxu0
  %1735 = vmatprep.mubr.bf16.mxu0 %v987
  %1736 = vmatmul.mubr.bf16.gmra.mrb[0].mxu0 %v986
  %v1737 = vpop.f32.mrb[0].mxu0
  %v1738 = vadd.f32 %v384, %v1737
  %v1739 = vpop.f32.mrb[0].mxu0
  %v1740 = vpop.f32.mrb[0].mxu0
  %v1741 = vadd.f32 %v389, %v1740
  %v1742 = vpop.f32.mrb[0].mxu0
  %1743 = vmatprep.mubr.bf16.mxu0 %v996
  %1744 = vmatmul.mubr.bf16.gmra.mrb[0].mxu0 %v995
  %v1745 = vpop.f32.mrb[0].mxu0
  %v1746 = vadd.f32 %v394, %v1745
  %v1747 = vpop.f32.mrb[0].mxu0
  %v1748 = vpop.f32.mrb[0].mxu0
  %v1749 = vadd.f32 %v399, %v1748
  %v1750 = vpop.f32.mrb[0].mxu0
  %1751 = vmatprep.mubr.bf16.mxu0 %v1005
  %1752 = vmatmul.mubr.bf16.gmra.mrb[0].mxu0 %v1004
  %v1753 = vpop.f32.mrb[0].mxu0
  %v1754 = vadd.f32 %v404, %v1753
  %v1755 = vpop.f32.mrb[0].mxu0
  %v1756 = vpop.f32.mrb[0].mxu0
  %v1757 = vadd.f32 %v409, %v1756
  %v1758 = vpop.f32.mrb[0].mxu0
  %1759 = vmatprep.mubr.bf16.mxu0 %v1014
  %1760 = vmatmul.mubr.bf16.gmra.mrb[0].mxu0 %v1013
  %v1761 = vpop.f32.mrb[0].mxu0
  %v1762 = vadd.f32 %v414, %v1761
  %v1763 = vpop.f32.mrb[0].mxu0
  %v1764 = vpop.f32.mrb[0].mxu0
  %v1765 = vadd.f32 %v419, %v1764
  %v1766 = vpop.f32.mrb[0].mxu0
  %1767 = vmatprep.mubr.bf16.mxu0 %v1023
  %1768 = vmatmul.mubr.bf16.gmra.mrb[0].mxu0 %v1022
  %v1769 = vpop.f32.mrb[0].mxu0
  %v1770 = vadd.f32 %v424, %v1769
  %v1771 = vpop.f32.mrb[0].mxu0
  %v1772 = vpop.f32.mrb[0].mxu0
  %v1773 = vadd.f32 %v429, %v1772
  %v1774 = vpop.f32.mrb[0].mxu0
  %1775 = vmatprep.mubr.bf16.mxu0 %v1032
  %1776 = vmatmul.mubr.bf16.gmra.mrb[0].mxu0 %v1031
  %v1777 = vpop.f32.mrb[0].mxu0
  %v1778 = vadd.f32 %v434, %v1777
  %v1779 = vpop.f32.mrb[0].mxu0
  %v1780 = vpop.f32.mrb[0].mxu0
  %v1781 = vadd.f32 %v439, %v1780
  %v1782 = vpop.f32.mrb[0].mxu0
  %1783 = vmatprep.mubr.bf16.mxu0 %v1041
  %1784 = vmatmul.mubr.bf16.gmra.mrb[0].mxu0 %v1040
  %v1785 = vpop.f32.mrb[0].mxu0
  %v1786 = vadd.f32 %v444, %v1785
  %v1787 = vpop.f32.mrb[0].mxu0
  %v1788 = vpop.f32.mrb[0].mxu0
  %v1789 = vadd.f32 %v449, %v1788
  %v1790 = vpop.f32.mrb[0].mxu0
  %1791 = vmatprep.mubr.bf16.mxu0 %v1050
  %1792 = vmatmul.mubr.bf16.gmra.mrb[0].mxu0 %v1049
  %v1793 = vpop.f32.mrb[0].mxu0
  %v1794 = vadd.f32 %v454, %v1793
  %v1795 = vpop.f32.mrb[0].mxu0
  %v1796 = vpop.f32.mrb[0].mxu0
  %v1797 = vadd.f32 %v459, %v1796
  %v1798 = vpop.f32.mrb[0].mxu0
  %1799 = vmatprep.mubr.bf16.mxu0 %v1059
  %1800 = vmatmul.mubr.bf16.gmra.mrb[0].mxu0 %v1058
  %v1801 = vpop.f32.mrb[0].mxu0
  %v1802 = vadd.f32 %v464, %v1801
  %v1803 = vpop.f32.mrb[0].mxu0
  %v1804 = vpop.f32.mrb[0].mxu0
  %v1805 = vadd.f32 %v469, %v1804
  %v1806 = vpop.f32.mrb[0].mxu0
  %1807 = vmatprep.mubr.bf16.mxu0 %v1068
  %1808 = vmatmul.mubr.bf16.gmra.mrb[0].mxu0 %v1067
  %v1809 = vpop.f32.mrb[0].mxu0
  %v1810 = vadd.f32 %v474, %v1809
  %v1811 = vpop.f32.mrb[0].mxu0
  %v1812 = vpop.f32.mrb[0].mxu0
  %v1813 = vadd.f32 %v479, %v1812
  %v1814 = vpop.f32.mrb[0].mxu0
  %1815 = vmatprep.mubr.bf16.mxu0 %v1077
  %1816 = vmatmul.mubr.bf16.gmra.mrb[0].mxu0 %v1076
  %v1817 = vpop.f32.mrb[0].mxu0
  %v1818 = vadd.f32 %v484, %v1817
  %v1819 = vpop.f32.mrb[0].mxu0
  %v1820 = vpop.f32.mrb[0].mxu0
  %v1821 = vadd.f32 %v489, %v1820
  %v1822 = vpop.f32.mrb[0].mxu0
  %1823 = vmatprep.mubr.bf16.mxu0 %v1086
  %1824 = vmatmul.mubr.bf16.gmra.mrb[0].mxu0 %v1085
  %v1825 = vpop.f32.mrb[0].mxu0
  %v1826 = vadd.f32 %v494, %v1825
  %v1827 = vpop.f32.mrb[0].mxu0
  %v1828 = vpop.f32.mrb[0].mxu0
  %v1829 = vadd.f32 %v499, %v1828
  %v1830 = vpop.f32.mrb[0].mxu0
  %1831 = vmatprep.mubr.bf16.mxu0 %v1095
  %1832 = vmatmul.mubr.bf16.gmra.mrb[0].mxu0 %v1094
  %v1833 = vpop.f32.mrb[0].mxu0
  %v1834 = vadd.f32 %v504, %v1833
  %v1835 = vpop.f32.mrb[0].mxu0
  %v1836 = vpop.f32.mrb[0].mxu0
  %v1837 = vadd.f32 %v509, %v1836
  %v1838 = vpop.f32.mrb[0].mxu0
  %1839 = vdwg.mxu0
  %1840 = vmatprep.subr.bf16.mxu0 0
  %1841 = vmatpush1.bf16.msra.mxu0 %v1551
  %1842 = vmatprep.subr.bf16.mxu0 0
  %1843 = vmatpush1.bf16.msra.mxu0 %v1552
  %1844 = vmatprep.subr.bf16.mxu0 0
  %1845 = vmatpush1.bf16.msra.mxu0 %v1553
  %1846 = vmatprep.subr.bf16.mxu0 0
  %1847 = vmatpush1.bf16.msra.mxu0 %v1554
  %1848 = vmatprep.subr.bf16.mxu0 0
  %1849 = vmatpush1.bf16.msra.mxu0 %v1555
  %1850 = vmatprep.subr.bf16.mxu0 0
  %1851 = vmatpush1.bf16.msra.mxu0 %v1556
  %1852 = vmatprep.subr.bf16.mxu0 0
  %1853 = vmatpush1.bf16.msra.mxu0 %v1557
  %1854 = vmatprep.subr.bf16.mxu0 0
  %1855 = vmatpush1.bf16.msra.mxu0 %v1558
  %1856 = vmatprep.subr.bf16.mxu0 0
  %1857 = vmatpush1.bf16.msra.mxu0 %v1559
  %1858 = vmatprep.subr.bf16.mxu0 0
  %1859 = vmatpush1.bf16.msra.mxu0 %v1560
  %1860 = vmatprep.subr.bf16.mxu0 0
  %1861 = vmatpush1.bf16.msra.mxu0 %v1561
  %1862 = vmatprep.subr.bf16.mxu0 0
  %1863 = vmatpush1.bf16.msra.mxu0 %v1562
  %1864 = vmatprep.subr.bf16.mxu0 0
  %1865 = vmatpush1.bf16.msra.mxu0 %v1563
  %1866 = vmatprep.subr.bf16.mxu0 0
  %1867 = vmatpush1.bf16.msra.mxu0 %v1564
  %1868 = vmatprep.subr.bf16.mxu0 0
  %1869 = vmatpush1.bf16.msra.mxu0 %v1565
  %1870 = vmatprep.subr.bf16.mxu0 0
  %1871 = vmatpush1.bf16.msra.mxu0 %v1566
  %1872 = vmatprep.mubr.bf16.mxu0 %v962
  %1873 = vmatmul.mubr.bf16.gmra.mrb[0].mxu0 %v961
  %v1874 = vpop.f32.mrb[0].mxu0
  %v1875 = vadd.f32 %v1714, %v1874
  %v1876 = vpop.f32.mrb[0].mxu0
  %v1877 = vpop.f32.mrb[0].mxu0
  %v1878 = vadd.f32 %v1717, %v1877
  %v1879 = vpop.f32.mrb[0].mxu0
  %1880 = vmatprep.mubr.bf16.mxu0 %v971
  %1881 = vmatmul.mubr.bf16.gmra.mrb[0].mxu0 %v970
  %v1882 = vpop.f32.mrb[0].mxu0
  %v1883 = vadd.f32 %v1722, %v1882
  %v1884 = vpop.f32.mrb[0].mxu0
  %v1885 = vpop.f32.mrb[0].mxu0
  %v1886 = vadd.f32 %v1725, %v1885
  %v1887 = vpop.f32.mrb[0].mxu0
  %1888 = vmatprep.mubr.bf16.mxu0 %v980
  %1889 = vmatmul.mubr.bf16.gmra.mrb[0].mxu0 %v979
  %v1890 = vpop.f32.mrb[0].mxu0
  %v1891 = vadd.f32 %v1730, %v1890
  %v1892 = vpop.f32.mrb[0].mxu0
  %v1893 = vpop.f32.mrb[0].mxu0
  %v1894 = vadd.f32 %v1733, %v1893
  %v1895 = vpop.f32.mrb[0].mxu0
  %1896 = vmatprep.mubr.bf16.mxu0 %v989
  %1897 = vmatmul.mubr.bf16.gmra.mrb[0].mxu0 %v988
  %v1898 = vpop.f32.mrb[0].mxu0
  %v1899 = vadd.f32 %v1738, %v1898
  %v1900 = vpop.f32.mrb[0].mxu0
  %v1901 = vpop.f32.mrb[0].mxu0
  %v1902 = vadd.f32 %v1741, %v1901
  %v1903 = vpop.f32.mrb[0].mxu0
  %1904 = vmatprep.mubr.bf16.mxu0 %v998
  %1905 = vmatmul.mubr.bf16.gmra.mrb[0].mxu0 %v997
  %v1906 = vpop.f32.mrb[0].mxu0
  %v1907 = vadd.f32 %v1746, %v1906
  %v1908 = vpop.f32.mrb[0].mxu0
  %v1909 = vpop.f32.mrb[0].mxu0
  %v1910 = vadd.f32 %v1749, %v1909
  %v1911 = vpop.f32.mrb[0].mxu0
  %1912 = vmatprep.mubr.bf16.mxu0 %v1007
  %1913 = vmatmul.mubr.bf16.gmra.mrb[0].mxu0 %v1006
  %v1914 = vpop.f32.mrb[0].mxu0
  %v1915 = vadd.f32 %v1754, %v1914
  %v1916 = vpop.f32.mrb[0].mxu0
  %v1917 = vpop.f32.mrb[0].mxu0
  %v1918 = vadd.f32 %v1757, %v1917
  %v1919 = vpop.f32.mrb[0].mxu0
  %1920 = vmatprep.mubr.bf16.mxu0 %v1016
  %1921 = vmatmul.mubr.bf16.gmra.mrb[0].mxu0 %v1015
  %v1922 = vpop.f32.mrb[0].mxu0
  %v1923 = vadd.f32 %v1762, %v1922
  %v1924 = vpop.f32.mrb[0].mxu0
  %v1925 = vpop.f32.mrb[0].mxu0
  %v1926 = vadd.f32 %v1765, %v1925
  %v1927 = vpop.f32.mrb[0].mxu0
  %1928 = vmatprep.mubr.bf16.mxu0 %v1025
  %1929 = vmatmul.mubr.bf16.gmra.mrb[0].mxu0 %v1024
  %v1930 = vpop.f32.mrb[0].mxu0
  %v1931 = vadd.f32 %v1770, %v1930
  %v1932 = vpop.f32.mrb[0].mxu0
  %v1933 = vpop.f32.mrb[0].mxu0
  %v1934 = vadd.f32 %v1773, %v1933
  %v1935 = vpop.f32.mrb[0].mxu0
  %1936 = vmatprep.mubr.bf16.mxu0 %v1034
  %1937 = vmatmul.mubr.bf16.gmra.mrb[0].mxu0 %v1033
  %v1938 = vpop.f32.mrb[0].mxu0
  %v1939 = vadd.f32 %v1778, %v1938
  %v1940 = vpop.f32.mrb[0].mxu0
  %v1941 = vpop.f32.mrb[0].mxu0
  %v1942 = vadd.f32 %v1781, %v1941
  %v1943 = vpop.f32.mrb[0].mxu0
  %1944 = vmatprep.mubr.bf16.mxu0 %v1043
  %1945 = vmatmul.mubr.bf16.gmra.mrb[0].mxu0 %v1042
  %v1946 = vpop.f32.mrb[0].mxu0
  %v1947 = vadd.f32 %v1786, %v1946
  %v1948 = vpop.f32.mrb[0].mxu0
  %v1949 = vpop.f32.mrb[0].mxu0
  %v1950 = vadd.f32 %v1789, %v1949
  %v1951 = vpop.f32.mrb[0].mxu0
  %1952 = vmatprep.mubr.bf16.mxu0 %v1052
  %1953 = vmatmul.mubr.bf16.gmra.mrb[0].mxu0 %v1051
  %v1954 = vpop.f32.mrb[0].mxu0
  %v1955 = vadd.f32 %v1794, %v1954
  %v1956 = vpop.f32.mrb[0].mxu0
  %v1957 = vpop.f32.mrb[0].mxu0
  %v1958 = vadd.f32 %v1797, %v1957
  %v1959 = vpop.f32.mrb[0].mxu0
  %1960 = vmatprep.mubr.bf16.mxu0 %v1061
  %1961 = vmatmul.mubr.bf16.gmra.mrb[0].mxu0 %v1060
  %v1962 = vpop.f32.mrb[0].mxu0
  %v1963 = vadd.f32 %v1802, %v1962
  %v1964 = vpop.f32.mrb[0].mxu0
  %v1965 = vpop.f32.mrb[0].mxu0
  %v1966 = vadd.f32 %v1805, %v1965
  %v1967 = vpop.f32.mrb[0].mxu0
  %1968 = vmatprep.mubr.bf16.mxu0 %v1070
  %1969 = vmatmul.mubr.bf16.gmra.mrb[0].mxu0 %v1069
  %v1970 = vpop.f32.mrb[0].mxu0
  %v1971 = vadd.f32 %v1810, %v1970
  %v1972 = vpop.f32.mrb[0].mxu0
  %v1973 = vpop.f32.mrb[0].mxu0
  %v1974 = vadd.f32 %v1813, %v1973
  %v1975 = vpop.f32.mrb[0].mxu0
  %1976 = vmatprep.mubr.bf16.mxu0 %v1079
  %1977 = vmatmul.mubr.bf16.gmra.mrb[0].mxu0 %v1078
  %v1978 = vpop.f32.mrb[0].mxu0
  %v1979 = vadd.f32 %v1818, %v1978
  %v1980 = vpop.f32.mrb[0].mxu0
  %v1981 = vpop.f32.mrb[0].mxu0
  %v1982 = vadd.f32 %v1821, %v1981
  %v1983 = vpop.f32.mrb[0].mxu0
  %1984 = vmatprep.mubr.bf16.mxu0 %v1088
  %1985 = vmatmul.mubr.bf16.gmra.mrb[0].mxu0 %v1087
  %v1986 = vpop.f32.mrb[0].mxu0
  %v1987 = vadd.f32 %v1826, %v1986
  %v1988 = vpop.f32.mrb[0].mxu0
  %v1989 = vpop.f32.mrb[0].mxu0
  %v1990 = vadd.f32 %v1829, %v1989
  %v1991 = vpop.f32.mrb[0].mxu0
  %1992 = vmatprep.mubr.bf16.mxu0 %v1097
  %1993 = vmatmul.mubr.bf16.gmra.mrb[0].mxu0 %v1096
  %v1994 = vpop.f32.mrb[0].mxu0
  %v1995 = vadd.f32 %v1834, %v1994
  %v1996 = vpop.f32.mrb[0].mxu0
  %v1997 = vpop.f32.mrb[0].mxu0
  %v1998 = vadd.f32 %v1837, %v1997
  %v1999 = vpop.f32.mrb[0].mxu0
  %2000 = vdwg.mxu0
  %2001 = vmatprep.subr.bf16.mxu0 0
  %2002 = vmatpush1.bf16.msra.mxu0 %v1567
  %2003 = vmatprep.subr.bf16.mxu0 0
  %2004 = vmatpush1.bf16.msra.mxu0 %v1568
  %2005 = vmatprep.subr.bf16.mxu0 0
  %2006 = vmatpush1.bf16.msra.mxu0 %v1569
  %2007 = vmatprep.subr.bf16.mxu0 0
  %2008 = vmatpush1.bf16.msra.mxu0 %v1570
  %2009 = vmatprep.subr.bf16.mxu0 0
  %2010 = vmatpush1.bf16.msra.mxu0 %v1571
  %2011 = vmatprep.subr.bf16.mxu0 0
  %2012 = vmatpush1.bf16.msra.mxu0 %v1572
  %2013 = vmatprep.subr.bf16.mxu0 0
  %2014 = vmatpush1.bf16.msra.mxu0 %v1573
  %2015 = vmatprep.subr.bf16.mxu0 0
  %2016 = vmatpush1.bf16.msra.mxu0 %v1574
  %2017 = vmatprep.subr.bf16.mxu0 0
  %2018 = vmatpush1.bf16.msra.mxu0 %v1575
  %2019 = vmatprep.subr.bf16.mxu0 0
  %2020 = vmatpush1.bf16.msra.mxu0 %v1576
  %2021 = vmatprep.subr.bf16.mxu0 0
  %2022 = vmatpush1.bf16.msra.mxu0 %v1577
  %2023 = vmatprep.subr.bf16.mxu0 0
  %2024 = vmatpush1.bf16.msra.mxu0 %v1578
  %2025 = vmatprep.subr.bf16.mxu0 0
  %2026 = vmatpush1.bf16.msra.mxu0 %v1579
  %2027 = vmatprep.subr.bf16.mxu0 0
  %2028 = vmatpush1.bf16.msra.mxu0 %v1580
  %2029 = vmatprep.subr.bf16.mxu0 0
  %2030 = vmatpush1.bf16.msra.mxu0 %v1581
  %2031 = vmatprep.subr.bf16.mxu0 0
  %2032 = vmatpush1.bf16.msra.mxu0 %v1582
  %2033 = vmatprep.mubr.bf16.mxu0 %v964
  %2034 = vmatmul.mubr.bf16.gmra.mrb[0].mxu0 %v963
  %v2035 = vpop.f32.mrb[0].mxu0
  %v2036 = vadd.f32 %v1875, %v2035
  %v2037 = vpop.f32.mrb[0].mxu0
  %v2038 = vpop.f32.mrb[0].mxu0
  %v2039 = vadd.f32 %v1878, %v2038
  %v2040 = vpop.f32.mrb[0].mxu0
  %2041 = vmatprep.mubr.bf16.mxu0 %v973
  %2042 = vmatmul.mubr.bf16.gmra.mrb[0].mxu0 %v972
  %v2043 = vpop.f32.mrb[0].mxu0
  %v2044 = vadd.f32 %v1883, %v2043
  %v2045 = vpop.f32.mrb[0].mxu0
  %v2046 = vpop.f32.mrb[0].mxu0
  %v2047 = vadd.f32 %v1886, %v2046
  %v2048 = vpop.f32.mrb[0].mxu0
  %2049 = vmatprep.mubr.bf16.mxu0 %v982
  %2050 = vmatmul.mubr.bf16.gmra.mrb[0].mxu0 %v981
  %v2051 = vpop.f32.mrb[0].mxu0
  %v2052 = vadd.f32 %v1891, %v2051
  %v2053 = vpop.f32.mrb[0].mxu0
  %v2054 = vpop.f32.mrb[0].mxu0
  %v2055 = vadd.f32 %v1894, %v2054
  %v2056 = vpop.f32.mrb[0].mxu0
  %2057 = vmatprep.mubr.bf16.mxu0 %v991
  %2058 = vmatmul.mubr.bf16.gmra.mrb[0].mxu0 %v990
  %v2059 = vpop.f32.mrb[0].mxu0
  %v2060 = vadd.f32 %v1899, %v2059
  %v2061 = vpop.f32.mrb[0].mxu0
  %v2062 = vpop.f32.mrb[0].mxu0
  %v2063 = vadd.f32 %v1902, %v2062
  %v2064 = vpop.f32.mrb[0].mxu0
  %2065 = vmatprep.mubr.bf16.mxu0 %v1000
  %2066 = vmatmul.mubr.bf16.gmra.mrb[0].mxu0 %v999
  %v2067 = vpop.f32.mrb[0].mxu0
  %v2068 = vadd.f32 %v1907, %v2067
  %v2069 = vpop.f32.mrb[0].mxu0
  %v2070 = vpop.f32.mrb[0].mxu0
  %v2071 = vadd.f32 %v1910, %v2070
  %v2072 = vpop.f32.mrb[0].mxu0
  %2073 = vmatprep.mubr.bf16.mxu0 %v1009
  %2074 = vmatmul.mubr.bf16.gmra.mrb[0].mxu0 %v1008
  %v2075 = vpop.f32.mrb[0].mxu0
  %v2076 = vadd.f32 %v1915, %v2075
  %v2077 = vpop.f32.mrb[0].mxu0
  %v2078 = vpop.f32.mrb[0].mxu0
  %v2079 = vadd.f32 %v1918, %v2078
  %v2080 = vpop.f32.mrb[0].mxu0
  %2081 = vmatprep.mubr.bf16.mxu0 %v1018
  %2082 = vmatmul.mubr.bf16.gmra.mrb[0].mxu0 %v1017
  %v2083 = vpop.f32.mrb[0].mxu0
  %v2084 = vadd.f32 %v1923, %v2083
  %v2085 = vpop.f32.mrb[0].mxu0
  %v2086 = vpop.f32.mrb[0].mxu0
  %v2087 = vadd.f32 %v1926, %v2086
  %v2088 = vpop.f32.mrb[0].mxu0
  %2089 = vmatprep.mubr.bf16.mxu0 %v1027
  %2090 = vmatmul.mubr.bf16.gmra.mrb[0].mxu0 %v1026
  %v2091 = vpop.f32.mrb[0].mxu0
  %v2092 = vadd.f32 %v1931, %v2091
  %v2093 = vpop.f32.mrb[0].mxu0
  %v2094 = vpop.f32.mrb[0].mxu0
  %v2095 = vadd.f32 %v1934, %v2094
  %v2096 = vpop.f32.mrb[0].mxu0
  %2097 = vmatprep.mubr.bf16.mxu0 %v1036
  %2098 = vmatmul.mubr.bf16.gmra.mrb[0].mxu0 %v1035
  %v2099 = vpop.f32.mrb[0].mxu0
  %v2100 = vadd.f32 %v1939, %v2099
  %v2101 = vpop.f32.mrb[0].mxu0
  %v2102 = vpop.f32.mrb[0].mxu0
  %v2103 = vadd.f32 %v1942, %v2102
  %v2104 = vpop.f32.mrb[0].mxu0
  %2105 = vmatprep.mubr.bf16.mxu0 %v1045
  %2106 = vmatmul.mubr.bf16.gmra.mrb[0].mxu0 %v1044
  %v2107 = vpop.f32.mrb[0].mxu0
  %v2108 = vadd.f32 %v1947, %v2107
  %v2109 = vpop.f32.mrb[0].mxu0
  %v2110 = vpop.f32.mrb[0].mxu0
  %v2111 = vadd.f32 %v1950, %v2110
  %v2112 = vpop.f32.mrb[0].mxu0
  %2113 = vmatprep.mubr.bf16.mxu0 %v1054
  %2114 = vmatmul.mubr.bf16.gmra.mrb[0].mxu0 %v1053
  %v2115 = vpop.f32.mrb[0].mxu0
  %v2116 = vadd.f32 %v1955, %v2115
  %v2117 = vpop.f32.mrb[0].mxu0
  %v2118 = vpop.f32.mrb[0].mxu0
  %v2119 = vadd.f32 %v1958, %v2118
  %v2120 = vpop.f32.mrb[0].mxu0
  %2121 = vmatprep.mubr.bf16.mxu0 %v1063
  %2122 = vmatmul.mubr.bf16.gmra.mrb[0].mxu0 %v1062
  %v2123 = vpop.f32.mrb[0].mxu0
  %v2124 = vadd.f32 %v1963, %v2123
  %v2125 = vpop.f32.mrb[0].mxu0
  %v2126 = vpop.f32.mrb[0].mxu0
  %v2127 = vadd.f32 %v1966, %v2126
  %v2128 = vpop.f32.mrb[0].mxu0
  %2129 = vmatprep.mubr.bf16.mxu0 %v1072
  %2130 = vmatmul.mubr.bf16.gmra.mrb[0].mxu0 %v1071
  %v2131 = vpop.f32.mrb[0].mxu0
  %v2132 = vadd.f32 %v1971, %v2131
  %v2133 = vpop.f32.mrb[0].mxu0
  %v2134 = vpop.f32.mrb[0].mxu0
  %v2135 = vadd.f32 %v1974, %v2134
  %v2136 = vpop.f32.mrb[0].mxu0
  %2137 = vmatprep.mubr.bf16.mxu0 %v1081
  %2138 = vmatmul.mubr.bf16.gmra.mrb[0].mxu0 %v1080
  %v2139 = vpop.f32.mrb[0].mxu0
  %v2140 = vadd.f32 %v1979, %v2139
  %v2141 = vpop.f32.mrb[0].mxu0
  %v2142 = vpop.f32.mrb[0].mxu0
  %v2143 = vadd.f32 %v1982, %v2142
  %v2144 = vpop.f32.mrb[0].mxu0
  %2145 = vmatprep.mubr.bf16.mxu0 %v1090
  %2146 = vmatmul.mubr.bf16.gmra.mrb[0].mxu0 %v1089
  %v2147 = vpop.f32.mrb[0].mxu0
  %v2148 = vadd.f32 %v1987, %v2147
  %v2149 = vpop.f32.mrb[0].mxu0
  %v2150 = vpop.f32.mrb[0].mxu0
  %v2151 = vadd.f32 %v1990, %v2150
  %v2152 = vpop.f32.mrb[0].mxu0
  %2153 = vmatprep.mubr.bf16.mxu0 %v1099
  %2154 = vmatmul.mubr.bf16.gmra.mrb[0].mxu0 %v1098
  %v2155 = vpop.f32.mrb[0].mxu0
  %v2156 = vadd.f32 %v1995, %v2155
  %v2157 = vpop.f32.mrb[0].mxu0
  %v2158 = vpop.f32.mrb[0].mxu0
  %v2159 = vadd.f32 %v1998, %v2158
  %v2160 = vpop.f32.mrb[0].mxu0
  %2161 = vdwg.mxu0
  %2162 = vmatprep.subr.bf16.mxu0 0
  %2163 = vmatpush1.bf16.msra.mxu0 %v1583
  %2164 = vmatprep.subr.bf16.mxu0 0
  %2165 = vmatpush1.bf16.msra.mxu0 %v1584
  %2166 = vmatprep.subr.bf16.mxu0 0
  %2167 = vmatpush1.bf16.msra.mxu0 %v1585
  %2168 = vmatprep.subr.bf16.mxu0 0
  %2169 = vmatpush1.bf16.msra.mxu0 %v1586
  %2170 = vmatprep.subr.bf16.mxu0 0
  %2171 = vmatpush1.bf16.msra.mxu0 %v1587
  %2172 = vmatprep.subr.bf16.mxu0 0
  %2173 = vmatpush1.bf16.msra.mxu0 %v1588
  %2174 = vmatprep.subr.bf16.mxu0 0
  %2175 = vmatpush1.bf16.msra.mxu0 %v1589
  %2176 = vmatprep.subr.bf16.mxu0 0
  %2177 = vmatpush1.bf16.msra.mxu0 %v1590
  %2178 = vmatprep.subr.bf16.mxu0 0
  %2179 = vmatpush1.bf16.msra.mxu0 %v1591
  %2180 = vmatprep.subr.bf16.mxu0 0
  %2181 = vmatpush1.bf16.msra.mxu0 %v1592
  %2182 = vmatprep.subr.bf16.mxu0 0
  %2183 = vmatpush1.bf16.msra.mxu0 %v1593
  %2184 = vmatprep.subr.bf16.mxu0 0
  %2185 = vmatpush1.bf16.msra.mxu0 %v1594
  %2186 = vmatprep.subr.bf16.mxu0 0
  %2187 = vmatpush1.bf16.msra.mxu0 %v1595
  %2188 = vmatprep.subr.bf16.mxu0 0
  %2189 = vmatpush1.bf16.msra.mxu0 %v1596
  %2190 = vmatprep.subr.bf16.mxu0 0
  %2191 = vmatpush1.bf16.msra.mxu0 %v1597
  %2192 = vmatprep.subr.bf16.mxu0 0
  %2193 = vmatpush1.bf16.msra.mxu0 %v1598
  %2194 = vmatprep.mubr.bf16.mxu0 %v966
  %2195 = vmatmul.mubr.bf16.gmra.mrb[0].mxu0 %v965
  %v2196 = vpop.f32.mrb[0].mxu0
  %v2197 = vadd.f32 %v2036, %v2196
  %v2198 = vpop.f32.mrb[0].mxu0
  %v2199 = vpop.f32.mrb[0].mxu0
  %v2200 = vadd.f32 %v2039, %v2199
  %v2201 = vpop.f32.mrb[0].mxu0
  %2202 = vmatprep.mubr.bf16.mxu0 %v975
  %2203 = vmatmul.mubr.bf16.gmra.mrb[0].mxu0 %v974
  %v2204 = vpop.f32.mrb[0].mxu0
  %v2205 = vadd.f32 %v2044, %v2204
  %v2206 = vpop.f32.mrb[0].mxu0
  %v2207 = vpop.f32.mrb[0].mxu0
  %v2208 = vadd.f32 %v2047, %v2207
  %v2209 = vpop.f32.mrb[0].mxu0
  %2210 = vmatprep.mubr.bf16.mxu0 %v984
  %2211 = vmatmul.mubr.bf16.gmra.mrb[0].mxu0 %v983
  %v2212 = vpop.f32.mrb[0].mxu0
  %v2213 = vadd.f32 %v2052, %v2212
  %v2214 = vpop.f32.mrb[0].mxu0
  %v2215 = vpop.f32.mrb[0].mxu0
  %v2216 = vadd.f32 %v2055, %v2215
  %v2217 = vpop.f32.mrb[0].mxu0
  %2218 = vmatprep.mubr.bf16.mxu0 %v993
  %2219 = vmatmul.mubr.bf16.gmra.mrb[0].mxu0 %v992
  %v2220 = vpop.f32.mrb[0].mxu0
  %v2221 = vadd.f32 %v2060, %v2220
  %v2222 = vpop.f32.mrb[0].mxu0
  %v2223 = vpop.f32.mrb[0].mxu0
  %v2224 = vadd.f32 %v2063, %v2223
  %v2225 = vpop.f32.mrb[0].mxu0
  %2226 = vmatprep.mubr.bf16.mxu0 %v1002
  %2227 = vmatmul.mubr.bf16.gmra.mrb[0].mxu0 %v1001
  %v2228 = vpop.f32.mrb[0].mxu0
  %v2229 = vadd.f32 %v2068, %v2228
  %v2230 = vpop.f32.mrb[0].mxu0
  %v2231 = vpop.f32.mrb[0].mxu0
  %v2232 = vadd.f32 %v2071, %v2231
  %v2233 = vpop.f32.mrb[0].mxu0
  %2234 = vmatprep.mubr.bf16.mxu0 %v1011
  %2235 = vmatmul.mubr.bf16.gmra.mrb[0].mxu0 %v1010
  %v2236 = vpop.f32.mrb[0].mxu0
  %v2237 = vadd.f32 %v2076, %v2236
  %v2238 = vpop.f32.mrb[0].mxu0
  %v2239 = vpop.f32.mrb[0].mxu0
  %v2240 = vadd.f32 %v2079, %v2239
  %v2241 = vpop.f32.mrb[0].mxu0
  %2242 = vmatprep.mubr.bf16.mxu0 %v1020
  %2243 = vmatmul.mubr.bf16.gmra.mrb[0].mxu0 %v1019
  %v2244 = vpop.f32.mrb[0].mxu0
  %v2245 = vadd.f32 %v2084, %v2244
  %v2246 = vpop.f32.mrb[0].mxu0
  %v2247 = vpop.f32.mrb[0].mxu0
  %v2248 = vadd.f32 %v2087, %v2247
  %v2249 = vpop.f32.mrb[0].mxu0
  %2250 = vmatprep.mubr.bf16.mxu0 %v1029
  %2251 = vmatmul.mubr.bf16.gmra.mrb[0].mxu0 %v1028
  %v2252 = vpop.f32.mrb[0].mxu0
  %v2253 = vadd.f32 %v2092, %v2252
  %v2254 = vpop.f32.mrb[0].mxu0
  %v2255 = vpop.f32.mrb[0].mxu0
  %v2256 = vadd.f32 %v2095, %v2255
  %v2257 = vpop.f32.mrb[0].mxu0
  %2258 = vmatprep.mubr.bf16.mxu0 %v1038
  %2259 = vmatmul.mubr.bf16.gmra.mrb[0].mxu0 %v1037
  %v2260 = vpop.f32.mrb[0].mxu0
  %v2261 = vadd.f32 %v2100, %v2260
  %v2262 = vpop.f32.mrb[0].mxu0
  %v2263 = vpop.f32.mrb[0].mxu0
  %v2264 = vadd.f32 %v2103, %v2263
  %v2265 = vpop.f32.mrb[0].mxu0
  %2266 = vmatprep.mubr.bf16.mxu0 %v1047
  %2267 = vmatmul.mubr.bf16.gmra.mrb[0].mxu0 %v1046
  %v2268 = vpop.f32.mrb[0].mxu0
  %v2269 = vadd.f32 %v2108, %v2268
  %v2270 = vpop.f32.mrb[0].mxu0
  %v2271 = vpop.f32.mrb[0].mxu0
  %v2272 = vadd.f32 %v2111, %v2271
  %v2273 = vpop.f32.mrb[0].mxu0
  %2274 = vmatprep.mubr.bf16.mxu0 %v1056
  %2275 = vmatmul.mubr.bf16.gmra.mrb[0].mxu0 %v1055
  %v2276 = vpop.f32.mrb[0].mxu0
  %v2277 = vadd.f32 %v2116, %v2276
  %v2278 = vpop.f32.mrb[0].mxu0
  %v2279 = vpop.f32.mrb[0].mxu0
  %v2280 = vadd.f32 %v2119, %v2279
  %v2281 = vpop.f32.mrb[0].mxu0
  %2282 = vmatprep.mubr.bf16.mxu0 %v1065
  %2283 = vmatmul.mubr.bf16.gmra.mrb[0].mxu0 %v1064
  %v2284 = vpop.f32.mrb[0].mxu0
  %v2285 = vadd.f32 %v2124, %v2284
  %v2286 = vpop.f32.mrb[0].mxu0
  %v2287 = vpop.f32.mrb[0].mxu0
  %v2288 = vadd.f32 %v2127, %v2287
  %v2289 = vpop.f32.mrb[0].mxu0
  %2290 = vmatprep.mubr.bf16.mxu0 %v1074
  %2291 = vmatmul.mubr.bf16.gmra.mrb[0].mxu0 %v1073
  %v2292 = vpop.f32.mrb[0].mxu0
  %v2293 = vadd.f32 %v2132, %v2292
  %v2294 = vpop.f32.mrb[0].mxu0
  %v2295 = vpop.f32.mrb[0].mxu0
  %v2296 = vadd.f32 %v2135, %v2295
  %v2297 = vpop.f32.mrb[0].mxu0
  %2298 = vmatprep.mubr.bf16.mxu0 %v1083
  %2299 = vmatmul.mubr.bf16.gmra.mrb[0].mxu0 %v1082
  %v2300 = vpop.f32.mrb[0].mxu0
  %v2301 = vadd.f32 %v2140, %v2300
  %v2302 = vpop.f32.mrb[0].mxu0
  %v2303 = vpop.f32.mrb[0].mxu0
  %v2304 = vadd.f32 %v2143, %v2303
  %v2305 = vpop.f32.mrb[0].mxu0
  %2306 = vmatprep.mubr.bf16.mxu0 %v1092
  %2307 = vmatmul.mubr.bf16.gmra.mrb[0].mxu0 %v1091
  %v2308 = vpop.f32.mrb[0].mxu0
  %v2309 = vadd.f32 %v2148, %v2308
  %v2310 = vpop.f32.mrb[0].mxu0
  %v2311 = vpop.f32.mrb[0].mxu0
  %v2312 = vadd.f32 %v2151, %v2311
  %v2313 = vpop.f32.mrb[0].mxu0
  %2314 = vmatprep.mubr.bf16.mxu0 %v1101
  %2315 = vmatmul.mubr.bf16.gmra.mrb[0].mxu0 %v1100
  %v2316 = vpop.f32.mrb[0].mxu0
  %v2317 = vadd.f32 %v2156, %v2316
  %v2318 = vpop.f32.mrb[0].mxu0
  %v2319 = vpop.f32.mrb[0].mxu0
  %v2320 = vadd.f32 %v2159, %v2319
  %v2321 = vpop.f32.mrb[0].mxu0
  %2322 = vdwg.mxu0
  %2323 = vmatprep.subr.bf16.mxu0 0
  %2324 = vmatpush1.bf16.msra.mxu0 %v1599
  %2325 = vmatprep.subr.bf16.mxu0 0
  %2326 = vmatpush1.bf16.msra.mxu0 %v1600
  %2327 = vmatprep.subr.bf16.mxu0 0
  %2328 = vmatpush1.bf16.msra.mxu0 %v1601
  %2329 = vmatprep.subr.bf16.mxu0 0
  %2330 = vmatpush1.bf16.msra.mxu0 %v1602
  %2331 = vmatprep.subr.bf16.mxu0 0
  %2332 = vmatpush1.bf16.msra.mxu0 %v1603
  %2333 = vmatprep.subr.bf16.mxu0 0
  %2334 = vmatpush1.bf16.msra.mxu0 %v1604
  %2335 = vmatprep.subr.bf16.mxu0 0
  %2336 = vmatpush1.bf16.msra.mxu0 %v1605
  %2337 = vmatprep.subr.bf16.mxu0 0
  %2338 = vmatpush1.bf16.msra.mxu0 %v1606
  %2339 = vmatprep.subr.bf16.mxu0 0
  %2340 = vmatpush1.bf16.msra.mxu0 0
  %2341 = vmatprep.subr.bf16.mxu0 0
  %2342 = vmatpush1.bf16.msra.mxu0 0
  %2343 = vmatprep.subr.bf16.mxu0 0
  %2344 = vmatpush1.bf16.msra.mxu0 0
  %2345 = vmatprep.subr.bf16.mxu0 0
  %2346 = vmatpush1.bf16.msra.mxu0 0
  %2347 = vmatprep.subr.bf16.mxu0 0
  %2348 = vmatpush1.bf16.msra.mxu0 0
  %2349 = vmatprep.subr.bf16.mxu0 0
  %2350 = vmatpush1.bf16.msra.mxu0 0
  %2351 = vmatprep.subr.bf16.mxu0 0
  %2352 = vmatpush1.bf16.msra.mxu0 0
  %2353 = vmatprep.subr.bf16.mxu0 0
  %2354 = vmatpush1.bf16.msra.mxu0 0
  %2355 = vmatprep.mubr.bf16.mxu0 0
  %2356 = vmatmul.mubr.bf16.gmra.mrb[0].mxu0 %v967
  %v2357 = vpop.f32.mrb[0].mxu0
  %v2358 = vadd.f32 %v2197, %v2357
  %v2359 = vpop.f32.mrb[0].mxu0
  %v2360 = vpop.f32.mrb[0].mxu0
  %v2361 = vadd.f32 %v2200, %v2360
  %v2362 = vpop.f32.mrb[0].mxu0
  %2363 = vmatprep.mubr.bf16.mxu0 0
  %2364 = vmatmul.mubr.bf16.gmra.mrb[0].mxu0 %v976
  %v2365 = vpop.f32.mrb[0].mxu0
  %v2366 = vadd.f32 %v2205, %v2365
  %v2367 = vpop.f32.mrb[0].mxu0
  %v2368 = vpop.f32.mrb[0].mxu0
  %v2369 = vadd.f32 %v2208, %v2368
  %v2370 = vpop.f32.mrb[0].mxu0
  %2371 = vmatprep.mubr.bf16.mxu0 0
  %2372 = vmatmul.mubr.bf16.gmra.mrb[0].mxu0 %v985
  %v2373 = vpop.f32.mrb[0].mxu0
  %v2374 = vadd.f32 %v2213, %v2373
  %v2375 = vpop.f32.mrb[0].mxu0
  %v2376 = vpop.f32.mrb[0].mxu0
  %v2377 = vadd.f32 %v2216, %v2376
  %v2378 = vpop.f32.mrb[0].mxu0
  %2379 = vmatprep.mubr.bf16.mxu0 0
  %2380 = vmatmul.mubr.bf16.gmra.mrb[0].mxu0 %v994
  %v2381 = vpop.f32.mrb[0].mxu0
  %v2382 = vadd.f32 %v2221, %v2381
  %v2383 = vpop.f32.mrb[0].mxu0
  %v2384 = vpop.f32.mrb[0].mxu0
  %v2385 = vadd.f32 %v2224, %v2384
  %v2386 = vpop.f32.mrb[0].mxu0
  %2387 = vmatprep.mubr.bf16.mxu0 0
  %2388 = vmatmul.mubr.bf16.gmra.mrb[0].mxu0 %v1003
  %v2389 = vpop.f32.mrb[0].mxu0
  %v2390 = vadd.f32 %v2229, %v2389
  %v2391 = vpop.f32.mrb[0].mxu0
  %v2392 = vpop.f32.mrb[0].mxu0
  %v2393 = vadd.f32 %v2232, %v2392
  %v2394 = vpop.f32.mrb[0].mxu0
  %2395 = vmatprep.mubr.bf16.mxu0 0
  %2396 = vmatmul.mubr.bf16.gmra.mrb[0].mxu0 %v1012
  %v2397 = vpop.f32.mrb[0].mxu0
  %v2398 = vadd.f32 %v2237, %v2397
  %v2399 = vpop.f32.mrb[0].mxu0
  %v2400 = vpop.f32.mrb[0].mxu0
  %v2401 = vadd.f32 %v2240, %v2400
  %v2402 = vpop.f32.mrb[0].mxu0
  %2403 = vmatprep.mubr.bf16.mxu0 0
  %2404 = vmatmul.mubr.bf16.gmra.mrb[0].mxu0 %v1021
  %v2405 = vpop.f32.mrb[0].mxu0
  %v2406 = vadd.f32 %v2245, %v2405
  %v2407 = vpop.f32.mrb[0].mxu0
  %v2408 = vpop.f32.mrb[0].mxu0
  %v2409 = vadd.f32 %v2248, %v2408
  %v2410 = vpop.f32.mrb[0].mxu0
  %2411 = vmatprep.mubr.bf16.mxu0 0
  %2412 = vmatmul.mubr.bf16.gmra.mrb[0].mxu0 %v1030
  %v2413 = vpop.f32.mrb[0].mxu0
  %v2414 = vadd.f32 %v2253, %v2413
  %v2415 = vpop.f32.mrb[0].mxu0
  %v2416 = vpop.f32.mrb[0].mxu0
  %v2417 = vadd.f32 %v2256, %v2416
  %v2418 = vpop.f32.mrb[0].mxu0
  %2419 = vmatprep.mubr.bf16.mxu0 0
  %2420 = vmatmul.mubr.bf16.gmra.mrb[0].mxu0 %v1039
  %v2421 = vpop.f32.mrb[0].mxu0
  %v2422 = vadd.f32 %v2261, %v2421
  %v2423 = vpop.f32.mrb[0].mxu0
  %v2424 = vpop.f32.mrb[0].mxu0
  %v2425 = vadd.f32 %v2264, %v2424
  %v2426 = vpop.f32.mrb[0].mxu0
  %2427 = vmatprep.mubr.bf16.mxu0 0
  %2428 = vmatmul.mubr.bf16.gmra.mrb[0].mxu0 %v1048
  %v2429 = vpop.f32.mrb[0].mxu0
  %v2430 = vadd.f32 %v2269, %v2429
  %v2431 = vpop.f32.mrb[0].mxu0
  %v2432 = vpop.f32.mrb[0].mxu0
  %v2433 = vadd.f32 %v2272, %v2432
  %v2434 = vpop.f32.mrb[0].mxu0
  %2435 = vmatprep.mubr.bf16.mxu0 0
  %2436 = vmatmul.mubr.bf16.gmra.mrb[0].mxu0 %v1057
  %v2437 = vpop.f32.mrb[0].mxu0
  %v2438 = vadd.f32 %v2277, %v2437
  %v2439 = vpop.f32.mrb[0].mxu0
  %v2440 = vpop.f32.mrb[0].mxu0
  %v2441 = vadd.f32 %v2280, %v2440
  %v2442 = vpop.f32.mrb[0].mxu0
  %2443 = vmatprep.mubr.bf16.mxu0 0
  %2444 = vmatmul.mubr.bf16.gmra.mrb[0].mxu0 %v1066
  %v2445 = vpop.f32.mrb[0].mxu0
  %v2446 = vadd.f32 %v2285, %v2445
  %v2447 = vpop.f32.mrb[0].mxu0
  %v2448 = vpop.f32.mrb[0].mxu0
  %v2449 = vadd.f32 %v2288, %v2448
  %v2450 = vpop.f32.mrb[0].mxu0
  %2451 = vmatprep.mubr.bf16.mxu0 0
  %2452 = vmatmul.mubr.bf16.gmra.mrb[0].mxu0 %v1075
  %v2453 = vpop.f32.mrb[0].mxu0
  %v2454 = vadd.f32 %v2293, %v2453
  %v2455 = vpop.f32.mrb[0].mxu0
  %v2456 = vpop.f32.mrb[0].mxu0
  %v2457 = vadd.f32 %v2296, %v2456
  %v2458 = vpop.f32.mrb[0].mxu0
  %2459 = vmatprep.mubr.bf16.mxu0 0
  %2460 = vmatmul.mubr.bf16.gmra.mrb[0].mxu0 %v1084
  %v2461 = vpop.f32.mrb[0].mxu0
  %v2462 = vadd.f32 %v2301, %v2461
  %v2463 = vpop.f32.mrb[0].mxu0
  %v2464 = vpop.f32.mrb[0].mxu0
  %v2465 = vadd.f32 %v2304, %v2464
  %v2466 = vpop.f32.mrb[0].mxu0
  %2467 = vmatprep.mubr.bf16.mxu0 0
  %2468 = vmatmul.mubr.bf16.gmra.mrb[0].mxu0 %v1093
  %v2469 = vpop.f32.mrb[0].mxu0
  %v2470 = vadd.f32 %v2309, %v2469
  %v2471 = vpop.f32.mrb[0].mxu0
  %v2472 = vpop.f32.mrb[0].mxu0
  %v2473 = vadd.f32 %v2312, %v2472
  %v2474 = vpop.f32.mrb[0].mxu0
  %2475 = vmatprep.mubr.bf16.mxu0 0
  %2476 = vmatmul.mubr.bf16.gmra.mrb[0].mxu0 %v1102
  %v2477 = vpop.f32.mrb[0].mxu0
  %v2478 = vadd.f32 %v2317, %v2477
  %v2479 = vpop.f32.mrb[0].mxu0
  %v2480 = vpop.f32.mrb[0].mxu0
  %v2481 = vadd.f32 %v2320, %v2480
  %v2482 = vpop.f32.mrb[0].mxu0
  %2483 = vdwg.mxu0
  %vm2484 = vcmp.gt.f32.partialorder %v2358, 0.0
  %vm2485 = vcmp.gt.f32.partialorder %v2361, 0.0
  %vm2486 = vcmp.gt.f32.partialorder %v2366, 0.0
  %vm2487 = vcmp.gt.f32.partialorder %v2369, 0.0
  %vm2488 = vcmp.gt.f32.partialorder %v2374, 0.0
  %vm2489 = vcmp.gt.f32.partialorder %v2377, 0.0
  %vm2490 = vcmp.gt.f32.partialorder %v2382, 0.0
  %vm2491 = vcmp.gt.f32.partialorder %v2385, 0.0
  %vm2492 = vcmp.gt.f32.partialorder %v2390, 0.0
  %vm2493 = vcmp.gt.f32.partialorder %v2393, 0.0
  %vm2494 = vcmp.gt.f32.partialorder %v2398, 0.0
  %vm2495 = vcmp.gt.f32.partialorder %v2401, 0.0
  %vm2496 = vcmp.gt.f32.partialorder %v2406, 0.0
  %vm2497 = vcmp.gt.f32.partialorder %v2409, 0.0
  %vm2498 = vcmp.gt.f32.partialorder %v2414, 0.0
  %vm2499 = vcmp.gt.f32.partialorder %v2417, 0.0
  %vm2500 = vcmp.gt.f32.partialorder %v2422, 0.0
  %vm2501 = vcmp.gt.f32.partialorder %v2425, 0.0
  %vm2502 = vcmp.gt.f32.partialorder %v2430, 0.0
  %vm2503 = vcmp.gt.f32.partialorder %v2433, 0.0
  %vm2504 = vcmp.gt.f32.partialorder %v2438, 0.0
  %vm2505 = vcmp.gt.f32.partialorder %v2441, 0.0
  %vm2506 = vcmp.gt.f32.partialorder %v2446, 0.0
  %vm2507 = vcmp.gt.f32.partialorder %v2449, 0.0
  %vm2508 = vcmp.gt.f32.partialorder %v2454, 0.0
  %vm2509 = vcmp.gt.f32.partialorder %v2457, 0.0
  %vm2510 = vcmp.gt.f32.partialorder %v2462, 0.0
  %vm2511 = vcmp.gt.f32.partialorder %v2465, 0.0
  %vm2512 = vcmp.gt.f32.partialorder %v2470, 0.0
  %vm2513 = vcmp.gt.f32.partialorder %v2473, 0.0
  %vm2514 = vcmp.gt.f32.partialorder %v2478, 0.0
  %vm2515 = vcmp.gt.f32.partialorder %v2481, 0.0
  %v2516 = vmul.f32 %v2358, 0.2
  %v2517 = vmul.f32 %v2361, 0.2
  %v2518 = vmul.f32 %v2366, 0.2
  %v2519 = vmul.f32 %v2369, 0.2
  %v2520 = vmul.f32 %v2374, 0.2
  %v2521 = vmul.f32 %v2377, 0.2
  %v2522 = vmul.f32 %v2382, 0.2
  %v2523 = vmul.f32 %v2385, 0.2
  %v2524 = vmul.f32 %v2390, 0.2
  %v2525 = vmul.f32 %v2393, 0.2
  %v2526 = vmul.f32 %v2398, 0.2
  %v2527 = vmul.f32 %v2401, 0.2
  %v2528 = vmul.f32 %v2406, 0.2
  %v2529 = vmul.f32 %v2409, 0.2
  %v2530 = vmul.f32 %v2414, 0.2
  %v2531 = vmul.f32 %v2417, 0.2
  %v2532 = vmul.f32 %v2422, 0.2
  %v2533 = vmul.f32 %v2425, 0.2
  %v2534 = vmul.f32 %v2430, 0.2
  %v2535 = vmul.f32 %v2433, 0.2
  %v2536 = vmul.f32 %v2438, 0.2
  %v2537 = vmul.f32 %v2441, 0.2
  %v2538 = vmul.f32 %v2446, 0.2
  %v2539 = vmul.f32 %v2449, 0.2
  %v2540 = vmul.f32 %v2454, 0.2
  %v2541 = vmul.f32 %v2457, 0.2
  %v2542 = vmul.f32 %v2462, 0.2
  %v2543 = vmul.f32 %v2465, 0.2
  %v2544 = vmul.f32 %v2470, 0.2
  %v2545 = vmul.f32 %v2473, 0.2
  %v2546 = vmul.f32 %v2478, 0.2
  %v2547 = vmul.f32 %v2481, 0.2
  %v2548 = vsel %vm2484, %v2358, %v2516
  %v2549 = vsel %vm2485, %v2361, %v2517
  %v2550 = vsel %vm2486, %v2366, %v2518
  %v2551 = vsel %vm2487, %v2369, %v2519
  %v2552 = vsel %vm2488, %v2374, %v2520
  %v2553 = vsel %vm2489, %v2377, %v2521
  %v2554 = vsel %vm2490, %v2382, %v2522
  %v2555 = vsel %vm2491, %v2385, %v2523
  %v2556 = vsel %vm2492, %v2390, %v2524
  %v2557 = vsel %vm2493, %v2393, %v2525
  %v2558 = vsel %vm2494, %v2398, %v2526
  %v2559 = vsel %vm2495, %v2401, %v2527
  %v2560 = vsel %vm2496, %v2406, %v2528
  %v2561 = vsel %vm2497, %v2409, %v2529
  %v2562 = vsel %vm2498, %v2414, %v2530
  %v2563 = vsel %vm2499, %v2417, %v2531
  %v2564 = vsel %vm2500, %v2422, %v2532
  %v2565 = vsel %vm2501, %v2425, %v2533
  %v2566 = vsel %vm2502, %v2430, %v2534
  %v2567 = vsel %vm2503, %v2433, %v2535
  %v2568 = vsel %vm2504, %v2438, %v2536
  %v2569 = vsel %vm2505, %v2441, %v2537
  %v2570 = vsel %vm2506, %v2446, %v2538
  %v2571 = vsel %vm2507, %v2449, %v2539
  %v2572 = vsel %vm2508, %v2454, %v2540
  %v2573 = vsel %vm2509, %v2457, %v2541
  %v2574 = vsel %vm2510, %v2462, %v2542
  %v2575 = vsel %vm2511, %v2465, %v2543
  %v2576 = vsel %vm2512, %v2470, %v2544
  %v2577 = vsel %vm2513, %v2473, %v2545
  %v2578 = vsel %vm2514, %v2478, %v2546
  %v2579 = vsel %vm2515, %v2481, %v2547
  %vm2580 = vcmask 64512
  %2581 = vst.msk [vmem:[%s3] sm:$0xff] %vm2580, %v2548
  %2582 = vst.msk [vmem:[%s3 + $0x8] sm:$0xff] %vm2580, %v2549
  %2583 = vst.msk [vmem:[%s3 + $0x10] sm:$0xff] %vm2580, %v2550
  %2584 = vst.msk [vmem:[%s3 + $0x18] sm:$0xff] %vm2580, %v2551
  %2585 = vst.msk [vmem:[%s3 + $0x20] sm:$0xff] %vm2580, %v2552
  %2586 = vst.msk [vmem:[%s3 + $0x28] sm:$0xff] %vm2580, %v2553
  %2587 = vst.msk [vmem:[%s3 + $0x30] sm:$0xff] %vm2580, %v2554
  %2588 = vst.msk [vmem:[%s3 + $0x38] sm:$0xff] %vm2580, %v2555
  %2589 = vst.msk [vmem:[%s3 + $0x40] sm:$0xff] %vm2580, %v2556
  %2590 = vst.msk [vmem:[%s3 + $0x48] sm:$0xff] %vm2580, %v2557
  %2591 = vst.msk [vmem:[%s3 + $0x50] sm:$0xff] %vm2580, %v2558
  %2592 = vst.msk [vmem:[%s3 + $0x58] sm:$0xff] %vm2580, %v2559
  %2593 = vst.msk [vmem:[%s3 + $0x60] sm:$0xff] %vm2580, %v2560
  %2594 = vst.msk [vmem:[%s3 + $0x68] sm:$0xff] %vm2580, %v2561
  %2595 = vst.msk [vmem:[%s3 + $0x70] sm:$0xff] %vm2580, %v2562
  %2596 = vst.msk [vmem:[%s3 + $0x78] sm:$0xff] %vm2580, %v2563
  %2597 = vst.msk [vmem:[%s3 + $0x80] sm:$0xff] %vm2580, %v2564
  %2598 = vst.msk [vmem:[%s3 + $0x88] sm:$0xff] %vm2580, %v2565
  %2599 = vst.msk [vmem:[%s3 + $0x90] sm:$0xff] %vm2580, %v2566
  %2600 = vst.msk [vmem:[%s3 + $0x98] sm:$0xff] %vm2580, %v2567
  %2601 = vst.msk [vmem:[%s3 + $0xa0] sm:$0xff] %vm2580, %v2568
  %2602 = vst.msk [vmem:[%s3 + $0xa8] sm:$0xff] %vm2580, %v2569
  %2603 = vst.msk [vmem:[%s3 + $0xb0] sm:$0xff] %vm2580, %v2570
  %2604 = vst.msk [vmem:[%s3 + $0xb8] sm:$0xff] %vm2580, %v2571
  %2605 = vst.msk [vmem:[%s3 + $0xc0] sm:$0xff] %vm2580, %v2572
  %2606 = vst.msk [vmem:[%s3 + $0xc8] sm:$0xff] %vm2580, %v2573
  %2607 = vst.msk [vmem:[%s3 + $0xd0] sm:$0xff] %vm2580, %v2574
  %2608 = vst.msk [vmem:[%s3 + $0xd8] sm:$0xff] %vm2580, %v2575
  %2609 = vst.msk [vmem:[%s3 + $0xe0] sm:$0xff] %vm2580, %v2576
  %2610 = vst.msk [vmem:[%s3 + $0xe8] sm:$0xff] %vm2580, %v2577
  %2611 = vst.msk [vmem:[%s3 + $0xf0] sm:$0xff] %vm2580, %v2578
  %2612 = vst.msk [vmem:[%s3 + $0xf8] sm:$0xff] %vm2580, %v2579
  // Predicated region
  $region14: #{vae_forward.12} parent=0 // pred_check
    _
  $region15: #{vae_forward.12} parent=0 // pred_check_branch
    %2614 = sbr.rel (0) target = $region17
  $region16: #{vae_forward.12} parent=0 // pred_region
    _
  $region17: #{vae_forward.12} parent=0 // pred_fallthru
    _
  // Predicated region
  $region18: #{vae_forward.12} parent=0 // pred_check
    _
  $region19: #{vae_forward.12} parent=0 // pred_check_branch
    %2616 = sbr.rel (0) target = $region21
  $region20: #{vae_forward.12} parent=0 // pred_region
    _
  $region21: #{vae_forward.12} parent=0 // pred_fallthru
    _

// kernel: vae_forward.13
$region0: #{vae_forward.13}
  #allocation0 [shape = 'u32[]', space=smem, size = 0x4, offset = 0x4, fixed_abs, tag = 'smem constant byte address 0x4 - core index']
  #allocation1 [shape = 'u32[144,128]{1,0:T(1,128)}', space=vmem, size = 0x12000, scoped, tag = 'internal scratch']
  %s0 = inlined_call_operand.vmem [shape: f32[2,1024], index: 0, kind: input, shape index: {}]
  %s1 = inlined_call_operand.vmem [shape: f32[1024,20], index: 1, kind: input, shape index: {}]
  %s2 = inlined_call_operand.vmem [shape: f32[1024,20], index: 2, kind: input, shape index: {}]
  %s3 = inlined_call_operand.vmem [shape: f32[1,20], index: 3, kind: input, shape index: {}]
  %s4 = inlined_call_operand.vmem [shape: f32[1,20], index: 4, kind: input, shape index: {}]
  %s5 = inlined_call_operand.vmem [shape: f32[2,20], index: 5, kind: input, shape index: {}]
  %s6 = inlined_call_operand.vmem [shape: f32[20,1024], index: 6, kind: input, shape index: {}]
  %s7 = inlined_call_operand.vmem [shape: f32[1,1024], index: 7, kind: input, shape index: {}]
  %s8 = inlined_call_operand.hbm [shape: f32[2,20], index: 8, kind: output, shape index: {0}]
  %s9 = inlined_call_operand.hbm [shape: f32[2,20], index: 9, kind: output, shape index: {1}]
  %s10 = inlined_call_operand.vmem [shape: f32[2,1024], index: 10, kind: output, shape index: {2}]
  %11 = xla_tuple %s8, %s9, %s10
  %s12 = sld [smem:[#allocation0]]
  $region58: #{vae_forward.13} parent=0
    _
  %s14 = ssub.s32 1, %s12
  %s15 = scalar_select 0, %s14, %s12
  $region1: #{vae_forward.13} parent=0
    #allocation2 [shape = 'u8[1024]{0}', space=vmem, size = 0x400, scoped, tag = 'output window, operand 0, single buffered']
    #allocation3 [shape = 's32[1]{0}', space=sflag, size = 0x4, scoped, tag = 'scoped memory for vae_forward.13']
    #allocation4 [shape = 'u8[1024]{0}', space=vmem, size = 0x400, scoped, tag = 'output window, operand 1, single buffered']
    #allocation5 [shape = 's32[1]{0}', space=sflag, size = 0x4, scoped, tag = 'scoped memory for vae_forward.13']
    %16 = vsyncpa [#allocation3], 0
    %17 = vsyncpa [#allocation5], 0
    // Predicated region
    $region2: #{vae_forward.13} parent=1 // pred_check
      _
    $region3: #{vae_forward.13} parent=1 // pred_check_branch
      %19 = sbr.rel (0) target = $region5
    $region4: #{vae_forward.13} parent=1 // pred_region
      _
    $region5: #{vae_forward.13} parent=1 // pred_fallthru
      _
    // Predicated region
    $region6: #{vae_forward.13} parent=1 // pred_check
      _
    $region7: #{vae_forward.13} parent=1 // pred_check_branch
      %21 = sbr.rel (0) target = $region9
    $region8: #{vae_forward.13} parent=1 // pred_region
      _
    $region9: #{vae_forward.13} parent=1 // pred_fallthru
      _
    // Predicated region
    $region10: #{vae_forward.13} parent=1 // pred_check
      _
    $region11: #{vae_forward.13} parent=1 // pred_check_branch
      %23 = sbr.rel (0) target = $region13
    $region12: #{vae_forward.13} parent=1 // pred_region
      _
    $region13: #{vae_forward.13} parent=1 // pred_fallthru
      _
    // Predicated region
    $region14: #{vae_forward.13} parent=1 // pred_check
      _
    $region15: #{vae_forward.13} parent=1 // pred_check_branch
      %25 = sbr.rel (0) target = $region17
    $region16: #{vae_forward.13} parent=1 // pred_region
      _
    $region17: #{vae_forward.13} parent=1 // pred_fallthru
      _
    // Predicated region
    $region18: #{vae_forward.13} parent=1 // pred_check
      _
    $region19: #{vae_forward.13} parent=1 // pred_check_branch
      %27 = sbr.rel (0) target = $region21
    $region20: #{vae_forward.13} parent=1 // pred_region
      _
    $region21: #{vae_forward.13} parent=1 // pred_fallthru
      _
    // Predicated region
    $region22: #{vae_forward.13} parent=1 // pred_check
      _
    $region23: #{vae_forward.13} parent=1 // pred_check_branch
      %29 = sbr.rel (0) target = $region25
    $region24: #{vae_forward.13} parent=1 // pred_region
      _
    $region25: #{vae_forward.13} parent=1 // pred_fallthru
      _
    // Predicated region
    $region26: #{vae_forward.13} parent=1 // pred_check
      _
    $region27: #{vae_forward.13} parent=1 // pred_check_branch
      %31 = sbr.rel (0) target = $region29
    $region28: #{vae_forward.13} parent=1 // pred_region
      _
    $region29: #{vae_forward.13} parent=1 // pred_fallthru
      _
    // Predicated region
    $region30: #{vae_forward.13} parent=1 // pred_check
      _
    $region31: #{vae_forward.13} parent=1 // pred_check_branch
      %33 = sbr.rel (0) target = $region33
    $region32: #{vae_forward.13} parent=1 // pred_region
      _
    $region33: #{vae_forward.13} parent=1 // pred_fallthru
      _
    %v34 = vld [vmem:[%s0] sm:$0xff]
    %v35 = vld [vmem:[%s0 + $0x8] sm:$0xff]
    %v36 = vld [vmem:[%s1] sm:$0xff]
    %v37 = vld [vmem:[%s1 + $0x8] sm:$0xff]
    %v38 = vld [vmem:[%s1 + $0x10] sm:$0xff]
    %v39 = vld [vmem:[%s1 + $0x18] sm:$0xff]
    %v40 = vld [vmem:[%s1 + $0x20] sm:$0xff]
    %v41 = vld [vmem:[%s1 + $0x28] sm:$0xff]
    %v42 = vld [vmem:[%s1 + $0x30] sm:$0xff]
    %v43 = vld [vmem:[%s1 + $0x38] sm:$0xff]
    %v44 = vld [vmem:[%s1 + $0x40] sm:$0xff]
    %v45 = vld [vmem:[%s1 + $0x48] sm:$0xff]
    %v46 = vld [vmem:[%s1 + $0x50] sm:$0xff]
    %v47 = vld [vmem:[%s1 + $0x58] sm:$0xff]
    %v48 = vld [vmem:[%s1 + $0x60] sm:$0xff]
    %v49 = vld [vmem:[%s1 + $0x68] sm:$0xff]
    %v50 = vld [vmem:[%s1 + $0x70] sm:$0xff]
    %v51 = vld [vmem:[%s1 + $0x78] sm:$0xff]
    %v52 = vld [vmem:[%s1 + $0x80] sm:$0xff]
    %v53 = vld [vmem:[%s1 + $0x88] sm:$0xff]
    %v54 = vld [vmem:[%s1 + $0x90] sm:$0xff]
    %v55 = vld [vmem:[%s1 + $0x98] sm:$0xff]
    %v56 = vld [vmem:[%s1 + $0xa0] sm:$0xff]
    %v57 = vld [vmem:[%s1 + $0xa8] sm:$0xff]
    %v58 = vld [vmem:[%s1 + $0xb0] sm:$0xff]
    %v59 = vld [vmem:[%s1 + $0xb8] sm:$0xff]
    %v60 = vld [vmem:[%s1 + $0xc0] sm:$0xff]
    %v61 = vld [vmem:[%s1 + $0xc8] sm:$0xff]
    %v62 = vld [vmem:[%s1 + $0xd0] sm:$0xff]
    %v63 = vld [vmem:[%s1 + $0xd8] sm:$0xff]
    %v64 = vld [vmem:[%s1 + $0xe0] sm:$0xff]
    %v65 = vld [vmem:[%s1 + $0xe8] sm:$0xff]
    %v66 = vld [vmem:[%s1 + $0xf0] sm:$0xff]
    %v67 = vld [vmem:[%s1 + $0xf8] sm:$0xff]
    %v68 = vld [vmem:[%s1 + $0x100] sm:$0xff]
    %v69 = vld [vmem:[%s1 + $0x108] sm:$0xff]
    %v70 = vld [vmem:[%s1 + $0x110] sm:$0xff]
    %v71 = vld [vmem:[%s1 + $0x118] sm:$0xff]
    %v72 = vld [vmem:[%s1 + $0x120] sm:$0xff]
    %v73 = vld [vmem:[%s1 + $0x128] sm:$0xff]
    %v74 = vld [vmem:[%s1 + $0x130] sm:$0xff]
    %v75 = vld [vmem:[%s1 + $0x138] sm:$0xff]
    %v76 = vld [vmem:[%s1 + $0x140] sm:$0xff]
    %v77 = vld [vmem:[%s1 + $0x148] sm:$0xff]
    %v78 = vld [vmem:[%s1 + $0x150] sm:$0xff]
    %v79 = vld [vmem:[%s1 + $0x158] sm:$0xff]
    %v80 = vld [vmem:[%s1 + $0x160] sm:$0xff]
    %v81 = vld [vmem:[%s1 + $0x168] sm:$0xff]
    %v82 = vld [vmem:[%s1 + $0x170] sm:$0xff]
    %v83 = vld [vmem:[%s1 + $0x178] sm:$0xff]
    %v84 = vld [vmem:[%s1 + $0x180] sm:$0xff]
    %v85 = vld [vmem:[%s1 + $0x188] sm:$0xff]
    %v86 = vld [vmem:[%s1 + $0x190] sm:$0xff]
    %v87 = vld [vmem:[%s1 + $0x198] sm:$0xff]
    %v88 = vld [vmem:[%s1 + $0x1a0] sm:$0xff]
    %v89 = vld [vmem:[%s1 + $0x1a8] sm:$0xff]
    %v90 = vld [vmem:[%s1 + $0x1b0] sm:$0xff]
    %v91 = vld [vmem:[%s1 + $0x1b8] sm:$0xff]
    %v92 = vld [vmem:[%s1 + $0x1c0] sm:$0xff]
    %v93 = vld [vmem:[%s1 + $0x1c8] sm:$0xff]
    %v94 = vld [vmem:[%s1 + $0x1d0] sm:$0xff]
    %v95 = vld [vmem:[%s1 + $0x1d8] sm:$0xff]
    %v96 = vld [vmem:[%s1 + $0x1e0] sm:$0xff]
    %v97 = vld [vmem:[%s1 + $0x1e8] sm:$0xff]
    %v98 = vld [vmem:[%s1 + $0x1f0] sm:$0xff]
    %v99 = vld [vmem:[%s1 + $0x1f8] sm:$0xff]
    %v100 = vld [vmem:[%s1 + $0x200] sm:$0xff]
    %v101 = vld [vmem:[%s1 + $0x208] sm:$0xff]
    %v102 = vld [vmem:[%s1 + $0x210] sm:$0xff]
    %v103 = vld [vmem:[%s1 + $0x218] sm:$0xff]
    %v104 = vld [vmem:[%s1 + $0x220] sm:$0xff]
    %v105 = vld [vmem:[%s1 + $0x228] sm:$0xff]
    %v106 = vld [vmem:[%s1 + $0x230] sm:$0xff]
    %v107 = vld [vmem:[%s1 + $0x238] sm:$0xff]
    %v108 = vld [vmem:[%s1 + $0x240] sm:$0xff]
    %v109 = vld [vmem:[%s1 + $0x248] sm:$0xff]
    %v110 = vld [vmem:[%s1 + $0x250] sm:$0xff]
    %v111 = vld [vmem:[%s1 + $0x258] sm:$0xff]
    %v112 = vld [vmem:[%s1 + $0x260] sm:$0xff]
    %v113 = vld [vmem:[%s1 + $0x268] sm:$0xff]
    %v114 = vld [vmem:[%s1 + $0x270] sm:$0xff]
    %v115 = vld [vmem:[%s1 + $0x278] sm:$0xff]
    %v116 = vld [vmem:[%s1 + $0x280] sm:$0xff]
    %v117 = vld [vmem:[%s1 + $0x288] sm:$0xff]
    %v118 = vld [vmem:[%s1 + $0x290] sm:$0xff]
    %v119 = vld [vmem:[%s1 + $0x298] sm:$0xff]
    %v120 = vld [vmem:[%s1 + $0x2a0] sm:$0xff]
    %v121 = vld [vmem:[%s1 + $0x2a8] sm:$0xff]
    %v122 = vld [vmem:[%s1 + $0x2b0] sm:$0xff]
    %v123 = vld [vmem:[%s1 + $0x2b8] sm:$0xff]
    %v124 = vld [vmem:[%s1 + $0x2c0] sm:$0xff]
    %v125 = vld [vmem:[%s1 + $0x2c8] sm:$0xff]
    %v126 = vld [vmem:[%s1 + $0x2d0] sm:$0xff]
    %v127 = vld [vmem:[%s1 + $0x2d8] sm:$0xff]
    %v128 = vld [vmem:[%s1 + $0x2e0] sm:$0xff]
    %v129 = vld [vmem:[%s1 + $0x2e8] sm:$0xff]
    %v130 = vld [vmem:[%s1 + $0x2f0] sm:$0xff]
    %v131 = vld [vmem:[%s1 + $0x2f8] sm:$0xff]
    %v132 = vld [vmem:[%s1 + $0x300] sm:$0xff]
    %v133 = vld [vmem:[%s1 + $0x308] sm:$0xff]
    %v134 = vld [vmem:[%s1 + $0x310] sm:$0xff]
    %v135 = vld [vmem:[%s1 + $0x318] sm:$0xff]
    %v136 = vld [vmem:[%s1 + $0x320] sm:$0xff]
    %v137 = vld [vmem:[%s1 + $0x328] sm:$0xff]
    %v138 = vld [vmem:[%s1 + $0x330] sm:$0xff]
    %v139 = vld [vmem:[%s1 + $0x338] sm:$0xff]
    %v140 = vld [vmem:[%s1 + $0x340] sm:$0xff]
    %v141 = vld [vmem:[%s1 + $0x348] sm:$0xff]
    %v142 = vld [vmem:[%s1 + $0x350] sm:$0xff]
    %v143 = vld [vmem:[%s1 + $0x358] sm:$0xff]
    %v144 = vld [vmem:[%s1 + $0x360] sm:$0xff]
    %v145 = vld [vmem:[%s1 + $0x368] sm:$0xff]
    %v146 = vld [vmem:[%s1 + $0x370] sm:$0xff]
    %v147 = vld [vmem:[%s1 + $0x378] sm:$0xff]
    %v148 = vld [vmem:[%s1 + $0x380] sm:$0xff]
    %v149 = vld [vmem:[%s1 + $0x388] sm:$0xff]
    %v150 = vld [vmem:[%s1 + $0x390] sm:$0xff]
    %v151 = vld [vmem:[%s1 + $0x398] sm:$0xff]
    %v152 = vld [vmem:[%s1 + $0x3a0] sm:$0xff]
    %v153 = vld [vmem:[%s1 + $0x3a8] sm:$0xff]
    %v154 = vld [vmem:[%s1 + $0x3b0] sm:$0xff]
    %v155 = vld [vmem:[%s1 + $0x3b8] sm:$0xff]
    %v156 = vld [vmem:[%s1 + $0x3c0] sm:$0xff]
    %v157 = vld [vmem:[%s1 + $0x3c8] sm:$0xff]
    %v158 = vld [vmem:[%s1 + $0x3d0] sm:$0xff]
    %v159 = vld [vmem:[%s1 + $0x3d8] sm:$0xff]
    %v160 = vld [vmem:[%s1 + $0x3e0] sm:$0xff]
    %v161 = vld [vmem:[%s1 + $0x3e8] sm:$0xff]
    %v162 = vld [vmem:[%s1 + $0x3f0] sm:$0xff]
    %v163 = vld [vmem:[%s1 + $0x3f8] sm:$0xff]
    %v164 = vld [vmem:[%s3] sm:$0x1]
    %v166 = vlaneseq
    %v167 = vshrl.u32 %v166, 7
    %v168 = vsub.s32 0, %v167
    %v169 = vrot.slane %v164, %v168
    %v173 = vcombine.high %v34, %v34
    %v175 = vunpack.c.l.s4 1983009808
    %v176 = vunpack.c.0.s8 %v175
    %v177 = vlaneseq
    %v178 = vshrl.u32 %v177, 7
    %v179 = vsub.s32 %v176, %v178
    %v180 = vrot.slane %v34, %v179
    %v182 = vunpack.c.l.s4 1983009808
    %v183 = vunpack.c.0.s8 %v182
    %v184 = vlaneseq
    %v185 = vshrl.u32 %v184, 7
    %v186 = vsub.s32 %v183, %v185
    %v187 = vrot.slane %v173, %v186
    %v188 = vcombine.high %v180, %v180
    %v189 = vcombine.high %v187, %v187
    %v190 = vcombine.high %v35, %v35
    %v192 = vunpack.c.l.s4 1983009808
    %v193 = vunpack.c.0.s8 %v192
    %v194 = vlaneseq
    %v195 = vshrl.u32 %v194, 7
    %v196 = vsub.s32 %v193, %v195
    %v197 = vrot.slane %v35, %v196
    %v199 = vunpack.c.l.s4 1983009808
    %v200 = vunpack.c.0.s8 %v199
    %v201 = vlaneseq
    %v202 = vshrl.u32 %v201, 7
    %v203 = vsub.s32 %v200, %v202
    %v204 = vrot.slane %v190, %v203
    %v205 = vcombine.high %v197, %v197
    %v206 = vcombine.high %v204, %v204
    %215 = vmatprep.subr.mxu0 0.0
    %216 = vmatpush1.msra.mxu0 %v36
    %217 = vmatprep.subr.mxu0 0.0
    %218 = vmatpush1.msra.mxu0 %v37
    %219 = vmatprep.subr.mxu0 0.0
    %220 = vmatpush1.msra.mxu0 %v38
    %221 = vmatprep.subr.mxu0 0.0
    %222 = vmatpush1.msra.mxu0 %v39
    %223 = vmatprep.subr.mxu0 0.0
    %224 = vmatpush1.msra.mxu0 %v40
    %225 = vmatprep.subr.mxu0 0.0
    %226 = vmatpush1.msra.mxu0 %v41
    %227 = vmatprep.subr.mxu0 0.0
    %228 = vmatpush1.msra.mxu0 %v42
    %229 = vmatprep.subr.mxu0 0.0
    %230 = vmatpush1.msra.mxu0 %v43
    %231 = vmatprep.subr.mxu0 0.0
    %232 = vmatpush1.msra.mxu0 %v44
    %233 = vmatprep.subr.mxu0 0.0
    %234 = vmatpush1.msra.mxu0 %v45
    %235 = vmatprep.subr.mxu0 0.0
    %236 = vmatpush1.msra.mxu0 %v46
    %237 = vmatprep.subr.mxu0 0.0
    %238 = vmatpush1.msra.mxu0 %v47
    %239 = vmatprep.subr.mxu0 0.0
    %240 = vmatpush1.msra.mxu0 %v48
    %241 = vmatprep.subr.mxu0 0.0
    %242 = vmatpush1.msra.mxu0 %v49
    %243 = vmatprep.subr.mxu0 0.0
    %244 = vmatpush1.msra.mxu0 %v50
    %245 = vmatprep.subr.mxu0 0.0
    %246 = vmatpush1.msra.mxu0 %v51
    %247 = vmatprep.subr.mxu0 0.0
    %248 = vmatpush1.msra.mxu0 %v52
    %249 = vmatprep.subr.mxu0 0.0
    %250 = vmatpush1.msra.mxu0 %v53
    %251 = vmatprep.subr.mxu0 0.0
    %252 = vmatpush1.msra.mxu0 %v54
    %253 = vmatprep.subr.mxu0 0.0
    %254 = vmatpush1.msra.mxu0 %v55
    %255 = vmatprep.subr.mxu0 0.0
    %256 = vmatpush1.msra.mxu0 %v56
    %257 = vmatprep.subr.mxu0 0.0
    %258 = vmatpush1.msra.mxu0 %v57
    %259 = vmatprep.subr.mxu0 0.0
    %260 = vmatpush1.msra.mxu0 %v58
    %261 = vmatprep.subr.mxu0 0.0
    %262 = vmatpush1.msra.mxu0 %v59
    %263 = vmatprep.subr.mxu0 0.0
    %264 = vmatpush1.msra.mxu0 %v60
    %265 = vmatprep.subr.mxu0 0.0
    %266 = vmatpush1.msra.mxu0 %v61
    %267 = vmatprep.subr.mxu0 0.0
    %268 = vmatpush1.msra.mxu0 %v62
    %269 = vmatprep.subr.mxu0 0.0
    %270 = vmatpush1.msra.mxu0 %v63
    %271 = vmatprep.subr.mxu0 0.0
    %272 = vmatpush1.msra.mxu0 %v64
    %273 = vmatprep.subr.mxu0 0.0
    %274 = vmatpush1.msra.mxu0 %v65
    %275 = vmatprep.subr.mxu0 0.0
    %276 = vmatpush1.msra.mxu0 %v66
    %277 = vmatprep.subr.mxu0 0.0
    %278 = vmatpush1.msra.mxu0 %v67
    %279 = vmatprep.mubr.f32.mxu0 %v188
    %280 = vmatmul.mubr.f32.gmra.mrb[0].mxu0 %v180
    %v281 = vpop.f32.mrb[0].mxu0
    %v282 = vadd.f32 %v169, %v281
    %v283 = vpop.f32.mrb[0].mxu0
    %284 = vdwg.mxu0
    %285 = vmatprep.subr.mxu0 0.0
    %286 = vmatpush1.msra.mxu0 %v68
    %287 = vmatprep.subr.mxu0 0.0
    %288 = vmatpush1.msra.mxu0 %v69
    %289 = vmatprep.subr.mxu0 0.0
    %290 = vmatpush1.msra.mxu0 %v70
    %291 = vmatprep.subr.mxu0 0.0
    %292 = vmatpush1.msra.mxu0 %v71
    %293 = vmatprep.subr.mxu0 0.0
    %294 = vmatpush1.msra.mxu0 %v72
    %295 = vmatprep.subr.mxu0 0.0
    %296 = vmatpush1.msra.mxu0 %v73
    %297 = vmatprep.subr.mxu0 0.0
    %298 = vmatpush1.msra.mxu0 %v74
    %299 = vmatprep.subr.mxu0 0.0
    %300 = vmatpush1.msra.mxu0 %v75
    %301 = vmatprep.subr.mxu0 0.0
    %302 = vmatpush1.msra.mxu0 %v76
    %303 = vmatprep.subr.mxu0 0.0
    %304 = vmatpush1.msra.mxu0 %v77
    %305 = vmatprep.subr.mxu0 0.0
    %306 = vmatpush1.msra.mxu0 %v78
    %307 = vmatprep.subr.mxu0 0.0
    %308 = vmatpush1.msra.mxu0 %v79
    %309 = vmatprep.subr.mxu0 0.0
    %310 = vmatpush1.msra.mxu0 %v80
    %311 = vmatprep.subr.mxu0 0.0
    %312 = vmatpush1.msra.mxu0 %v81
    %313 = vmatprep.subr.mxu0 0.0
    %314 = vmatpush1.msra.mxu0 %v82
    %315 = vmatprep.subr.mxu0 0.0
    %316 = vmatpush1.msra.mxu0 %v83
    %317 = vmatprep.subr.mxu0 0.0
    %318 = vmatpush1.msra.mxu0 %v84
    %319 = vmatprep.subr.mxu0 0.0
    %320 = vmatpush1.msra.mxu0 %v85
    %321 = vmatprep.subr.mxu0 0.0
    %322 = vmatpush1.msra.mxu0 %v86
    %323 = vmatprep.subr.mxu0 0.0
    %324 = vmatpush1.msra.mxu0 %v87
    %325 = vmatprep.subr.mxu0 0.0
    %326 = vmatpush1.msra.mxu0 %v88
    %327 = vmatprep.subr.mxu0 0.0
    %328 = vmatpush1.msra.mxu0 %v89
    %329 = vmatprep.subr.mxu0 0.0
    %330 = vmatpush1.msra.mxu0 %v90
    %331 = vmatprep.subr.mxu0 0.0
    %332 = vmatpush1.msra.mxu0 %v91
    %333 = vmatprep.subr.mxu0 0.0
    %334 = vmatpush1.msra.mxu0 %v92
    %335 = vmatprep.subr.mxu0 0.0
    %336 = vmatpush1.msra.mxu0 %v93
    %337 = vmatprep.subr.mxu0 0.0
    %338 = vmatpush1.msra.mxu0 %v94
    %339 = vmatprep.subr.mxu0 0.0
    %340 = vmatpush1.msra.mxu0 %v95
    %341 = vmatprep.subr.mxu0 0.0
    %342 = vmatpush1.msra.mxu0 %v96
    %343 = vmatprep.subr.mxu0 0.0
    %344 = vmatpush1.msra.mxu0 %v97
    %345 = vmatprep.subr.mxu0 0.0
    %346 = vmatpush1.msra.mxu0 %v98
    %347 = vmatprep.subr.mxu0 0.0
    %348 = vmatpush1.msra.mxu0 %v99
    %349 = vmatprep.mubr.f32.mxu0 %v189
    %350 = vmatmul.mubr.f32.gmra.mrb[0].mxu0 %v187
    %v351 = vpop.f32.mrb[0].mxu0
    %v352 = vadd.f32 %v282, %v351
    %v353 = vpop.f32.mrb[0].mxu0
    %354 = vdwg.mxu0
    %355 = vmatprep.subr.mxu0 0.0
    %356 = vmatpush1.msra.mxu0 %v100
    %357 = vmatprep.subr.mxu0 0.0
    %358 = vmatpush1.msra.mxu0 %v101
    %359 = vmatprep.subr.mxu0 0.0
    %360 = vmatpush1.msra.mxu0 %v102
    %361 = vmatprep.subr.mxu0 0.0
    %362 = vmatpush1.msra.mxu0 %v103
    %363 = vmatprep.subr.mxu0 0.0
    %364 = vmatpush1.msra.mxu0 %v104
    %365 = vmatprep.subr.mxu0 0.0
    %366 = vmatpush1.msra.mxu0 %v105
    %367 = vmatprep.subr.mxu0 0.0
    %368 = vmatpush1.msra.mxu0 %v106
    %369 = vmatprep.subr.mxu0 0.0
    %370 = vmatpush1.msra.mxu0 %v107
    %371 = vmatprep.subr.mxu0 0.0
    %372 = vmatpush1.msra.mxu0 %v108
    %373 = vmatprep.subr.mxu0 0.0
    %374 = vmatpush1.msra.mxu0 %v109
    %375 = vmatprep.subr.mxu0 0.0
    %376 = vmatpush1.msra.mxu0 %v110
    %377 = vmatprep.subr.mxu0 0.0
    %378 = vmatpush1.msra.mxu0 %v111
    %379 = vmatprep.subr.mxu0 0.0
    %380 = vmatpush1.msra.mxu0 %v112
    %381 = vmatprep.subr.mxu0 0.0
    %382 = vmatpush1.msra.mxu0 %v113
    %383 = vmatprep.subr.mxu0 0.0
    %384 = vmatpush1.msra.mxu0 %v114
    %385 = vmatprep.subr.mxu0 0.0
    %386 = vmatpush1.msra.mxu0 %v115
    %387 = vmatprep.subr.mxu0 0.0
    %388 = vmatpush1.msra.mxu0 %v116
    %389 = vmatprep.subr.mxu0 0.0
    %390 = vmatpush1.msra.mxu0 %v117
    %391 = vmatprep.subr.mxu0 0.0
    %392 = vmatpush1.msra.mxu0 %v118
    %393 = vmatprep.subr.mxu0 0.0
    %394 = vmatpush1.msra.mxu0 %v119
    %395 = vmatprep.subr.mxu0 0.0
    %396 = vmatpush1.msra.mxu0 %v120
    %397 = vmatprep.subr.mxu0 0.0
    %398 = vmatpush1.msra.mxu0 %v121
    %399 = vmatprep.subr.mxu0 0.0
    %400 = vmatpush1.msra.mxu0 %v122
    %401 = vmatprep.subr.mxu0 0.0
    %402 = vmatpush1.msra.mxu0 %v123
    %403 = vmatprep.subr.mxu0 0.0
    %404 = vmatpush1.msra.mxu0 %v124
    %405 = vmatprep.subr.mxu0 0.0
    %406 = vmatpush1.msra.mxu0 %v125
    %407 = vmatprep.subr.mxu0 0.0
    %408 = vmatpush1.msra.mxu0 %v126
    %409 = vmatprep.subr.mxu0 0.0
    %410 = vmatpush1.msra.mxu0 %v127
    %411 = vmatprep.subr.mxu0 0.0
    %412 = vmatpush1.msra.mxu0 %v128
    %413 = vmatprep.subr.mxu0 0.0
    %414 = vmatpush1.msra.mxu0 %v129
    %415 = vmatprep.subr.mxu0 0.0
    %416 = vmatpush1.msra.mxu0 %v130
    %417 = vmatprep.subr.mxu0 0.0
    %418 = vmatpush1.msra.mxu0 %v131
    %419 = vmatprep.mubr.f32.mxu0 %v205
    %420 = vmatmul.mubr.f32.gmra.mrb[0].mxu0 %v197
    %v421 = vpop.f32.mrb[0].mxu0
    %v422 = vadd.f32 %v352, %v421
    %v423 = vpop.f32.mrb[0].mxu0
    %424 = vdwg.mxu0
    %425 = vmatprep.subr.mxu0 0.0
    %426 = vmatpush1.msra.mxu0 %v132
    %427 = vmatprep.subr.mxu0 0.0
    %428 = vmatpush1.msra.mxu0 %v133
    %429 = vmatprep.subr.mxu0 0.0
    %430 = vmatpush1.msra.mxu0 %v134
    %431 = vmatprep.subr.mxu0 0.0
    %432 = vmatpush1.msra.mxu0 %v135
    %433 = vmatprep.subr.mxu0 0.0
    %434 = vmatpush1.msra.mxu0 %v136
    %435 = vmatprep.subr.mxu0 0.0
    %436 = vmatpush1.msra.mxu0 %v137
    %437 = vmatprep.subr.mxu0 0.0
    %438 = vmatpush1.msra.mxu0 %v138
    %439 = vmatprep.subr.mxu0 0.0
    %440 = vmatpush1.msra.mxu0 %v139
    %441 = vmatprep.subr.mxu0 0.0
    %442 = vmatpush1.msra.mxu0 %v140
    %443 = vmatprep.subr.mxu0 0.0
    %444 = vmatpush1.msra.mxu0 %v141
    %445 = vmatprep.subr.mxu0 0.0
    %446 = vmatpush1.msra.mxu0 %v142
    %447 = vmatprep.subr.mxu0 0.0
    %448 = vmatpush1.msra.mxu0 %v143
    %449 = vmatprep.subr.mxu0 0.0
    %450 = vmatpush1.msra.mxu0 %v144
    %451 = vmatprep.subr.mxu0 0.0
    %452 = vmatpush1.msra.mxu0 %v145
    %453 = vmatprep.subr.mxu0 0.0
    %454 = vmatpush1.msra.mxu0 %v146
    %455 = vmatprep.subr.mxu0 0.0
    %456 = vmatpush1.msra.mxu0 %v147
    %457 = vmatprep.subr.mxu0 0.0
    %458 = vmatpush1.msra.mxu0 %v148
    %459 = vmatprep.subr.mxu0 0.0
    %460 = vmatpush1.msra.mxu0 %v149
    %461 = vmatprep.subr.mxu0 0.0
    %462 = vmatpush1.msra.mxu0 %v150
    %463 = vmatprep.subr.mxu0 0.0
    %464 = vmatpush1.msra.mxu0 %v151
    %465 = vmatprep.subr.mxu0 0.0
    %466 = vmatpush1.msra.mxu0 %v152
    %467 = vmatprep.subr.mxu0 0.0
    %468 = vmatpush1.msra.mxu0 %v153
    %469 = vmatprep.subr.mxu0 0.0
    %470 = vmatpush1.msra.mxu0 %v154
    %471 = vmatprep.subr.mxu0 0.0
    %472 = vmatpush1.msra.mxu0 %v155
    %473 = vmatprep.subr.mxu0 0.0
    %474 = vmatpush1.msra.mxu0 %v156
    %475 = vmatprep.subr.mxu0 0.0
    %476 = vmatpush1.msra.mxu0 %v157
    %477 = vmatprep.subr.mxu0 0.0
    %478 = vmatpush1.msra.mxu0 %v158
    %479 = vmatprep.subr.mxu0 0.0
    %480 = vmatpush1.msra.mxu0 %v159
    %481 = vmatprep.subr.mxu0 0.0
    %482 = vmatpush1.msra.mxu0 %v160
    %483 = vmatprep.subr.mxu0 0.0
    %484 = vmatpush1.msra.mxu0 %v161
    %485 = vmatprep.subr.mxu0 0.0
    %486 = vmatpush1.msra.mxu0 %v162
    %487 = vmatprep.subr.mxu0 0.0
    %488 = vmatpush1.msra.mxu0 %v163
    %489 = vmatprep.mubr.f32.mxu0 %v206
    %490 = vmatmul.mubr.f32.gmra.mrb[0].mxu0 %v204
    %v491 = vpop.f32.mrb[0].mxu0
    %v492 = vadd.f32 %v422, %v491
    %v493 = vpop.f32.mrb[0].mxu0
    %494 = vdwg.mxu0
    %v495 = vld [vmem:[%s2] sm:$0xff]
    %v496 = vld [vmem:[%s2 + $0x8] sm:$0xff]
    %v497 = vld [vmem:[%s2 + $0x10] sm:$0xff]
    %v498 = vld [vmem:[%s2 + $0x18] sm:$0xff]
    %v499 = vld [vmem:[%s2 + $0x20] sm:$0xff]
    %v500 = vld [vmem:[%s2 + $0x28] sm:$0xff]
    %v501 = vld [vmem:[%s2 + $0x30] sm:$0xff]
    %v502 = vld [vmem:[%s2 + $0x38] sm:$0xff]
    %v503 = vld [vmem:[%s2 + $0x40] sm:$0xff]
    %v504 = vld [vmem:[%s2 + $0x48] sm:$0xff]
    %v505 = vld [vmem:[%s2 + $0x50] sm:$0xff]
    %v506 = vld [vmem:[%s2 + $0x58] sm:$0xff]
    %v507 = vld [vmem:[%s2 + $0x60] sm:$0xff]
    %v508 = vld [vmem:[%s2 + $0x68] sm:$0xff]
    %v509 = vld [vmem:[%s2 + $0x70] sm:$0xff]
    %v510 = vld [vmem:[%s2 + $0x78] sm:$0xff]
    %v511 = vld [vmem:[%s2 + $0x80] sm:$0xff]
    %v512 = vld [vmem:[%s2 + $0x88] sm:$0xff]
    %v513 = vld [vmem:[%s2 + $0x90] sm:$0xff]
    %v514 = vld [vmem:[%s2 + $0x98] sm:$0xff]
    %v515 = vld [vmem:[%s2 + $0xa0] sm:$0xff]
    %v516 = vld [vmem:[%s2 + $0xa8] sm:$0xff]
    %v517 = vld [vmem:[%s2 + $0xb0] sm:$0xff]
    %v518 = vld [vmem:[%s2 + $0xb8] sm:$0xff]
    %v519 = vld [vmem:[%s2 + $0xc0] sm:$0xff]
    %v520 = vld [vmem:[%s2 + $0xc8] sm:$0xff]
    %v521 = vld [vmem:[%s2 + $0xd0] sm:$0xff]
    %v522 = vld [vmem:[%s2 + $0xd8] sm:$0xff]
    %v523 = vld [vmem:[%s2 + $0xe0] sm:$0xff]
    %v524 = vld [vmem:[%s2 + $0xe8] sm:$0xff]
    %v525 = vld [vmem:[%s2 + $0xf0] sm:$0xff]
    %v526 = vld [vmem:[%s2 + $0xf8] sm:$0xff]
    %v527 = vld [vmem:[%s2 + $0x100] sm:$0xff]
    %v528 = vld [vmem:[%s2 + $0x108] sm:$0xff]
    %v529 = vld [vmem:[%s2 + $0x110] sm:$0xff]
    %v530 = vld [vmem:[%s2 + $0x118] sm:$0xff]
    %v531 = vld [vmem:[%s2 + $0x120] sm:$0xff]
    %v532 = vld [vmem:[%s2 + $0x128] sm:$0xff]
    %v533 = vld [vmem:[%s2 + $0x130] sm:$0xff]
    %v534 = vld [vmem:[%s2 + $0x138] sm:$0xff]
    %v535 = vld [vmem:[%s2 + $0x140] sm:$0xff]
    %v536 = vld [vmem:[%s2 + $0x148] sm:$0xff]
    %v537 = vld [vmem:[%s2 + $0x150] sm:$0xff]
    %v538 = vld [vmem:[%s2 + $0x158] sm:$0xff]
    %v539 = vld [vmem:[%s2 + $0x160] sm:$0xff]
    %v540 = vld [vmem:[%s2 + $0x168] sm:$0xff]
    %v541 = vld [vmem:[%s2 + $0x170] sm:$0xff]
    %v542 = vld [vmem:[%s2 + $0x178] sm:$0xff]
    %v543 = vld [vmem:[%s2 + $0x180] sm:$0xff]
    %v544 = vld [vmem:[%s2 + $0x188] sm:$0xff]
    %v545 = vld [vmem:[%s2 + $0x190] sm:$0xff]
    %v546 = vld [vmem:[%s2 + $0x198] sm:$0xff]
    %v547 = vld [vmem:[%s2 + $0x1a0] sm:$0xff]
    %v548 = vld [vmem:[%s2 + $0x1a8] sm:$0xff]
    %v549 = vld [vmem:[%s2 + $0x1b0] sm:$0xff]
    %v550 = vld [vmem:[%s2 + $0x1b8] sm:$0xff]
    %v551 = vld [vmem:[%s2 + $0x1c0] sm:$0xff]
    %v552 = vld [vmem:[%s2 + $0x1c8] sm:$0xff]
    %v553 = vld [vmem:[%s2 + $0x1d0] sm:$0xff]
    %v554 = vld [vmem:[%s2 + $0x1d8] sm:$0xff]
    %v555 = vld [vmem:[%s2 + $0x1e0] sm:$0xff]
    %v556 = vld [vmem:[%s2 + $0x1e8] sm:$0xff]
    %v557 = vld [vmem:[%s2 + $0x1f0] sm:$0xff]
    %v558 = vld [vmem:[%s2 + $0x1f8] sm:$0xff]
    %v559 = vld [vmem:[%s2 + $0x200] sm:$0xff]
    %v560 = vld [vmem:[%s2 + $0x208] sm:$0xff]
    %v561 = vld [vmem:[%s2 + $0x210] sm:$0xff]
    %v562 = vld [vmem:[%s2 + $0x218] sm:$0xff]
    %v563 = vld [vmem:[%s2 + $0x220] sm:$0xff]
    %v564 = vld [vmem:[%s2 + $0x228] sm:$0xff]
    %v565 = vld [vmem:[%s2 + $0x230] sm:$0xff]
    %v566 = vld [vmem:[%s2 + $0x238] sm:$0xff]
    %v567 = vld [vmem:[%s2 + $0x240] sm:$0xff]
    %v568 = vld [vmem:[%s2 + $0x248] sm:$0xff]
    %v569 = vld [vmem:[%s2 + $0x250] sm:$0xff]
    %v570 = vld [vmem:[%s2 + $0x258] sm:$0xff]
    %v571 = vld [vmem:[%s2 + $0x260] sm:$0xff]
    %v572 = vld [vmem:[%s2 + $0x268] sm:$0xff]
    %v573 = vld [vmem:[%s2 + $0x270] sm:$0xff]
    %v574 = vld [vmem:[%s2 + $0x278] sm:$0xff]
    %v575 = vld [vmem:[%s2 + $0x280] sm:$0xff]
    %v576 = vld [vmem:[%s2 + $0x288] sm:$0xff]
    %v577 = vld [vmem:[%s2 + $0x290] sm:$0xff]
    %v578 = vld [vmem:[%s2 + $0x298] sm:$0xff]
    %v579 = vld [vmem:[%s2 + $0x2a0] sm:$0xff]
    %v580 = vld [vmem:[%s2 + $0x2a8] sm:$0xff]
    %v581 = vld [vmem:[%s2 + $0x2b0] sm:$0xff]
    %v582 = vld [vmem:[%s2 + $0x2b8] sm:$0xff]
    %v583 = vld [vmem:[%s2 + $0x2c0] sm:$0xff]
    %v584 = vld [vmem:[%s2 + $0x2c8] sm:$0xff]
    %v585 = vld [vmem:[%s2 + $0x2d0] sm:$0xff]
    %v586 = vld [vmem:[%s2 + $0x2d8] sm:$0xff]
    %v587 = vld [vmem:[%s2 + $0x2e0] sm:$0xff]
    %v588 = vld [vmem:[%s2 + $0x2e8] sm:$0xff]
    %v589 = vld [vmem:[%s2 + $0x2f0] sm:$0xff]
    %v590 = vld [vmem:[%s2 + $0x2f8] sm:$0xff]
    %v591 = vld [vmem:[%s2 + $0x300] sm:$0xff]
    %v592 = vld [vmem:[%s2 + $0x308] sm:$0xff]
    %v593 = vld [vmem:[%s2 + $0x310] sm:$0xff]
    %v594 = vld [vmem:[%s2 + $0x318] sm:$0xff]
    %v595 = vld [vmem:[%s2 + $0x320] sm:$0xff]
    %v596 = vld [vmem:[%s2 + $0x328] sm:$0xff]
    %v597 = vld [vmem:[%s2 + $0x330] sm:$0xff]
    %v598 = vld [vmem:[%s2 + $0x338] sm:$0xff]
    %v599 = vld [vmem:[%s2 + $0x340] sm:$0xff]
    %v600 = vld [vmem:[%s2 + $0x348] sm:$0xff]
    %v601 = vld [vmem:[%s2 + $0x350] sm:$0xff]
    %v602 = vld [vmem:[%s2 + $0x358] sm:$0xff]
    %v603 = vld [vmem:[%s2 + $0x360] sm:$0xff]
    %v604 = vld [vmem:[%s2 + $0x368] sm:$0xff]
    %v605 = vld [vmem:[%s2 + $0x370] sm:$0xff]
    %v606 = vld [vmem:[%s2 + $0x378] sm:$0xff]
    %v607 = vld [vmem:[%s2 + $0x380] sm:$0xff]
    %v608 = vld [vmem:[%s2 + $0x388] sm:$0xff]
    %v609 = vld [vmem:[%s2 + $0x390] sm:$0xff]
    %v610 = vld [vmem:[%s2 + $0x398] sm:$0xff]
    %v611 = vld [vmem:[%s2 + $0x3a0] sm:$0xff]
    %v612 = vld [vmem:[%s2 + $0x3a8] sm:$0xff]
    %v613 = vld [vmem:[%s2 + $0x3b0] sm:$0xff]
    %v614 = vld [vmem:[%s2 + $0x3b8] sm:$0xff]
    %v615 = vld [vmem:[%s2 + $0x3c0] sm:$0xff]
    %v616 = vld [vmem:[%s2 + $0x3c8] sm:$0xff]
    %v617 = vld [vmem:[%s2 + $0x3d0] sm:$0xff]
    %v618 = vld [vmem:[%s2 + $0x3d8] sm:$0xff]
    %v619 = vld [vmem:[%s2 + $0x3e0] sm:$0xff]
    %v620 = vld [vmem:[%s2 + $0x3e8] sm:$0xff]
    %v621 = vld [vmem:[%s2 + $0x3f0] sm:$0xff]
    %v622 = vld [vmem:[%s2 + $0x3f8] sm:$0xff]
    %v623 = vld [vmem:[%s4] sm:$0x1]
    %v625 = vlaneseq
    %v626 = vshrl.u32 %v625, 7
    %v627 = vsub.s32 0, %v626
    %v628 = vrot.slane %v623, %v627
    %630 = vmatprep.subr.mxu0 0.0
    %631 = vmatpush1.msra.mxu0 %v495
    %632 = vmatprep.subr.mxu0 0.0
    %633 = vmatpush1.msra.mxu0 %v496
    %634 = vmatprep.subr.mxu0 0.0
    %635 = vmatpush1.msra.mxu0 %v497
    %636 = vmatprep.subr.mxu0 0.0
    %637 = vmatpush1.msra.mxu0 %v498
    %638 = vmatprep.subr.mxu0 0.0
    %639 = vmatpush1.msra.mxu0 %v499
    %640 = vmatprep.subr.mxu0 0.0
    %641 = vmatpush1.msra.mxu0 %v500
    %642 = vmatprep.subr.mxu0 0.0
    %643 = vmatpush1.msra.mxu0 %v501
    %644 = vmatprep.subr.mxu0 0.0
    %645 = vmatpush1.msra.mxu0 %v502
    %646 = vmatprep.subr.mxu0 0.0
    %647 = vmatpush1.msra.mxu0 %v503
    %648 = vmatprep.subr.mxu0 0.0
    %649 = vmatpush1.msra.mxu0 %v504
    %650 = vmatprep.subr.mxu0 0.0
    %651 = vmatpush1.msra.mxu0 %v505
    %652 = vmatprep.subr.mxu0 0.0
    %653 = vmatpush1.msra.mxu0 %v506
    %654 = vmatprep.subr.mxu0 0.0
    %655 = vmatpush1.msra.mxu0 %v507
    %656 = vmatprep.subr.mxu0 0.0
    %657 = vmatpush1.msra.mxu0 %v508
    %658 = vmatprep.subr.mxu0 0.0
    %659 = vmatpush1.msra.mxu0 %v509
    %660 = vmatprep.subr.mxu0 0.0
    %661 = vmatpush1.msra.mxu0 %v510
    %662 = vmatprep.subr.mxu0 0.0
    %663 = vmatpush1.msra.mxu0 %v511
    %664 = vmatprep.subr.mxu0 0.0
    %665 = vmatpush1.msra.mxu0 %v512
    %666 = vmatprep.subr.mxu0 0.0
    %667 = vmatpush1.msra.mxu0 %v513
    %668 = vmatprep.subr.mxu0 0.0
    %669 = vmatpush1.msra.mxu0 %v514
    %670 = vmatprep.subr.mxu0 0.0
    %671 = vmatpush1.msra.mxu0 %v515
    %672 = vmatprep.subr.mxu0 0.0
    %673 = vmatpush1.msra.mxu0 %v516
    %674 = vmatprep.subr.mxu0 0.0
    %675 = vmatpush1.msra.mxu0 %v517
    %676 = vmatprep.subr.mxu0 0.0
    %677 = vmatpush1.msra.mxu0 %v518
    %678 = vmatprep.subr.mxu0 0.0
    %679 = vmatpush1.msra.mxu0 %v519
    %680 = vmatprep.subr.mxu0 0.0
    %681 = vmatpush1.msra.mxu0 %v520
    %682 = vmatprep.subr.mxu0 0.0
    %683 = vmatpush1.msra.mxu0 %v521
    %684 = vmatprep.subr.mxu0 0.0
    %685 = vmatpush1.msra.mxu0 %v522
    %686 = vmatprep.subr.mxu0 0.0
    %687 = vmatpush1.msra.mxu0 %v523
    %688 = vmatprep.subr.mxu0 0.0
    %689 = vmatpush1.msra.mxu0 %v524
    %690 = vmatprep.subr.mxu0 0.0
    %691 = vmatpush1.msra.mxu0 %v525
    %692 = vmatprep.subr.mxu0 0.0
    %693 = vmatpush1.msra.mxu0 %v526
    %694 = vmatprep.mubr.f32.mxu0 %v188
    %695 = vmatmul.mubr.f32.gmra.mrb[0].mxu0 %v180
    %v696 = vpop.f32.mrb[0].mxu0
    %v697 = vadd.f32 %v628, %v696
    %v698 = vpop.f32.mrb[0].mxu0
    %699 = vdwg.mxu0
    %700 = vmatprep.subr.mxu0 0.0
    %701 = vmatpush1.msra.mxu0 %v527
    %702 = vmatprep.subr.mxu0 0.0
    %703 = vmatpush1.msra.mxu0 %v528
    %704 = vmatprep.subr.mxu0 0.0
    %705 = vmatpush1.msra.mxu0 %v529
    %706 = vmatprep.subr.mxu0 0.0
    %707 = vmatpush1.msra.mxu0 %v530
    %708 = vmatprep.subr.mxu0 0.0
    %709 = vmatpush1.msra.mxu0 %v531
    %710 = vmatprep.subr.mxu0 0.0
    %711 = vmatpush1.msra.mxu0 %v532
    %712 = vmatprep.subr.mxu0 0.0
    %713 = vmatpush1.msra.mxu0 %v533
    %714 = vmatprep.subr.mxu0 0.0
    %715 = vmatpush1.msra.mxu0 %v534
    %716 = vmatprep.subr.mxu0 0.0
    %717 = vmatpush1.msra.mxu0 %v535
    %718 = vmatprep.subr.mxu0 0.0
    %719 = vmatpush1.msra.mxu0 %v536
    %720 = vmatprep.subr.mxu0 0.0
    %721 = vmatpush1.msra.mxu0 %v537
    %722 = vmatprep.subr.mxu0 0.0
    %723 = vmatpush1.msra.mxu0 %v538
    %724 = vmatprep.subr.mxu0 0.0
    %725 = vmatpush1.msra.mxu0 %v539
    %726 = vmatprep.subr.mxu0 0.0
    %727 = vmatpush1.msra.mxu0 %v540
    %728 = vmatprep.subr.mxu0 0.0
    %729 = vmatpush1.msra.mxu0 %v541
    %730 = vmatprep.subr.mxu0 0.0
    %731 = vmatpush1.msra.mxu0 %v542
    %732 = vmatprep.subr.mxu0 0.0
    %733 = vmatpush1.msra.mxu0 %v543
    %734 = vmatprep.subr.mxu0 0.0
    %735 = vmatpush1.msra.mxu0 %v544
    %736 = vmatprep.subr.mxu0 0.0
    %737 = vmatpush1.msra.mxu0 %v545
    %738 = vmatprep.subr.mxu0 0.0
    %739 = vmatpush1.msra.mxu0 %v546
    %740 = vmatprep.subr.mxu0 0.0
    %741 = vmatpush1.msra.mxu0 %v547
    %742 = vmatprep.subr.mxu0 0.0
    %743 = vmatpush1.msra.mxu0 %v548
    %744 = vmatprep.subr.mxu0 0.0
    %745 = vmatpush1.msra.mxu0 %v549
    %746 = vmatprep.subr.mxu0 0.0
    %747 = vmatpush1.msra.mxu0 %v550
    %748 = vmatprep.subr.mxu0 0.0
    %749 = vmatpush1.msra.mxu0 %v551
    %750 = vmatprep.subr.mxu0 0.0
    %751 = vmatpush1.msra.mxu0 %v552
    %752 = vmatprep.subr.mxu0 0.0
    %753 = vmatpush1.msra.mxu0 %v553
    %754 = vmatprep.subr.mxu0 0.0
    %755 = vmatpush1.msra.mxu0 %v554
    %756 = vmatprep.subr.mxu0 0.0
    %757 = vmatpush1.msra.mxu0 %v555
    %758 = vmatprep.subr.mxu0 0.0
    %759 = vmatpush1.msra.mxu0 %v556
    %760 = vmatprep.subr.mxu0 0.0
    %761 = vmatpush1.msra.mxu0 %v557
    %762 = vmatprep.subr.mxu0 0.0
    %763 = vmatpush1.msra.mxu0 %v558
    %764 = vmatprep.mubr.f32.mxu0 %v189
    %765 = vmatmul.mubr.f32.gmra.mrb[0].mxu0 %v187
    %v766 = vpop.f32.mrb[0].mxu0
    %v767 = vadd.f32 %v697, %v766
    %v768 = vpop.f32.mrb[0].mxu0
    %769 = vdwg.mxu0
    %770 = vmatprep.subr.mxu0 0.0
    %771 = vmatpush1.msra.mxu0 %v559
    %772 = vmatprep.subr.mxu0 0.0
    %773 = vmatpush1.msra.mxu0 %v560
    %774 = vmatprep.subr.mxu0 0.0
    %775 = vmatpush1.msra.mxu0 %v561
    %776 = vmatprep.subr.mxu0 0.0
    %777 = vmatpush1.msra.mxu0 %v562
    %778 = vmatprep.subr.mxu0 0.0
    %779 = vmatpush1.msra.mxu0 %v563
    %780 = vmatprep.subr.mxu0 0.0
    %781 = vmatpush1.msra.mxu0 %v564
    %782 = vmatprep.subr.mxu0 0.0
    %783 = vmatpush1.msra.mxu0 %v565
    %784 = vmatprep.subr.mxu0 0.0
    %785 = vmatpush1.msra.mxu0 %v566
    %786 = vmatprep.subr.mxu0 0.0
    %787 = vmatpush1.msra.mxu0 %v567
    %788 = vmatprep.subr.mxu0 0.0
    %789 = vmatpush1.msra.mxu0 %v568
    %790 = vmatprep.subr.mxu0 0.0
    %791 = vmatpush1.msra.mxu0 %v569
    %792 = vmatprep.subr.mxu0 0.0
    %793 = vmatpush1.msra.mxu0 %v570
    %794 = vmatprep.subr.mxu0 0.0
    %795 = vmatpush1.msra.mxu0 %v571
    %796 = vmatprep.subr.mxu0 0.0
    %797 = vmatpush1.msra.mxu0 %v572
    %798 = vmatprep.subr.mxu0 0.0
    %799 = vmatpush1.msra.mxu0 %v573
    %800 = vmatprep.subr.mxu0 0.0
    %801 = vmatpush1.msra.mxu0 %v574
    %802 = vmatprep.subr.mxu0 0.0
    %803 = vmatpush1.msra.mxu0 %v575
    %804 = vmatprep.subr.mxu0 0.0
    %805 = vmatpush1.msra.mxu0 %v576
    %806 = vmatprep.subr.mxu0 0.0
    %807 = vmatpush1.msra.mxu0 %v577
    %808 = vmatprep.subr.mxu0 0.0
    %809 = vmatpush1.msra.mxu0 %v578
    %810 = vmatprep.subr.mxu0 0.0
    %811 = vmatpush1.msra.mxu0 %v579
    %812 = vmatprep.subr.mxu0 0.0
    %813 = vmatpush1.msra.mxu0 %v580
    %814 = vmatprep.subr.mxu0 0.0
    %815 = vmatpush1.msra.mxu0 %v581
    %816 = vmatprep.subr.mxu0 0.0
    %817 = vmatpush1.msra.mxu0 %v582
    %818 = vmatprep.subr.mxu0 0.0
    %819 = vmatpush1.msra.mxu0 %v583
    %820 = vmatprep.subr.mxu0 0.0
    %821 = vmatpush1.msra.mxu0 %v584
    %822 = vmatprep.subr.mxu0 0.0
    %823 = vmatpush1.msra.mxu0 %v585
    %824 = vmatprep.subr.mxu0 0.0
    %825 = vmatpush1.msra.mxu0 %v586
    %826 = vmatprep.subr.mxu0 0.0
    %827 = vmatpush1.msra.mxu0 %v587
    %828 = vmatprep.subr.mxu0 0.0
    %829 = vmatpush1.msra.mxu0 %v588
    %830 = vmatprep.subr.mxu0 0.0
    %831 = vmatpush1.msra.mxu0 %v589
    %832 = vmatprep.subr.mxu0 0.0
    %833 = vmatpush1.msra.mxu0 %v590
    %834 = vmatprep.mubr.f32.mxu0 %v205
    %835 = vmatmul.mubr.f32.gmra.mrb[0].mxu0 %v197
    %v836 = vpop.f32.mrb[0].mxu0
    %v837 = vadd.f32 %v767, %v836
    %v838 = vpop.f32.mrb[0].mxu0
    %839 = vdwg.mxu0
    %840 = vmatprep.subr.mxu0 0.0
    %841 = vmatpush1.msra.mxu0 %v591
    %842 = vmatprep.subr.mxu0 0.0
    %843 = vmatpush1.msra.mxu0 %v592
    %844 = vmatprep.subr.mxu0 0.0
    %845 = vmatpush1.msra.mxu0 %v593
    %846 = vmatprep.subr.mxu0 0.0
    %847 = vmatpush1.msra.mxu0 %v594
    %848 = vmatprep.subr.mxu0 0.0
    %849 = vmatpush1.msra.mxu0 %v595
    %850 = vmatprep.subr.mxu0 0.0
    %851 = vmatpush1.msra.mxu0 %v596
    %852 = vmatprep.subr.mxu0 0.0
    %853 = vmatpush1.msra.mxu0 %v597
    %854 = vmatprep.subr.mxu0 0.0
    %855 = vmatpush1.msra.mxu0 %v598
    %856 = vmatprep.subr.mxu0 0.0
    %857 = vmatpush1.msra.mxu0 %v599
    %858 = vmatprep.subr.mxu0 0.0
    %859 = vmatpush1.msra.mxu0 %v600
    %860 = vmatprep.subr.mxu0 0.0
    %861 = vmatpush1.msra.mxu0 %v601
    %862 = vmatprep.subr.mxu0 0.0
    %863 = vmatpush1.msra.mxu0 %v602
    %864 = vmatprep.subr.mxu0 0.0
    %865 = vmatpush1.msra.mxu0 %v603
    %866 = vmatprep.subr.mxu0 0.0
    %867 = vmatpush1.msra.mxu0 %v604
    %868 = vmatprep.subr.mxu0 0.0
    %869 = vmatpush1.msra.mxu0 %v605
    %870 = vmatprep.subr.mxu0 0.0
    %871 = vmatpush1.msra.mxu0 %v606
    %872 = vmatprep.subr.mxu0 0.0
    %873 = vmatpush1.msra.mxu0 %v607
    %874 = vmatprep.subr.mxu0 0.0
    %875 = vmatpush1.msra.mxu0 %v608
    %876 = vmatprep.subr.mxu0 0.0
    %877 = vmatpush1.msra.mxu0 %v609
    %878 = vmatprep.subr.mxu0 0.0
    %879 = vmatpush1.msra.mxu0 %v610
    %880 = vmatprep.subr.mxu0 0.0
    %881 = vmatpush1.msra.mxu0 %v611
    %882 = vmatprep.subr.mxu0 0.0
    %883 = vmatpush1.msra.mxu0 %v612
    %884 = vmatprep.subr.mxu0 0.0
    %885 = vmatpush1.msra.mxu0 %v613
    %886 = vmatprep.subr.mxu0 0.0
    %887 = vmatpush1.msra.mxu0 %v614
    %888 = vmatprep.subr.mxu0 0.0
    %889 = vmatpush1.msra.mxu0 %v615
    %890 = vmatprep.subr.mxu0 0.0
    %891 = vmatpush1.msra.mxu0 %v616
    %892 = vmatprep.subr.mxu0 0.0
    %893 = vmatpush1.msra.mxu0 %v617
    %894 = vmatprep.subr.mxu0 0.0
    %895 = vmatpush1.msra.mxu0 %v618
    %896 = vmatprep.subr.mxu0 0.0
    %897 = vmatpush1.msra.mxu0 %v619
    %898 = vmatprep.subr.mxu0 0.0
    %899 = vmatpush1.msra.mxu0 %v620
    %900 = vmatprep.subr.mxu0 0.0
    %901 = vmatpush1.msra.mxu0 %v621
    %902 = vmatprep.subr.mxu0 0.0
    %903 = vmatpush1.msra.mxu0 %v622
    %904 = vmatprep.mubr.f32.mxu0 %v206
    %905 = vmatmul.mubr.f32.gmra.mrb[0].mxu0 %v204
    %v906 = vpop.f32.mrb[0].mxu0
    %v907 = vadd.f32 %v837, %v906
    %v908 = vpop.f32.mrb[0].mxu0
    %909 = vdwg.mxu0
    %v910 = vmul.f32 %v907, 0.5
    %v911 = vmul.f32 %v910, 1.442695
    %v912 = vpow.pop %v911
    %v913 = vld [vmem:[%s5] sm:$0x3]
    %v914 = vmul.f32 %v912, %v913
    %v915 = vadd.f32 %v492, %v914
    %v916 = vld [vmem:[%s6] sm:$0xff]
    %v917 = vld [vmem:[%s6 + $0x8] sm:$0xff]
    %v918 = vld [vmem:[%s6 + $0x10] sm:$0xff]
    %v919 = vld [vmem:[%s6 + $0x18] sm:$0xff]
    %v920 = vld [vmem:[%s6 + $0x20] sm:$0xff]
    %v921 = vld [vmem:[%s6 + $0x28] sm:$0xff]
    %v922 = vld [vmem:[%s6 + $0x30] sm:$0xff]
    %v923 = vld [vmem:[%s6 + $0x38] sm:$0xff]
    %v924 = vld [vmem:[%s6 + $0x40] sm:$0xff]
    %v925 = vld [vmem:[%s6 + $0x48] sm:$0xff]
    %v926 = vld [vmem:[%s6 + $0x50] sm:$0xff]
    %v927 = vld [vmem:[%s6 + $0x58] sm:$0xff]
    %v928 = vld [vmem:[%s6 + $0x60] sm:$0xff]
    %v929 = vld [vmem:[%s6 + $0x68] sm:$0xff]
    %v930 = vld [vmem:[%s6 + $0x70] sm:$0xff]
    %v931 = vld [vmem:[%s6 + $0x78] sm:$0xff]
    %v932 = vld [vmem:[%s6 + $0x80] sm:$0xf]
    %v933 = vld [vmem:[%s6 + $0x88] sm:$0xf]
    %v934 = vld [vmem:[%s6 + $0x90] sm:$0xf]
    %v935 = vld [vmem:[%s6 + $0x98] sm:$0xf]
    %v936 = vld [vmem:[%s6 + $0xa0] sm:$0xf]
    %v937 = vld [vmem:[%s6 + $0xa8] sm:$0xf]
    %v938 = vld [vmem:[%s6 + $0xb0] sm:$0xf]
    %v939 = vld [vmem:[%s6 + $0xb8] sm:$0xf]
    %v940 = vld [vmem:[%s7] sm:$0xff]
    %v942 = vlaneseq
    %v943 = vshrl.u32 %v942, 7
    %v944 = vsub.s32 0, %v943
    %v945 = vrot.slane %v940, %v944
    %v946 = vlaneseq
    %v947 = vshrl.u32 %v946, 7
    %v948 = vsub.s32 1, %v947
    %v949 = vrot.slane %v940, %v948
    %v950 = vlaneseq
    %v951 = vshrl.u32 %v950, 7
    %v952 = vsub.s32 2, %v951
    %v953 = vrot.slane %v940, %v952
    %v954 = vlaneseq
    %v955 = vshrl.u32 %v954, 7
    %v956 = vsub.s32 3, %v955
    %v957 = vrot.slane %v940, %v956
    %v958 = vlaneseq
    %v959 = vshrl.u32 %v958, 7
    %v960 = vsub.s32 4, %v959
    %v961 = vrot.slane %v940, %v960
    %v962 = vlaneseq
    %v963 = vshrl.u32 %v962, 7
    %v964 = vsub.s32 5, %v963
    %v965 = vrot.slane %v940, %v964
    %v966 = vlaneseq
    %v967 = vshrl.u32 %v966, 7
    %v968 = vsub.s32 6, %v967
    %v969 = vrot.slane %v940, %v968
    %v970 = vlaneseq
    %v971 = vshrl.u32 %v970, 7
    %v972 = vsub.s32 7, %v971
    %v973 = vrot.slane %v940, %v972
    %vm982 = vcmask 162816
    %v984 = vsel %vm982, %v915, 0
    %vm986 = vcmask 1043456
    %v988 = vsel %vm986, %v932, 0
    %v991 = vsel %vm986, %v933, 0
    %v994 = vsel %vm986, %v934, 0
    %v997 = vsel %vm986, %v935, 0
    %v1000 = vsel %vm986, %v936, 0
    %v1003 = vsel %vm986, %v937, 0
    %v1006 = vsel %vm986, %v938, 0
    %v1009 = vsel %vm986, %v939, 0
    %1011 = vmatprep.subr.mxu0 %v917
    %1012 = vmatpush1.msra.mxu0 %v916
    %1013 = vmatprep.subr.mxu0 %v925
    %1014 = vmatpush1.msra.mxu0 %v924
    %1015 = vmatprep.subr.mxu0 %v991
    %1016 = vmatpush1.msra.mxu0 %v988
    %1017 = vmatprep.subr.mxu0 0.0
    %1018 = vmatpush1.msra.mxu0 0.0
    %1019 = vmatprep.subr.mxu0 0.0
    %1020 = vmatpush1.msra.mxu0 0.0
    %1021 = vmatprep.subr.mxu0 0.0
    %1022 = vmatpush1.msra.mxu0 0.0
    %1023 = vmatprep.subr.mxu0 0.0
    %1024 = vmatpush1.msra.mxu0 0.0
    %1025 = vmatprep.subr.mxu0 0.0
    %1026 = vmatpush1.msra.mxu0 0.0
    %1027 = vmatprep.subr.mxu0 0.0
    %1028 = vmatpush1.msra.mxu0 0.0
    %1029 = vmatprep.subr.mxu0 0.0
    %1030 = vmatpush1.msra.mxu0 0.0
    %1031 = vmatprep.subr.mxu0 0.0
    %1032 = vmatpush1.msra.mxu0 0.0
    %1033 = vmatprep.subr.mxu0 0.0
    %1034 = vmatpush1.msra.mxu0 0.0
    %1035 = vmatprep.subr.mxu0 0.0
    %1036 = vmatpush1.msra.mxu0 0.0
    %1037 = vmatprep.subr.mxu0 0.0
    %1038 = vmatpush1.msra.mxu0 0.0
    %1039 = vmatprep.subr.mxu0 0.0
    %1040 = vmatpush1.msra.mxu0 0.0
    %1041 = vmatprep.subr.mxu0 0.0
    %1042 = vmatpush1.msra.mxu0 0.0
    %1043 = vmatprep.subr.mxu0 0.0
    %1044 = vmatpush1.msra.mxu0 0.0
    %1045 = vmatprep.subr.mxu0 0.0
    %1046 = vmatpush1.msra.mxu0 0.0
    %1047 = vmatprep.subr.mxu0 0.0
    %1048 = vmatpush1.msra.mxu0 0.0
    %1049 = vmatprep.subr.mxu0 0.0
    %1050 = vmatpush1.msra.mxu0 0.0
    %1051 = vmatprep.subr.mxu0 0.0
    %1052 = vmatpush1.msra.mxu0 0.0
    %1053 = vmatprep.subr.mxu0 0.0
    %1054 = vmatpush1.msra.mxu0 0.0
    %1055 = vmatprep.subr.mxu0 0.0
    %1056 = vmatpush1.msra.mxu0 0.0
    %1057 = vmatprep.subr.mxu0 0.0
    %1058 = vmatpush1.msra.mxu0 0.0
    %1059 = vmatprep.subr.mxu0 0.0
    %1060 = vmatpush1.msra.mxu0 0.0
    %1061 = vmatprep.subr.mxu0 0.0
    %1062 = vmatpush1.msra.mxu0 0.0
    %1063 = vmatprep.subr.mxu0 0.0
    %1064 = vmatpush1.msra.mxu0 0.0
    %1065 = vmatprep.subr.mxu0 0.0
    %1066 = vmatpush1.msra.mxu0 0.0
    %1067 = vmatprep.subr.mxu0 0.0
    %1068 = vmatpush1.msra.mxu0 0.0
    %1069 = vmatprep.subr.mxu0 0.0
    %1070 = vmatpush1.msra.mxu0 0.0
    %1071 = vmatprep.subr.mxu0 0.0
    %1072 = vmatpush1.msra.mxu0 0.0
    %1073 = vmatprep.subr.mxu0 0.0
    %1074 = vmatpush1.msra.mxu0 0.0
    %1075 = vmatprep.mubr.f32.mxu0 0.0
    %1076 = vmatmul.mubr.f32.gmra.mrb[0].mxu0 %v984
    %v1077 = vpop.f32.mrb[0].mxu0
    %v1078 = vadd.f32 %v945, %v1077
    %v1079 = vpop.f32.mrb[0].mxu0
    %v1080 = vadd.f32 %v949, %v1079
    %1081 = vdwg.mxu0
    %1082 = vmatprep.subr.mxu0 %v919
    %1083 = vmatpush1.msra.mxu0 %v918
    %1084 = vmatprep.subr.mxu0 %v927
    %1085 = vmatpush1.msra.mxu0 %v926
    %1086 = vmatprep.subr.mxu0 %v997
    %1087 = vmatpush1.msra.mxu0 %v994
    %1088 = vmatprep.subr.mxu0 0.0
    %1089 = vmatpush1.msra.mxu0 0.0
    %1090 = vmatprep.subr.mxu0 0.0
    %1091 = vmatpush1.msra.mxu0 0.0
    %1092 = vmatprep.subr.mxu0 0.0
    %1093 = vmatpush1.msra.mxu0 0.0
    %1094 = vmatprep.subr.mxu0 0.0
    %1095 = vmatpush1.msra.mxu0 0.0
    %1096 = vmatprep.subr.mxu0 0.0
    %1097 = vmatpush1.msra.mxu0 0.0
    %1098 = vmatprep.subr.mxu0 0.0
    %1099 = vmatpush1.msra.mxu0 0.0
    %1100 = vmatprep.subr.mxu0 0.0
    %1101 = vmatpush1.msra.mxu0 0.0
    %1102 = vmatprep.subr.mxu0 0.0
    %1103 = vmatpush1.msra.mxu0 0.0
    %1104 = vmatprep.subr.mxu0 0.0
    %1105 = vmatpush1.msra.mxu0 0.0
    %1106 = vmatprep.subr.mxu0 0.0
    %1107 = vmatpush1.msra.mxu0 0.0
    %1108 = vmatprep.subr.mxu0 0.0
    %1109 = vmatpush1.msra.mxu0 0.0
    %1110 = vmatprep.subr.mxu0 0.0
    %1111 = vmatpush1.msra.mxu0 0.0
    %1112 = vmatprep.subr.mxu0 0.0
    %1113 = vmatpush1.msra.mxu0 0.0
    %1114 = vmatprep.subr.mxu0 0.0
    %1115 = vmatpush1.msra.mxu0 0.0
    %1116 = vmatprep.subr.mxu0 0.0
    %1117 = vmatpush1.msra.mxu0 0.0
    %1118 = vmatprep.subr.mxu0 0.0
    %1119 = vmatpush1.msra.mxu0 0.0
    %1120 = vmatprep.subr.mxu0 0.0
    %1121 = vmatpush1.msra.mxu0 0.0
    %1122 = vmatprep.subr.mxu0 0.0
    %1123 = vmatpush1.msra.mxu0 0.0
    %1124 = vmatprep.subr.mxu0 0.0
    %1125 = vmatpush1.msra.mxu0 0.0
    %1126 = vmatprep.subr.mxu0 0.0
    %1127 = vmatpush1.msra.mxu0 0.0
    %1128 = vmatprep.subr.mxu0 0.0
    %1129 = vmatpush1.msra.mxu0 0.0
    %1130 = vmatprep.subr.mxu0 0.0
    %1131 = vmatpush1.msra.mxu0 0.0
    %1132 = vmatprep.subr.mxu0 0.0
    %1133 = vmatpush1.msra.mxu0 0.0
    %1134 = vmatprep.subr.mxu0 0.0
    %1135 = vmatpush1.msra.mxu0 0.0
    %1136 = vmatprep.subr.mxu0 0.0
    %1137 = vmatpush1.msra.mxu0 0.0
    %1138 = vmatprep.subr.mxu0 0.0
    %1139 = vmatpush1.msra.mxu0 0.0
    %1140 = vmatprep.subr.mxu0 0.0
    %1141 = vmatpush1.msra.mxu0 0.0
    %1142 = vmatprep.subr.mxu0 0.0
    %1143 = vmatpush1.msra.mxu0 0.0
    %1144 = vmatprep.subr.mxu0 0.0
    %1145 = vmatpush1.msra.mxu0 0.0
    %1146 = vmatprep.mubr.f32.mxu0 0.0
    %1147 = vmatmul.mubr.f32.gmra.mrb[0].mxu0 %v984
    %v1148 = vpop.f32.mrb[0].mxu0
    %v1149 = vadd.f32 %v953, %v1148
    %v1150 = vpop.f32.mrb[0].mxu0
    %v1151 = vadd.f32 %v957, %v1150
    %1152 = vdwg.mxu0
    %1153 = vmatprep.subr.mxu0 %v921
    %1154 = vmatpush1.msra.mxu0 %v920
    %1155 = vmatprep.subr.mxu0 %v929
    %1156 = vmatpush1.msra.mxu0 %v928
    %1157 = vmatprep.subr.mxu0 %v1003
    %1158 = vmatpush1.msra.mxu0 %v1000
    %1159 = vmatprep.subr.mxu0 0.0
    %1160 = vmatpush1.msra.mxu0 0.0
    %1161 = vmatprep.subr.mxu0 0.0
    %1162 = vmatpush1.msra.mxu0 0.0
    %1163 = vmatprep.subr.mxu0 0.0
    %1164 = vmatpush1.msra.mxu0 0.0
    %1165 = vmatprep.subr.mxu0 0.0
    %1166 = vmatpush1.msra.mxu0 0.0
    %1167 = vmatprep.subr.mxu0 0.0
    %1168 = vmatpush1.msra.mxu0 0.0
    %1169 = vmatprep.subr.mxu0 0.0
    %1170 = vmatpush1.msra.mxu0 0.0
    %1171 = vmatprep.subr.mxu0 0.0
    %1172 = vmatpush1.msra.mxu0 0.0
    %1173 = vmatprep.subr.mxu0 0.0
    %1174 = vmatpush1.msra.mxu0 0.0
    %1175 = vmatprep.subr.mxu0 0.0
    %1176 = vmatpush1.msra.mxu0 0.0
    %1177 = vmatprep.subr.mxu0 0.0
    %1178 = vmatpush1.msra.mxu0 0.0
    %1179 = vmatprep.subr.mxu0 0.0
    %1180 = vmatpush1.msra.mxu0 0.0
    %1181 = vmatprep.subr.mxu0 0.0
    %1182 = vmatpush1.msra.mxu0 0.0
    %1183 = vmatprep.subr.mxu0 0.0
    %1184 = vmatpush1.msra.mxu0 0.0
    %1185 = vmatprep.subr.mxu0 0.0
    %1186 = vmatpush1.msra.mxu0 0.0
    %1187 = vmatprep.subr.mxu0 0.0
    %1188 = vmatpush1.msra.mxu0 0.0
    %1189 = vmatprep.subr.mxu0 0.0
    %1190 = vmatpush1.msra.mxu0 0.0
    %1191 = vmatprep.subr.mxu0 0.0
    %1192 = vmatpush1.msra.mxu0 0.0
    %1193 = vmatprep.subr.mxu0 0.0
    %1194 = vmatpush1.msra.mxu0 0.0
    %1195 = vmatprep.subr.mxu0 0.0
    %1196 = vmatpush1.msra.mxu0 0.0
    %1197 = vmatprep.subr.mxu0 0.0
    %1198 = vmatpush1.msra.mxu0 0.0
    %1199 = vmatprep.subr.mxu0 0.0
    %1200 = vmatpush1.msra.mxu0 0.0
    %1201 = vmatprep.subr.mxu0 0.0
    %1202 = vmatpush1.msra.mxu0 0.0
    %1203 = vmatprep.subr.mxu0 0.0
    %1204 = vmatpush1.msra.mxu0 0.0
    %1205 = vmatprep.subr.mxu0 0.0
    %1206 = vmatpush1.msra.mxu0 0.0
    %1207 = vmatprep.subr.mxu0 0.0
    %1208 = vmatpush1.msra.mxu0 0.0
    %1209 = vmatprep.subr.mxu0 0.0
    %1210 = vmatpush1.msra.mxu0 0.0
    %1211 = vmatprep.subr.mxu0 0.0
    %1212 = vmatpush1.msra.mxu0 0.0
    %1213 = vmatprep.subr.mxu0 0.0
    %1214 = vmatpush1.msra.mxu0 0.0
    %1215 = vmatprep.subr.mxu0 0.0
    %1216 = vmatpush1.msra.mxu0 0.0
    %1217 = vmatprep.mubr.f32.mxu0 0.0
    %1218 = vmatmul.mubr.f32.gmra.mrb[0].mxu0 %v984
    %v1219 = vpop.f32.mrb[0].mxu0
    %v1220 = vadd.f32 %v961, %v1219
    %v1221 = vpop.f32.mrb[0].mxu0
    %v1222 = vadd.f32 %v965, %v1221
    %1223 = vdwg.mxu0
    %1224 = vmatprep.subr.mxu0 %v923
    %1225 = vmatpush1.msra.mxu0 %v922
    %1226 = vmatprep.subr.mxu0 %v931
    %1227 = vmatpush1.msra.mxu0 %v930
    %1228 = vmatprep.subr.mxu0 %v1009
    %1229 = vmatpush1.msra.mxu0 %v1006
    %1230 = vmatprep.subr.mxu0 0.0
    %1231 = vmatpush1.msra.mxu0 0.0
    %1232 = vmatprep.subr.mxu0 0.0
    %1233 = vmatpush1.msra.mxu0 0.0
    %1234 = vmatprep.subr.mxu0 0.0
    %1235 = vmatpush1.msra.mxu0 0.0
    %1236 = vmatprep.subr.mxu0 0.0
    %1237 = vmatpush1.msra.mxu0 0.0
    %1238 = vmatprep.subr.mxu0 0.0
    %1239 = vmatpush1.msra.mxu0 0.0
    %1240 = vmatprep.subr.mxu0 0.0
    %1241 = vmatpush1.msra.mxu0 0.0
    %1242 = vmatprep.subr.mxu0 0.0
    %1243 = vmatpush1.msra.mxu0 0.0
    %1244 = vmatprep.subr.mxu0 0.0
    %1245 = vmatpush1.msra.mxu0 0.0
    %1246 = vmatprep.subr.mxu0 0.0
    %1247 = vmatpush1.msra.mxu0 0.0
    %1248 = vmatprep.subr.mxu0 0.0
    %1249 = vmatpush1.msra.mxu0 0.0
    %1250 = vmatprep.subr.mxu0 0.0
    %1251 = vmatpush1.msra.mxu0 0.0
    %1252 = vmatprep.subr.mxu0 0.0
    %1253 = vmatpush1.msra.mxu0 0.0
    %1254 = vmatprep.subr.mxu0 0.0
    %1255 = vmatpush1.msra.mxu0 0.0
    %1256 = vmatprep.subr.mxu0 0.0
    %1257 = vmatpush1.msra.mxu0 0.0
    %1258 = vmatprep.subr.mxu0 0.0
    %1259 = vmatpush1.msra.mxu0 0.0
    %1260 = vmatprep.subr.mxu0 0.0
    %1261 = vmatpush1.msra.mxu0 0.0
    %1262 = vmatprep.subr.mxu0 0.0
    %1263 = vmatpush1.msra.mxu0 0.0
    %1264 = vmatprep.subr.mxu0 0.0
    %1265 = vmatpush1.msra.mxu0 0.0
    %1266 = vmatprep.subr.mxu0 0.0
    %1267 = vmatpush1.msra.mxu0 0.0
    %1268 = vmatprep.subr.mxu0 0.0
    %1269 = vmatpush1.msra.mxu0 0.0
    %1270 = vmatprep.subr.mxu0 0.0
    %1271 = vmatpush1.msra.mxu0 0.0
    %1272 = vmatprep.subr.mxu0 0.0
    %1273 = vmatpush1.msra.mxu0 0.0
    %1274 = vmatprep.subr.mxu0 0.0
    %1275 = vmatpush1.msra.mxu0 0.0
    %1276 = vmatprep.subr.mxu0 0.0
    %1277 = vmatpush1.msra.mxu0 0.0
    %1278 = vmatprep.subr.mxu0 0.0
    %1279 = vmatpush1.msra.mxu0 0.0
    %1280 = vmatprep.subr.mxu0 0.0
    %1281 = vmatpush1.msra.mxu0 0.0
    %1282 = vmatprep.subr.mxu0 0.0
    %1283 = vmatpush1.msra.mxu0 0.0
    %1284 = vmatprep.subr.mxu0 0.0
    %1285 = vmatpush1.msra.mxu0 0.0
    %1286 = vmatprep.subr.mxu0 0.0
    %1287 = vmatpush1.msra.mxu0 0.0
    %1288 = vmatprep.mubr.f32.mxu0 0.0
    %1289 = vmatmul.mubr.f32.gmra.mrb[0].mxu0 %v984
    %v1290 = vpop.f32.mrb[0].mxu0
    %v1291 = vadd.f32 %v969, %v1290
    %v1292 = vpop.f32.mrb[0].mxu0
    %v1293 = vadd.f32 %v973, %v1292
    %1294 = vdwg.mxu0
    %vm1295 = vcmask 156672
    %1296 = vst.msk [vmem:[#allocation2] sm:$0x3] %vm1295, %v492
    %1297 = vst.msk [vmem:[#allocation4] sm:$0x3] %vm1295, %v907
    %v1306 = vcombine.low %v1078, %v1080
    %v1307 = vcombine.low %v1149, %v1151
    %v1309 = vunpack.c.l.s4 1983009808
    %v1310 = vunpack.c.0.s8 %v1309
    %v1311 = vlaneseq
    %v1312 = vshrl.u32 %v1311, 7
    %v1313 = vsub.s32 %v1310, %v1312
    %v1314 = vrot.slane %v1306, %v1313
    %v1316 = vunpack.c.l.s4 1983009808
    %v1317 = vunpack.c.0.s8 %v1316
    %v1318 = vlaneseq
    %v1319 = vshrl.u32 %v1318, 7
    %v1320 = vsub.s32 %v1317, %v1319
    %v1321 = vrot.slane %v1307, %v1320
    %v1322 = vcombine.low %v1314, %v1321
    %v1323 = vcombine.low %v1220, %v1222
    %v1324 = vcombine.low %v1291, %v1293
    %v1326 = vunpack.c.l.s4 1983009808
    %v1327 = vunpack.c.0.s8 %v1326
    %v1328 = vlaneseq
    %v1329 = vshrl.u32 %v1328, 7
    %v1330 = vsub.s32 %v1327, %v1329
    %v1331 = vrot.slane %v1323, %v1330
    %v1333 = vunpack.c.l.s4 1983009808
    %v1334 = vunpack.c.0.s8 %v1333
    %v1335 = vlaneseq
    %v1336 = vshrl.u32 %v1335, 7
    %v1337 = vsub.s32 %v1334, %v1336
    %v1338 = vrot.slane %v1324, %v1337
    %v1339 = vcombine.low %v1331, %v1338
    %1342 = vst [vmem:[%s10] sm:$0xff] %v1322
    %1343 = vst [vmem:[%s10 + $0x8] sm:$0xff] %v1339
    // Predicated region
    $region34: #{vae_forward.13} parent=1 // pred_check
      _
    $region35: #{vae_forward.13} parent=1 // pred_check_branch
      %1345 = sbr.rel (0) target = $region37
    $region36: #{vae_forward.13} parent=1 // pred_region
      %s1347 = ssub.s32 32, 32
      %1348 = vsyncadd [#allocation3], %s1347
      %s1350 = sshll.u32 [#allocation2], 4
      %s1351 = int_to_ptr.vmem [resolvable:$true] %s1350
      %1353 = dma.vmem_to_hbm [thread:$0]  %s1351, 32, %s8, [#allocation3]
    $region37: #{vae_forward.13} parent=1 // pred_fallthru
      _
    // Predicated region
    $region38: #{vae_forward.13} parent=1 // pred_check
      _
    $region39: #{vae_forward.13} parent=1 // pred_check_branch
      %1355 = sbr.rel (0) target = $region41
    $region40: #{vae_forward.13} parent=1 // pred_region
      %s1357 = ssub.s32 32, 32
      %1358 = vsyncadd [#allocation5], %s1357
      %s1360 = sshll.u32 [#allocation4], 4
      %s1361 = int_to_ptr.vmem [resolvable:$true] %s1360
      %1363 = dma.vmem_to_hbm [thread:$0]  %s1361, 32, %s9, [#allocation5]
    $region41: #{vae_forward.13} parent=1 // pred_fallthru
      _
    // Predicated region
    $region42: #{vae_forward.13} parent=1 // pred_check
      _
    $region43: #{vae_forward.13} parent=1 // pred_check_branch
      %1365 = sbr.rel (0) target = $region45
    $region44: #{vae_forward.13} parent=1 // pred_region
      _
    $region45: #{vae_forward.13} parent=1 // pred_fallthru
      _
    // Predicated region
    $region46: #{vae_forward.13} parent=1 // pred_check
      _
    $region47: #{vae_forward.13} parent=1 // pred_check_branch
      %1367 = sbr.rel (0) target = $region49
    $region48: #{vae_forward.13} parent=1 // pred_region
      %1368 = dma.done [#allocation3], 32
    $region49: #{vae_forward.13} parent=1 // pred_fallthru
      _
    // Predicated region
    $region50: #{vae_forward.13} parent=1 // pred_check
      _
    $region51: #{vae_forward.13} parent=1 // pred_check_branch
      %1370 = sbr.rel (0) target = $region53
    $region52: #{vae_forward.13} parent=1 // pred_region
      %1371 = dma.done [#allocation5], 32
    $region53: #{vae_forward.13} parent=1 // pred_fallthru
      _
    // Predicated region
    $region54: #{vae_forward.13} parent=1 // pred_check
      _
    $region55: #{vae_forward.13} parent=1 // pred_check_branch
      %1373 = sbr.rel (0) target = $region57
    $region56: #{vae_forward.13} parent=1 // pred_region
      _
    $region57: #{vae_forward.13} parent=1 // pred_fallthru
      _
    %1374 = vsyncpa [#allocation3], 1
    %1375 = vsyncpa [#allocation5], 1

// kernel: vae_forward.14
$region0: #{vae_forward.14}
  #allocation0 [shape = 'u32[]', space=smem, size = 0x4, offset = 0x4, fixed_abs, tag = 'smem constant byte address 0x4 - core index']
  #allocation1 [shape = 'u32[144,128]{1,0:T(1,128)}', space=vmem, size = 0x12000, scoped, tag = 'internal scratch']
  %s0 = inlined_call_operand.vmem [shape: bf16[128,2304], index: 0, kind: input, shape index: {}]
  %s1 = inlined_call_operand.vmem [shape: bf16[2304,32], index: 1, kind: input, shape index: {}]
  %s2 = inlined_call_operand.vmem [shape: f32[128,1], index: 2, kind: input, shape index: {}]
  %s3 = inlined_call_operand.vmem [shape: f32[128,32], index: 3, kind: output, shape index: {}]
  %s4 = sld [smem:[#allocation0]]
  $region22: #{vae_forward.14} parent=0
    _
  %s6 = ssub.s32 1, %s4
  %s7 = scalar_select 0, %s6, %s4
  // Predicated region
  $region2: #{vae_forward.14} parent=0 // pred_check
    _
  $region3: #{vae_forward.14} parent=0 // pred_check_branch
    %9 = sbr.rel (0) target = $region5
  $region4: #{vae_forward.14} parent=0 // pred_region
    _
  $region5: #{vae_forward.14} parent=0 // pred_fallthru
    _
  // Predicated region
  $region6: #{vae_forward.14} parent=0 // pred_check
    _
  $region7: #{vae_forward.14} parent=0 // pred_check_branch
    %11 = sbr.rel (0) target = $region9
  $region8: #{vae_forward.14} parent=0 // pred_region
    _
  $region9: #{vae_forward.14} parent=0 // pred_fallthru
    _
  // Predicated region
  $region10: #{vae_forward.14} parent=0 // pred_check
    _
  $region11: #{vae_forward.14} parent=0 // pred_check_branch
    %13 = sbr.rel (0) target = $region13
  $region12: #{vae_forward.14} parent=0 // pred_region
    _
  $region13: #{vae_forward.14} parent=0 // pred_fallthru
    _
  %v15 = vld [vmem:[%s0] sm:$0xff]
  %v16 = vld [vmem:[%s0 + $0x8] sm:$0xff]
  %v17 = vld [vmem:[%s0 + $0x10] sm:$0xff]
  %v18 = vld [vmem:[%s0 + $0x18] sm:$0xff]
  %v19 = vld [vmem:[%s0 + $0x20] sm:$0xff]
  %v20 = vld [vmem:[%s0 + $0x28] sm:$0xff]
  %v21 = vld [vmem:[%s0 + $0x30] sm:$0xff]
  %v22 = vld [vmem:[%s0 + $0x38] sm:$0xff]
  %v23 = vld [vmem:[%s0 + $0x40] sm:$0xff]
  %v24 = vld [vmem:[%s0 + $0x48] sm:$0xff]
  %v25 = vld [vmem:[%s0 + $0x50] sm:$0xff]
  %v26 = vld [vmem:[%s0 + $0x58] sm:$0xff]
  %v27 = vld [vmem:[%s0 + $0x60] sm:$0xff]
  %v28 = vld [vmem:[%s0 + $0x68] sm:$0xff]
  %v29 = vld [vmem:[%s0 + $0x70] sm:$0xff]
  %v30 = vld [vmem:[%s0 + $0x78] sm:$0xff]
  %v31 = vld [vmem:[%s0 + $0x80] sm:$0xff]
  %v32 = vld [vmem:[%s0 + $0x88] sm:$0xff]
  %v33 = vld [vmem:[%s0 + $0x90] sm:$0xff]
  %v34 = vld [vmem:[%s0 + $0x98] sm:$0xff]
  %v35 = vld [vmem:[%s0 + $0xa0] sm:$0xff]
  %v36 = vld [vmem:[%s0 + $0xa8] sm:$0xff]
  %v37 = vld [vmem:[%s0 + $0xb0] sm:$0xff]
  %v38 = vld [vmem:[%s0 + $0xb8] sm:$0xff]
  %v39 = vld [vmem:[%s0 + $0xc0] sm:$0xff]
  %v40 = vld [vmem:[%s0 + $0xc8] sm:$0xff]
  %v41 = vld [vmem:[%s0 + $0xd0] sm:$0xff]
  %v42 = vld [vmem:[%s0 + $0xd8] sm:$0xff]
  %v43 = vld [vmem:[%s0 + $0xe0] sm:$0xff]
  %v44 = vld [vmem:[%s0 + $0xe8] sm:$0xff]
  %v45 = vld [vmem:[%s0 + $0xf0] sm:$0xff]
  %v46 = vld [vmem:[%s0 + $0xf8] sm:$0xff]
  %v47 = vld [vmem:[%s0 + $0x100] sm:$0xff]
  %v48 = vld [vmem:[%s0 + $0x108] sm:$0xff]
  %v49 = vld [vmem:[%s0 + $0x110] sm:$0xff]
  %v50 = vld [vmem:[%s0 + $0x118] sm:$0xff]
  %v51 = vld [vmem:[%s0 + $0x120] sm:$0xff]
  %v52 = vld [vmem:[%s0 + $0x128] sm:$0xff]
  %v53 = vld [vmem:[%s0 + $0x130] sm:$0xff]
  %v54 = vld [vmem:[%s0 + $0x138] sm:$0xff]
  %v55 = vld [vmem:[%s0 + $0x140] sm:$0xff]
  %v56 = vld [vmem:[%s0 + $0x148] sm:$0xff]
  %v57 = vld [vmem:[%s0 + $0x150] sm:$0xff]
  %v58 = vld [vmem:[%s0 + $0x158] sm:$0xff]
  %v59 = vld [vmem:[%s0 + $0x160] sm:$0xff]
  %v60 = vld [vmem:[%s0 + $0x168] sm:$0xff]
  %v61 = vld [vmem:[%s0 + $0x170] sm:$0xff]
  %v62 = vld [vmem:[%s0 + $0x178] sm:$0xff]
  %v63 = vld [vmem:[%s0 + $0x180] sm:$0xff]
  %v64 = vld [vmem:[%s0 + $0x188] sm:$0xff]
  %v65 = vld [vmem:[%s0 + $0x190] sm:$0xff]
  %v66 = vld [vmem:[%s0 + $0x198] sm:$0xff]
  %v67 = vld [vmem:[%s0 + $0x1a0] sm:$0xff]
  %v68 = vld [vmem:[%s0 + $0x1a8] sm:$0xff]
  %v69 = vld [vmem:[%s0 + $0x1b0] sm:$0xff]
  %v70 = vld [vmem:[%s0 + $0x1b8] sm:$0xff]
  %v71 = vld [vmem:[%s0 + $0x1c0] sm:$0xff]
  %v72 = vld [vmem:[%s0 + $0x1c8] sm:$0xff]
  %v73 = vld [vmem:[%s0 + $0x1d0] sm:$0xff]
  %v74 = vld [vmem:[%s0 + $0x1d8] sm:$0xff]
  %v75 = vld [vmem:[%s0 + $0x1e0] sm:$0xff]
  %v76 = vld [vmem:[%s0 + $0x1e8] sm:$0xff]
  %v77 = vld [vmem:[%s0 + $0x1f0] sm:$0xff]
  %v78 = vld [vmem:[%s0 + $0x1f8] sm:$0xff]
  %v79 = vld [vmem:[%s0 + $0x200] sm:$0xff]
  %v80 = vld [vmem:[%s0 + $0x208] sm:$0xff]
  %v81 = vld [vmem:[%s0 + $0x210] sm:$0xff]
  %v82 = vld [vmem:[%s0 + $0x218] sm:$0xff]
  %v83 = vld [vmem:[%s0 + $0x220] sm:$0xff]
  %v84 = vld [vmem:[%s0 + $0x228] sm:$0xff]
  %v85 = vld [vmem:[%s0 + $0x230] sm:$0xff]
  %v86 = vld [vmem:[%s0 + $0x238] sm:$0xff]
  %v87 = vld [vmem:[%s0 + $0x240] sm:$0xff]
  %v88 = vld [vmem:[%s0 + $0x248] sm:$0xff]
  %v89 = vld [vmem:[%s0 + $0x250] sm:$0xff]
  %v90 = vld [vmem:[%s0 + $0x258] sm:$0xff]
  %v91 = vld [vmem:[%s0 + $0x260] sm:$0xff]
  %v92 = vld [vmem:[%s0 + $0x268] sm:$0xff]
  %v93 = vld [vmem:[%s0 + $0x270] sm:$0xff]
  %v94 = vld [vmem:[%s0 + $0x278] sm:$0xff]
  %v95 = vld [vmem:[%s0 + $0x280] sm:$0xff]
  %v96 = vld [vmem:[%s0 + $0x288] sm:$0xff]
  %v97 = vld [vmem:[%s0 + $0x290] sm:$0xff]
  %v98 = vld [vmem:[%s0 + $0x298] sm:$0xff]
  %v99 = vld [vmem:[%s0 + $0x2a0] sm:$0xff]
  %v100 = vld [vmem:[%s0 + $0x2a8] sm:$0xff]
  %v101 = vld [vmem:[%s0 + $0x2b0] sm:$0xff]
  %v102 = vld [vmem:[%s0 + $0x2b8] sm:$0xff]
  %v103 = vld [vmem:[%s0 + $0x2c0] sm:$0xff]
  %v104 = vld [vmem:[%s0 + $0x2c8] sm:$0xff]
  %v105 = vld [vmem:[%s0 + $0x2d0] sm:$0xff]
  %v106 = vld [vmem:[%s0 + $0x2d8] sm:$0xff]
  %v107 = vld [vmem:[%s0 + $0x2e0] sm:$0xff]
  %v108 = vld [vmem:[%s0 + $0x2e8] sm:$0xff]
  %v109 = vld [vmem:[%s0 + $0x2f0] sm:$0xff]
  %v110 = vld [vmem:[%s0 + $0x2f8] sm:$0xff]
  %v111 = vld [vmem:[%s0 + $0x300] sm:$0xff]
  %v112 = vld [vmem:[%s0 + $0x308] sm:$0xff]
  %v113 = vld [vmem:[%s0 + $0x310] sm:$0xff]
  %v114 = vld [vmem:[%s0 + $0x318] sm:$0xff]
  %v115 = vld [vmem:[%s0 + $0x320] sm:$0xff]
  %v116 = vld [vmem:[%s0 + $0x328] sm:$0xff]
  %v117 = vld [vmem:[%s0 + $0x330] sm:$0xff]
  %v118 = vld [vmem:[%s0 + $0x338] sm:$0xff]
  %v119 = vld [vmem:[%s0 + $0x340] sm:$0xff]
  %v120 = vld [vmem:[%s0 + $0x348] sm:$0xff]
  %v121 = vld [vmem:[%s0 + $0x350] sm:$0xff]
  %v122 = vld [vmem:[%s0 + $0x358] sm:$0xff]
  %v123 = vld [vmem:[%s0 + $0x360] sm:$0xff]
  %v124 = vld [vmem:[%s0 + $0x368] sm:$0xff]
  %v125 = vld [vmem:[%s0 + $0x370] sm:$0xff]
  %v126 = vld [vmem:[%s0 + $0x378] sm:$0xff]
  %v127 = vld [vmem:[%s0 + $0x380] sm:$0xff]
  %v128 = vld [vmem:[%s0 + $0x388] sm:$0xff]
  %v129 = vld [vmem:[%s0 + $0x390] sm:$0xff]
  %v130 = vld [vmem:[%s0 + $0x398] sm:$0xff]
  %v131 = vld [vmem:[%s0 + $0x3a0] sm:$0xff]
  %v132 = vld [vmem:[%s0 + $0x3a8] sm:$0xff]
  %v133 = vld [vmem:[%s0 + $0x3b0] sm:$0xff]
  %v134 = vld [vmem:[%s0 + $0x3b8] sm:$0xff]
  %v135 = vld [vmem:[%s0 + $0x3c0] sm:$0xff]
  %v136 = vld [vmem:[%s0 + $0x3c8] sm:$0xff]
  %v137 = vld [vmem:[%s0 + $0x3d0] sm:$0xff]
  %v138 = vld [vmem:[%s0 + $0x3d8] sm:$0xff]
  %v139 = vld [vmem:[%s0 + $0x3e0] sm:$0xff]
  %v140 = vld [vmem:[%s0 + $0x3e8] sm:$0xff]
  %v141 = vld [vmem:[%s0 + $0x3f0] sm:$0xff]
  %v142 = vld [vmem:[%s0 + $0x3f8] sm:$0xff]
  %v143 = vld [vmem:[%s0 + $0x400] sm:$0xff]
  %v144 = vld [vmem:[%s0 + $0x408] sm:$0xff]
  %v145 = vld [vmem:[%s0 + $0x410] sm:$0xff]
  %v146 = vld [vmem:[%s0 + $0x418] sm:$0xff]
  %v147 = vld [vmem:[%s0 + $0x420] sm:$0xff]
  %v148 = vld [vmem:[%s0 + $0x428] sm:$0xff]
  %v149 = vld [vmem:[%s0 + $0x430] sm:$0xff]
  %v150 = vld [vmem:[%s0 + $0x438] sm:$0xff]
  %v151 = vld [vmem:[%s0 + $0x440] sm:$0xff]
  %v152 = vld [vmem:[%s0 + $0x448] sm:$0xff]
  %v153 = vld [vmem:[%s0 + $0x450] sm:$0xff]
  %v154 = vld [vmem:[%s0 + $0x458] sm:$0xff]
  %v155 = vld [vmem:[%s0 + $0x460] sm:$0xff]
  %v156 = vld [vmem:[%s0 + $0x468] sm:$0xff]
  %v157 = vld [vmem:[%s0 + $0x470] sm:$0xff]
  %v158 = vld [vmem:[%s0 + $0x478] sm:$0xff]
  %v159 = vld [vmem:[%s1] sm:$0xf]
  %v160 = vld [vmem:[%s1 + $0x4] sm:$0xf]
  %v161 = vld [vmem:[%s1 + $0x8] sm:$0xf]
  %v162 = vld [vmem:[%s1 + $0xc] sm:$0xf]
  %v163 = vld [vmem:[%s1 + $0x10] sm:$0xf]
  %v164 = vld [vmem:[%s1 + $0x14] sm:$0xf]
  %v165 = vld [vmem:[%s1 + $0x18] sm:$0xf]
  %v166 = vld [vmem:[%s1 + $0x1c] sm:$0xf]
  %v167 = vld [vmem:[%s1 + $0x20] sm:$0xf]
  %v168 = vld [vmem:[%s1 + $0x24] sm:$0xf]
  %v169 = vld [vmem:[%s1 + $0x28] sm:$0xf]
  %v170 = vld [vmem:[%s1 + $0x2c] sm:$0xf]
  %v171 = vld [vmem:[%s1 + $0x30] sm:$0xf]
  %v172 = vld [vmem:[%s1 + $0x34] sm:$0xf]
  %v173 = vld [vmem:[%s1 + $0x38] sm:$0xf]
  %v174 = vld [vmem:[%s1 + $0x3c] sm:$0xf]
  %v175 = vld [vmem:[%s1 + $0x40] sm:$0xf]
  %v176 = vld [vmem:[%s1 + $0x44] sm:$0xf]
  %v177 = vld [vmem:[%s1 + $0x48] sm:$0xf]
  %v178 = vld [vmem:[%s1 + $0x4c] sm:$0xf]
  %v179 = vld [vmem:[%s1 + $0x50] sm:$0xf]
  %v180 = vld [vmem:[%s1 + $0x54] sm:$0xf]
  %v181 = vld [vmem:[%s1 + $0x58] sm:$0xf]
  %v182 = vld [vmem:[%s1 + $0x5c] sm:$0xf]
  %v183 = vld [vmem:[%s1 + $0x60] sm:$0xf]
  %v184 = vld [vmem:[%s1 + $0x64] sm:$0xf]
  %v185 = vld [vmem:[%s1 + $0x68] sm:$0xf]
  %v186 = vld [vmem:[%s1 + $0x6c] sm:$0xf]
  %v187 = vld [vmem:[%s1 + $0x70] sm:$0xf]
  %v188 = vld [vmem:[%s1 + $0x74] sm:$0xf]
  %v189 = vld [vmem:[%s1 + $0x78] sm:$0xf]
  %v190 = vld [vmem:[%s1 + $0x7c] sm:$0xf]
  %v191 = vld [vmem:[%s1 + $0x80] sm:$0xf]
  %v192 = vld [vmem:[%s1 + $0x84] sm:$0xf]
  %v193 = vld [vmem:[%s1 + $0x88] sm:$0xf]
  %v194 = vld [vmem:[%s1 + $0x8c] sm:$0xf]
  %v195 = vld [vmem:[%s1 + $0x90] sm:$0xf]
  %v196 = vld [vmem:[%s1 + $0x94] sm:$0xf]
  %v197 = vld [vmem:[%s1 + $0x98] sm:$0xf]
  %v198 = vld [vmem:[%s1 + $0x9c] sm:$0xf]
  %v199 = vld [vmem:[%s1 + $0xa0] sm:$0xf]
  %v200 = vld [vmem:[%s1 + $0xa4] sm:$0xf]
  %v201 = vld [vmem:[%s1 + $0xa8] sm:$0xf]
  %v202 = vld [vmem:[%s1 + $0xac] sm:$0xf]
  %v203 = vld [vmem:[%s1 + $0xb0] sm:$0xf]
  %v204 = vld [vmem:[%s1 + $0xb4] sm:$0xf]
  %v205 = vld [vmem:[%s1 + $0xb8] sm:$0xf]
  %v206 = vld [vmem:[%s1 + $0xbc] sm:$0xf]
  %v207 = vld [vmem:[%s1 + $0xc0] sm:$0xf]
  %v208 = vld [vmem:[%s1 + $0xc4] sm:$0xf]
  %v209 = vld [vmem:[%s1 + $0xc8] sm:$0xf]
  %v210 = vld [vmem:[%s1 + $0xcc] sm:$0xf]
  %v211 = vld [vmem:[%s1 + $0xd0] sm:$0xf]
  %v212 = vld [vmem:[%s1 + $0xd4] sm:$0xf]
  %v213 = vld [vmem:[%s1 + $0xd8] sm:$0xf]
  %v214 = vld [vmem:[%s1 + $0xdc] sm:$0xf]
  %v215 = vld [vmem:[%s1 + $0xe0] sm:$0xf]
  %v216 = vld [vmem:[%s1 + $0xe4] sm:$0xf]
  %v217 = vld [vmem:[%s1 + $0xe8] sm:$0xf]
  %v218 = vld [vmem:[%s1 + $0xec] sm:$0xf]
  %v219 = vld [vmem:[%s1 + $0xf0] sm:$0xf]
  %v220 = vld [vmem:[%s1 + $0xf4] sm:$0xf]
  %v221 = vld [vmem:[%s1 + $0xf8] sm:$0xf]
  %v222 = vld [vmem:[%s1 + $0xfc] sm:$0xf]
  %v223 = vld [vmem:[%s1 + $0x100] sm:$0xf]
  %v224 = vld [vmem:[%s1 + $0x104] sm:$0xf]
  %v225 = vld [vmem:[%s1 + $0x108] sm:$0xf]
  %v226 = vld [vmem:[%s1 + $0x10c] sm:$0xf]
  %v227 = vld [vmem:[%s1 + $0x110] sm:$0xf]
  %v228 = vld [vmem:[%s1 + $0x114] sm:$0xf]
  %v229 = vld [vmem:[%s1 + $0x118] sm:$0xf]
  %v230 = vld [vmem:[%s1 + $0x11c] sm:$0xf]
  %v231 = vld [vmem:[%s1 + $0x120] sm:$0xf]
  %v232 = vld [vmem:[%s1 + $0x124] sm:$0xf]
  %v233 = vld [vmem:[%s1 + $0x128] sm:$0xf]
  %v234 = vld [vmem:[%s1 + $0x12c] sm:$0xf]
  %v235 = vld [vmem:[%s1 + $0x130] sm:$0xf]
  %v236 = vld [vmem:[%s1 + $0x134] sm:$0xf]
  %v237 = vld [vmem:[%s1 + $0x138] sm:$0xf]
  %v238 = vld [vmem:[%s1 + $0x13c] sm:$0xf]
  %v239 = vld [vmem:[%s1 + $0x140] sm:$0xf]
  %v240 = vld [vmem:[%s1 + $0x144] sm:$0xf]
  %v241 = vld [vmem:[%s1 + $0x148] sm:$0xf]
  %v242 = vld [vmem:[%s1 + $0x14c] sm:$0xf]
  %v243 = vld [vmem:[%s1 + $0x150] sm:$0xf]
  %v244 = vld [vmem:[%s1 + $0x154] sm:$0xf]
  %v245 = vld [vmem:[%s1 + $0x158] sm:$0xf]
  %v246 = vld [vmem:[%s1 + $0x15c] sm:$0xf]
  %v247 = vld [vmem:[%s1 + $0x160] sm:$0xf]
  %v248 = vld [vmem:[%s1 + $0x164] sm:$0xf]
  %v249 = vld [vmem:[%s1 + $0x168] sm:$0xf]
  %v250 = vld [vmem:[%s1 + $0x16c] sm:$0xf]
  %v251 = vld [vmem:[%s1 + $0x170] sm:$0xf]
  %v252 = vld [vmem:[%s1 + $0x174] sm:$0xf]
  %v253 = vld [vmem:[%s1 + $0x178] sm:$0xf]
  %v254 = vld [vmem:[%s1 + $0x17c] sm:$0xf]
  %v255 = vld [vmem:[%s1 + $0x180] sm:$0xf]
  %v256 = vld [vmem:[%s1 + $0x184] sm:$0xf]
  %v257 = vld [vmem:[%s1 + $0x188] sm:$0xf]
  %v258 = vld [vmem:[%s1 + $0x18c] sm:$0xf]
  %v259 = vld [vmem:[%s1 + $0x190] sm:$0xf]
  %v260 = vld [vmem:[%s1 + $0x194] sm:$0xf]
  %v261 = vld [vmem:[%s1 + $0x198] sm:$0xf]
  %v262 = vld [vmem:[%s1 + $0x19c] sm:$0xf]
  %v263 = vld [vmem:[%s1 + $0x1a0] sm:$0xf]
  %v264 = vld [vmem:[%s1 + $0x1a4] sm:$0xf]
  %v265 = vld [vmem:[%s1 + $0x1a8] sm:$0xf]
  %v266 = vld [vmem:[%s1 + $0x1ac] sm:$0xf]
  %v267 = vld [vmem:[%s1 + $0x1b0] sm:$0xf]
  %v268 = vld [vmem:[%s1 + $0x1b4] sm:$0xf]
  %v269 = vld [vmem:[%s1 + $0x1b8] sm:$0xf]
  %v270 = vld [vmem:[%s1 + $0x1bc] sm:$0xf]
  %v271 = vld [vmem:[%s1 + $0x1c0] sm:$0xf]
  %v272 = vld [vmem:[%s1 + $0x1c4] sm:$0xf]
  %v273 = vld [vmem:[%s1 + $0x1c8] sm:$0xf]
  %v274 = vld [vmem:[%s1 + $0x1cc] sm:$0xf]
  %v275 = vld [vmem:[%s1 + $0x1d0] sm:$0xf]
  %v276 = vld [vmem:[%s1 + $0x1d4] sm:$0xf]
  %v277 = vld [vmem:[%s1 + $0x1d8] sm:$0xf]
  %v278 = vld [vmem:[%s1 + $0x1dc] sm:$0xf]
  %v279 = vld [vmem:[%s1 + $0x1e0] sm:$0xf]
  %v280 = vld [vmem:[%s1 + $0x1e4] sm:$0xf]
  %v281 = vld [vmem:[%s1 + $0x1e8] sm:$0xf]
  %v282 = vld [vmem:[%s1 + $0x1ec] sm:$0xf]
  %v283 = vld [vmem:[%s1 + $0x1f0] sm:$0xf]
  %v284 = vld [vmem:[%s1 + $0x1f4] sm:$0xf]
  %v285 = vld [vmem:[%s1 + $0x1f8] sm:$0xf]
  %v286 = vld [vmem:[%s1 + $0x1fc] sm:$0xf]
  %v287 = vld [vmem:[%s1 + $0x200] sm:$0xf]
  %v288 = vld [vmem:[%s1 + $0x204] sm:$0xf]
  %v289 = vld [vmem:[%s1 + $0x208] sm:$0xf]
  %v290 = vld [vmem:[%s1 + $0x20c] sm:$0xf]
  %v291 = vld [vmem:[%s1 + $0x210] sm:$0xf]
  %v292 = vld [vmem:[%s1 + $0x214] sm:$0xf]
  %v293 = vld [vmem:[%s1 + $0x218] sm:$0xf]
  %v294 = vld [vmem:[%s1 + $0x21c] sm:$0xf]
  %v295 = vld [vmem:[%s1 + $0x220] sm:$0xf]
  %v296 = vld [vmem:[%s1 + $0x224] sm:$0xf]
  %v297 = vld [vmem:[%s1 + $0x228] sm:$0xf]
  %v298 = vld [vmem:[%s1 + $0x22c] sm:$0xf]
  %v299 = vld [vmem:[%s1 + $0x230] sm:$0xf]
  %v300 = vld [vmem:[%s1 + $0x234] sm:$0xf]
  %v301 = vld [vmem:[%s1 + $0x238] sm:$0xf]
  %v302 = vld [vmem:[%s1 + $0x23c] sm:$0xf]
  %v303 = vld [vmem:[%s1 + $0x240] sm:$0xf]
  %v304 = vld [vmem:[%s1 + $0x244] sm:$0xf]
  %v305 = vld [vmem:[%s1 + $0x248] sm:$0xf]
  %v306 = vld [vmem:[%s1 + $0x24c] sm:$0xf]
  %v307 = vld [vmem:[%s1 + $0x250] sm:$0xf]
  %v308 = vld [vmem:[%s1 + $0x254] sm:$0xf]
  %v309 = vld [vmem:[%s1 + $0x258] sm:$0xf]
  %v310 = vld [vmem:[%s1 + $0x25c] sm:$0xf]
  %v311 = vld [vmem:[%s1 + $0x260] sm:$0xf]
  %v312 = vld [vmem:[%s1 + $0x264] sm:$0xf]
  %v313 = vld [vmem:[%s1 + $0x268] sm:$0xf]
  %v314 = vld [vmem:[%s1 + $0x26c] sm:$0xf]
  %v315 = vld [vmem:[%s1 + $0x270] sm:$0xf]
  %v316 = vld [vmem:[%s1 + $0x274] sm:$0xf]
  %v317 = vld [vmem:[%s1 + $0x278] sm:$0xf]
  %v318 = vld [vmem:[%s1 + $0x27c] sm:$0xf]
  %v319 = vld [vmem:[%s1 + $0x280] sm:$0xf]
  %v320 = vld [vmem:[%s1 + $0x284] sm:$0xf]
  %v321 = vld [vmem:[%s1 + $0x288] sm:$0xf]
  %v322 = vld [vmem:[%s1 + $0x28c] sm:$0xf]
  %v323 = vld [vmem:[%s1 + $0x290] sm:$0xf]
  %v324 = vld [vmem:[%s1 + $0x294] sm:$0xf]
  %v325 = vld [vmem:[%s1 + $0x298] sm:$0xf]
  %v326 = vld [vmem:[%s1 + $0x29c] sm:$0xf]
  %v327 = vld [vmem:[%s1 + $0x2a0] sm:$0xf]
  %v328 = vld [vmem:[%s1 + $0x2a4] sm:$0xf]
  %v329 = vld [vmem:[%s1 + $0x2a8] sm:$0xf]
  %v330 = vld [vmem:[%s1 + $0x2ac] sm:$0xf]
  %v331 = vld [vmem:[%s1 + $0x2b0] sm:$0xf]
  %v332 = vld [vmem:[%s1 + $0x2b4] sm:$0xf]
  %v333 = vld [vmem:[%s1 + $0x2b8] sm:$0xf]
  %v334 = vld [vmem:[%s1 + $0x2bc] sm:$0xf]
  %v335 = vld [vmem:[%s1 + $0x2c0] sm:$0xf]
  %v336 = vld [vmem:[%s1 + $0x2c4] sm:$0xf]
  %v337 = vld [vmem:[%s1 + $0x2c8] sm:$0xf]
  %v338 = vld [vmem:[%s1 + $0x2cc] sm:$0xf]
  %v339 = vld [vmem:[%s1 + $0x2d0] sm:$0xf]
  %v340 = vld [vmem:[%s1 + $0x2d4] sm:$0xf]
  %v341 = vld [vmem:[%s1 + $0x2d8] sm:$0xf]
  %v342 = vld [vmem:[%s1 + $0x2dc] sm:$0xf]
  %v343 = vld [vmem:[%s1 + $0x2e0] sm:$0xf]
  %v344 = vld [vmem:[%s1 + $0x2e4] sm:$0xf]
  %v345 = vld [vmem:[%s1 + $0x2e8] sm:$0xf]
  %v346 = vld [vmem:[%s1 + $0x2ec] sm:$0xf]
  %v347 = vld [vmem:[%s1 + $0x2f0] sm:$0xf]
  %v348 = vld [vmem:[%s1 + $0x2f4] sm:$0xf]
  %v349 = vld [vmem:[%s1 + $0x2f8] sm:$0xf]
  %v350 = vld [vmem:[%s1 + $0x2fc] sm:$0xf]
  %v351 = vld [vmem:[%s1 + $0x300] sm:$0xf]
  %v352 = vld [vmem:[%s1 + $0x304] sm:$0xf]
  %v353 = vld [vmem:[%s1 + $0x308] sm:$0xf]
  %v354 = vld [vmem:[%s1 + $0x30c] sm:$0xf]
  %v355 = vld [vmem:[%s1 + $0x310] sm:$0xf]
  %v356 = vld [vmem:[%s1 + $0x314] sm:$0xf]
  %v357 = vld [vmem:[%s1 + $0x318] sm:$0xf]
  %v358 = vld [vmem:[%s1 + $0x31c] sm:$0xf]
  %v359 = vld [vmem:[%s1 + $0x320] sm:$0xf]
  %v360 = vld [vmem:[%s1 + $0x324] sm:$0xf]
  %v361 = vld [vmem:[%s1 + $0x328] sm:$0xf]
  %v362 = vld [vmem:[%s1 + $0x32c] sm:$0xf]
  %v363 = vld [vmem:[%s1 + $0x330] sm:$0xf]
  %v364 = vld [vmem:[%s1 + $0x334] sm:$0xf]
  %v365 = vld [vmem:[%s1 + $0x338] sm:$0xf]
  %v366 = vld [vmem:[%s1 + $0x33c] sm:$0xf]
  %v367 = vld [vmem:[%s1 + $0x340] sm:$0xf]
  %v368 = vld [vmem:[%s1 + $0x344] sm:$0xf]
  %v369 = vld [vmem:[%s1 + $0x348] sm:$0xf]
  %v370 = vld [vmem:[%s1 + $0x34c] sm:$0xf]
  %v371 = vld [vmem:[%s1 + $0x350] sm:$0xf]
  %v372 = vld [vmem:[%s1 + $0x354] sm:$0xf]
  %v373 = vld [vmem:[%s1 + $0x358] sm:$0xf]
  %v374 = vld [vmem:[%s1 + $0x35c] sm:$0xf]
  %v375 = vld [vmem:[%s1 + $0x360] sm:$0xf]
  %v376 = vld [vmem:[%s1 + $0x364] sm:$0xf]
  %v377 = vld [vmem:[%s1 + $0x368] sm:$0xf]
  %v378 = vld [vmem:[%s1 + $0x36c] sm:$0xf]
  %v379 = vld [vmem:[%s1 + $0x370] sm:$0xf]
  %v380 = vld [vmem:[%s1 + $0x374] sm:$0xf]
  %v381 = vld [vmem:[%s1 + $0x378] sm:$0xf]
  %v382 = vld [vmem:[%s1 + $0x37c] sm:$0xf]
  %v383 = vld [vmem:[%s1 + $0x380] sm:$0xf]
  %v384 = vld [vmem:[%s1 + $0x384] sm:$0xf]
  %v385 = vld [vmem:[%s1 + $0x388] sm:$0xf]
  %v386 = vld [vmem:[%s1 + $0x38c] sm:$0xf]
  %v387 = vld [vmem:[%s1 + $0x390] sm:$0xf]
  %v388 = vld [vmem:[%s1 + $0x394] sm:$0xf]
  %v389 = vld [vmem:[%s1 + $0x398] sm:$0xf]
  %v390 = vld [vmem:[%s1 + $0x39c] sm:$0xf]
  %v391 = vld [vmem:[%s1 + $0x3a0] sm:$0xf]
  %v392 = vld [vmem:[%s1 + $0x3a4] sm:$0xf]
  %v393 = vld [vmem:[%s1 + $0x3a8] sm:$0xf]
  %v394 = vld [vmem:[%s1 + $0x3ac] sm:$0xf]
  %v395 = vld [vmem:[%s1 + $0x3b0] sm:$0xf]
  %v396 = vld [vmem:[%s1 + $0x3b4] sm:$0xf]
  %v397 = vld [vmem:[%s1 + $0x3b8] sm:$0xf]
  %v398 = vld [vmem:[%s1 + $0x3bc] sm:$0xf]
  %v399 = vld [vmem:[%s1 + $0x3c0] sm:$0xf]
  %v400 = vld [vmem:[%s1 + $0x3c4] sm:$0xf]
  %v401 = vld [vmem:[%s1 + $0x3c8] sm:$0xf]
  %v402 = vld [vmem:[%s1 + $0x3cc] sm:$0xf]
  %v403 = vld [vmem:[%s1 + $0x3d0] sm:$0xf]
  %v404 = vld [vmem:[%s1 + $0x3d4] sm:$0xf]
  %v405 = vld [vmem:[%s1 + $0x3d8] sm:$0xf]
  %v406 = vld [vmem:[%s1 + $0x3dc] sm:$0xf]
  %v407 = vld [vmem:[%s1 + $0x3e0] sm:$0xf]
  %v408 = vld [vmem:[%s1 + $0x3e4] sm:$0xf]
  %v409 = vld [vmem:[%s1 + $0x3e8] sm:$0xf]
  %v410 = vld [vmem:[%s1 + $0x3ec] sm:$0xf]
  %v411 = vld [vmem:[%s1 + $0x3f0] sm:$0xf]
  %v412 = vld [vmem:[%s1 + $0x3f4] sm:$0xf]
  %v413 = vld [vmem:[%s1 + $0x3f8] sm:$0xf]
  %v414 = vld [vmem:[%s1 + $0x3fc] sm:$0xf]
  %v415 = vld [vmem:[%s1 + $0x400] sm:$0xf]
  %v416 = vld [vmem:[%s1 + $0x404] sm:$0xf]
  %v417 = vld [vmem:[%s1 + $0x408] sm:$0xf]
  %v418 = vld [vmem:[%s1 + $0x40c] sm:$0xf]
  %v419 = vld [vmem:[%s1 + $0x410] sm:$0xf]
  %v420 = vld [vmem:[%s1 + $0x414] sm:$0xf]
  %v421 = vld [vmem:[%s1 + $0x418] sm:$0xf]
  %v422 = vld [vmem:[%s1 + $0x41c] sm:$0xf]
  %v423 = vld [vmem:[%s1 + $0x420] sm:$0xf]
  %v424 = vld [vmem:[%s1 + $0x424] sm:$0xf]
  %v425 = vld [vmem:[%s1 + $0x428] sm:$0xf]
  %v426 = vld [vmem:[%s1 + $0x42c] sm:$0xf]
  %v427 = vld [vmem:[%s1 + $0x430] sm:$0xf]
  %v428 = vld [vmem:[%s1 + $0x434] sm:$0xf]
  %v429 = vld [vmem:[%s1 + $0x438] sm:$0xf]
  %v430 = vld [vmem:[%s1 + $0x43c] sm:$0xf]
  %v431 = vld [vmem:[%s1 + $0x440] sm:$0xf]
  %v432 = vld [vmem:[%s1 + $0x444] sm:$0xf]
  %v433 = vld [vmem:[%s1 + $0x448] sm:$0xf]
  %v434 = vld [vmem:[%s1 + $0x44c] sm:$0xf]
  %v435 = vld [vmem:[%s1 + $0x450] sm:$0xf]
  %v436 = vld [vmem:[%s1 + $0x454] sm:$0xf]
  %v437 = vld [vmem:[%s1 + $0x458] sm:$0xf]
  %v438 = vld [vmem:[%s1 + $0x45c] sm:$0xf]
  %v439 = vld [vmem:[%s1 + $0x460] sm:$0xf]
  %v440 = vld [vmem:[%s1 + $0x464] sm:$0xf]
  %v441 = vld [vmem:[%s1 + $0x468] sm:$0xf]
  %v442 = vld [vmem:[%s1 + $0x46c] sm:$0xf]
  %v443 = vld [vmem:[%s1 + $0x470] sm:$0xf]
  %v444 = vld [vmem:[%s1 + $0x474] sm:$0xf]
  %v445 = vld [vmem:[%s1 + $0x478] sm:$0xf]
  %v446 = vld [vmem:[%s1 + $0x47c] sm:$0xf]
  %v447 = vld [vmem:[%s2] sm:$0xff]
  %v448 = vld [vmem:[%s2 + $0x8] sm:$0xff]
  %v449 = vld [vmem:[%s2 + $0x10] sm:$0xff]
  %v450 = vld [vmem:[%s2 + $0x18] sm:$0xff]
  %v451 = vld [vmem:[%s2 + $0x20] sm:$0xff]
  %v452 = vld [vmem:[%s2 + $0x28] sm:$0xff]
  %v453 = vld [vmem:[%s2 + $0x30] sm:$0xff]
  %v454 = vld [vmem:[%s2 + $0x38] sm:$0xff]
  %v455 = vld [vmem:[%s2 + $0x40] sm:$0xff]
  %v456 = vld [vmem:[%s2 + $0x48] sm:$0xff]
  %v457 = vld [vmem:[%s2 + $0x50] sm:$0xff]
  %v458 = vld [vmem:[%s2 + $0x58] sm:$0xff]
  %v459 = vld [vmem:[%s2 + $0x60] sm:$0xff]
  %v460 = vld [vmem:[%s2 + $0x68] sm:$0xff]
  %v461 = vld [vmem:[%s2 + $0x70] sm:$0xff]
  %v462 = vld [vmem:[%s2 + $0x78] sm:$0xff]
  %464 = vset.pattern.permute.xlu0 0
  %465 = vperm.xlu0 %464, %v447
  %v466 = vpop.permute.xlu0 %465
  %469 = vset.pattern.permute.xlu0 0
  %470 = vperm.xlu0 %469, %v448
  %v471 = vpop.permute.xlu0 %470
  %474 = vset.pattern.permute.xlu0 0
  %475 = vperm.xlu0 %474, %v449
  %v476 = vpop.permute.xlu0 %475
  %479 = vset.pattern.permute.xlu0 0
  %480 = vperm.xlu0 %479, %v450
  %v481 = vpop.permute.xlu0 %480
  %484 = vset.pattern.permute.xlu0 0
  %485 = vperm.xlu0 %484, %v451
  %v486 = vpop.permute.xlu0 %485
  %489 = vset.pattern.permute.xlu0 0
  %490 = vperm.xlu0 %489, %v452
  %v491 = vpop.permute.xlu0 %490
  %494 = vset.pattern.permute.xlu0 0
  %495 = vperm.xlu0 %494, %v453
  %v496 = vpop.permute.xlu0 %495
  %499 = vset.pattern.permute.xlu0 0
  %500 = vperm.xlu0 %499, %v454
  %v501 = vpop.permute.xlu0 %500
  %504 = vset.pattern.permute.xlu0 0
  %505 = vperm.xlu0 %504, %v455
  %v506 = vpop.permute.xlu0 %505
  %509 = vset.pattern.permute.xlu0 0
  %510 = vperm.xlu0 %509, %v456
  %v511 = vpop.permute.xlu0 %510
  %514 = vset.pattern.permute.xlu0 0
  %515 = vperm.xlu0 %514, %v457
  %v516 = vpop.permute.xlu0 %515
  %519 = vset.pattern.permute.xlu0 0
  %520 = vperm.xlu0 %519, %v458
  %v521 = vpop.permute.xlu0 %520
  %524 = vset.pattern.permute.xlu0 0
  %525 = vperm.xlu0 %524, %v459
  %v526 = vpop.permute.xlu0 %525
  %529 = vset.pattern.permute.xlu0 0
  %530 = vperm.xlu0 %529, %v460
  %v531 = vpop.permute.xlu0 %530
  %534 = vset.pattern.permute.xlu0 0
  %535 = vperm.xlu0 %534, %v461
  %v536 = vpop.permute.xlu0 %535
  %539 = vset.pattern.permute.xlu0 0
  %540 = vperm.xlu0 %539, %v462
  %v541 = vpop.permute.xlu0 %540
  %v687 = vunpack.c.l.b16 %v15
  %v688 = vunpack.c.h.b16 %v15
  %v689 = vunpack.c.l.b16 %v16
  %v690 = vunpack.c.h.b16 %v16
  %v691 = vunpack.c.l.b16 %v17
  %v692 = vunpack.c.h.b16 %v17
  %v693 = vunpack.c.l.b16 %v18
  %v694 = vunpack.c.h.b16 %v18
  %v695 = vunpack.c.l.b16 %v19
  %v696 = vunpack.c.h.b16 %v19
  %v697 = vunpack.c.l.b16 %v20
  %v698 = vunpack.c.h.b16 %v20
  %v699 = vunpack.c.l.b16 %v21
  %v700 = vunpack.c.h.b16 %v21
  %v701 = vunpack.c.l.b16 %v22
  %v702 = vunpack.c.h.b16 %v22
  %v703 = vunpack.c.l.b16 %v23
  %v704 = vunpack.c.h.b16 %v23
  %v705 = vunpack.c.l.b16 %v24
  %v706 = vunpack.c.h.b16 %v24
  %v707 = vunpack.c.l.b16 %v25
  %v708 = vunpack.c.h.b16 %v25
  %v709 = vunpack.c.l.b16 %v26
  %v710 = vunpack.c.h.b16 %v26
  %v711 = vunpack.c.l.b16 %v27
  %v712 = vunpack.c.h.b16 %v27
  %v713 = vunpack.c.l.b16 %v28
  %v714 = vunpack.c.h.b16 %v28
  %v715 = vunpack.c.l.b16 %v29
  %v716 = vunpack.c.h.b16 %v29
  %v717 = vunpack.c.l.b16 %v30
  %v718 = vunpack.c.h.b16 %v30
  %v719 = vunpack.c.l.b16 %v31
  %v720 = vunpack.c.h.b16 %v31
  %v721 = vunpack.c.l.b16 %v32
  %v722 = vunpack.c.h.b16 %v32
  %v723 = vunpack.c.l.b16 %v33
  %v724 = vunpack.c.h.b16 %v33
  %v725 = vunpack.c.l.b16 %v34
  %v726 = vunpack.c.h.b16 %v34
  %v727 = vunpack.c.l.b16 %v35
  %v728 = vunpack.c.h.b16 %v35
  %v729 = vunpack.c.l.b16 %v36
  %v730 = vunpack.c.h.b16 %v36
  %v731 = vunpack.c.l.b16 %v37
  %v732 = vunpack.c.h.b16 %v37
  %v733 = vunpack.c.l.b16 %v38
  %v734 = vunpack.c.h.b16 %v38
  %v735 = vunpack.c.l.b16 %v39
  %v736 = vunpack.c.h.b16 %v39
  %v737 = vunpack.c.l.b16 %v40
  %v738 = vunpack.c.h.b16 %v40
  %v739 = vunpack.c.l.b16 %v41
  %v740 = vunpack.c.h.b16 %v41
  %v741 = vunpack.c.l.b16 %v42
  %v742 = vunpack.c.h.b16 %v42
  %v743 = vunpack.c.l.b16 %v43
  %v744 = vunpack.c.h.b16 %v43
  %v745 = vunpack.c.l.b16 %v44
  %v746 = vunpack.c.h.b16 %v44
  %v747 = vunpack.c.l.b16 %v45
  %v748 = vunpack.c.h.b16 %v45
  %v749 = vunpack.c.l.b16 %v46
  %v750 = vunpack.c.h.b16 %v46
  %v751 = vunpack.c.l.b16 %v47
  %v752 = vunpack.c.h.b16 %v47
  %v753 = vunpack.c.l.b16 %v48
  %v754 = vunpack.c.h.b16 %v48
  %v755 = vunpack.c.l.b16 %v49
  %v756 = vunpack.c.h.b16 %v49
  %v757 = vunpack.c.l.b16 %v50
  %v758 = vunpack.c.h.b16 %v50
  %v759 = vunpack.c.l.b16 %v51
  %v760 = vunpack.c.h.b16 %v51
  %v761 = vunpack.c.l.b16 %v52
  %v762 = vunpack.c.h.b16 %v52
  %v763 = vunpack.c.l.b16 %v53
  %v764 = vunpack.c.h.b16 %v53
  %v765 = vunpack.c.l.b16 %v54
  %v766 = vunpack.c.h.b16 %v54
  %v767 = vunpack.c.l.b16 %v55
  %v768 = vunpack.c.h.b16 %v55
  %v769 = vunpack.c.l.b16 %v56
  %v770 = vunpack.c.h.b16 %v56
  %v771 = vunpack.c.l.b16 %v57
  %v772 = vunpack.c.h.b16 %v57
  %v773 = vunpack.c.l.b16 %v58
  %v774 = vunpack.c.h.b16 %v58
  %v775 = vunpack.c.l.b16 %v59
  %v776 = vunpack.c.h.b16 %v59
  %v777 = vunpack.c.l.b16 %v60
  %v778 = vunpack.c.h.b16 %v60
  %v779 = vunpack.c.l.b16 %v61
  %v780 = vunpack.c.h.b16 %v61
  %v781 = vunpack.c.l.b16 %v62
  %v782 = vunpack.c.h.b16 %v62
  %v783 = vunpack.c.l.b16 %v63
  %v784 = vunpack.c.h.b16 %v63
  %v785 = vunpack.c.l.b16 %v64
  %v786 = vunpack.c.h.b16 %v64
  %v787 = vunpack.c.l.b16 %v65
  %v788 = vunpack.c.h.b16 %v65
  %v789 = vunpack.c.l.b16 %v66
  %v790 = vunpack.c.h.b16 %v66
  %v791 = vunpack.c.l.b16 %v67
  %v792 = vunpack.c.h.b16 %v67
  %v793 = vunpack.c.l.b16 %v68
  %v794 = vunpack.c.h.b16 %v68
  %v795 = vunpack.c.l.b16 %v69
  %v796 = vunpack.c.h.b16 %v69
  %v797 = vunpack.c.l.b16 %v70
  %v798 = vunpack.c.h.b16 %v70
  %v799 = vunpack.c.l.b16 %v71
  %v800 = vunpack.c.h.b16 %v71
  %v801 = vunpack.c.l.b16 %v72
  %v802 = vunpack.c.h.b16 %v72
  %v803 = vunpack.c.l.b16 %v73
  %v804 = vunpack.c.h.b16 %v73
  %v805 = vunpack.c.l.b16 %v74
  %v806 = vunpack.c.h.b16 %v74
  %v807 = vunpack.c.l.b16 %v75
  %v808 = vunpack.c.h.b16 %v75
  %v809 = vunpack.c.l.b16 %v76
  %v810 = vunpack.c.h.b16 %v76
  %v811 = vunpack.c.l.b16 %v77
  %v812 = vunpack.c.h.b16 %v77
  %v813 = vunpack.c.l.b16 %v78
  %v814 = vunpack.c.h.b16 %v78
  %v815 = vunpack.c.l.b16 %v79
  %v816 = vunpack.c.h.b16 %v79
  %v817 = vunpack.c.l.b16 %v80
  %v818 = vunpack.c.h.b16 %v80
  %v819 = vunpack.c.l.b16 %v81
  %v820 = vunpack.c.h.b16 %v81
  %v821 = vunpack.c.l.b16 %v82
  %v822 = vunpack.c.h.b16 %v82
  %v823 = vunpack.c.l.b16 %v83
  %v824 = vunpack.c.h.b16 %v83
  %v825 = vunpack.c.l.b16 %v84
  %v826 = vunpack.c.h.b16 %v84
  %v827 = vunpack.c.l.b16 %v85
  %v828 = vunpack.c.h.b16 %v85
  %v829 = vunpack.c.l.b16 %v86
  %v830 = vunpack.c.h.b16 %v86
  %v831 = vunpack.c.l.b16 %v87
  %v832 = vunpack.c.h.b16 %v87
  %v833 = vunpack.c.l.b16 %v88
  %v834 = vunpack.c.h.b16 %v88
  %v835 = vunpack.c.l.b16 %v89
  %v836 = vunpack.c.h.b16 %v89
  %v837 = vunpack.c.l.b16 %v90
  %v838 = vunpack.c.h.b16 %v90
  %v839 = vunpack.c.l.b16 %v91
  %v840 = vunpack.c.h.b16 %v91
  %v841 = vunpack.c.l.b16 %v92
  %v842 = vunpack.c.h.b16 %v92
  %v843 = vunpack.c.l.b16 %v93
  %v844 = vunpack.c.h.b16 %v93
  %v845 = vunpack.c.l.b16 %v94
  %v846 = vunpack.c.h.b16 %v94
  %v847 = vunpack.c.l.b16 %v95
  %v848 = vunpack.c.h.b16 %v95
  %v849 = vunpack.c.l.b16 %v96
  %v850 = vunpack.c.h.b16 %v96
  %v851 = vunpack.c.l.b16 %v97
  %v852 = vunpack.c.h.b16 %v97
  %v853 = vunpack.c.l.b16 %v98
  %v854 = vunpack.c.h.b16 %v98
  %v855 = vunpack.c.l.b16 %v99
  %v856 = vunpack.c.h.b16 %v99
  %v857 = vunpack.c.l.b16 %v100
  %v858 = vunpack.c.h.b16 %v100
  %v859 = vunpack.c.l.b16 %v101
  %v860 = vunpack.c.h.b16 %v101
  %v861 = vunpack.c.l.b16 %v102
  %v862 = vunpack.c.h.b16 %v102
  %v863 = vunpack.c.l.b16 %v103
  %v864 = vunpack.c.h.b16 %v103
  %v865 = vunpack.c.l.b16 %v104
  %v866 = vunpack.c.h.b16 %v104
  %v867 = vunpack.c.l.b16 %v105
  %v868 = vunpack.c.h.b16 %v105
  %v869 = vunpack.c.l.b16 %v106
  %v870 = vunpack.c.h.b16 %v106
  %v871 = vunpack.c.l.b16 %v107
  %v872 = vunpack.c.h.b16 %v107
  %v873 = vunpack.c.l.b16 %v108
  %v874 = vunpack.c.h.b16 %v108
  %v875 = vunpack.c.l.b16 %v109
  %v876 = vunpack.c.h.b16 %v109
  %v877 = vunpack.c.l.b16 %v110
  %v878 = vunpack.c.h.b16 %v110
  %v879 = vunpack.c.l.b16 %v111
  %v880 = vunpack.c.h.b16 %v111
  %v881 = vunpack.c.l.b16 %v112
  %v882 = vunpack.c.h.b16 %v112
  %v883 = vunpack.c.l.b16 %v113
  %v884 = vunpack.c.h.b16 %v113
  %v885 = vunpack.c.l.b16 %v114
  %v886 = vunpack.c.h.b16 %v114
  %v887 = vunpack.c.l.b16 %v115
  %v888 = vunpack.c.h.b16 %v115
  %v889 = vunpack.c.l.b16 %v116
  %v890 = vunpack.c.h.b16 %v116
  %v891 = vunpack.c.l.b16 %v117
  %v892 = vunpack.c.h.b16 %v117
  %v893 = vunpack.c.l.b16 %v118
  %v894 = vunpack.c.h.b16 %v118
  %v895 = vunpack.c.l.b16 %v119
  %v896 = vunpack.c.h.b16 %v119
  %v897 = vunpack.c.l.b16 %v120
  %v898 = vunpack.c.h.b16 %v120
  %v899 = vunpack.c.l.b16 %v121
  %v900 = vunpack.c.h.b16 %v121
  %v901 = vunpack.c.l.b16 %v122
  %v902 = vunpack.c.h.b16 %v122
  %v903 = vunpack.c.l.b16 %v123
  %v904 = vunpack.c.h.b16 %v123
  %v905 = vunpack.c.l.b16 %v124
  %v906 = vunpack.c.h.b16 %v124
  %v907 = vunpack.c.l.b16 %v125
  %v908 = vunpack.c.h.b16 %v125
  %v909 = vunpack.c.l.b16 %v126
  %v910 = vunpack.c.h.b16 %v126
  %v911 = vunpack.c.l.b16 %v127
  %v912 = vunpack.c.h.b16 %v127
  %v913 = vunpack.c.l.b16 %v128
  %v914 = vunpack.c.h.b16 %v128
  %v915 = vunpack.c.l.b16 %v129
  %v916 = vunpack.c.h.b16 %v129
  %v917 = vunpack.c.l.b16 %v130
  %v918 = vunpack.c.h.b16 %v130
  %v919 = vunpack.c.l.b16 %v131
  %v920 = vunpack.c.h.b16 %v131
  %v921 = vunpack.c.l.b16 %v132
  %v922 = vunpack.c.h.b16 %v132
  %v923 = vunpack.c.l.b16 %v133
  %v924 = vunpack.c.h.b16 %v133
  %v925 = vunpack.c.l.b16 %v134
  %v926 = vunpack.c.h.b16 %v134
  %v927 = vunpack.c.l.b16 %v135
  %v928 = vunpack.c.h.b16 %v135
  %v929 = vunpack.c.l.b16 %v136
  %v930 = vunpack.c.h.b16 %v136
  %v931 = vunpack.c.l.b16 %v137
  %v932 = vunpack.c.h.b16 %v137
  %v933 = vunpack.c.l.b16 %v138
  %v934 = vunpack.c.h.b16 %v138
  %v935 = vunpack.c.l.b16 %v139
  %v936 = vunpack.c.h.b16 %v139
  %v937 = vunpack.c.l.b16 %v140
  %v938 = vunpack.c.h.b16 %v140
  %v939 = vunpack.c.l.b16 %v141
  %v940 = vunpack.c.h.b16 %v141
  %v941 = vunpack.c.l.b16 %v142
  %v942 = vunpack.c.h.b16 %v142
  %v943 = vunpack.c.l.b16 %v143
  %v944 = vunpack.c.h.b16 %v143
  %v945 = vunpack.c.l.b16 %v144
  %v946 = vunpack.c.h.b16 %v144
  %v947 = vunpack.c.l.b16 %v145
  %v948 = vunpack.c.h.b16 %v145
  %v949 = vunpack.c.l.b16 %v146
  %v950 = vunpack.c.h.b16 %v146
  %v951 = vunpack.c.l.b16 %v147
  %v952 = vunpack.c.h.b16 %v147
  %v953 = vunpack.c.l.b16 %v148
  %v954 = vunpack.c.h.b16 %v148
  %v955 = vunpack.c.l.b16 %v149
  %v956 = vunpack.c.h.b16 %v149
  %v957 = vunpack.c.l.b16 %v150
  %v958 = vunpack.c.h.b16 %v150
  %v959 = vunpack.c.l.b16 %v151
  %v960 = vunpack.c.h.b16 %v151
  %v961 = vunpack.c.l.b16 %v152
  %v962 = vunpack.c.h.b16 %v152
  %v963 = vunpack.c.l.b16 %v153
  %v964 = vunpack.c.h.b16 %v153
  %v965 = vunpack.c.l.b16 %v154
  %v966 = vunpack.c.h.b16 %v154
  %v967 = vunpack.c.l.b16 %v155
  %v968 = vunpack.c.h.b16 %v155
  %v969 = vunpack.c.l.b16 %v156
  %v970 = vunpack.c.h.b16 %v156
  %v971 = vunpack.c.l.b16 %v157
  %v972 = vunpack.c.h.b16 %v157
  %v973 = vunpack.c.l.b16 %v158
  %v974 = vunpack.c.h.b16 %v158
  %v975 = vpack.c.b16 %v705, %v687
  %v976 = vpack.c.b16 %v706, %v688
  %v977 = vpack.c.b16 %v707, %v689
  %v978 = vpack.c.b16 %v708, %v690
  %v979 = vpack.c.b16 %v709, %v691
  %v980 = vpack.c.b16 %v710, %v692
  %v981 = vpack.c.b16 %v711, %v693
  %v982 = vpack.c.b16 %v712, %v694
  %v983 = vpack.c.b16 %v713, %v695
  %v984 = vpack.c.b16 %v714, %v696
  %v985 = vpack.c.b16 %v715, %v697
  %v986 = vpack.c.b16 %v716, %v698
  %v987 = vpack.c.b16 %v717, %v699
  %v988 = vpack.c.b16 %v718, %v700
  %v989 = vpack.c.b16 %v719, %v701
  %v990 = vpack.c.b16 %v720, %v702
  %v991 = vpack.c.b16 %v721, %v703
  %v992 = vpack.c.b16 %v722, %v704
  %v993 = vpack.c.b16 %v741, %v723
  %v994 = vpack.c.b16 %v742, %v724
  %v995 = vpack.c.b16 %v743, %v725
  %v996 = vpack.c.b16 %v744, %v726
  %v997 = vpack.c.b16 %v745, %v727
  %v998 = vpack.c.b16 %v746, %v728
  %v999 = vpack.c.b16 %v747, %v729
  %v1000 = vpack.c.b16 %v748, %v730
  %v1001 = vpack.c.b16 %v749, %v731
  %v1002 = vpack.c.b16 %v750, %v732
  %v1003 = vpack.c.b16 %v751, %v733
  %v1004 = vpack.c.b16 %v752, %v734
  %v1005 = vpack.c.b16 %v753, %v735
  %v1006 = vpack.c.b16 %v754, %v736
  %v1007 = vpack.c.b16 %v755, %v737
  %v1008 = vpack.c.b16 %v756, %v738
  %v1009 = vpack.c.b16 %v757, %v739
  %v1010 = vpack.c.b16 %v758, %v740
  %v1011 = vpack.c.b16 %v777, %v759
  %v1012 = vpack.c.b16 %v778, %v760
  %v1013 = vpack.c.b16 %v779, %v761
  %v1014 = vpack.c.b16 %v780, %v762
  %v1015 = vpack.c.b16 %v781, %v763
  %v1016 = vpack.c.b16 %v782, %v764
  %v1017 = vpack.c.b16 %v783, %v765
  %v1018 = vpack.c.b16 %v784, %v766
  %v1019 = vpack.c.b16 %v785, %v767
  %v1020 = vpack.c.b16 %v786, %v768
  %v1021 = vpack.c.b16 %v787, %v769
  %v1022 = vpack.c.b16 %v788, %v770
  %v1023 = vpack.c.b16 %v789, %v771
  %v1024 = vpack.c.b16 %v790, %v772
  %v1025 = vpack.c.b16 %v791, %v773
  %v1026 = vpack.c.b16 %v792, %v774
  %v1027 = vpack.c.b16 %v793, %v775
  %v1028 = vpack.c.b16 %v794, %v776
  %v1029 = vpack.c.b16 %v813, %v795
  %v1030 = vpack.c.b16 %v814, %v796
  %v1031 = vpack.c.b16 %v815, %v797
  %v1032 = vpack.c.b16 %v816, %v798
  %v1033 = vpack.c.b16 %v817, %v799
  %v1034 = vpack.c.b16 %v818, %v800
  %v1035 = vpack.c.b16 %v819, %v801
  %v1036 = vpack.c.b16 %v820, %v802
  %v1037 = vpack.c.b16 %v821, %v803
  %v1038 = vpack.c.b16 %v822, %v804
  %v1039 = vpack.c.b16 %v823, %v805
  %v1040 = vpack.c.b16 %v824, %v806
  %v1041 = vpack.c.b16 %v825, %v807
  %v1042 = vpack.c.b16 %v826, %v808
  %v1043 = vpack.c.b16 %v827, %v809
  %v1044 = vpack.c.b16 %v828, %v810
  %v1045 = vpack.c.b16 %v829, %v811
  %v1046 = vpack.c.b16 %v830, %v812
  %v1047 = vpack.c.b16 %v849, %v831
  %v1048 = vpack.c.b16 %v850, %v832
  %v1049 = vpack.c.b16 %v851, %v833
  %v1050 = vpack.c.b16 %v852, %v834
  %v1051 = vpack.c.b16 %v853, %v835
  %v1052 = vpack.c.b16 %v854, %v836
  %v1053 = vpack.c.b16 %v855, %v837
  %v1054 = vpack.c.b16 %v856, %v838
  %v1055 = vpack.c.b16 %v857, %v839
  %v1056 = vpack.c.b16 %v858, %v840
  %v1057 = vpack.c.b16 %v859, %v841
  %v1058 = vpack.c.b16 %v860, %v842
  %v1059 = vpack.c.b16 %v861, %v843
  %v1060 = vpack.c.b16 %v862, %v844
  %v1061 = vpack.c.b16 %v863, %v845
  %v1062 = vpack.c.b16 %v864, %v846
  %v1063 = vpack.c.b16 %v865, %v847
  %v1064 = vpack.c.b16 %v866, %v848
  %v1065 = vpack.c.b16 %v885, %v867
  %v1066 = vpack.c.b16 %v886, %v868
  %v1067 = vpack.c.b16 %v887, %v869
  %v1068 = vpack.c.b16 %v888, %v870
  %v1069 = vpack.c.b16 %v889, %v871
  %v1070 = vpack.c.b16 %v890, %v872
  %v1071 = vpack.c.b16 %v891, %v873
  %v1072 = vpack.c.b16 %v892, %v874
  %v1073 = vpack.c.b16 %v893, %v875
  %v1074 = vpack.c.b16 %v894, %v876
  %v1075 = vpack.c.b16 %v895, %v877
  %v1076 = vpack.c.b16 %v896, %v878
  %v1077 = vpack.c.b16 %v897, %v879
  %v1078 = vpack.c.b16 %v898, %v880
  %v1079 = vpack.c.b16 %v899, %v881
  %v1080 = vpack.c.b16 %v900, %v882
  %v1081 = vpack.c.b16 %v901, %v883
  %v1082 = vpack.c.b16 %v902, %v884
  %v1083 = vpack.c.b16 %v921, %v903
  %v1084 = vpack.c.b16 %v922, %v904
  %v1085 = vpack.c.b16 %v923, %v905
  %v1086 = vpack.c.b16 %v924, %v906
  %v1087 = vpack.c.b16 %v925, %v907
  %v1088 = vpack.c.b16 %v926, %v908
  %v1089 = vpack.c.b16 %v927, %v909
  %v1090 = vpack.c.b16 %v928, %v910
  %v1091 = vpack.c.b16 %v929, %v911
  %v1092 = vpack.c.b16 %v930, %v912
  %v1093 = vpack.c.b16 %v931, %v913
  %v1094 = vpack.c.b16 %v932, %v914
  %v1095 = vpack.c.b16 %v933, %v915
  %v1096 = vpack.c.b16 %v934, %v916
  %v1097 = vpack.c.b16 %v935, %v917
  %v1098 = vpack.c.b16 %v936, %v918
  %v1099 = vpack.c.b16 %v937, %v919
  %v1100 = vpack.c.b16 %v938, %v920
  %v1101 = vpack.c.b16 %v957, %v939
  %v1102 = vpack.c.b16 %v958, %v940
  %v1103 = vpack.c.b16 %v959, %v941
  %v1104 = vpack.c.b16 %v960, %v942
  %v1105 = vpack.c.b16 %v961, %v943
  %v1106 = vpack.c.b16 %v962, %v944
  %v1107 = vpack.c.b16 %v963, %v945
  %v1108 = vpack.c.b16 %v964, %v946
  %v1109 = vpack.c.b16 %v965, %v947
  %v1110 = vpack.c.b16 %v966, %v948
  %v1111 = vpack.c.b16 %v967, %v949
  %v1112 = vpack.c.b16 %v968, %v950
  %v1113 = vpack.c.b16 %v969, %v951
  %v1114 = vpack.c.b16 %v970, %v952
  %v1115 = vpack.c.b16 %v971, %v953
  %v1116 = vpack.c.b16 %v972, %v954
  %v1117 = vpack.c.b16 %v973, %v955
  %v1118 = vpack.c.b16 %v974, %v956
  %v1551 = vunpack.c.l.b16 %v159
  %v1552 = vunpack.c.l.b16 %v160
  %v1553 = vunpack.c.l.b16 %v161
  %v1554 = vunpack.c.l.b16 %v162
  %v1555 = vunpack.c.l.b16 %v163
  %v1556 = vunpack.c.l.b16 %v164
  %v1557 = vunpack.c.l.b16 %v165
  %v1558 = vunpack.c.l.b16 %v166
  %v1559 = vunpack.c.l.b16 %v167
  %v1560 = vunpack.c.l.b16 %v168
  %v1561 = vunpack.c.l.b16 %v169
  %v1562 = vunpack.c.l.b16 %v170
  %v1563 = vunpack.c.l.b16 %v171
  %v1564 = vunpack.c.l.b16 %v172
  %v1565 = vunpack.c.l.b16 %v173
  %v1566 = vunpack.c.l.b16 %v174
  %v1567 = vunpack.c.l.b16 %v175
  %v1568 = vunpack.c.l.b16 %v176
  %v1569 = vunpack.c.l.b16 %v177
  %v1570 = vunpack.c.l.b16 %v178
  %v1571 = vunpack.c.l.b16 %v179
  %v1572 = vunpack.c.l.b16 %v180
  %v1573 = vunpack.c.l.b16 %v181
  %v1574 = vunpack.c.l.b16 %v182
  %v1575 = vunpack.c.l.b16 %v183
  %v1576 = vunpack.c.l.b16 %v184
  %v1577 = vunpack.c.l.b16 %v185
  %v1578 = vunpack.c.l.b16 %v186
  %v1579 = vunpack.c.l.b16 %v187
  %v1580 = vunpack.c.l.b16 %v188
  %v1581 = vunpack.c.l.b16 %v189
  %v1582 = vunpack.c.l.b16 %v190
  %v1583 = vunpack.c.l.b16 %v191
  %v1584 = vunpack.c.l.b16 %v192
  %v1585 = vunpack.c.l.b16 %v193
  %v1586 = vunpack.c.l.b16 %v194
  %v1587 = vunpack.c.l.b16 %v195
  %v1588 = vunpack.c.l.b16 %v196
  %v1589 = vunpack.c.l.b16 %v197
  %v1590 = vunpack.c.l.b16 %v198
  %v1591 = vunpack.c.l.b16 %v199
  %v1592 = vunpack.c.l.b16 %v200
  %v1593 = vunpack.c.l.b16 %v201
  %v1594 = vunpack.c.l.b16 %v202
  %v1595 = vunpack.c.l.b16 %v203
  %v1596 = vunpack.c.l.b16 %v204
  %v1597 = vunpack.c.l.b16 %v205
  %v1598 = vunpack.c.l.b16 %v206
  %v1599 = vunpack.c.l.b16 %v207
  %v1600 = vunpack.c.l.b16 %v208
  %v1601 = vunpack.c.l.b16 %v209
  %v1602 = vunpack.c.l.b16 %v210
  %v1603 = vunpack.c.l.b16 %v211
  %v1604 = vunpack.c.l.b16 %v212
  %v1605 = vunpack.c.l.b16 %v213
  %v1606 = vunpack.c.l.b16 %v214
  %v1607 = vunpack.c.l.b16 %v215
  %v1608 = vunpack.c.l.b16 %v216
  %v1609 = vunpack.c.l.b16 %v217
  %v1610 = vunpack.c.l.b16 %v218
  %v1611 = vunpack.c.l.b16 %v219
  %v1612 = vunpack.c.l.b16 %v220
  %v1613 = vunpack.c.l.b16 %v221
  %v1614 = vunpack.c.l.b16 %v222
  %v1615 = vunpack.c.l.b16 %v223
  %v1616 = vunpack.c.l.b16 %v224
  %v1617 = vunpack.c.l.b16 %v225
  %v1618 = vunpack.c.l.b16 %v226
  %v1619 = vunpack.c.l.b16 %v227
  %v1620 = vunpack.c.l.b16 %v228
  %v1621 = vunpack.c.l.b16 %v229
  %v1622 = vunpack.c.l.b16 %v230
  %v1623 = vunpack.c.l.b16 %v231
  %v1624 = vunpack.c.l.b16 %v232
  %v1625 = vunpack.c.l.b16 %v233
  %v1626 = vunpack.c.l.b16 %v234
  %v1627 = vunpack.c.l.b16 %v235
  %v1628 = vunpack.c.l.b16 %v236
  %v1629 = vunpack.c.l.b16 %v237
  %v1630 = vunpack.c.l.b16 %v238
  %v1631 = vunpack.c.l.b16 %v239
  %v1632 = vunpack.c.l.b16 %v240
  %v1633 = vunpack.c.l.b16 %v241
  %v1634 = vunpack.c.l.b16 %v242
  %v1635 = vunpack.c.l.b16 %v243
  %v1636 = vunpack.c.l.b16 %v244
  %v1637 = vunpack.c.l.b16 %v245
  %v1638 = vunpack.c.l.b16 %v246
  %v1639 = vunpack.c.l.b16 %v247
  %v1640 = vunpack.c.l.b16 %v248
  %v1641 = vunpack.c.l.b16 %v249
  %v1642 = vunpack.c.l.b16 %v250
  %v1643 = vunpack.c.l.b16 %v251
  %v1644 = vunpack.c.l.b16 %v252
  %v1645 = vunpack.c.l.b16 %v253
  %v1646 = vunpack.c.l.b16 %v254
  %v1647 = vunpack.c.l.b16 %v255
  %v1648 = vunpack.c.l.b16 %v256
  %v1649 = vunpack.c.l.b16 %v257
  %v1650 = vunpack.c.l.b16 %v258
  %v1651 = vunpack.c.l.b16 %v259
  %v1652 = vunpack.c.l.b16 %v260
  %v1653 = vunpack.c.l.b16 %v261
  %v1654 = vunpack.c.l.b16 %v262
  %v1655 = vunpack.c.l.b16 %v263
  %v1656 = vunpack.c.l.b16 %v264
  %v1657 = vunpack.c.l.b16 %v265
  %v1658 = vunpack.c.l.b16 %v266
  %v1659 = vunpack.c.l.b16 %v267
  %v1660 = vunpack.c.l.b16 %v268
  %v1661 = vunpack.c.l.b16 %v269
  %v1662 = vunpack.c.l.b16 %v270
  %v1663 = vunpack.c.l.b16 %v271
  %v1664 = vunpack.c.l.b16 %v272
  %v1665 = vunpack.c.l.b16 %v273
  %v1666 = vunpack.c.l.b16 %v274
  %v1667 = vunpack.c.l.b16 %v275
  %v1668 = vunpack.c.l.b16 %v276
  %v1669 = vunpack.c.l.b16 %v277
  %v1670 = vunpack.c.l.b16 %v278
  %v1671 = vunpack.c.l.b16 %v279
  %v1672 = vunpack.c.l.b16 %v280
  %v1673 = vunpack.c.l.b16 %v281
  %v1674 = vunpack.c.l.b16 %v282
  %v1675 = vunpack.c.l.b16 %v283
  %v1676 = vunpack.c.l.b16 %v284
  %v1677 = vunpack.c.l.b16 %v285
  %v1678 = vunpack.c.l.b16 %v286
  %v1679 = vunpack.c.l.b16 %v287
  %v1680 = vunpack.c.l.b16 %v288
  %v1681 = vunpack.c.l.b16 %v289
  %v1682 = vunpack.c.l.b16 %v290
  %v1683 = vunpack.c.l.b16 %v291
  %v1684 = vunpack.c.l.b16 %v292
  %v1685 = vunpack.c.l.b16 %v293
  %v1686 = vunpack.c.l.b16 %v294
  %v1687 = vunpack.c.l.b16 %v295
  %v1688 = vunpack.c.l.b16 %v296
  %v1689 = vunpack.c.l.b16 %v297
  %v1690 = vunpack.c.l.b16 %v298
  %v1691 = vunpack.c.l.b16 %v299
  %v1692 = vunpack.c.l.b16 %v300
  %v1693 = vunpack.c.l.b16 %v301
  %v1694 = vunpack.c.l.b16 %v302
  %v1695 = vunpack.c.l.b16 %v303
  %v1696 = vunpack.c.l.b16 %v304
  %v1697 = vunpack.c.l.b16 %v305
  %v1698 = vunpack.c.l.b16 %v306
  %v1699 = vunpack.c.l.b16 %v307
  %v1700 = vunpack.c.l.b16 %v308
  %v1701 = vunpack.c.l.b16 %v309
  %v1702 = vunpack.c.l.b16 %v310
  %v1703 = vunpack.c.l.b16 %v311
  %v1704 = vunpack.c.l.b16 %v312
  %v1705 = vunpack.c.l.b16 %v313
  %v1706 = vunpack.c.l.b16 %v314
  %v1707 = vunpack.c.l.b16 %v315
  %v1708 = vunpack.c.l.b16 %v316
  %v1709 = vunpack.c.l.b16 %v317
  %v1710 = vunpack.c.l.b16 %v318
  %v1711 = vunpack.c.l.b16 %v319
  %v1712 = vunpack.c.l.b16 %v320
  %v1713 = vunpack.c.l.b16 %v321
  %v1714 = vunpack.c.l.b16 %v322
  %v1715 = vunpack.c.l.b16 %v323
  %v1716 = vunpack.c.l.b16 %v324
  %v1717 = vunpack.c.l.b16 %v325
  %v1718 = vunpack.c.l.b16 %v326
  %v1719 = vunpack.c.l.b16 %v327
  %v1720 = vunpack.c.l.b16 %v328
  %v1721 = vunpack.c.l.b16 %v329
  %v1722 = vunpack.c.l.b16 %v330
  %v1723 = vunpack.c.l.b16 %v331
  %v1724 = vunpack.c.l.b16 %v332
  %v1725 = vunpack.c.l.b16 %v333
  %v1726 = vunpack.c.l.b16 %v334
  %v1727 = vunpack.c.l.b16 %v335
  %v1728 = vunpack.c.l.b16 %v336
  %v1729 = vunpack.c.l.b16 %v337
  %v1730 = vunpack.c.l.b16 %v338
  %v1731 = vunpack.c.l.b16 %v339
  %v1732 = vunpack.c.l.b16 %v340
  %v1733 = vunpack.c.l.b16 %v341
  %v1734 = vunpack.c.l.b16 %v342
  %v1735 = vunpack.c.l.b16 %v343
  %v1736 = vunpack.c.l.b16 %v344
  %v1737 = vunpack.c.l.b16 %v345
  %v1738 = vunpack.c.l.b16 %v346
  %v1739 = vunpack.c.l.b16 %v347
  %v1740 = vunpack.c.l.b16 %v348
  %v1741 = vunpack.c.l.b16 %v349
  %v1742 = vunpack.c.l.b16 %v350
  %v1743 = vunpack.c.l.b16 %v351
  %v1744 = vunpack.c.l.b16 %v352
  %v1745 = vunpack.c.l.b16 %v353
  %v1746 = vunpack.c.l.b16 %v354
  %v1747 = vunpack.c.l.b16 %v355
  %v1748 = vunpack.c.l.b16 %v356
  %v1749 = vunpack.c.l.b16 %v357
  %v1750 = vunpack.c.l.b16 %v358
  %v1751 = vunpack.c.l.b16 %v359
  %v1752 = vunpack.c.l.b16 %v360
  %v1753 = vunpack.c.l.b16 %v361
  %v1754 = vunpack.c.l.b16 %v362
  %v1755 = vunpack.c.l.b16 %v363
  %v1756 = vunpack.c.l.b16 %v364
  %v1757 = vunpack.c.l.b16 %v365
  %v1758 = vunpack.c.l.b16 %v366
  %v1759 = vunpack.c.l.b16 %v367
  %v1760 = vunpack.c.l.b16 %v368
  %v1761 = vunpack.c.l.b16 %v369
  %v1762 = vunpack.c.l.b16 %v370
  %v1763 = vunpack.c.l.b16 %v371
  %v1764 = vunpack.c.l.b16 %v372
  %v1765 = vunpack.c.l.b16 %v373
  %v1766 = vunpack.c.l.b16 %v374
  %v1767 = vunpack.c.l.b16 %v375
  %v1768 = vunpack.c.l.b16 %v376
  %v1769 = vunpack.c.l.b16 %v377
  %v1770 = vunpack.c.l.b16 %v378
  %v1771 = vunpack.c.l.b16 %v379
  %v1772 = vunpack.c.l.b16 %v380
  %v1773 = vunpack.c.l.b16 %v381
  %v1774 = vunpack.c.l.b16 %v382
  %v1775 = vunpack.c.l.b16 %v383
  %v1776 = vunpack.c.l.b16 %v384
  %v1777 = vunpack.c.l.b16 %v385
  %v1778 = vunpack.c.l.b16 %v386
  %v1779 = vunpack.c.l.b16 %v387
  %v1780 = vunpack.c.l.b16 %v388
  %v1781 = vunpack.c.l.b16 %v389
  %v1782 = vunpack.c.l.b16 %v390
  %v1783 = vunpack.c.l.b16 %v391
  %v1784 = vunpack.c.l.b16 %v392
  %v1785 = vunpack.c.l.b16 %v393
  %v1786 = vunpack.c.l.b16 %v394
  %v1787 = vunpack.c.l.b16 %v395
  %v1788 = vunpack.c.l.b16 %v396
  %v1789 = vunpack.c.l.b16 %v397
  %v1790 = vunpack.c.l.b16 %v398
  %v1791 = vunpack.c.l.b16 %v399
  %v1792 = vunpack.c.l.b16 %v400
  %v1793 = vunpack.c.l.b16 %v401
  %v1794 = vunpack.c.l.b16 %v402
  %v1795 = vunpack.c.l.b16 %v403
  %v1796 = vunpack.c.l.b16 %v404
  %v1797 = vunpack.c.l.b16 %v405
  %v1798 = vunpack.c.l.b16 %v406
  %v1799 = vunpack.c.l.b16 %v407
  %v1800 = vunpack.c.l.b16 %v408
  %v1801 = vunpack.c.l.b16 %v409
  %v1802 = vunpack.c.l.b16 %v410
  %v1803 = vunpack.c.l.b16 %v411
  %v1804 = vunpack.c.l.b16 %v412
  %v1805 = vunpack.c.l.b16 %v413
  %v1806 = vunpack.c.l.b16 %v414
  %v1807 = vunpack.c.l.b16 %v415
  %v1808 = vunpack.c.l.b16 %v416
  %v1809 = vunpack.c.l.b16 %v417
  %v1810 = vunpack.c.l.b16 %v418
  %v1811 = vunpack.c.l.b16 %v419
  %v1812 = vunpack.c.l.b16 %v420
  %v1813 = vunpack.c.l.b16 %v421
  %v1814 = vunpack.c.l.b16 %v422
  %v1815 = vunpack.c.l.b16 %v423
  %v1816 = vunpack.c.l.b16 %v424
  %v1817 = vunpack.c.l.b16 %v425
  %v1818 = vunpack.c.l.b16 %v426
  %v1819 = vunpack.c.l.b16 %v427
  %v1820 = vunpack.c.l.b16 %v428
  %v1821 = vunpack.c.l.b16 %v429
  %v1822 = vunpack.c.l.b16 %v430
  %v1823 = vunpack.c.l.b16 %v431
  %v1824 = vunpack.c.l.b16 %v432
  %v1825 = vunpack.c.l.b16 %v433
  %v1826 = vunpack.c.l.b16 %v434
  %v1827 = vunpack.c.l.b16 %v435
  %v1828 = vunpack.c.l.b16 %v436
  %v1829 = vunpack.c.l.b16 %v437
  %v1830 = vunpack.c.l.b16 %v438
  %v1831 = vunpack.c.l.b16 %v439
  %v1832 = vunpack.c.l.b16 %v440
  %v1833 = vunpack.c.l.b16 %v441
  %v1834 = vunpack.c.l.b16 %v442
  %v1835 = vunpack.c.l.b16 %v443
  %v1836 = vunpack.c.l.b16 %v444
  %v1837 = vunpack.c.l.b16 %v445
  %v1838 = vunpack.c.l.b16 %v446
  %v1839 = vpack.c.b16 %v1552, %v1551
  %v1840 = vpack.c.b16 %v1554, %v1553
  %v1841 = vpack.c.b16 %v1556, %v1555
  %v1842 = vpack.c.b16 %v1558, %v1557
  %v1843 = vpack.c.b16 %v1560, %v1559
  %v1844 = vpack.c.b16 %v1562, %v1561
  %v1845 = vpack.c.b16 %v1564, %v1563
  %v1846 = vpack.c.b16 %v1566, %v1565
  %v1847 = vpack.c.b16 %v1568, %v1567
  %v1848 = vpack.c.b16 %v1570, %v1569
  %v1849 = vpack.c.b16 %v1572, %v1571
  %v1850 = vpack.c.b16 %v1574, %v1573
  %v1851 = vpack.c.b16 %v1576, %v1575
  %v1852 = vpack.c.b16 %v1578, %v1577
  %v1853 = vpack.c.b16 %v1580, %v1579
  %v1854 = vpack.c.b16 %v1582, %v1581
  %v1855 = vpack.c.b16 %v1584, %v1583
  %v1856 = vpack.c.b16 %v1586, %v1585
  %v1857 = vpack.c.b16 %v1588, %v1587
  %v1858 = vpack.c.b16 %v1590, %v1589
  %v1859 = vpack.c.b16 %v1592, %v1591
  %v1860 = vpack.c.b16 %v1594, %v1593
  %v1861 = vpack.c.b16 %v1596, %v1595
  %v1862 = vpack.c.b16 %v1598, %v1597
  %v1863 = vpack.c.b16 %v1600, %v1599
  %v1864 = vpack.c.b16 %v1602, %v1601
  %v1865 = vpack.c.b16 %v1604, %v1603
  %v1866 = vpack.c.b16 %v1606, %v1605
  %v1867 = vpack.c.b16 %v1608, %v1607
  %v1868 = vpack.c.b16 %v1610, %v1609
  %v1869 = vpack.c.b16 %v1612, %v1611
  %v1870 = vpack.c.b16 %v1614, %v1613
  %v1871 = vpack.c.b16 %v1616, %v1615
  %v1872 = vpack.c.b16 %v1618, %v1617
  %v1873 = vpack.c.b16 %v1620, %v1619
  %v1874 = vpack.c.b16 %v1622, %v1621
  %v1875 = vpack.c.b16 %v1624, %v1623
  %v1876 = vpack.c.b16 %v1626, %v1625
  %v1877 = vpack.c.b16 %v1628, %v1627
  %v1878 = vpack.c.b16 %v1630, %v1629
  %v1879 = vpack.c.b16 %v1632, %v1631
  %v1880 = vpack.c.b16 %v1634, %v1633
  %v1881 = vpack.c.b16 %v1636, %v1635
  %v1882 = vpack.c.b16 %v1638, %v1637
  %v1883 = vpack.c.b16 %v1640, %v1639
  %v1884 = vpack.c.b16 %v1642, %v1641
  %v1885 = vpack.c.b16 %v1644, %v1643
  %v1886 = vpack.c.b16 %v1646, %v1645
  %v1887 = vpack.c.b16 %v1648, %v1647
  %v1888 = vpack.c.b16 %v1650, %v1649
  %v1889 = vpack.c.b16 %v1652, %v1651
  %v1890 = vpack.c.b16 %v1654, %v1653
  %v1891 = vpack.c.b16 %v1656, %v1655
  %v1892 = vpack.c.b16 %v1658, %v1657
  %v1893 = vpack.c.b16 %v1660, %v1659
  %v1894 = vpack.c.b16 %v1662, %v1661
  %v1895 = vpack.c.b16 %v1664, %v1663
  %v1896 = vpack.c.b16 %v1666, %v1665
  %v1897 = vpack.c.b16 %v1668, %v1667
  %v1898 = vpack.c.b16 %v1670, %v1669
  %v1899 = vpack.c.b16 %v1672, %v1671
  %v1900 = vpack.c.b16 %v1674, %v1673
  %v1901 = vpack.c.b16 %v1676, %v1675
  %v1902 = vpack.c.b16 %v1678, %v1677
  %v1903 = vpack.c.b16 %v1680, %v1679
  %v1904 = vpack.c.b16 %v1682, %v1681
  %v1905 = vpack.c.b16 %v1684, %v1683
  %v1906 = vpack.c.b16 %v1686, %v1685
  %v1907 = vpack.c.b16 %v1688, %v1687
  %v1908 = vpack.c.b16 %v1690, %v1689
  %v1909 = vpack.c.b16 %v1692, %v1691
  %v1910 = vpack.c.b16 %v1694, %v1693
  %v1911 = vpack.c.b16 %v1696, %v1695
  %v1912 = vpack.c.b16 %v1698, %v1697
  %v1913 = vpack.c.b16 %v1700, %v1699
  %v1914 = vpack.c.b16 %v1702, %v1701
  %v1915 = vpack.c.b16 %v1704, %v1703
  %v1916 = vpack.c.b16 %v1706, %v1705
  %v1917 = vpack.c.b16 %v1708, %v1707
  %v1918 = vpack.c.b16 %v1710, %v1709
  %v1919 = vpack.c.b16 %v1712, %v1711
  %v1920 = vpack.c.b16 %v1714, %v1713
  %v1921 = vpack.c.b16 %v1716, %v1715
  %v1922 = vpack.c.b16 %v1718, %v1717
  %v1923 = vpack.c.b16 %v1720, %v1719
  %v1924 = vpack.c.b16 %v1722, %v1721
  %v1925 = vpack.c.b16 %v1724, %v1723
  %v1926 = vpack.c.b16 %v1726, %v1725
  %v1927 = vpack.c.b16 %v1728, %v1727
  %v1928 = vpack.c.b16 %v1730, %v1729
  %v1929 = vpack.c.b16 %v1732, %v1731
  %v1930 = vpack.c.b16 %v1734, %v1733
  %v1931 = vpack.c.b16 %v1736, %v1735
  %v1932 = vpack.c.b16 %v1738, %v1737
  %v1933 = vpack.c.b16 %v1740, %v1739
  %v1934 = vpack.c.b16 %v1742, %v1741
  %v1935 = vpack.c.b16 %v1744, %v1743
  %v1936 = vpack.c.b16 %v1746, %v1745
  %v1937 = vpack.c.b16 %v1748, %v1747
  %v1938 = vpack.c.b16 %v1750, %v1749
  %v1939 = vpack.c.b16 %v1752, %v1751
  %v1940 = vpack.c.b16 %v1754, %v1753
  %v1941 = vpack.c.b16 %v1756, %v1755
  %v1942 = vpack.c.b16 %v1758, %v1757
  %v1943 = vpack.c.b16 %v1760, %v1759
  %v1944 = vpack.c.b16 %v1762, %v1761
  %v1945 = vpack.c.b16 %v1764, %v1763
  %v1946 = vpack.c.b16 %v1766, %v1765
  %v1947 = vpack.c.b16 %v1768, %v1767
  %v1948 = vpack.c.b16 %v1770, %v1769
  %v1949 = vpack.c.b16 %v1772, %v1771
  %v1950 = vpack.c.b16 %v1774, %v1773
  %v1951 = vpack.c.b16 %v1776, %v1775
  %v1952 = vpack.c.b16 %v1778, %v1777
  %v1953 = vpack.c.b16 %v1780, %v1779
  %v1954 = vpack.c.b16 %v1782, %v1781
  %v1955 = vpack.c.b16 %v1784, %v1783
  %v1956 = vpack.c.b16 %v1786, %v1785
  %v1957 = vpack.c.b16 %v1788, %v1787
  %v1958 = vpack.c.b16 %v1790, %v1789
  %v1959 = vpack.c.b16 %v1792, %v1791
  %v1960 = vpack.c.b16 %v1794, %v1793
  %v1961 = vpack.c.b16 %v1796, %v1795
  %v1962 = vpack.c.b16 %v1798, %v1797
  %v1963 = vpack.c.b16 %v1800, %v1799
  %v1964 = vpack.c.b16 %v1802, %v1801
  %v1965 = vpack.c.b16 %v1804, %v1803
  %v1966 = vpack.c.b16 %v1806, %v1805
  %v1967 = vpack.c.b16 %v1808, %v1807
  %v1968 = vpack.c.b16 %v1810, %v1809
  %v1969 = vpack.c.b16 %v1812, %v1811
  %v1970 = vpack.c.b16 %v1814, %v1813
  %v1971 = vpack.c.b16 %v1816, %v1815
  %v1972 = vpack.c.b16 %v1818, %v1817
  %v1973 = vpack.c.b16 %v1820, %v1819
  %v1974 = vpack.c.b16 %v1822, %v1821
  %v1975 = vpack.c.b16 %v1824, %v1823
  %v1976 = vpack.c.b16 %v1826, %v1825
  %v1977 = vpack.c.b16 %v1828, %v1827
  %v1978 = vpack.c.b16 %v1830, %v1829
  %v1979 = vpack.c.b16 %v1832, %v1831
  %v1980 = vpack.c.b16 %v1834, %v1833
  %v1981 = vpack.c.b16 %v1836, %v1835
  %v1982 = vpack.c.b16 %v1838, %v1837
  %2127 = vmatprep.subr.bf16.mxu0 0
  %2128 = vmatpush1.bf16.msra.mxu0 %v1839
  %2129 = vmatprep.subr.bf16.mxu0 0
  %2130 = vmatpush1.bf16.msra.mxu0 %v1840
  %2131 = vmatprep.subr.bf16.mxu0 0
  %2132 = vmatpush1.bf16.msra.mxu0 %v1841
  %2133 = vmatprep.subr.bf16.mxu0 0
  %2134 = vmatpush1.bf16.msra.mxu0 %v1842
  %2135 = vmatprep.subr.bf16.mxu0 0
  %2136 = vmatpush1.bf16.msra.mxu0 %v1843
  %2137 = vmatprep.subr.bf16.mxu0 0
  %2138 = vmatpush1.bf16.msra.mxu0 %v1844
  %2139 = vmatprep.subr.bf16.mxu0 0
  %2140 = vmatpush1.bf16.msra.mxu0 %v1845
  %2141 = vmatprep.subr.bf16.mxu0 0
  %2142 = vmatpush1.bf16.msra.mxu0 %v1846
  %2143 = vmatprep.subr.bf16.mxu0 0
  %2144 = vmatpush1.bf16.msra.mxu0 %v1847
  %2145 = vmatprep.subr.bf16.mxu0 0
  %2146 = vmatpush1.bf16.msra.mxu0 %v1848
  %2147 = vmatprep.subr.bf16.mxu0 0
  %2148 = vmatpush1.bf16.msra.mxu0 %v1849
  %2149 = vmatprep.subr.bf16.mxu0 0
  %2150 = vmatpush1.bf16.msra.mxu0 %v1850
  %2151 = vmatprep.subr.bf16.mxu0 0
  %2152 = vmatpush1.bf16.msra.mxu0 %v1851
  %2153 = vmatprep.subr.bf16.mxu0 0
  %2154 = vmatpush1.bf16.msra.mxu0 %v1852
  %2155 = vmatprep.subr.bf16.mxu0 0
  %2156 = vmatpush1.bf16.msra.mxu0 %v1853
  %2157 = vmatprep.subr.bf16.mxu0 0
  %2158 = vmatpush1.bf16.msra.mxu0 %v1854
  %2159 = vmatprep.mubr.bf16.mxu0 %v976
  %2160 = vmatmul.mubr.bf16.gmra.mrb[0].mxu0 %v975
  %v2161 = vpop.f32.mrb[0].mxu0
  %v2162 = vadd.f32 %v466, %v2161
  %v2163 = vpop.f32.mrb[0].mxu0
  %v2164 = vpop.f32.mrb[0].mxu0
  %v2165 = vadd.f32 %v471, %v2164
  %v2166 = vpop.f32.mrb[0].mxu0
  %2167 = vmatprep.mubr.bf16.mxu0 %v994
  %2168 = vmatmul.mubr.bf16.gmra.mrb[0].mxu0 %v993
  %v2169 = vpop.f32.mrb[0].mxu0
  %v2170 = vadd.f32 %v476, %v2169
  %v2171 = vpop.f32.mrb[0].mxu0
  %v2172 = vpop.f32.mrb[0].mxu0
  %v2173 = vadd.f32 %v481, %v2172
  %v2174 = vpop.f32.mrb[0].mxu0
  %2175 = vmatprep.mubr.bf16.mxu0 %v1012
  %2176 = vmatmul.mubr.bf16.gmra.mrb[0].mxu0 %v1011
  %v2177 = vpop.f32.mrb[0].mxu0
  %v2178 = vadd.f32 %v486, %v2177
  %v2179 = vpop.f32.mrb[0].mxu0
  %v2180 = vpop.f32.mrb[0].mxu0
  %v2181 = vadd.f32 %v491, %v2180
  %v2182 = vpop.f32.mrb[0].mxu0
  %2183 = vmatprep.mubr.bf16.mxu0 %v1030
  %2184 = vmatmul.mubr.bf16.gmra.mrb[0].mxu0 %v1029
  %v2185 = vpop.f32.mrb[0].mxu0
  %v2186 = vadd.f32 %v496, %v2185
  %v2187 = vpop.f32.mrb[0].mxu0
  %v2188 = vpop.f32.mrb[0].mxu0
  %v2189 = vadd.f32 %v501, %v2188
  %v2190 = vpop.f32.mrb[0].mxu0
  %2191 = vmatprep.mubr.bf16.mxu0 %v1048
  %2192 = vmatmul.mubr.bf16.gmra.mrb[0].mxu0 %v1047
  %v2193 = vpop.f32.mrb[0].mxu0
  %v2194 = vadd.f32 %v506, %v2193
  %v2195 = vpop.f32.mrb[0].mxu0
  %v2196 = vpop.f32.mrb[0].mxu0
  %v2197 = vadd.f32 %v511, %v2196
  %v2198 = vpop.f32.mrb[0].mxu0
  %2199 = vmatprep.mubr.bf16.mxu0 %v1066
  %2200 = vmatmul.mubr.bf16.gmra.mrb[0].mxu0 %v1065
  %v2201 = vpop.f32.mrb[0].mxu0
  %v2202 = vadd.f32 %v516, %v2201
  %v2203 = vpop.f32.mrb[0].mxu0
  %v2204 = vpop.f32.mrb[0].mxu0
  %v2205 = vadd.f32 %v521, %v2204
  %v2206 = vpop.f32.mrb[0].mxu0
  %2207 = vmatprep.mubr.bf16.mxu0 %v1084
  %2208 = vmatmul.mubr.bf16.gmra.mrb[0].mxu0 %v1083
  %v2209 = vpop.f32.mrb[0].mxu0
  %v2210 = vadd.f32 %v526, %v2209
  %v2211 = vpop.f32.mrb[0].mxu0
  %v2212 = vpop.f32.mrb[0].mxu0
  %v2213 = vadd.f32 %v531, %v2212
  %v2214 = vpop.f32.mrb[0].mxu0
  %2215 = vmatprep.mubr.bf16.mxu0 %v1102
  %2216 = vmatmul.mubr.bf16.gmra.mrb[0].mxu0 %v1101
  %v2217 = vpop.f32.mrb[0].mxu0
  %v2218 = vadd.f32 %v536, %v2217
  %v2219 = vpop.f32.mrb[0].mxu0
  %v2220 = vpop.f32.mrb[0].mxu0
  %v2221 = vadd.f32 %v541, %v2220
  %v2222 = vpop.f32.mrb[0].mxu0
  %2223 = vdwg.mxu0
  %2224 = vmatprep.subr.bf16.mxu0 0
  %2225 = vmatpush1.bf16.msra.mxu0 %v1855
  %2226 = vmatprep.subr.bf16.mxu0 0
  %2227 = vmatpush1.bf16.msra.mxu0 %v1856
  %2228 = vmatprep.subr.bf16.mxu0 0
  %2229 = vmatpush1.bf16.msra.mxu0 %v1857
  %2230 = vmatprep.subr.bf16.mxu0 0
  %2231 = vmatpush1.bf16.msra.mxu0 %v1858
  %2232 = vmatprep.subr.bf16.mxu0 0
  %2233 = vmatpush1.bf16.msra.mxu0 %v1859
  %2234 = vmatprep.subr.bf16.mxu0 0
  %2235 = vmatpush1.bf16.msra.mxu0 %v1860
  %2236 = vmatprep.subr.bf16.mxu0 0
  %2237 = vmatpush1.bf16.msra.mxu0 %v1861
  %2238 = vmatprep.subr.bf16.mxu0 0
  %2239 = vmatpush1.bf16.msra.mxu0 %v1862
  %2240 = vmatprep.subr.bf16.mxu0 0
  %2241 = vmatpush1.bf16.msra.mxu0 %v1863
  %2242 = vmatprep.subr.bf16.mxu0 0
  %2243 = vmatpush1.bf16.msra.mxu0 %v1864
  %2244 = vmatprep.subr.bf16.mxu0 0
  %2245 = vmatpush1.bf16.msra.mxu0 %v1865
  %2246 = vmatprep.subr.bf16.mxu0 0
  %2247 = vmatpush1.bf16.msra.mxu0 %v1866
  %2248 = vmatprep.subr.bf16.mxu0 0
  %2249 = vmatpush1.bf16.msra.mxu0 %v1867
  %2250 = vmatprep.subr.bf16.mxu0 0
  %2251 = vmatpush1.bf16.msra.mxu0 %v1868
  %2252 = vmatprep.subr.bf16.mxu0 0
  %2253 = vmatpush1.bf16.msra.mxu0 %v1869
  %2254 = vmatprep.subr.bf16.mxu0 0
  %2255 = vmatpush1.bf16.msra.mxu0 %v1870
  %2256 = vmatprep.mubr.bf16.mxu0 %v978
  %2257 = vmatmul.mubr.bf16.gmra.mrb[0].mxu0 %v977
  %v2258 = vpop.f32.mrb[0].mxu0
  %v2259 = vadd.f32 %v2162, %v2258
  %v2260 = vpop.f32.mrb[0].mxu0
  %v2261 = vpop.f32.mrb[0].mxu0
  %v2262 = vadd.f32 %v2165, %v2261
  %v2263 = vpop.f32.mrb[0].mxu0
  %2264 = vmatprep.mubr.bf16.mxu0 %v996
  %2265 = vmatmul.mubr.bf16.gmra.mrb[0].mxu0 %v995
  %v2266 = vpop.f32.mrb[0].mxu0
  %v2267 = vadd.f32 %v2170, %v2266
  %v2268 = vpop.f32.mrb[0].mxu0
  %v2269 = vpop.f32.mrb[0].mxu0
  %v2270 = vadd.f32 %v2173, %v2269
  %v2271 = vpop.f32.mrb[0].mxu0
  %2272 = vmatprep.mubr.bf16.mxu0 %v1014
  %2273 = vmatmul.mubr.bf16.gmra.mrb[0].mxu0 %v1013
  %v2274 = vpop.f32.mrb[0].mxu0
  %v2275 = vadd.f32 %v2178, %v2274
  %v2276 = vpop.f32.mrb[0].mxu0
  %v2277 = vpop.f32.mrb[0].mxu0
  %v2278 = vadd.f32 %v2181, %v2277
  %v2279 = vpop.f32.mrb[0].mxu0
  %2280 = vmatprep.mubr.bf16.mxu0 %v1032
  %2281 = vmatmul.mubr.bf16.gmra.mrb[0].mxu0 %v1031
  %v2282 = vpop.f32.mrb[0].mxu0
  %v2283 = vadd.f32 %v2186, %v2282
  %v2284 = vpop.f32.mrb[0].mxu0
  %v2285 = vpop.f32.mrb[0].mxu0
  %v2286 = vadd.f32 %v2189, %v2285
  %v2287 = vpop.f32.mrb[0].mxu0
  %2288 = vmatprep.mubr.bf16.mxu0 %v1050
  %2289 = vmatmul.mubr.bf16.gmra.mrb[0].mxu0 %v1049
  %v2290 = vpop.f32.mrb[0].mxu0
  %v2291 = vadd.f32 %v2194, %v2290
  %v2292 = vpop.f32.mrb[0].mxu0
  %v2293 = vpop.f32.mrb[0].mxu0
  %v2294 = vadd.f32 %v2197, %v2293
  %v2295 = vpop.f32.mrb[0].mxu0
  %2296 = vmatprep.mubr.bf16.mxu0 %v1068
  %2297 = vmatmul.mubr.bf16.gmra.mrb[0].mxu0 %v1067
  %v2298 = vpop.f32.mrb[0].mxu0
  %v2299 = vadd.f32 %v2202, %v2298
  %v2300 = vpop.f32.mrb[0].mxu0
  %v2301 = vpop.f32.mrb[0].mxu0
  %v2302 = vadd.f32 %v2205, %v2301
  %v2303 = vpop.f32.mrb[0].mxu0
  %2304 = vmatprep.mubr.bf16.mxu0 %v1086
  %2305 = vmatmul.mubr.bf16.gmra.mrb[0].mxu0 %v1085
  %v2306 = vpop.f32.mrb[0].mxu0
  %v2307 = vadd.f32 %v2210, %v2306
  %v2308 = vpop.f32.mrb[0].mxu0
  %v2309 = vpop.f32.mrb[0].mxu0
  %v2310 = vadd.f32 %v2213, %v2309
  %v2311 = vpop.f32.mrb[0].mxu0
  %2312 = vmatprep.mubr.bf16.mxu0 %v1104
  %2313 = vmatmul.mubr.bf16.gmra.mrb[0].mxu0 %v1103
  %v2314 = vpop.f32.mrb[0].mxu0
  %v2315 = vadd.f32 %v2218, %v2314
  %v2316 = vpop.f32.mrb[0].mxu0
  %v2317 = vpop.f32.mrb[0].mxu0
  %v2318 = vadd.f32 %v2221, %v2317
  %v2319 = vpop.f32.mrb[0].mxu0
  %2320 = vdwg.mxu0
  %2321 = vmatprep.subr.bf16.mxu0 0
  %2322 = vmatpush1.bf16.msra.mxu0 %v1871
  %2323 = vmatprep.subr.bf16.mxu0 0
  %2324 = vmatpush1.bf16.msra.mxu0 %v1872
  %2325 = vmatprep.subr.bf16.mxu0 0
  %2326 = vmatpush1.bf16.msra.mxu0 %v1873
  %2327 = vmatprep.subr.bf16.mxu0 0
  %2328 = vmatpush1.bf16.msra.mxu0 %v1874
  %2329 = vmatprep.subr.bf16.mxu0 0
  %2330 = vmatpush1.bf16.msra.mxu0 %v1875
  %2331 = vmatprep.subr.bf16.mxu0 0
  %2332 = vmatpush1.bf16.msra.mxu0 %v1876
  %2333 = vmatprep.subr.bf16.mxu0 0
  %2334 = vmatpush1.bf16.msra.mxu0 %v1877
  %2335 = vmatprep.subr.bf16.mxu0 0
  %2336 = vmatpush1.bf16.msra.mxu0 %v1878
  %2337 = vmatprep.subr.bf16.mxu0 0
  %2338 = vmatpush1.bf16.msra.mxu0 %v1879
  %2339 = vmatprep.subr.bf16.mxu0 0
  %2340 = vmatpush1.bf16.msra.mxu0 %v1880
  %2341 = vmatprep.subr.bf16.mxu0 0
  %2342 = vmatpush1.bf16.msra.mxu0 %v1881
  %2343 = vmatprep.subr.bf16.mxu0 0
  %2344 = vmatpush1.bf16.msra.mxu0 %v1882
  %2345 = vmatprep.subr.bf16.mxu0 0
  %2346 = vmatpush1.bf16.msra.mxu0 %v1883
  %2347 = vmatprep.subr.bf16.mxu0 0
  %2348 = vmatpush1.bf16.msra.mxu0 %v1884
  %2349 = vmatprep.subr.bf16.mxu0 0
  %2350 = vmatpush1.bf16.msra.mxu0 %v1885
  %2351 = vmatprep.subr.bf16.mxu0 0
  %2352 = vmatpush1.bf16.msra.mxu0 %v1886
  %2353 = vmatprep.mubr.bf16.mxu0 %v980
  %2354 = vmatmul.mubr.bf16.gmra.mrb[0].mxu0 %v979
  %v2355 = vpop.f32.mrb[0].mxu0
  %v2356 = vadd.f32 %v2259, %v2355
  %v2357 = vpop.f32.mrb[0].mxu0
  %v2358 = vpop.f32.mrb[0].mxu0
  %v2359 = vadd.f32 %v2262, %v2358
  %v2360 = vpop.f32.mrb[0].mxu0
  %2361 = vmatprep.mubr.bf16.mxu0 %v998
  %2362 = vmatmul.mubr.bf16.gmra.mrb[0].mxu0 %v997
  %v2363 = vpop.f32.mrb[0].mxu0
  %v2364 = vadd.f32 %v2267, %v2363
  %v2365 = vpop.f32.mrb[0].mxu0
  %v2366 = vpop.f32.mrb[0].mxu0
  %v2367 = vadd.f32 %v2270, %v2366
  %v2368 = vpop.f32.mrb[0].mxu0
  %2369 = vmatprep.mubr.bf16.mxu0 %v1016
  %2370 = vmatmul.mubr.bf16.gmra.mrb[0].mxu0 %v1015
  %v2371 = vpop.f32.mrb[0].mxu0
  %v2372 = vadd.f32 %v2275, %v2371
  %v2373 = vpop.f32.mrb[0].mxu0
  %v2374 = vpop.f32.mrb[0].mxu0
  %v2375 = vadd.f32 %v2278, %v2374
  %v2376 = vpop.f32.mrb[0].mxu0
  %2377 = vmatprep.mubr.bf16.mxu0 %v1034
  %2378 = vmatmul.mubr.bf16.gmra.mrb[0].mxu0 %v1033
  %v2379 = vpop.f32.mrb[0].mxu0
  %v2380 = vadd.f32 %v2283, %v2379
  %v2381 = vpop.f32.mrb[0].mxu0
  %v2382 = vpop.f32.mrb[0].mxu0
  %v2383 = vadd.f32 %v2286, %v2382
  %v2384 = vpop.f32.mrb[0].mxu0
  %2385 = vmatprep.mubr.bf16.mxu0 %v1052
  %2386 = vmatmul.mubr.bf16.gmra.mrb[0].mxu0 %v1051
  %v2387 = vpop.f32.mrb[0].mxu0
  %v2388 = vadd.f32 %v2291, %v2387
  %v2389 = vpop.f32.mrb[0].mxu0
  %v2390 = vpop.f32.mrb[0].mxu0
  %v2391 = vadd.f32 %v2294, %v2390
  %v2392 = vpop.f32.mrb[0].mxu0
  %2393 = vmatprep.mubr.bf16.mxu0 %v1070
  %2394 = vmatmul.mubr.bf16.gmra.mrb[0].mxu0 %v1069
  %v2395 = vpop.f32.mrb[0].mxu0
  %v2396 = vadd.f32 %v2299, %v2395
  %v2397 = vpop.f32.mrb[0].mxu0
  %v2398 = vpop.f32.mrb[0].mxu0
  %v2399 = vadd.f32 %v2302, %v2398
  %v2400 = vpop.f32.mrb[0].mxu0
  %2401 = vmatprep.mubr.bf16.mxu0 %v1088
  %2402 = vmatmul.mubr.bf16.gmra.mrb[0].mxu0 %v1087
  %v2403 = vpop.f32.mrb[0].mxu0
  %v2404 = vadd.f32 %v2307, %v2403
  %v2405 = vpop.f32.mrb[0].mxu0
  %v2406 = vpop.f32.mrb[0].mxu0
  %v2407 = vadd.f32 %v2310, %v2406
  %v2408 = vpop.f32.mrb[0].mxu0
  %2409 = vmatprep.mubr.bf16.mxu0 %v1106
  %2410 = vmatmul.mubr.bf16.gmra.mrb[0].mxu0 %v1105
  %v2411 = vpop.f32.mrb[0].mxu0
  %v2412 = vadd.f32 %v2315, %v2411
  %v2413 = vpop.f32.mrb[0].mxu0
  %v2414 = vpop.f32.mrb[0].mxu0
  %v2415 = vadd.f32 %v2318, %v2414
  %v2416 = vpop.f32.mrb[0].mxu0
  %2417 = vdwg.mxu0
  %2418 = vmatprep.subr.bf16.mxu0 0
  %2419 = vmatpush1.bf16.msra.mxu0 %v1887
  %2420 = vmatprep.subr.bf16.mxu0 0
  %2421 = vmatpush1.bf16.msra.mxu0 %v1888
  %2422 = vmatprep.subr.bf16.mxu0 0
  %2423 = vmatpush1.bf16.msra.mxu0 %v1889
  %2424 = vmatprep.subr.bf16.mxu0 0
  %2425 = vmatpush1.bf16.msra.mxu0 %v1890
  %2426 = vmatprep.subr.bf16.mxu0 0
  %2427 = vmatpush1.bf16.msra.mxu0 %v1891
  %2428 = vmatprep.subr.bf16.mxu0 0
  %2429 = vmatpush1.bf16.msra.mxu0 %v1892
  %2430 = vmatprep.subr.bf16.mxu0 0
  %2431 = vmatpush1.bf16.msra.mxu0 %v1893
  %2432 = vmatprep.subr.bf16.mxu0 0
  %2433 = vmatpush1.bf16.msra.mxu0 %v1894
  %2434 = vmatprep.subr.bf16.mxu0 0
  %2435 = vmatpush1.bf16.msra.mxu0 %v1895
  %2436 = vmatprep.subr.bf16.mxu0 0
  %2437 = vmatpush1.bf16.msra.mxu0 %v1896
  %2438 = vmatprep.subr.bf16.mxu0 0
  %2439 = vmatpush1.bf16.msra.mxu0 %v1897
  %2440 = vmatprep.subr.bf16.mxu0 0
  %2441 = vmatpush1.bf16.msra.mxu0 %v1898
  %2442 = vmatprep.subr.bf16.mxu0 0
  %2443 = vmatpush1.bf16.msra.mxu0 %v1899
  %2444 = vmatprep.subr.bf16.mxu0 0
  %2445 = vmatpush1.bf16.msra.mxu0 %v1900
  %2446 = vmatprep.subr.bf16.mxu0 0
  %2447 = vmatpush1.bf16.msra.mxu0 %v1901
  %2448 = vmatprep.subr.bf16.mxu0 0
  %2449 = vmatpush1.bf16.msra.mxu0 %v1902
  %2450 = vmatprep.mubr.bf16.mxu0 %v982
  %2451 = vmatmul.mubr.bf16.gmra.mrb[0].mxu0 %v981
  %v2452 = vpop.f32.mrb[0].mxu0
  %v2453 = vadd.f32 %v2356, %v2452
  %v2454 = vpop.f32.mrb[0].mxu0
  %v2455 = vpop.f32.mrb[0].mxu0
  %v2456 = vadd.f32 %v2359, %v2455
  %v2457 = vpop.f32.mrb[0].mxu0
  %2458 = vmatprep.mubr.bf16.mxu0 %v1000
  %2459 = vmatmul.mubr.bf16.gmra.mrb[0].mxu0 %v999
  %v2460 = vpop.f32.mrb[0].mxu0
  %v2461 = vadd.f32 %v2364, %v2460
  %v2462 = vpop.f32.mrb[0].mxu0
  %v2463 = vpop.f32.mrb[0].mxu0
  %v2464 = vadd.f32 %v2367, %v2463
  %v2465 = vpop.f32.mrb[0].mxu0
  %2466 = vmatprep.mubr.bf16.mxu0 %v1018
  %2467 = vmatmul.mubr.bf16.gmra.mrb[0].mxu0 %v1017
  %v2468 = vpop.f32.mrb[0].mxu0
  %v2469 = vadd.f32 %v2372, %v2468
  %v2470 = vpop.f32.mrb[0].mxu0
  %v2471 = vpop.f32.mrb[0].mxu0
  %v2472 = vadd.f32 %v2375, %v2471
  %v2473 = vpop.f32.mrb[0].mxu0
  %2474 = vmatprep.mubr.bf16.mxu0 %v1036
  %2475 = vmatmul.mubr.bf16.gmra.mrb[0].mxu0 %v1035
  %v2476 = vpop.f32.mrb[0].mxu0
  %v2477 = vadd.f32 %v2380, %v2476
  %v2478 = vpop.f32.mrb[0].mxu0
  %v2479 = vpop.f32.mrb[0].mxu0
  %v2480 = vadd.f32 %v2383, %v2479
  %v2481 = vpop.f32.mrb[0].mxu0
  %2482 = vmatprep.mubr.bf16.mxu0 %v1054
  %2483 = vmatmul.mubr.bf16.gmra.mrb[0].mxu0 %v1053
  %v2484 = vpop.f32.mrb[0].mxu0
  %v2485 = vadd.f32 %v2388, %v2484
  %v2486 = vpop.f32.mrb[0].mxu0
  %v2487 = vpop.f32.mrb[0].mxu0
  %v2488 = vadd.f32 %v2391, %v2487
  %v2489 = vpop.f32.mrb[0].mxu0
  %2490 = vmatprep.mubr.bf16.mxu0 %v1072
  %2491 = vmatmul.mubr.bf16.gmra.mrb[0].mxu0 %v1071
  %v2492 = vpop.f32.mrb[0].mxu0
  %v2493 = vadd.f32 %v2396, %v2492
  %v2494 = vpop.f32.mrb[0].mxu0
  %v2495 = vpop.f32.mrb[0].mxu0
  %v2496 = vadd.f32 %v2399, %v2495
  %v2497 = vpop.f32.mrb[0].mxu0
  %2498 = vmatprep.mubr.bf16.mxu0 %v1090
  %2499 = vmatmul.mubr.bf16.gmra.mrb[0].mxu0 %v1089
  %v2500 = vpop.f32.mrb[0].mxu0
  %v2501 = vadd.f32 %v2404, %v2500
  %v2502 = vpop.f32.mrb[0].mxu0
  %v2503 = vpop.f32.mrb[0].mxu0
  %v2504 = vadd.f32 %v2407, %v2503
  %v2505 = vpop.f32.mrb[0].mxu0
  %2506 = vmatprep.mubr.bf16.mxu0 %v1108
  %2507 = vmatmul.mubr.bf16.gmra.mrb[0].mxu0 %v1107
  %v2508 = vpop.f32.mrb[0].mxu0
  %v2509 = vadd.f32 %v2412, %v2508
  %v2510 = vpop.f32.mrb[0].mxu0
  %v2511 = vpop.f32.mrb[0].mxu0
  %v2512 = vadd.f32 %v2415, %v2511
  %v2513 = vpop.f32.mrb[0].mxu0
  %2514 = vdwg.mxu0
  %2515 = vmatprep.subr.bf16.mxu0 0
  %2516 = vmatpush1.bf16.msra.mxu0 %v1903
  %2517 = vmatprep.subr.bf16.mxu0 0
  %2518 = vmatpush1.bf16.msra.mxu0 %v1904
  %2519 = vmatprep.subr.bf16.mxu0 0
  %2520 = vmatpush1.bf16.msra.mxu0 %v1905
  %2521 = vmatprep.subr.bf16.mxu0 0
  %2522 = vmatpush1.bf16.msra.mxu0 %v1906
  %2523 = vmatprep.subr.bf16.mxu0 0
  %2524 = vmatpush1.bf16.msra.mxu0 %v1907
  %2525 = vmatprep.subr.bf16.mxu0 0
  %2526 = vmatpush1.bf16.msra.mxu0 %v1908
  %2527 = vmatprep.subr.bf16.mxu0 0
  %2528 = vmatpush1.bf16.msra.mxu0 %v1909
  %2529 = vmatprep.subr.bf16.mxu0 0
  %2530 = vmatpush1.bf16.msra.mxu0 %v1910
  %2531 = vmatprep.subr.bf16.mxu0 0
  %2532 = vmatpush1.bf16.msra.mxu0 %v1911
  %2533 = vmatprep.subr.bf16.mxu0 0
  %2534 = vmatpush1.bf16.msra.mxu0 %v1912
  %2535 = vmatprep.subr.bf16.mxu0 0
  %2536 = vmatpush1.bf16.msra.mxu0 %v1913
  %2537 = vmatprep.subr.bf16.mxu0 0
  %2538 = vmatpush1.bf16.msra.mxu0 %v1914
  %2539 = vmatprep.subr.bf16.mxu0 0
  %2540 = vmatpush1.bf16.msra.mxu0 %v1915
  %2541 = vmatprep.subr.bf16.mxu0 0
  %2542 = vmatpush1.bf16.msra.mxu0 %v1916
  %2543 = vmatprep.subr.bf16.mxu0 0
  %2544 = vmatpush1.bf16.msra.mxu0 %v1917
  %2545 = vmatprep.subr.bf16.mxu0 0
  %2546 = vmatpush1.bf16.msra.mxu0 %v1918
  %2547 = vmatprep.mubr.bf16.mxu0 %v984
  %2548 = vmatmul.mubr.bf16.gmra.mrb[0].mxu0 %v983
  %v2549 = vpop.f32.mrb[0].mxu0
  %v2550 = vadd.f32 %v2453, %v2549
  %v2551 = vpop.f32.mrb[0].mxu0
  %v2552 = vpop.f32.mrb[0].mxu0
  %v2553 = vadd.f32 %v2456, %v2552
  %v2554 = vpop.f32.mrb[0].mxu0
  %2555 = vmatprep.mubr.bf16.mxu0 %v1002
  %2556 = vmatmul.mubr.bf16.gmra.mrb[0].mxu0 %v1001
  %v2557 = vpop.f32.mrb[0].mxu0
  %v2558 = vadd.f32 %v2461, %v2557
  %v2559 = vpop.f32.mrb[0].mxu0
  %v2560 = vpop.f32.mrb[0].mxu0
  %v2561 = vadd.f32 %v2464, %v2560
  %v2562 = vpop.f32.mrb[0].mxu0
  %2563 = vmatprep.mubr.bf16.mxu0 %v1020
  %2564 = vmatmul.mubr.bf16.gmra.mrb[0].mxu0 %v1019
  %v2565 = vpop.f32.mrb[0].mxu0
  %v2566 = vadd.f32 %v2469, %v2565
  %v2567 = vpop.f32.mrb[0].mxu0
  %v2568 = vpop.f32.mrb[0].mxu0
  %v2569 = vadd.f32 %v2472, %v2568
  %v2570 = vpop.f32.mrb[0].mxu0
  %2571 = vmatprep.mubr.bf16.mxu0 %v1038
  %2572 = vmatmul.mubr.bf16.gmra.mrb[0].mxu0 %v1037
  %v2573 = vpop.f32.mrb[0].mxu0
  %v2574 = vadd.f32 %v2477, %v2573
  %v2575 = vpop.f32.mrb[0].mxu0
  %v2576 = vpop.f32.mrb[0].mxu0
  %v2577 = vadd.f32 %v2480, %v2576
  %v2578 = vpop.f32.mrb[0].mxu0
  %2579 = vmatprep.mubr.bf16.mxu0 %v1056
  %2580 = vmatmul.mubr.bf16.gmra.mrb[0].mxu0 %v1055
  %v2581 = vpop.f32.mrb[0].mxu0
  %v2582 = vadd.f32 %v2485, %v2581
  %v2583 = vpop.f32.mrb[0].mxu0
  %v2584 = vpop.f32.mrb[0].mxu0
  %v2585 = vadd.f32 %v2488, %v2584
  %v2586 = vpop.f32.mrb[0].mxu0
  %2587 = vmatprep.mubr.bf16.mxu0 %v1074
  %2588 = vmatmul.mubr.bf16.gmra.mrb[0].mxu0 %v1073
  %v2589 = vpop.f32.mrb[0].mxu0
  %v2590 = vadd.f32 %v2493, %v2589
  %v2591 = vpop.f32.mrb[0].mxu0
  %v2592 = vpop.f32.mrb[0].mxu0
  %v2593 = vadd.f32 %v2496, %v2592
  %v2594 = vpop.f32.mrb[0].mxu0
  %2595 = vmatprep.mubr.bf16.mxu0 %v1092
  %2596 = vmatmul.mubr.bf16.gmra.mrb[0].mxu0 %v1091
  %v2597 = vpop.f32.mrb[0].mxu0
  %v2598 = vadd.f32 %v2501, %v2597
  %v2599 = vpop.f32.mrb[0].mxu0
  %v2600 = vpop.f32.mrb[0].mxu0
  %v2601 = vadd.f32 %v2504, %v2600
  %v2602 = vpop.f32.mrb[0].mxu0
  %2603 = vmatprep.mubr.bf16.mxu0 %v1110
  %2604 = vmatmul.mubr.bf16.gmra.mrb[0].mxu0 %v1109
  %v2605 = vpop.f32.mrb[0].mxu0
  %v2606 = vadd.f32 %v2509, %v2605
  %v2607 = vpop.f32.mrb[0].mxu0
  %v2608 = vpop.f32.mrb[0].mxu0
  %v2609 = vadd.f32 %v2512, %v2608
  %v2610 = vpop.f32.mrb[0].mxu0
  %2611 = vdwg.mxu0
  %2612 = vmatprep.subr.bf16.mxu0 0
  %2613 = vmatpush1.bf16.msra.mxu0 %v1919
  %2614 = vmatprep.subr.bf16.mxu0 0
  %2615 = vmatpush1.bf16.msra.mxu0 %v1920
  %2616 = vmatprep.subr.bf16.mxu0 0
  %2617 = vmatpush1.bf16.msra.mxu0 %v1921
  %2618 = vmatprep.subr.bf16.mxu0 0
  %2619 = vmatpush1.bf16.msra.mxu0 %v1922
  %2620 = vmatprep.subr.bf16.mxu0 0
  %2621 = vmatpush1.bf16.msra.mxu0 %v1923
  %2622 = vmatprep.subr.bf16.mxu0 0
  %2623 = vmatpush1.bf16.msra.mxu0 %v1924
  %2624 = vmatprep.subr.bf16.mxu0 0
  %2625 = vmatpush1.bf16.msra.mxu0 %v1925
  %2626 = vmatprep.subr.bf16.mxu0 0
  %2627 = vmatpush1.bf16.msra.mxu0 %v1926
  %2628 = vmatprep.subr.bf16.mxu0 0
  %2629 = vmatpush1.bf16.msra.mxu0 %v1927
  %2630 = vmatprep.subr.bf16.mxu0 0
  %2631 = vmatpush1.bf16.msra.mxu0 %v1928
  %2632 = vmatprep.subr.bf16.mxu0 0
  %2633 = vmatpush1.bf16.msra.mxu0 %v1929
  %2634 = vmatprep.subr.bf16.mxu0 0
  %2635 = vmatpush1.bf16.msra.mxu0 %v1930
  %2636 = vmatprep.subr.bf16.mxu0 0
  %2637 = vmatpush1.bf16.msra.mxu0 %v1931
  %2638 = vmatprep.subr.bf16.mxu0 0
  %2639 = vmatpush1.bf16.msra.mxu0 %v1932
  %2640 = vmatprep.subr.bf16.mxu0 0
  %2641 = vmatpush1.bf16.msra.mxu0 %v1933
  %2642 = vmatprep.subr.bf16.mxu0 0
  %2643 = vmatpush1.bf16.msra.mxu0 %v1934
  %2644 = vmatprep.mubr.bf16.mxu0 %v986
  %2645 = vmatmul.mubr.bf16.gmra.mrb[0].mxu0 %v985
  %v2646 = vpop.f32.mrb[0].mxu0
  %v2647 = vadd.f32 %v2550, %v2646
  %v2648 = vpop.f32.mrb[0].mxu0
  %v2649 = vpop.f32.mrb[0].mxu0
  %v2650 = vadd.f32 %v2553, %v2649
  %v2651 = vpop.f32.mrb[0].mxu0
  %2652 = vmatprep.mubr.bf16.mxu0 %v1004
  %2653 = vmatmul.mubr.bf16.gmra.mrb[0].mxu0 %v1003
  %v2654 = vpop.f32.mrb[0].mxu0
  %v2655 = vadd.f32 %v2558, %v2654
  %v2656 = vpop.f32.mrb[0].mxu0
  %v2657 = vpop.f32.mrb[0].mxu0
  %v2658 = vadd.f32 %v2561, %v2657
  %v2659 = vpop.f32.mrb[0].mxu0
  %2660 = vmatprep.mubr.bf16.mxu0 %v1022
  %2661 = vmatmul.mubr.bf16.gmra.mrb[0].mxu0 %v1021
  %v2662 = vpop.f32.mrb[0].mxu0
  %v2663 = vadd.f32 %v2566, %v2662
  %v2664 = vpop.f32.mrb[0].mxu0
  %v2665 = vpop.f32.mrb[0].mxu0
  %v2666 = vadd.f32 %v2569, %v2665
  %v2667 = vpop.f32.mrb[0].mxu0
  %2668 = vmatprep.mubr.bf16.mxu0 %v1040
  %2669 = vmatmul.mubr.bf16.gmra.mrb[0].mxu0 %v1039
  %v2670 = vpop.f32.mrb[0].mxu0
  %v2671 = vadd.f32 %v2574, %v2670
  %v2672 = vpop.f32.mrb[0].mxu0
  %v2673 = vpop.f32.mrb[0].mxu0
  %v2674 = vadd.f32 %v2577, %v2673
  %v2675 = vpop.f32.mrb[0].mxu0
  %2676 = vmatprep.mubr.bf16.mxu0 %v1058
  %2677 = vmatmul.mubr.bf16.gmra.mrb[0].mxu0 %v1057
  %v2678 = vpop.f32.mrb[0].mxu0
  %v2679 = vadd.f32 %v2582, %v2678
  %v2680 = vpop.f32.mrb[0].mxu0
  %v2681 = vpop.f32.mrb[0].mxu0
  %v2682 = vadd.f32 %v2585, %v2681
  %v2683 = vpop.f32.mrb[0].mxu0
  %2684 = vmatprep.mubr.bf16.mxu0 %v1076
  %2685 = vmatmul.mubr.bf16.gmra.mrb[0].mxu0 %v1075
  %v2686 = vpop.f32.mrb[0].mxu0
  %v2687 = vadd.f32 %v2590, %v2686
  %v2688 = vpop.f32.mrb[0].mxu0
  %v2689 = vpop.f32.mrb[0].mxu0
  %v2690 = vadd.f32 %v2593, %v2689
  %v2691 = vpop.f32.mrb[0].mxu0
  %2692 = vmatprep.mubr.bf16.mxu0 %v1094
  %2693 = vmatmul.mubr.bf16.gmra.mrb[0].mxu0 %v1093
  %v2694 = vpop.f32.mrb[0].mxu0
  %v2695 = vadd.f32 %v2598, %v2694
  %v2696 = vpop.f32.mrb[0].mxu0
  %v2697 = vpop.f32.mrb[0].mxu0
  %v2698 = vadd.f32 %v2601, %v2697
  %v2699 = vpop.f32.mrb[0].mxu0
  %2700 = vmatprep.mubr.bf16.mxu0 %v1112
  %2701 = vmatmul.mubr.bf16.gmra.mrb[0].mxu0 %v1111
  %v2702 = vpop.f32.mrb[0].mxu0
  %v2703 = vadd.f32 %v2606, %v2702
  %v2704 = vpop.f32.mrb[0].mxu0
  %v2705 = vpop.f32.mrb[0].mxu0
  %v2706 = vadd.f32 %v2609, %v2705
  %v2707 = vpop.f32.mrb[0].mxu0
  %2708 = vdwg.mxu0
  %2709 = vmatprep.subr.bf16.mxu0 0
  %2710 = vmatpush1.bf16.msra.mxu0 %v1935
  %2711 = vmatprep.subr.bf16.mxu0 0
  %2712 = vmatpush1.bf16.msra.mxu0 %v1936
  %2713 = vmatprep.subr.bf16.mxu0 0
  %2714 = vmatpush1.bf16.msra.mxu0 %v1937
  %2715 = vmatprep.subr.bf16.mxu0 0
  %2716 = vmatpush1.bf16.msra.mxu0 %v1938
  %2717 = vmatprep.subr.bf16.mxu0 0
  %2718 = vmatpush1.bf16.msra.mxu0 %v1939
  %2719 = vmatprep.subr.bf16.mxu0 0
  %2720 = vmatpush1.bf16.msra.mxu0 %v1940
  %2721 = vmatprep.subr.bf16.mxu0 0
  %2722 = vmatpush1.bf16.msra.mxu0 %v1941
  %2723 = vmatprep.subr.bf16.mxu0 0
  %2724 = vmatpush1.bf16.msra.mxu0 %v1942
  %2725 = vmatprep.subr.bf16.mxu0 0
  %2726 = vmatpush1.bf16.msra.mxu0 %v1943
  %2727 = vmatprep.subr.bf16.mxu0 0
  %2728 = vmatpush1.bf16.msra.mxu0 %v1944
  %2729 = vmatprep.subr.bf16.mxu0 0
  %2730 = vmatpush1.bf16.msra.mxu0 %v1945
  %2731 = vmatprep.subr.bf16.mxu0 0
  %2732 = vmatpush1.bf16.msra.mxu0 %v1946
  %2733 = vmatprep.subr.bf16.mxu0 0
  %2734 = vmatpush1.bf16.msra.mxu0 %v1947
  %2735 = vmatprep.subr.bf16.mxu0 0
  %2736 = vmatpush1.bf16.msra.mxu0 %v1948
  %2737 = vmatprep.subr.bf16.mxu0 0
  %2738 = vmatpush1.bf16.msra.mxu0 %v1949
  %2739 = vmatprep.subr.bf16.mxu0 0
  %2740 = vmatpush1.bf16.msra.mxu0 %v1950
  %2741 = vmatprep.mubr.bf16.mxu0 %v988
  %2742 = vmatmul.mubr.bf16.gmra.mrb[0].mxu0 %v987
  %v2743 = vpop.f32.mrb[0].mxu0
  %v2744 = vadd.f32 %v2647, %v2743
  %v2745 = vpop.f32.mrb[0].mxu0
  %v2746 = vpop.f32.mrb[0].mxu0
  %v2747 = vadd.f32 %v2650, %v2746
  %v2748 = vpop.f32.mrb[0].mxu0
  %2749 = vmatprep.mubr.bf16.mxu0 %v1006
  %2750 = vmatmul.mubr.bf16.gmra.mrb[0].mxu0 %v1005
  %v2751 = vpop.f32.mrb[0].mxu0
  %v2752 = vadd.f32 %v2655, %v2751
  %v2753 = vpop.f32.mrb[0].mxu0
  %v2754 = vpop.f32.mrb[0].mxu0
  %v2755 = vadd.f32 %v2658, %v2754
  %v2756 = vpop.f32.mrb[0].mxu0
  %2757 = vmatprep.mubr.bf16.mxu0 %v1024
  %2758 = vmatmul.mubr.bf16.gmra.mrb[0].mxu0 %v1023
  %v2759 = vpop.f32.mrb[0].mxu0
  %v2760 = vadd.f32 %v2663, %v2759
  %v2761 = vpop.f32.mrb[0].mxu0
  %v2762 = vpop.f32.mrb[0].mxu0
  %v2763 = vadd.f32 %v2666, %v2762
  %v2764 = vpop.f32.mrb[0].mxu0
  %2765 = vmatprep.mubr.bf16.mxu0 %v1042
  %2766 = vmatmul.mubr.bf16.gmra.mrb[0].mxu0 %v1041
  %v2767 = vpop.f32.mrb[0].mxu0
  %v2768 = vadd.f32 %v2671, %v2767
  %v2769 = vpop.f32.mrb[0].mxu0
  %v2770 = vpop.f32.mrb[0].mxu0
  %v2771 = vadd.f32 %v2674, %v2770
  %v2772 = vpop.f32.mrb[0].mxu0
  %2773 = vmatprep.mubr.bf16.mxu0 %v1060
  %2774 = vmatmul.mubr.bf16.gmra.mrb[0].mxu0 %v1059
  %v2775 = vpop.f32.mrb[0].mxu0
  %v2776 = vadd.f32 %v2679, %v2775
  %v2777 = vpop.f32.mrb[0].mxu0
  %v2778 = vpop.f32.mrb[0].mxu0
  %v2779 = vadd.f32 %v2682, %v2778
  %v2780 = vpop.f32.mrb[0].mxu0
  %2781 = vmatprep.mubr.bf16.mxu0 %v1078
  %2782 = vmatmul.mubr.bf16.gmra.mrb[0].mxu0 %v1077
  %v2783 = vpop.f32.mrb[0].mxu0
  %v2784 = vadd.f32 %v2687, %v2783
  %v2785 = vpop.f32.mrb[0].mxu0
  %v2786 = vpop.f32.mrb[0].mxu0
  %v2787 = vadd.f32 %v2690, %v2786
  %v2788 = vpop.f32.mrb[0].mxu0
  %2789 = vmatprep.mubr.bf16.mxu0 %v1096
  %2790 = vmatmul.mubr.bf16.gmra.mrb[0].mxu0 %v1095
  %v2791 = vpop.f32.mrb[0].mxu0
  %v2792 = vadd.f32 %v2695, %v2791
  %v2793 = vpop.f32.mrb[0].mxu0
  %v2794 = vpop.f32.mrb[0].mxu0
  %v2795 = vadd.f32 %v2698, %v2794
  %v2796 = vpop.f32.mrb[0].mxu0
  %2797 = vmatprep.mubr.bf16.mxu0 %v1114
  %2798 = vmatmul.mubr.bf16.gmra.mrb[0].mxu0 %v1113
  %v2799 = vpop.f32.mrb[0].mxu0
  %v2800 = vadd.f32 %v2703, %v2799
  %v2801 = vpop.f32.mrb[0].mxu0
  %v2802 = vpop.f32.mrb[0].mxu0
  %v2803 = vadd.f32 %v2706, %v2802
  %v2804 = vpop.f32.mrb[0].mxu0
  %2805 = vdwg.mxu0
  %2806 = vmatprep.subr.bf16.mxu0 0
  %2807 = vmatpush1.bf16.msra.mxu0 %v1951
  %2808 = vmatprep.subr.bf16.mxu0 0
  %2809 = vmatpush1.bf16.msra.mxu0 %v1952
  %2810 = vmatprep.subr.bf16.mxu0 0
  %2811 = vmatpush1.bf16.msra.mxu0 %v1953
  %2812 = vmatprep.subr.bf16.mxu0 0
  %2813 = vmatpush1.bf16.msra.mxu0 %v1954
  %2814 = vmatprep.subr.bf16.mxu0 0
  %2815 = vmatpush1.bf16.msra.mxu0 %v1955
  %2816 = vmatprep.subr.bf16.mxu0 0
  %2817 = vmatpush1.bf16.msra.mxu0 %v1956
  %2818 = vmatprep.subr.bf16.mxu0 0
  %2819 = vmatpush1.bf16.msra.mxu0 %v1957
  %2820 = vmatprep.subr.bf16.mxu0 0
  %2821 = vmatpush1.bf16.msra.mxu0 %v1958
  %2822 = vmatprep.subr.bf16.mxu0 0
  %2823 = vmatpush1.bf16.msra.mxu0 %v1959
  %2824 = vmatprep.subr.bf16.mxu0 0
  %2825 = vmatpush1.bf16.msra.mxu0 %v1960
  %2826 = vmatprep.subr.bf16.mxu0 0
  %2827 = vmatpush1.bf16.msra.mxu0 %v1961
  %2828 = vmatprep.subr.bf16.mxu0 0
  %2829 = vmatpush1.bf16.msra.mxu0 %v1962
  %2830 = vmatprep.subr.bf16.mxu0 0
  %2831 = vmatpush1.bf16.msra.mxu0 %v1963
  %2832 = vmatprep.subr.bf16.mxu0 0
  %2833 = vmatpush1.bf16.msra.mxu0 %v1964
  %2834 = vmatprep.subr.bf16.mxu0 0
  %2835 = vmatpush1.bf16.msra.mxu0 %v1965
  %2836 = vmatprep.subr.bf16.mxu0 0
  %2837 = vmatpush1.bf16.msra.mxu0 %v1966
  %2838 = vmatprep.mubr.bf16.mxu0 %v990
  %2839 = vmatmul.mubr.bf16.gmra.mrb[0].mxu0 %v989
  %v2840 = vpop.f32.mrb[0].mxu0
  %v2841 = vadd.f32 %v2744, %v2840
  %v2842 = vpop.f32.mrb[0].mxu0
  %v2843 = vpop.f32.mrb[0].mxu0
  %v2844 = vadd.f32 %v2747, %v2843
  %v2845 = vpop.f32.mrb[0].mxu0
  %2846 = vmatprep.mubr.bf16.mxu0 %v1008
  %2847 = vmatmul.mubr.bf16.gmra.mrb[0].mxu0 %v1007
  %v2848 = vpop.f32.mrb[0].mxu0
  %v2849 = vadd.f32 %v2752, %v2848
  %v2850 = vpop.f32.mrb[0].mxu0
  %v2851 = vpop.f32.mrb[0].mxu0
  %v2852 = vadd.f32 %v2755, %v2851
  %v2853 = vpop.f32.mrb[0].mxu0
  %2854 = vmatprep.mubr.bf16.mxu0 %v1026
  %2855 = vmatmul.mubr.bf16.gmra.mrb[0].mxu0 %v1025
  %v2856 = vpop.f32.mrb[0].mxu0
  %v2857 = vadd.f32 %v2760, %v2856
  %v2858 = vpop.f32.mrb[0].mxu0
  %v2859 = vpop.f32.mrb[0].mxu0
  %v2860 = vadd.f32 %v2763, %v2859
  %v2861 = vpop.f32.mrb[0].mxu0
  %2862 = vmatprep.mubr.bf16.mxu0 %v1044
  %2863 = vmatmul.mubr.bf16.gmra.mrb[0].mxu0 %v1043
  %v2864 = vpop.f32.mrb[0].mxu0
  %v2865 = vadd.f32 %v2768, %v2864
  %v2866 = vpop.f32.mrb[0].mxu0
  %v2867 = vpop.f32.mrb[0].mxu0
  %v2868 = vadd.f32 %v2771, %v2867
  %v2869 = vpop.f32.mrb[0].mxu0
  %2870 = vmatprep.mubr.bf16.mxu0 %v1062
  %2871 = vmatmul.mubr.bf16.gmra.mrb[0].mxu0 %v1061
  %v2872 = vpop.f32.mrb[0].mxu0
  %v2873 = vadd.f32 %v2776, %v2872
  %v2874 = vpop.f32.mrb[0].mxu0
  %v2875 = vpop.f32.mrb[0].mxu0
  %v2876 = vadd.f32 %v2779, %v2875
  %v2877 = vpop.f32.mrb[0].mxu0
  %2878 = vmatprep.mubr.bf16.mxu0 %v1080
  %2879 = vmatmul.mubr.bf16.gmra.mrb[0].mxu0 %v1079
  %v2880 = vpop.f32.mrb[0].mxu0
  %v2881 = vadd.f32 %v2784, %v2880
  %v2882 = vpop.f32.mrb[0].mxu0
  %v2883 = vpop.f32.mrb[0].mxu0
  %v2884 = vadd.f32 %v2787, %v2883
  %v2885 = vpop.f32.mrb[0].mxu0
  %2886 = vmatprep.mubr.bf16.mxu0 %v1098
  %2887 = vmatmul.mubr.bf16.gmra.mrb[0].mxu0 %v1097
  %v2888 = vpop.f32.mrb[0].mxu0
  %v2889 = vadd.f32 %v2792, %v2888
  %v2890 = vpop.f32.mrb[0].mxu0
  %v2891 = vpop.f32.mrb[0].mxu0
  %v2892 = vadd.f32 %v2795, %v2891
  %v2893 = vpop.f32.mrb[0].mxu0
  %2894 = vmatprep.mubr.bf16.mxu0 %v1116
  %2895 = vmatmul.mubr.bf16.gmra.mrb[0].mxu0 %v1115
  %v2896 = vpop.f32.mrb[0].mxu0
  %v2897 = vadd.f32 %v2800, %v2896
  %v2898 = vpop.f32.mrb[0].mxu0
  %v2899 = vpop.f32.mrb[0].mxu0
  %v2900 = vadd.f32 %v2803, %v2899
  %v2901 = vpop.f32.mrb[0].mxu0
  %2902 = vdwg.mxu0
  %2903 = vmatprep.subr.bf16.mxu0 0
  %2904 = vmatpush1.bf16.msra.mxu0 %v1967
  %2905 = vmatprep.subr.bf16.mxu0 0
  %2906 = vmatpush1.bf16.msra.mxu0 %v1968
  %2907 = vmatprep.subr.bf16.mxu0 0
  %2908 = vmatpush1.bf16.msra.mxu0 %v1969
  %2909 = vmatprep.subr.bf16.mxu0 0
  %2910 = vmatpush1.bf16.msra.mxu0 %v1970
  %2911 = vmatprep.subr.bf16.mxu0 0
  %2912 = vmatpush1.bf16.msra.mxu0 %v1971
  %2913 = vmatprep.subr.bf16.mxu0 0
  %2914 = vmatpush1.bf16.msra.mxu0 %v1972
  %2915 = vmatprep.subr.bf16.mxu0 0
  %2916 = vmatpush1.bf16.msra.mxu0 %v1973
  %2917 = vmatprep.subr.bf16.mxu0 0
  %2918 = vmatpush1.bf16.msra.mxu0 %v1974
  %2919 = vmatprep.subr.bf16.mxu0 0
  %2920 = vmatpush1.bf16.msra.mxu0 %v1975
  %2921 = vmatprep.subr.bf16.mxu0 0
  %2922 = vmatpush1.bf16.msra.mxu0 %v1976
  %2923 = vmatprep.subr.bf16.mxu0 0
  %2924 = vmatpush1.bf16.msra.mxu0 %v1977
  %2925 = vmatprep.subr.bf16.mxu0 0
  %2926 = vmatpush1.bf16.msra.mxu0 %v1978
  %2927 = vmatprep.subr.bf16.mxu0 0
  %2928 = vmatpush1.bf16.msra.mxu0 %v1979
  %2929 = vmatprep.subr.bf16.mxu0 0
  %2930 = vmatpush1.bf16.msra.mxu0 %v1980
  %2931 = vmatprep.subr.bf16.mxu0 0
  %2932 = vmatpush1.bf16.msra.mxu0 %v1981
  %2933 = vmatprep.subr.bf16.mxu0 0
  %2934 = vmatpush1.bf16.msra.mxu0 %v1982
  %2935 = vmatprep.mubr.bf16.mxu0 %v992
  %2936 = vmatmul.mubr.bf16.gmra.mrb[0].mxu0 %v991
  %v2937 = vpop.f32.mrb[0].mxu0
  %v2938 = vadd.f32 %v2841, %v2937
  %v2939 = vpop.f32.mrb[0].mxu0
  %v2940 = vpop.f32.mrb[0].mxu0
  %v2941 = vadd.f32 %v2844, %v2940
  %v2942 = vpop.f32.mrb[0].mxu0
  %2943 = vmatprep.mubr.bf16.mxu0 %v1010
  %2944 = vmatmul.mubr.bf16.gmra.mrb[0].mxu0 %v1009
  %v2945 = vpop.f32.mrb[0].mxu0
  %v2946 = vadd.f32 %v2849, %v2945
  %v2947 = vpop.f32.mrb[0].mxu0
  %v2948 = vpop.f32.mrb[0].mxu0
  %v2949 = vadd.f32 %v2852, %v2948
  %v2950 = vpop.f32.mrb[0].mxu0
  %2951 = vmatprep.mubr.bf16.mxu0 %v1028
  %2952 = vmatmul.mubr.bf16.gmra.mrb[0].mxu0 %v1027
  %v2953 = vpop.f32.mrb[0].mxu0
  %v2954 = vadd.f32 %v2857, %v2953
  %v2955 = vpop.f32.mrb[0].mxu0
  %v2956 = vpop.f32.mrb[0].mxu0
  %v2957 = vadd.f32 %v2860, %v2956
  %v2958 = vpop.f32.mrb[0].mxu0
  %2959 = vmatprep.mubr.bf16.mxu0 %v1046
  %2960 = vmatmul.mubr.bf16.gmra.mrb[0].mxu0 %v1045
  %v2961 = vpop.f32.mrb[0].mxu0
  %v2962 = vadd.f32 %v2865, %v2961
  %v2963 = vpop.f32.mrb[0].mxu0
  %v2964 = vpop.f32.mrb[0].mxu0
  %v2965 = vadd.f32 %v2868, %v2964
  %v2966 = vpop.f32.mrb[0].mxu0
  %2967 = vmatprep.mubr.bf16.mxu0 %v1064
  %2968 = vmatmul.mubr.bf16.gmra.mrb[0].mxu0 %v1063
  %v2969 = vpop.f32.mrb[0].mxu0
  %v2970 = vadd.f32 %v2873, %v2969
  %v2971 = vpop.f32.mrb[0].mxu0
  %v2972 = vpop.f32.mrb[0].mxu0
  %v2973 = vadd.f32 %v2876, %v2972
  %v2974 = vpop.f32.mrb[0].mxu0
  %2975 = vmatprep.mubr.bf16.mxu0 %v1082
  %2976 = vmatmul.mubr.bf16.gmra.mrb[0].mxu0 %v1081
  %v2977 = vpop.f32.mrb[0].mxu0
  %v2978 = vadd.f32 %v2881, %v2977
  %v2979 = vpop.f32.mrb[0].mxu0
  %v2980 = vpop.f32.mrb[0].mxu0
  %v2981 = vadd.f32 %v2884, %v2980
  %v2982 = vpop.f32.mrb[0].mxu0
  %2983 = vmatprep.mubr.bf16.mxu0 %v1100
  %2984 = vmatmul.mubr.bf16.gmra.mrb[0].mxu0 %v1099
  %v2985 = vpop.f32.mrb[0].mxu0
  %v2986 = vadd.f32 %v2889, %v2985
  %v2987 = vpop.f32.mrb[0].mxu0
  %v2988 = vpop.f32.mrb[0].mxu0
  %v2989 = vadd.f32 %v2892, %v2988
  %v2990 = vpop.f32.mrb[0].mxu0
  %2991 = vmatprep.mubr.bf16.mxu0 %v1118
  %2992 = vmatmul.mubr.bf16.gmra.mrb[0].mxu0 %v1117
  %v2993 = vpop.f32.mrb[0].mxu0
  %v2994 = vadd.f32 %v2897, %v2993
  %v2995 = vpop.f32.mrb[0].mxu0
  %v2996 = vpop.f32.mrb[0].mxu0
  %v2997 = vadd.f32 %v2900, %v2996
  %v2998 = vpop.f32.mrb[0].mxu0
  %2999 = vdwg.mxu0
  %vm3000 = vcmp.gt.f32.partialorder %v2938, 0.0
  %vm3001 = vcmp.gt.f32.partialorder %v2941, 0.0
  %vm3002 = vcmp.gt.f32.partialorder %v2946, 0.0
  %vm3003 = vcmp.gt.f32.partialorder %v2949, 0.0
  %vm3004 = vcmp.gt.f32.partialorder %v2954, 0.0
  %vm3005 = vcmp.gt.f32.partialorder %v2957, 0.0
  %vm3006 = vcmp.gt.f32.partialorder %v2962, 0.0
  %vm3007 = vcmp.gt.f32.partialorder %v2965, 0.0
  %vm3008 = vcmp.gt.f32.partialorder %v2970, 0.0
  %vm3009 = vcmp.gt.f32.partialorder %v2973, 0.0
  %vm3010 = vcmp.gt.f32.partialorder %v2978, 0.0
  %vm3011 = vcmp.gt.f32.partialorder %v2981, 0.0
  %vm3012 = vcmp.gt.f32.partialorder %v2986, 0.0
  %vm3013 = vcmp.gt.f32.partialorder %v2989, 0.0
  %vm3014 = vcmp.gt.f32.partialorder %v2994, 0.0
  %vm3015 = vcmp.gt.f32.partialorder %v2997, 0.0
  %v3016 = vmul.f32 %v2938, 0.2
  %v3017 = vmul.f32 %v2941, 0.2
  %v3018 = vmul.f32 %v2946, 0.2
  %v3019 = vmul.f32 %v2949, 0.2
  %v3020 = vmul.f32 %v2954, 0.2
  %v3021 = vmul.f32 %v2957, 0.2
  %v3022 = vmul.f32 %v2962, 0.2
  %v3023 = vmul.f32 %v2965, 0.2
  %v3024 = vmul.f32 %v2970, 0.2
  %v3025 = vmul.f32 %v2973, 0.2
  %v3026 = vmul.f32 %v2978, 0.2
  %v3027 = vmul.f32 %v2981, 0.2
  %v3028 = vmul.f32 %v2986, 0.2
  %v3029 = vmul.f32 %v2989, 0.2
  %v3030 = vmul.f32 %v2994, 0.2
  %v3031 = vmul.f32 %v2997, 0.2
  %v3032 = vsel %vm3000, %v2938, %v3016
  %v3033 = vsel %vm3001, %v2941, %v3017
  %v3034 = vsel %vm3002, %v2946, %v3018
  %v3035 = vsel %vm3003, %v2949, %v3019
  %v3036 = vsel %vm3004, %v2954, %v3020
  %v3037 = vsel %vm3005, %v2957, %v3021
  %v3038 = vsel %vm3006, %v2962, %v3022
  %v3039 = vsel %vm3007, %v2965, %v3023
  %v3040 = vsel %vm3008, %v2970, %v3024
  %v3041 = vsel %vm3009, %v2973, %v3025
  %v3042 = vsel %vm3010, %v2978, %v3026
  %v3043 = vsel %vm3011, %v2981, %v3027
  %v3044 = vsel %vm3012, %v2986, %v3028
  %v3045 = vsel %vm3013, %v2989, %v3029
  %v3046 = vsel %vm3014, %v2994, %v3030
  %v3047 = vsel %vm3015, %v2997, %v3031
  %vm3048 = vcmask 261120
  %3049 = vst.msk [vmem:[%s3] sm:$0xff] %vm3048, %v3032
  %3050 = vst.msk [vmem:[%s3 + $0x8] sm:$0xff] %vm3048, %v3033
  %3051 = vst.msk [vmem:[%s3 + $0x10] sm:$0xff] %vm3048, %v3034
  %3052 = vst.msk [vmem:[%s3 + $0x18] sm:$0xff] %vm3048, %v3035
  %3053 = vst.msk [vmem:[%s3 + $0x20] sm:$0xff] %vm3048, %v3036
  %3054 = vst.msk [vmem:[%s3 + $0x28] sm:$0xff] %vm3048, %v3037
  %3055 = vst.msk [vmem:[%s3 + $0x30] sm:$0xff] %vm3048, %v3038
  %3056 = vst.msk [vmem:[%s3 + $0x38] sm:$0xff] %vm3048, %v3039
  %3057 = vst.msk [vmem:[%s3 + $0x40] sm:$0xff] %vm3048, %v3040
  %3058 = vst.msk [vmem:[%s3 + $0x48] sm:$0xff] %vm3048, %v3041
  %3059 = vst.msk [vmem:[%s3 + $0x50] sm:$0xff] %vm3048, %v3042
  %3060 = vst.msk [vmem:[%s3 + $0x58] sm:$0xff] %vm3048, %v3043
  %3061 = vst.msk [vmem:[%s3 + $0x60] sm:$0xff] %vm3048, %v3044
  %3062 = vst.msk [vmem:[%s3 + $0x68] sm:$0xff] %vm3048, %v3045
  %3063 = vst.msk [vmem:[%s3 + $0x70] sm:$0xff] %vm3048, %v3046
  %3064 = vst.msk [vmem:[%s3 + $0x78] sm:$0xff] %vm3048, %v3047
  // Predicated region
  $region14: #{vae_forward.14} parent=0 // pred_check
    _
  $region15: #{vae_forward.14} parent=0 // pred_check_branch
    %3066 = sbr.rel (0) target = $region17
  $region16: #{vae_forward.14} parent=0 // pred_region
    _
  $region17: #{vae_forward.14} parent=0 // pred_fallthru
    _
  // Predicated region
  $region18: #{vae_forward.14} parent=0 // pred_check
    _
  $region19: #{vae_forward.14} parent=0 // pred_check_branch
    %3068 = sbr.rel (0) target = $region21
  $region20: #{vae_forward.14} parent=0 // pred_region
    _
  $region21: #{vae_forward.14} parent=0 // pred_fallthru
    _

// kernel: vae_forward.15
$region0: #{vae_forward.15}
  #allocation0 [shape = 'u32[]', space=smem, size = 0x4, offset = 0x4, fixed_abs, tag = 'smem constant byte address 0x4 - core index']
  #allocation1 [shape = 'u32[144,128]{1,0:T(1,128)}', space=vmem, size = 0x12000, scoped, tag = 'internal scratch']
  %s0 = inlined_call_operand.vmem [shape: bf16[64,1152], index: 0, kind: input, shape index: {}]
  %s1 = inlined_call_operand.vmem [shape: bf16[1152,128], index: 1, kind: input, shape index: {}]
  %s2 = inlined_call_operand.vmem [shape: f32[64,1], index: 2, kind: input, shape index: {}]
  %s3 = inlined_call_operand.vmem [shape: f32[64,128], index: 3, kind: output, shape index: {}]
  %s4 = sld [smem:[#allocation0]]
  $region22: #{vae_forward.15} parent=0
    _
  %s6 = ssub.s32 1, %s4
  %s7 = scalar_select 0, %s6, %s4
  // Predicated region
  $region2: #{vae_forward.15} parent=0 // pred_check
    _
  $region3: #{vae_forward.15} parent=0 // pred_check_branch
    %9 = sbr.rel (0) target = $region5
  $region4: #{vae_forward.15} parent=0 // pred_region
    _
  $region5: #{vae_forward.15} parent=0 // pred_fallthru
    _
  // Predicated region
  $region6: #{vae_forward.15} parent=0 // pred_check
    _
  $region7: #{vae_forward.15} parent=0 // pred_check_branch
    %11 = sbr.rel (0) target = $region9
  $region8: #{vae_forward.15} parent=0 // pred_region
    _
  $region9: #{vae_forward.15} parent=0 // pred_fallthru
    _
  // Predicated region
  $region10: #{vae_forward.15} parent=0 // pred_check
    _
  $region11: #{vae_forward.15} parent=0 // pred_check_branch
    %13 = sbr.rel (0) target = $region13
  $region12: #{vae_forward.15} parent=0 // pred_region
    _
  $region13: #{vae_forward.15} parent=0 // pred_fallthru
    _
  %v15 = vld [vmem:[%s0] sm:$0xff]
  %v16 = vld [vmem:[%s0 + $0x8] sm:$0xff]
  %v17 = vld [vmem:[%s0 + $0x10] sm:$0xff]
  %v18 = vld [vmem:[%s0 + $0x18] sm:$0xff]
  %v19 = vld [vmem:[%s0 + $0x20] sm:$0xf]
  %v20 = vld [vmem:[%s0 + $0x24] sm:$0xff]
  %v21 = vld [vmem:[%s0 + $0x2c] sm:$0xff]
  %v22 = vld [vmem:[%s0 + $0x34] sm:$0xff]
  %v23 = vld [vmem:[%s0 + $0x3c] sm:$0xff]
  %v24 = vld [vmem:[%s0 + $0x44] sm:$0xf]
  %v25 = vld [vmem:[%s0 + $0x48] sm:$0xff]
  %v26 = vld [vmem:[%s0 + $0x50] sm:$0xff]
  %v27 = vld [vmem:[%s0 + $0x58] sm:$0xff]
  %v28 = vld [vmem:[%s0 + $0x60] sm:$0xff]
  %v29 = vld [vmem:[%s0 + $0x68] sm:$0xf]
  %v30 = vld [vmem:[%s0 + $0x6c] sm:$0xff]
  %v31 = vld [vmem:[%s0 + $0x74] sm:$0xff]
  %v32 = vld [vmem:[%s0 + $0x7c] sm:$0xff]
  %v33 = vld [vmem:[%s0 + $0x84] sm:$0xff]
  %v34 = vld [vmem:[%s0 + $0x8c] sm:$0xf]
  %v35 = vld [vmem:[%s0 + $0x90] sm:$0xff]
  %v36 = vld [vmem:[%s0 + $0x98] sm:$0xff]
  %v37 = vld [vmem:[%s0 + $0xa0] sm:$0xff]
  %v38 = vld [vmem:[%s0 + $0xa8] sm:$0xff]
  %v39 = vld [vmem:[%s0 + $0xb0] sm:$0xf]
  %v40 = vld [vmem:[%s0 + $0xb4] sm:$0xff]
  %v41 = vld [vmem:[%s0 + $0xbc] sm:$0xff]
  %v42 = vld [vmem:[%s0 + $0xc4] sm:$0xff]
  %v43 = vld [vmem:[%s0 + $0xcc] sm:$0xff]
  %v44 = vld [vmem:[%s0 + $0xd4] sm:$0xf]
  %v45 = vld [vmem:[%s0 + $0xd8] sm:$0xff]
  %v46 = vld [vmem:[%s0 + $0xe0] sm:$0xff]
  %v47 = vld [vmem:[%s0 + $0xe8] sm:$0xff]
  %v48 = vld [vmem:[%s0 + $0xf0] sm:$0xff]
  %v49 = vld [vmem:[%s0 + $0xf8] sm:$0xf]
  %v50 = vld [vmem:[%s0 + $0xfc] sm:$0xff]
  %v51 = vld [vmem:[%s0 + $0x104] sm:$0xff]
  %v52 = vld [vmem:[%s0 + $0x10c] sm:$0xff]
  %v53 = vld [vmem:[%s0 + $0x114] sm:$0xff]
  %v54 = vld [vmem:[%s0 + $0x11c] sm:$0xf]
  %v55 = vld [vmem:[%s1] sm:$0xf]
  %v56 = vld [vmem:[%s1 + $0x4] sm:$0xf]
  %v57 = vld [vmem:[%s1 + $0x8] sm:$0xf]
  %v58 = vld [vmem:[%s1 + $0xc] sm:$0xf]
  %v59 = vld [vmem:[%s1 + $0x10] sm:$0xf]
  %v60 = vld [vmem:[%s1 + $0x14] sm:$0xf]
  %v61 = vld [vmem:[%s1 + $0x18] sm:$0xf]
  %v62 = vld [vmem:[%s1 + $0x1c] sm:$0xf]
  %v63 = vld [vmem:[%s1 + $0x20] sm:$0xf]
  %v64 = vld [vmem:[%s1 + $0x24] sm:$0xf]
  %v65 = vld [vmem:[%s1 + $0x28] sm:$0xf]
  %v66 = vld [vmem:[%s1 + $0x2c] sm:$0xf]
  %v67 = vld [vmem:[%s1 + $0x30] sm:$0xf]
  %v68 = vld [vmem:[%s1 + $0x34] sm:$0xf]
  %v69 = vld [vmem:[%s1 + $0x38] sm:$0xf]
  %v70 = vld [vmem:[%s1 + $0x3c] sm:$0xf]
  %v71 = vld [vmem:[%s1 + $0x40] sm:$0xf]
  %v72 = vld [vmem:[%s1 + $0x44] sm:$0xf]
  %v73 = vld [vmem:[%s1 + $0x48] sm:$0xf]
  %v74 = vld [vmem:[%s1 + $0x4c] sm:$0xf]
  %v75 = vld [vmem:[%s1 + $0x50] sm:$0xf]
  %v76 = vld [vmem:[%s1 + $0x54] sm:$0xf]
  %v77 = vld [vmem:[%s1 + $0x58] sm:$0xf]
  %v78 = vld [vmem:[%s1 + $0x5c] sm:$0xf]
  %v79 = vld [vmem:[%s1 + $0x60] sm:$0xf]
  %v80 = vld [vmem:[%s1 + $0x64] sm:$0xf]
  %v81 = vld [vmem:[%s1 + $0x68] sm:$0xf]
  %v82 = vld [vmem:[%s1 + $0x6c] sm:$0xf]
  %v83 = vld [vmem:[%s1 + $0x70] sm:$0xf]
  %v84 = vld [vmem:[%s1 + $0x74] sm:$0xf]
  %v85 = vld [vmem:[%s1 + $0x78] sm:$0xf]
  %v86 = vld [vmem:[%s1 + $0x7c] sm:$0xf]
  %v87 = vld [vmem:[%s1 + $0x80] sm:$0xf]
  %v88 = vld [vmem:[%s1 + $0x84] sm:$0xf]
  %v89 = vld [vmem:[%s1 + $0x88] sm:$0xf]
  %v90 = vld [vmem:[%s1 + $0x8c] sm:$0xf]
  %v91 = vld [vmem:[%s1 + $0x90] sm:$0xf]
  %v92 = vld [vmem:[%s1 + $0x94] sm:$0xf]
  %v93 = vld [vmem:[%s1 + $0x98] sm:$0xf]
  %v94 = vld [vmem:[%s1 + $0x9c] sm:$0xf]
  %v95 = vld [vmem:[%s1 + $0xa0] sm:$0xf]
  %v96 = vld [vmem:[%s1 + $0xa4] sm:$0xf]
  %v97 = vld [vmem:[%s1 + $0xa8] sm:$0xf]
  %v98 = vld [vmem:[%s1 + $0xac] sm:$0xf]
  %v99 = vld [vmem:[%s1 + $0xb0] sm:$0xf]
  %v100 = vld [vmem:[%s1 + $0xb4] sm:$0xf]
  %v101 = vld [vmem:[%s1 + $0xb8] sm:$0xf]
  %v102 = vld [vmem:[%s1 + $0xbc] sm:$0xf]
  %v103 = vld [vmem:[%s1 + $0xc0] sm:$0xf]
  %v104 = vld [vmem:[%s1 + $0xc4] sm:$0xf]
  %v105 = vld [vmem:[%s1 + $0xc8] sm:$0xf]
  %v106 = vld [vmem:[%s1 + $0xcc] sm:$0xf]
  %v107 = vld [vmem:[%s1 + $0xd0] sm:$0xf]
  %v108 = vld [vmem:[%s1 + $0xd4] sm:$0xf]
  %v109 = vld [vmem:[%s1 + $0xd8] sm:$0xf]
  %v110 = vld [vmem:[%s1 + $0xdc] sm:$0xf]
  %v111 = vld [vmem:[%s1 + $0xe0] sm:$0xf]
  %v112 = vld [vmem:[%s1 + $0xe4] sm:$0xf]
  %v113 = vld [vmem:[%s1 + $0xe8] sm:$0xf]
  %v114 = vld [vmem:[%s1 + $0xec] sm:$0xf]
  %v115 = vld [vmem:[%s1 + $0xf0] sm:$0xf]
  %v116 = vld [vmem:[%s1 + $0xf4] sm:$0xf]
  %v117 = vld [vmem:[%s1 + $0xf8] sm:$0xf]
  %v118 = vld [vmem:[%s1 + $0xfc] sm:$0xf]
  %v119 = vld [vmem:[%s1 + $0x100] sm:$0xf]
  %v120 = vld [vmem:[%s1 + $0x104] sm:$0xf]
  %v121 = vld [vmem:[%s1 + $0x108] sm:$0xf]
  %v122 = vld [vmem:[%s1 + $0x10c] sm:$0xf]
  %v123 = vld [vmem:[%s1 + $0x110] sm:$0xf]
  %v124 = vld [vmem:[%s1 + $0x114] sm:$0xf]
  %v125 = vld [vmem:[%s1 + $0x118] sm:$0xf]
  %v126 = vld [vmem:[%s1 + $0x11c] sm:$0xf]
  %v127 = vld [vmem:[%s1 + $0x120] sm:$0xf]
  %v128 = vld [vmem:[%s1 + $0x124] sm:$0xf]
  %v129 = vld [vmem:[%s1 + $0x128] sm:$0xf]
  %v130 = vld [vmem:[%s1 + $0x12c] sm:$0xf]
  %v131 = vld [vmem:[%s1 + $0x130] sm:$0xf]
  %v132 = vld [vmem:[%s1 + $0x134] sm:$0xf]
  %v133 = vld [vmem:[%s1 + $0x138] sm:$0xf]
  %v134 = vld [vmem:[%s1 + $0x13c] sm:$0xf]
  %v135 = vld [vmem:[%s1 + $0x140] sm:$0xf]
  %v136 = vld [vmem:[%s1 + $0x144] sm:$0xf]
  %v137 = vld [vmem:[%s1 + $0x148] sm:$0xf]
  %v138 = vld [vmem:[%s1 + $0x14c] sm:$0xf]
  %v139 = vld [vmem:[%s1 + $0x150] sm:$0xf]
  %v140 = vld [vmem:[%s1 + $0x154] sm:$0xf]
  %v141 = vld [vmem:[%s1 + $0x158] sm:$0xf]
  %v142 = vld [vmem:[%s1 + $0x15c] sm:$0xf]
  %v143 = vld [vmem:[%s1 + $0x160] sm:$0xf]
  %v144 = vld [vmem:[%s1 + $0x164] sm:$0xf]
  %v145 = vld [vmem:[%s1 + $0x168] sm:$0xf]
  %v146 = vld [vmem:[%s1 + $0x16c] sm:$0xf]
  %v147 = vld [vmem:[%s1 + $0x170] sm:$0xf]
  %v148 = vld [vmem:[%s1 + $0x174] sm:$0xf]
  %v149 = vld [vmem:[%s1 + $0x178] sm:$0xf]
  %v150 = vld [vmem:[%s1 + $0x17c] sm:$0xf]
  %v151 = vld [vmem:[%s1 + $0x180] sm:$0xf]
  %v152 = vld [vmem:[%s1 + $0x184] sm:$0xf]
  %v153 = vld [vmem:[%s1 + $0x188] sm:$0xf]
  %v154 = vld [vmem:[%s1 + $0x18c] sm:$0xf]
  %v155 = vld [vmem:[%s1 + $0x190] sm:$0xf]
  %v156 = vld [vmem:[%s1 + $0x194] sm:$0xf]
  %v157 = vld [vmem:[%s1 + $0x198] sm:$0xf]
  %v158 = vld [vmem:[%s1 + $0x19c] sm:$0xf]
  %v159 = vld [vmem:[%s1 + $0x1a0] sm:$0xf]
  %v160 = vld [vmem:[%s1 + $0x1a4] sm:$0xf]
  %v161 = vld [vmem:[%s1 + $0x1a8] sm:$0xf]
  %v162 = vld [vmem:[%s1 + $0x1ac] sm:$0xf]
  %v163 = vld [vmem:[%s1 + $0x1b0] sm:$0xf]
  %v164 = vld [vmem:[%s1 + $0x1b4] sm:$0xf]
  %v165 = vld [vmem:[%s1 + $0x1b8] sm:$0xf]
  %v166 = vld [vmem:[%s1 + $0x1bc] sm:$0xf]
  %v167 = vld [vmem:[%s1 + $0x1c0] sm:$0xf]
  %v168 = vld [vmem:[%s1 + $0x1c4] sm:$0xf]
  %v169 = vld [vmem:[%s1 + $0x1c8] sm:$0xf]
  %v170 = vld [vmem:[%s1 + $0x1cc] sm:$0xf]
  %v171 = vld [vmem:[%s1 + $0x1d0] sm:$0xf]
  %v172 = vld [vmem:[%s1 + $0x1d4] sm:$0xf]
  %v173 = vld [vmem:[%s1 + $0x1d8] sm:$0xf]
  %v174 = vld [vmem:[%s1 + $0x1dc] sm:$0xf]
  %v175 = vld [vmem:[%s1 + $0x1e0] sm:$0xf]
  %v176 = vld [vmem:[%s1 + $0x1e4] sm:$0xf]
  %v177 = vld [vmem:[%s1 + $0x1e8] sm:$0xf]
  %v178 = vld [vmem:[%s1 + $0x1ec] sm:$0xf]
  %v179 = vld [vmem:[%s1 + $0x1f0] sm:$0xf]
  %v180 = vld [vmem:[%s1 + $0x1f4] sm:$0xf]
  %v181 = vld [vmem:[%s1 + $0x1f8] sm:$0xf]
  %v182 = vld [vmem:[%s1 + $0x1fc] sm:$0xf]
  %v183 = vld [vmem:[%s1 + $0x200] sm:$0xf]
  %v184 = vld [vmem:[%s1 + $0x204] sm:$0xf]
  %v185 = vld [vmem:[%s1 + $0x208] sm:$0xf]
  %v186 = vld [vmem:[%s1 + $0x20c] sm:$0xf]
  %v187 = vld [vmem:[%s1 + $0x210] sm:$0xf]
  %v188 = vld [vmem:[%s1 + $0x214] sm:$0xf]
  %v189 = vld [vmem:[%s1 + $0x218] sm:$0xf]
  %v190 = vld [vmem:[%s1 + $0x21c] sm:$0xf]
  %v191 = vld [vmem:[%s1 + $0x220] sm:$0xf]
  %v192 = vld [vmem:[%s1 + $0x224] sm:$0xf]
  %v193 = vld [vmem:[%s1 + $0x228] sm:$0xf]
  %v194 = vld [vmem:[%s1 + $0x22c] sm:$0xf]
  %v195 = vld [vmem:[%s1 + $0x230] sm:$0xf]
  %v196 = vld [vmem:[%s1 + $0x234] sm:$0xf]
  %v197 = vld [vmem:[%s1 + $0x238] sm:$0xf]
  %v198 = vld [vmem:[%s1 + $0x23c] sm:$0xf]
  %v199 = vld [vmem:[%s2] sm:$0xff]
  %v200 = vld [vmem:[%s2 + $0x8] sm:$0xff]
  %v201 = vld [vmem:[%s2 + $0x10] sm:$0xff]
  %v202 = vld [vmem:[%s2 + $0x18] sm:$0xff]
  %v203 = vld [vmem:[%s2 + $0x20] sm:$0xff]
  %v204 = vld [vmem:[%s2 + $0x28] sm:$0xff]
  %v205 = vld [vmem:[%s2 + $0x30] sm:$0xff]
  %v206 = vld [vmem:[%s2 + $0x38] sm:$0xff]
  %208 = vset.pattern.permute.xlu0 0
  %209 = vperm.xlu0 %208, %v199
  %v210 = vpop.permute.xlu0 %209
  %213 = vset.pattern.permute.xlu0 0
  %214 = vperm.xlu0 %213, %v200
  %v215 = vpop.permute.xlu0 %214
  %218 = vset.pattern.permute.xlu0 0
  %219 = vperm.xlu0 %218, %v201
  %v220 = vpop.permute.xlu0 %219
  %223 = vset.pattern.permute.xlu0 0
  %224 = vperm.xlu0 %223, %v202
  %v225 = vpop.permute.xlu0 %224
  %228 = vset.pattern.permute.xlu0 0
  %229 = vperm.xlu0 %228, %v203
  %v230 = vpop.permute.xlu0 %229
  %233 = vset.pattern.permute.xlu0 0
  %234 = vperm.xlu0 %233, %v204
  %v235 = vpop.permute.xlu0 %234
  %238 = vset.pattern.permute.xlu0 0
  %239 = vperm.xlu0 %238, %v205
  %v240 = vpop.permute.xlu0 %239
  %243 = vset.pattern.permute.xlu0 0
  %244 = vperm.xlu0 %243, %v206
  %v245 = vpop.permute.xlu0 %244
  %v287 = vunpack.c.l.b16 %v15
  %v288 = vunpack.c.h.b16 %v15
  %v289 = vunpack.c.l.b16 %v16
  %v290 = vunpack.c.h.b16 %v16
  %v291 = vunpack.c.l.b16 %v17
  %v292 = vunpack.c.h.b16 %v17
  %v293 = vunpack.c.l.b16 %v18
  %v294 = vunpack.c.h.b16 %v18
  %v295 = vunpack.c.l.b16 %v19
  %v296 = vunpack.c.l.b16 %v20
  %v297 = vunpack.c.h.b16 %v20
  %v298 = vunpack.c.l.b16 %v21
  %v299 = vunpack.c.h.b16 %v21
  %v300 = vunpack.c.l.b16 %v22
  %v301 = vunpack.c.h.b16 %v22
  %v302 = vunpack.c.l.b16 %v23
  %v303 = vunpack.c.h.b16 %v23
  %v304 = vunpack.c.l.b16 %v24
  %v305 = vunpack.c.l.b16 %v25
  %v306 = vunpack.c.h.b16 %v25
  %v307 = vunpack.c.l.b16 %v26
  %v308 = vunpack.c.h.b16 %v26
  %v309 = vunpack.c.l.b16 %v27
  %v310 = vunpack.c.h.b16 %v27
  %v311 = vunpack.c.l.b16 %v28
  %v312 = vunpack.c.h.b16 %v28
  %v313 = vunpack.c.l.b16 %v29
  %v314 = vunpack.c.l.b16 %v30
  %v315 = vunpack.c.h.b16 %v30
  %v316 = vunpack.c.l.b16 %v31
  %v317 = vunpack.c.h.b16 %v31
  %v318 = vunpack.c.l.b16 %v32
  %v319 = vunpack.c.h.b16 %v32
  %v320 = vunpack.c.l.b16 %v33
  %v321 = vunpack.c.h.b16 %v33
  %v322 = vunpack.c.l.b16 %v34
  %v323 = vunpack.c.l.b16 %v35
  %v324 = vunpack.c.h.b16 %v35
  %v325 = vunpack.c.l.b16 %v36
  %v326 = vunpack.c.h.b16 %v36
  %v327 = vunpack.c.l.b16 %v37
  %v328 = vunpack.c.h.b16 %v37
  %v329 = vunpack.c.l.b16 %v38
  %v330 = vunpack.c.h.b16 %v38
  %v331 = vunpack.c.l.b16 %v39
  %v332 = vunpack.c.l.b16 %v40
  %v333 = vunpack.c.h.b16 %v40
  %v334 = vunpack.c.l.b16 %v41
  %v335 = vunpack.c.h.b16 %v41
  %v336 = vunpack.c.l.b16 %v42
  %v337 = vunpack.c.h.b16 %v42
  %v338 = vunpack.c.l.b16 %v43
  %v339 = vunpack.c.h.b16 %v43
  %v340 = vunpack.c.l.b16 %v44
  %v341 = vunpack.c.l.b16 %v45
  %v342 = vunpack.c.h.b16 %v45
  %v343 = vunpack.c.l.b16 %v46
  %v344 = vunpack.c.h.b16 %v46
  %v345 = vunpack.c.l.b16 %v47
  %v346 = vunpack.c.h.b16 %v47
  %v347 = vunpack.c.l.b16 %v48
  %v348 = vunpack.c.h.b16 %v48
  %v349 = vunpack.c.l.b16 %v49
  %v350 = vunpack.c.l.b16 %v50
  %v351 = vunpack.c.h.b16 %v50
  %v352 = vunpack.c.l.b16 %v51
  %v353 = vunpack.c.h.b16 %v51
  %v354 = vunpack.c.l.b16 %v52
  %v355 = vunpack.c.h.b16 %v52
  %v356 = vunpack.c.l.b16 %v53
  %v357 = vunpack.c.h.b16 %v53
  %v358 = vunpack.c.l.b16 %v54
  %v359 = vpack.c.b16 %v296, %v287
  %v360 = vpack.c.b16 %v297, %v288
  %v361 = vpack.c.b16 %v298, %v289
  %v362 = vpack.c.b16 %v299, %v290
  %v363 = vpack.c.b16 %v300, %v291
  %v364 = vpack.c.b16 %v301, %v292
  %v365 = vpack.c.b16 %v302, %v293
  %v366 = vpack.c.b16 %v303, %v294
  %v367 = vpack.c.b16 %v304, %v295
  %v368 = vpack.c.b16 %v314, %v305
  %v369 = vpack.c.b16 %v315, %v306
  %v370 = vpack.c.b16 %v316, %v307
  %v371 = vpack.c.b16 %v317, %v308
  %v372 = vpack.c.b16 %v318, %v309
  %v373 = vpack.c.b16 %v319, %v310
  %v374 = vpack.c.b16 %v320, %v311
  %v375 = vpack.c.b16 %v321, %v312
  %v376 = vpack.c.b16 %v322, %v313
  %v377 = vpack.c.b16 %v332, %v323
  %v378 = vpack.c.b16 %v333, %v324
  %v379 = vpack.c.b16 %v334, %v325
  %v380 = vpack.c.b16 %v335, %v326
  %v381 = vpack.c.b16 %v336, %v327
  %v382 = vpack.c.b16 %v337, %v328
  %v383 = vpack.c.b16 %v338, %v329
  %v384 = vpack.c.b16 %v339, %v330
  %v385 = vpack.c.b16 %v340, %v331
  %v386 = vpack.c.b16 %v350, %v341
  %v387 = vpack.c.b16 %v351, %v342
  %v388 = vpack.c.b16 %v352, %v343
  %v389 = vpack.c.b16 %v353, %v344
  %v390 = vpack.c.b16 %v354, %v345
  %v391 = vpack.c.b16 %v355, %v346
  %v392 = vpack.c.b16 %v356, %v347
  %v393 = vpack.c.b16 %v357, %v348
  %v394 = vpack.c.b16 %v358, %v349
  %v575 = vunpack.c.l.b16 %v55
  %v576 = vunpack.c.l.b16 %v56
  %v577 = vunpack.c.l.b16 %v57
  %v578 = vunpack.c.l.b16 %v58
  %v579 = vunpack.c.l.b16 %v59
  %v580 = vunpack.c.l.b16 %v60
  %v581 = vunpack.c.l.b16 %v61
  %v582 = vunpack.c.l.b16 %v62
  %v583 = vunpack.c.l.b16 %v63
  %v584 = vunpack.c.l.b16 %v64
  %v585 = vunpack.c.l.b16 %v65
  %v586 = vunpack.c.l.b16 %v66
  %v587 = vunpack.c.l.b16 %v67
  %v588 = vunpack.c.l.b16 %v68
  %v589 = vunpack.c.l.b16 %v69
  %v590 = vunpack.c.l.b16 %v70
  %v591 = vunpack.c.l.b16 %v71
  %v592 = vunpack.c.l.b16 %v72
  %v593 = vunpack.c.l.b16 %v73
  %v594 = vunpack.c.l.b16 %v74
  %v595 = vunpack.c.l.b16 %v75
  %v596 = vunpack.c.l.b16 %v76
  %v597 = vunpack.c.l.b16 %v77
  %v598 = vunpack.c.l.b16 %v78
  %v599 = vunpack.c.l.b16 %v79
  %v600 = vunpack.c.l.b16 %v80
  %v601 = vunpack.c.l.b16 %v81
  %v602 = vunpack.c.l.b16 %v82
  %v603 = vunpack.c.l.b16 %v83
  %v604 = vunpack.c.l.b16 %v84
  %v605 = vunpack.c.l.b16 %v85
  %v606 = vunpack.c.l.b16 %v86
  %v607 = vunpack.c.l.b16 %v87
  %v608 = vunpack.c.l.b16 %v88
  %v609 = vunpack.c.l.b16 %v89
  %v610 = vunpack.c.l.b16 %v90
  %v611 = vunpack.c.l.b16 %v91
  %v612 = vunpack.c.l.b16 %v92
  %v613 = vunpack.c.l.b16 %v93
  %v614 = vunpack.c.l.b16 %v94
  %v615 = vunpack.c.l.b16 %v95
  %v616 = vunpack.c.l.b16 %v96
  %v617 = vunpack.c.l.b16 %v97
  %v618 = vunpack.c.l.b16 %v98
  %v619 = vunpack.c.l.b16 %v99
  %v620 = vunpack.c.l.b16 %v100
  %v621 = vunpack.c.l.b16 %v101
  %v622 = vunpack.c.l.b16 %v102
  %v623 = vunpack.c.l.b16 %v103
  %v624 = vunpack.c.l.b16 %v104
  %v625 = vunpack.c.l.b16 %v105
  %v626 = vunpack.c.l.b16 %v106
  %v627 = vunpack.c.l.b16 %v107
  %v628 = vunpack.c.l.b16 %v108
  %v629 = vunpack.c.l.b16 %v109
  %v630 = vunpack.c.l.b16 %v110
  %v631 = vunpack.c.l.b16 %v111
  %v632 = vunpack.c.l.b16 %v112
  %v633 = vunpack.c.l.b16 %v113
  %v634 = vunpack.c.l.b16 %v114
  %v635 = vunpack.c.l.b16 %v115
  %v636 = vunpack.c.l.b16 %v116
  %v637 = vunpack.c.l.b16 %v117
  %v638 = vunpack.c.l.b16 %v118
  %v639 = vunpack.c.l.b16 %v119
  %v640 = vunpack.c.l.b16 %v120
  %v641 = vunpack.c.l.b16 %v121
  %v642 = vunpack.c.l.b16 %v122
  %v643 = vunpack.c.l.b16 %v123
  %v644 = vunpack.c.l.b16 %v124
  %v645 = vunpack.c.l.b16 %v125
  %v646 = vunpack.c.l.b16 %v126
  %v647 = vunpack.c.l.b16 %v127
  %v648 = vunpack.c.l.b16 %v128
  %v649 = vunpack.c.l.b16 %v129
  %v650 = vunpack.c.l.b16 %v130
  %v651 = vunpack.c.l.b16 %v131
  %v652 = vunpack.c.l.b16 %v132
  %v653 = vunpack.c.l.b16 %v133
  %v654 = vunpack.c.l.b16 %v134
  %v655 = vunpack.c.l.b16 %v135
  %v656 = vunpack.c.l.b16 %v136
  %v657 = vunpack.c.l.b16 %v137
  %v658 = vunpack.c.l.b16 %v138
  %v659 = vunpack.c.l.b16 %v139
  %v660 = vunpack.c.l.b16 %v140
  %v661 = vunpack.c.l.b16 %v141
  %v662 = vunpack.c.l.b16 %v142
  %v663 = vunpack.c.l.b16 %v143
  %v664 = vunpack.c.l.b16 %v144
  %v665 = vunpack.c.l.b16 %v145
  %v666 = vunpack.c.l.b16 %v146
  %v667 = vunpack.c.l.b16 %v147
  %v668 = vunpack.c.l.b16 %v148
  %v669 = vunpack.c.l.b16 %v149
  %v670 = vunpack.c.l.b16 %v150
  %v671 = vunpack.c.l.b16 %v151
  %v672 = vunpack.c.l.b16 %v152
  %v673 = vunpack.c.l.b16 %v153
  %v674 = vunpack.c.l.b16 %v154
  %v675 = vunpack.c.l.b16 %v155
  %v676 = vunpack.c.l.b16 %v156
  %v677 = vunpack.c.l.b16 %v157
  %v678 = vunpack.c.l.b16 %v158
  %v679 = vunpack.c.l.b16 %v159
  %v680 = vunpack.c.l.b16 %v160
  %v681 = vunpack.c.l.b16 %v161
  %v682 = vunpack.c.l.b16 %v162
  %v683 = vunpack.c.l.b16 %v163
  %v684 = vunpack.c.l.b16 %v164
  %v685 = vunpack.c.l.b16 %v165
  %v686 = vunpack.c.l.b16 %v166
  %v687 = vunpack.c.l.b16 %v167
  %v688 = vunpack.c.l.b16 %v168
  %v689 = vunpack.c.l.b16 %v169
  %v690 = vunpack.c.l.b16 %v170
  %v691 = vunpack.c.l.b16 %v171
  %v692 = vunpack.c.l.b16 %v172
  %v693 = vunpack.c.l.b16 %v173
  %v694 = vunpack.c.l.b16 %v174
  %v695 = vunpack.c.l.b16 %v175
  %v696 = vunpack.c.l.b16 %v176
  %v697 = vunpack.c.l.b16 %v177
  %v698 = vunpack.c.l.b16 %v178
  %v699 = vunpack.c.l.b16 %v179
  %v700 = vunpack.c.l.b16 %v180
  %v701 = vunpack.c.l.b16 %v181
  %v702 = vunpack.c.l.b16 %v182
  %v703 = vunpack.c.l.b16 %v183
  %v704 = vunpack.c.l.b16 %v184
  %v705 = vunpack.c.l.b16 %v185
  %v706 = vunpack.c.l.b16 %v186
  %v707 = vunpack.c.l.b16 %v187
  %v708 = vunpack.c.l.b16 %v188
  %v709 = vunpack.c.l.b16 %v189
  %v710 = vunpack.c.l.b16 %v190
  %v711 = vunpack.c.l.b16 %v191
  %v712 = vunpack.c.l.b16 %v192
  %v713 = vunpack.c.l.b16 %v193
  %v714 = vunpack.c.l.b16 %v194
  %v715 = vunpack.c.l.b16 %v195
  %v716 = vunpack.c.l.b16 %v196
  %v717 = vunpack.c.l.b16 %v197
  %v718 = vunpack.c.l.b16 %v198
  %v719 = vpack.c.b16 %v576, %v575
  %v720 = vpack.c.b16 %v578, %v577
  %v721 = vpack.c.b16 %v580, %v579
  %v722 = vpack.c.b16 %v582, %v581
  %v723 = vpack.c.b16 %v584, %v583
  %v724 = vpack.c.b16 %v586, %v585
  %v725 = vpack.c.b16 %v588, %v587
  %v726 = vpack.c.b16 %v590, %v589
  %v727 = vpack.c.b16 %v592, %v591
  %v728 = vpack.c.b16 %v594, %v593
  %v729 = vpack.c.b16 %v596, %v595
  %v730 = vpack.c.b16 %v598, %v597
  %v731 = vpack.c.b16 %v600, %v599
  %v732 = vpack.c.b16 %v602, %v601
  %v733 = vpack.c.b16 %v604, %v603
  %v734 = vpack.c.b16 %v606, %v605
  %v735 = vpack.c.b16 %v608, %v607
  %v736 = vpack.c.b16 %v610, %v609
  %v737 = vpack.c.b16 %v612, %v611
  %v738 = vpack.c.b16 %v614, %v613
  %v739 = vpack.c.b16 %v616, %v615
  %v740 = vpack.c.b16 %v618, %v617
  %v741 = vpack.c.b16 %v620, %v619
  %v742 = vpack.c.b16 %v622, %v621
  %v743 = vpack.c.b16 %v624, %v623
  %v744 = vpack.c.b16 %v626, %v625
  %v745 = vpack.c.b16 %v628, %v627
  %v746 = vpack.c.b16 %v630, %v629
  %v747 = vpack.c.b16 %v632, %v631
  %v748 = vpack.c.b16 %v634, %v633
  %v749 = vpack.c.b16 %v636, %v635
  %v750 = vpack.c.b16 %v638, %v637
  %v751 = vpack.c.b16 %v640, %v639
  %v752 = vpack.c.b16 %v642, %v641
  %v753 = vpack.c.b16 %v644, %v643
  %v754 = vpack.c.b16 %v646, %v645
  %v755 = vpack.c.b16 %v648, %v647
  %v756 = vpack.c.b16 %v650, %v649
  %v757 = vpack.c.b16 %v652, %v651
  %v758 = vpack.c.b16 %v654, %v653
  %v759 = vpack.c.b16 %v656, %v655
  %v760 = vpack.c.b16 %v658, %v657
  %v761 = vpack.c.b16 %v660, %v659
  %v762 = vpack.c.b16 %v662, %v661
  %v763 = vpack.c.b16 %v664, %v663
  %v764 = vpack.c.b16 %v666, %v665
  %v765 = vpack.c.b16 %v668, %v667
  %v766 = vpack.c.b16 %v670, %v669
  %v767 = vpack.c.b16 %v672, %v671
  %v768 = vpack.c.b16 %v674, %v673
  %v769 = vpack.c.b16 %v676, %v675
  %v770 = vpack.c.b16 %v678, %v677
  %v771 = vpack.c.b16 %v680, %v679
  %v772 = vpack.c.b16 %v682, %v681
  %v773 = vpack.c.b16 %v684, %v683
  %v774 = vpack.c.b16 %v686, %v685
  %v775 = vpack.c.b16 %v688, %v687
  %v776 = vpack.c.b16 %v690, %v689
  %v777 = vpack.c.b16 %v692, %v691
  %v778 = vpack.c.b16 %v694, %v693
  %v779 = vpack.c.b16 %v696, %v695
  %v780 = vpack.c.b16 %v698, %v697
  %v781 = vpack.c.b16 %v700, %v699
  %v782 = vpack.c.b16 %v702, %v701
  %v783 = vpack.c.b16 %v704, %v703
  %v784 = vpack.c.b16 %v706, %v705
  %v785 = vpack.c.b16 %v708, %v707
  %v786 = vpack.c.b16 %v710, %v709
  %v787 = vpack.c.b16 %v712, %v711
  %v788 = vpack.c.b16 %v714, %v713
  %v789 = vpack.c.b16 %v716, %v715
  %v790 = vpack.c.b16 %v718, %v717
  %863 = vmatprep.subr.bf16.mxu0 0
  %864 = vmatpush1.bf16.msra.mxu0 %v719
  %865 = vmatprep.subr.bf16.mxu0 0
  %866 = vmatpush1.bf16.msra.mxu0 %v720
  %867 = vmatprep.subr.bf16.mxu0 0
  %868 = vmatpush1.bf16.msra.mxu0 %v721
  %869 = vmatprep.subr.bf16.mxu0 0
  %870 = vmatpush1.bf16.msra.mxu0 %v722
  %871 = vmatprep.subr.bf16.mxu0 0
  %872 = vmatpush1.bf16.msra.mxu0 %v723
  %873 = vmatprep.subr.bf16.mxu0 0
  %874 = vmatpush1.bf16.msra.mxu0 %v724
  %875 = vmatprep.subr.bf16.mxu0 0
  %876 = vmatpush1.bf16.msra.mxu0 %v725
  %877 = vmatprep.subr.bf16.mxu0 0
  %878 = vmatpush1.bf16.msra.mxu0 %v726
  %879 = vmatprep.subr.bf16.mxu0 0
  %880 = vmatpush1.bf16.msra.mxu0 %v727
  %881 = vmatprep.subr.bf16.mxu0 0
  %882 = vmatpush1.bf16.msra.mxu0 %v728
  %883 = vmatprep.subr.bf16.mxu0 0
  %884 = vmatpush1.bf16.msra.mxu0 %v729
  %885 = vmatprep.subr.bf16.mxu0 0
  %886 = vmatpush1.bf16.msra.mxu0 %v730
  %887 = vmatprep.subr.bf16.mxu0 0
  %888 = vmatpush1.bf16.msra.mxu0 %v731
  %889 = vmatprep.subr.bf16.mxu0 0
  %890 = vmatpush1.bf16.msra.mxu0 %v732
  %891 = vmatprep.subr.bf16.mxu0 0
  %892 = vmatpush1.bf16.msra.mxu0 %v733
  %893 = vmatprep.subr.bf16.mxu0 0
  %894 = vmatpush1.bf16.msra.mxu0 %v734
  %895 = vmatprep.mubr.bf16.mxu0 %v360
  %896 = vmatmul.mubr.bf16.gmra.mrb[0].mxu0 %v359
  %v897 = vpop.f32.mrb[0].mxu0
  %v898 = vadd.f32 %v210, %v897
  %v899 = vpop.f32.mrb[0].mxu0
  %v900 = vpop.f32.mrb[0].mxu0
  %v901 = vadd.f32 %v215, %v900
  %v902 = vpop.f32.mrb[0].mxu0
  %903 = vmatprep.mubr.bf16.mxu0 %v369
  %904 = vmatmul.mubr.bf16.gmra.mrb[0].mxu0 %v368
  %v905 = vpop.f32.mrb[0].mxu0
  %v906 = vadd.f32 %v220, %v905
  %v907 = vpop.f32.mrb[0].mxu0
  %v908 = vpop.f32.mrb[0].mxu0
  %v909 = vadd.f32 %v225, %v908
  %v910 = vpop.f32.mrb[0].mxu0
  %911 = vmatprep.mubr.bf16.mxu0 %v378
  %912 = vmatmul.mubr.bf16.gmra.mrb[0].mxu0 %v377
  %v913 = vpop.f32.mrb[0].mxu0
  %v914 = vadd.f32 %v230, %v913
  %v915 = vpop.f32.mrb[0].mxu0
  %v916 = vpop.f32.mrb[0].mxu0
  %v917 = vadd.f32 %v235, %v916
  %v918 = vpop.f32.mrb[0].mxu0
  %919 = vmatprep.mubr.bf16.mxu0 %v387
  %920 = vmatmul.mubr.bf16.gmra.mrb[0].mxu0 %v386
  %v921 = vpop.f32.mrb[0].mxu0
  %v922 = vadd.f32 %v240, %v921
  %v923 = vpop.f32.mrb[0].mxu0
  %v924 = vpop.f32.mrb[0].mxu0
  %v925 = vadd.f32 %v245, %v924
  %v926 = vpop.f32.mrb[0].mxu0
  %927 = vdwg.mxu0
  %928 = vmatprep.subr.bf16.mxu0 0
  %929 = vmatpush1.bf16.msra.mxu0 %v735
  %930 = vmatprep.subr.bf16.mxu0 0
  %931 = vmatpush1.bf16.msra.mxu0 %v736
  %932 = vmatprep.subr.bf16.mxu0 0
  %933 = vmatpush1.bf16.msra.mxu0 %v737
  %934 = vmatprep.subr.bf16.mxu0 0
  %935 = vmatpush1.bf16.msra.mxu0 %v738
  %936 = vmatprep.subr.bf16.mxu0 0
  %937 = vmatpush1.bf16.msra.mxu0 %v739
  %938 = vmatprep.subr.bf16.mxu0 0
  %939 = vmatpush1.bf16.msra.mxu0 %v740
  %940 = vmatprep.subr.bf16.mxu0 0
  %941 = vmatpush1.bf16.msra.mxu0 %v741
  %942 = vmatprep.subr.bf16.mxu0 0
  %943 = vmatpush1.bf16.msra.mxu0 %v742
  %944 = vmatprep.subr.bf16.mxu0 0
  %945 = vmatpush1.bf16.msra.mxu0 %v743
  %946 = vmatprep.subr.bf16.mxu0 0
  %947 = vmatpush1.bf16.msra.mxu0 %v744
  %948 = vmatprep.subr.bf16.mxu0 0
  %949 = vmatpush1.bf16.msra.mxu0 %v745
  %950 = vmatprep.subr.bf16.mxu0 0
  %951 = vmatpush1.bf16.msra.mxu0 %v746
  %952 = vmatprep.subr.bf16.mxu0 0
  %953 = vmatpush1.bf16.msra.mxu0 %v747
  %954 = vmatprep.subr.bf16.mxu0 0
  %955 = vmatpush1.bf16.msra.mxu0 %v748
  %956 = vmatprep.subr.bf16.mxu0 0
  %957 = vmatpush1.bf16.msra.mxu0 %v749
  %958 = vmatprep.subr.bf16.mxu0 0
  %959 = vmatpush1.bf16.msra.mxu0 %v750
  %960 = vmatprep.mubr.bf16.mxu0 %v362
  %961 = vmatmul.mubr.bf16.gmra.mrb[0].mxu0 %v361
  %v962 = vpop.f32.mrb[0].mxu0
  %v963 = vadd.f32 %v898, %v962
  %v964 = vpop.f32.mrb[0].mxu0
  %v965 = vpop.f32.mrb[0].mxu0
  %v966 = vadd.f32 %v901, %v965
  %v967 = vpop.f32.mrb[0].mxu0
  %968 = vmatprep.mubr.bf16.mxu0 %v371
  %969 = vmatmul.mubr.bf16.gmra.mrb[0].mxu0 %v370
  %v970 = vpop.f32.mrb[0].mxu0
  %v971 = vadd.f32 %v906, %v970
  %v972 = vpop.f32.mrb[0].mxu0
  %v973 = vpop.f32.mrb[0].mxu0
  %v974 = vadd.f32 %v909, %v973
  %v975 = vpop.f32.mrb[0].mxu0
  %976 = vmatprep.mubr.bf16.mxu0 %v380
  %977 = vmatmul.mubr.bf16.gmra.mrb[0].mxu0 %v379
  %v978 = vpop.f32.mrb[0].mxu0
  %v979 = vadd.f32 %v914, %v978
  %v980 = vpop.f32.mrb[0].mxu0
  %v981 = vpop.f32.mrb[0].mxu0
  %v982 = vadd.f32 %v917, %v981
  %v983 = vpop.f32.mrb[0].mxu0
  %984 = vmatprep.mubr.bf16.mxu0 %v389
  %985 = vmatmul.mubr.bf16.gmra.mrb[0].mxu0 %v388
  %v986 = vpop.f32.mrb[0].mxu0
  %v987 = vadd.f32 %v922, %v986
  %v988 = vpop.f32.mrb[0].mxu0
  %v989 = vpop.f32.mrb[0].mxu0
  %v990 = vadd.f32 %v925, %v989
  %v991 = vpop.f32.mrb[0].mxu0
  %992 = vdwg.mxu0
  %993 = vmatprep.subr.bf16.mxu0 0
  %994 = vmatpush1.bf16.msra.mxu0 %v751
  %995 = vmatprep.subr.bf16.mxu0 0
  %996 = vmatpush1.bf16.msra.mxu0 %v752
  %997 = vmatprep.subr.bf16.mxu0 0
  %998 = vmatpush1.bf16.msra.mxu0 %v753
  %999 = vmatprep.subr.bf16.mxu0 0
  %1000 = vmatpush1.bf16.msra.mxu0 %v754
  %1001 = vmatprep.subr.bf16.mxu0 0
  %1002 = vmatpush1.bf16.msra.mxu0 %v755
  %1003 = vmatprep.subr.bf16.mxu0 0
  %1004 = vmatpush1.bf16.msra.mxu0 %v756
  %1005 = vmatprep.subr.bf16.mxu0 0
  %1006 = vmatpush1.bf16.msra.mxu0 %v757
  %1007 = vmatprep.subr.bf16.mxu0 0
  %1008 = vmatpush1.bf16.msra.mxu0 %v758
  %1009 = vmatprep.subr.bf16.mxu0 0
  %1010 = vmatpush1.bf16.msra.mxu0 %v759
  %1011 = vmatprep.subr.bf16.mxu0 0
  %1012 = vmatpush1.bf16.msra.mxu0 %v760
  %1013 = vmatprep.subr.bf16.mxu0 0
  %1014 = vmatpush1.bf16.msra.mxu0 %v761
  %1015 = vmatprep.subr.bf16.mxu0 0
  %1016 = vmatpush1.bf16.msra.mxu0 %v762
  %1017 = vmatprep.subr.bf16.mxu0 0
  %1018 = vmatpush1.bf16.msra.mxu0 %v763
  %1019 = vmatprep.subr.bf16.mxu0 0
  %1020 = vmatpush1.bf16.msra.mxu0 %v764
  %1021 = vmatprep.subr.bf16.mxu0 0
  %1022 = vmatpush1.bf16.msra.mxu0 %v765
  %1023 = vmatprep.subr.bf16.mxu0 0
  %1024 = vmatpush1.bf16.msra.mxu0 %v766
  %1025 = vmatprep.mubr.bf16.mxu0 %v364
  %1026 = vmatmul.mubr.bf16.gmra.mrb[0].mxu0 %v363
  %v1027 = vpop.f32.mrb[0].mxu0
  %v1028 = vadd.f32 %v963, %v1027
  %v1029 = vpop.f32.mrb[0].mxu0
  %v1030 = vpop.f32.mrb[0].mxu0
  %v1031 = vadd.f32 %v966, %v1030
  %v1032 = vpop.f32.mrb[0].mxu0
  %1033 = vmatprep.mubr.bf16.mxu0 %v373
  %1034 = vmatmul.mubr.bf16.gmra.mrb[0].mxu0 %v372
  %v1035 = vpop.f32.mrb[0].mxu0
  %v1036 = vadd.f32 %v971, %v1035
  %v1037 = vpop.f32.mrb[0].mxu0
  %v1038 = vpop.f32.mrb[0].mxu0
  %v1039 = vadd.f32 %v974, %v1038
  %v1040 = vpop.f32.mrb[0].mxu0
  %1041 = vmatprep.mubr.bf16.mxu0 %v382
  %1042 = vmatmul.mubr.bf16.gmra.mrb[0].mxu0 %v381
  %v1043 = vpop.f32.mrb[0].mxu0
  %v1044 = vadd.f32 %v979, %v1043
  %v1045 = vpop.f32.mrb[0].mxu0
  %v1046 = vpop.f32.mrb[0].mxu0
  %v1047 = vadd.f32 %v982, %v1046
  %v1048 = vpop.f32.mrb[0].mxu0
  %1049 = vmatprep.mubr.bf16.mxu0 %v391
  %1050 = vmatmul.mubr.bf16.gmra.mrb[0].mxu0 %v390
  %v1051 = vpop.f32.mrb[0].mxu0
  %v1052 = vadd.f32 %v987, %v1051
  %v1053 = vpop.f32.mrb[0].mxu0
  %v1054 = vpop.f32.mrb[0].mxu0
  %v1055 = vadd.f32 %v990, %v1054
  %v1056 = vpop.f32.mrb[0].mxu0
  %1057 = vdwg.mxu0
  %1058 = vmatprep.subr.bf16.mxu0 0
  %1059 = vmatpush1.bf16.msra.mxu0 %v767
  %1060 = vmatprep.subr.bf16.mxu0 0
  %1061 = vmatpush1.bf16.msra.mxu0 %v768
  %1062 = vmatprep.subr.bf16.mxu0 0
  %1063 = vmatpush1.bf16.msra.mxu0 %v769
  %1064 = vmatprep.subr.bf16.mxu0 0
  %1065 = vmatpush1.bf16.msra.mxu0 %v770
  %1066 = vmatprep.subr.bf16.mxu0 0
  %1067 = vmatpush1.bf16.msra.mxu0 %v771
  %1068 = vmatprep.subr.bf16.mxu0 0
  %1069 = vmatpush1.bf16.msra.mxu0 %v772
  %1070 = vmatprep.subr.bf16.mxu0 0
  %1071 = vmatpush1.bf16.msra.mxu0 %v773
  %1072 = vmatprep.subr.bf16.mxu0 0
  %1073 = vmatpush1.bf16.msra.mxu0 %v774
  %1074 = vmatprep.subr.bf16.mxu0 0
  %1075 = vmatpush1.bf16.msra.mxu0 %v775
  %1076 = vmatprep.subr.bf16.mxu0 0
  %1077 = vmatpush1.bf16.msra.mxu0 %v776
  %1078 = vmatprep.subr.bf16.mxu0 0
  %1079 = vmatpush1.bf16.msra.mxu0 %v777
  %1080 = vmatprep.subr.bf16.mxu0 0
  %1081 = vmatpush1.bf16.msra.mxu0 %v778
  %1082 = vmatprep.subr.bf16.mxu0 0
  %1083 = vmatpush1.bf16.msra.mxu0 %v779
  %1084 = vmatprep.subr.bf16.mxu0 0
  %1085 = vmatpush1.bf16.msra.mxu0 %v780
  %1086 = vmatprep.subr.bf16.mxu0 0
  %1087 = vmatpush1.bf16.msra.mxu0 %v781
  %1088 = vmatprep.subr.bf16.mxu0 0
  %1089 = vmatpush1.bf16.msra.mxu0 %v782
  %1090 = vmatprep.mubr.bf16.mxu0 %v366
  %1091 = vmatmul.mubr.bf16.gmra.mrb[0].mxu0 %v365
  %v1092 = vpop.f32.mrb[0].mxu0
  %v1093 = vadd.f32 %v1028, %v1092
  %v1094 = vpop.f32.mrb[0].mxu0
  %v1095 = vpop.f32.mrb[0].mxu0
  %v1096 = vadd.f32 %v1031, %v1095
  %v1097 = vpop.f32.mrb[0].mxu0
  %1098 = vmatprep.mubr.bf16.mxu0 %v375
  %1099 = vmatmul.mubr.bf16.gmra.mrb[0].mxu0 %v374
  %v1100 = vpop.f32.mrb[0].mxu0
  %v1101 = vadd.f32 %v1036, %v1100
  %v1102 = vpop.f32.mrb[0].mxu0
  %v1103 = vpop.f32.mrb[0].mxu0
  %v1104 = vadd.f32 %v1039, %v1103
  %v1105 = vpop.f32.mrb[0].mxu0
  %1106 = vmatprep.mubr.bf16.mxu0 %v384
  %1107 = vmatmul.mubr.bf16.gmra.mrb[0].mxu0 %v383
  %v1108 = vpop.f32.mrb[0].mxu0
  %v1109 = vadd.f32 %v1044, %v1108
  %v1110 = vpop.f32.mrb[0].mxu0
  %v1111 = vpop.f32.mrb[0].mxu0
  %v1112 = vadd.f32 %v1047, %v1111
  %v1113 = vpop.f32.mrb[0].mxu0
  %1114 = vmatprep.mubr.bf16.mxu0 %v393
  %1115 = vmatmul.mubr.bf16.gmra.mrb[0].mxu0 %v392
  %v1116 = vpop.f32.mrb[0].mxu0
  %v1117 = vadd.f32 %v1052, %v1116
  %v1118 = vpop.f32.mrb[0].mxu0
  %v1119 = vpop.f32.mrb[0].mxu0
  %v1120 = vadd.f32 %v1055, %v1119
  %v1121 = vpop.f32.mrb[0].mxu0
  %1122 = vdwg.mxu0
  %1123 = vmatprep.subr.bf16.mxu0 0
  %1124 = vmatpush1.bf16.msra.mxu0 %v783
  %1125 = vmatprep.subr.bf16.mxu0 0
  %1126 = vmatpush1.bf16.msra.mxu0 %v784
  %1127 = vmatprep.subr.bf16.mxu0 0
  %1128 = vmatpush1.bf16.msra.mxu0 %v785
  %1129 = vmatprep.subr.bf16.mxu0 0
  %1130 = vmatpush1.bf16.msra.mxu0 %v786
  %1131 = vmatprep.subr.bf16.mxu0 0
  %1132 = vmatpush1.bf16.msra.mxu0 %v787
  %1133 = vmatprep.subr.bf16.mxu0 0
  %1134 = vmatpush1.bf16.msra.mxu0 %v788
  %1135 = vmatprep.subr.bf16.mxu0 0
  %1136 = vmatpush1.bf16.msra.mxu0 %v789
  %1137 = vmatprep.subr.bf16.mxu0 0
  %1138 = vmatpush1.bf16.msra.mxu0 %v790
  %1139 = vmatprep.subr.bf16.mxu0 0
  %1140 = vmatpush1.bf16.msra.mxu0 0
  %1141 = vmatprep.subr.bf16.mxu0 0
  %1142 = vmatpush1.bf16.msra.mxu0 0
  %1143 = vmatprep.subr.bf16.mxu0 0
  %1144 = vmatpush1.bf16.msra.mxu0 0
  %1145 = vmatprep.subr.bf16.mxu0 0
  %1146 = vmatpush1.bf16.msra.mxu0 0
  %1147 = vmatprep.subr.bf16.mxu0 0
  %1148 = vmatpush1.bf16.msra.mxu0 0
  %1149 = vmatprep.subr.bf16.mxu0 0
  %1150 = vmatpush1.bf16.msra.mxu0 0
  %1151 = vmatprep.subr.bf16.mxu0 0
  %1152 = vmatpush1.bf16.msra.mxu0 0
  %1153 = vmatprep.subr.bf16.mxu0 0
  %1154 = vmatpush1.bf16.msra.mxu0 0
  %1155 = vmatprep.mubr.bf16.mxu0 0
  %1156 = vmatmul.mubr.bf16.gmra.mrb[0].mxu0 %v367
  %v1157 = vpop.f32.mrb[0].mxu0
  %v1158 = vadd.f32 %v1093, %v1157
  %v1159 = vpop.f32.mrb[0].mxu0
  %v1160 = vpop.f32.mrb[0].mxu0
  %v1161 = vadd.f32 %v1096, %v1160
  %v1162 = vpop.f32.mrb[0].mxu0
  %1163 = vmatprep.mubr.bf16.mxu0 0
  %1164 = vmatmul.mubr.bf16.gmra.mrb[0].mxu0 %v376
  %v1165 = vpop.f32.mrb[0].mxu0
  %v1166 = vadd.f32 %v1101, %v1165
  %v1167 = vpop.f32.mrb[0].mxu0
  %v1168 = vpop.f32.mrb[0].mxu0
  %v1169 = vadd.f32 %v1104, %v1168
  %v1170 = vpop.f32.mrb[0].mxu0
  %1171 = vmatprep.mubr.bf16.mxu0 0
  %1172 = vmatmul.mubr.bf16.gmra.mrb[0].mxu0 %v385
  %v1173 = vpop.f32.mrb[0].mxu0
  %v1174 = vadd.f32 %v1109, %v1173
  %v1175 = vpop.f32.mrb[0].mxu0
  %v1176 = vpop.f32.mrb[0].mxu0
  %v1177 = vadd.f32 %v1112, %v1176
  %v1178 = vpop.f32.mrb[0].mxu0
  %1179 = vmatprep.mubr.bf16.mxu0 0
  %1180 = vmatmul.mubr.bf16.gmra.mrb[0].mxu0 %v394
  %v1181 = vpop.f32.mrb[0].mxu0
  %v1182 = vadd.f32 %v1117, %v1181
  %v1183 = vpop.f32.mrb[0].mxu0
  %v1184 = vpop.f32.mrb[0].mxu0
  %v1185 = vadd.f32 %v1120, %v1184
  %v1186 = vpop.f32.mrb[0].mxu0
  %1187 = vdwg.mxu0
  %vm1188 = vcmp.gt.f32.partialorder %v1158, 0.0
  %vm1189 = vcmp.gt.f32.partialorder %v1161, 0.0
  %vm1190 = vcmp.gt.f32.partialorder %v1166, 0.0
  %vm1191 = vcmp.gt.f32.partialorder %v1169, 0.0
  %vm1192 = vcmp.gt.f32.partialorder %v1174, 0.0
  %vm1193 = vcmp.gt.f32.partialorder %v1177, 0.0
  %vm1194 = vcmp.gt.f32.partialorder %v1182, 0.0
  %vm1195 = vcmp.gt.f32.partialorder %v1185, 0.0
  %v1196 = vmul.f32 %v1158, 0.2
  %v1197 = vmul.f32 %v1161, 0.2
  %v1198 = vmul.f32 %v1166, 0.2
  %v1199 = vmul.f32 %v1169, 0.2
  %v1200 = vmul.f32 %v1174, 0.2
  %v1201 = vmul.f32 %v1177, 0.2
  %v1202 = vmul.f32 %v1182, 0.2
  %v1203 = vmul.f32 %v1185, 0.2
  %v1204 = vsel %vm1188, %v1158, %v1196
  %v1205 = vsel %vm1189, %v1161, %v1197
  %v1206 = vsel %vm1190, %v1166, %v1198
  %v1207 = vsel %vm1191, %v1169, %v1199
  %v1208 = vsel %vm1192, %v1174, %v1200
  %v1209 = vsel %vm1193, %v1177, %v1201
  %v1210 = vsel %vm1194, %v1182, %v1202
  %v1211 = vsel %vm1195, %v1185, %v1203
  %1212 = vst [vmem:[%s3] sm:$0xff] %v1204
  %1213 = vst [vmem:[%s3 + $0x8] sm:$0xff] %v1205
  %1214 = vst [vmem:[%s3 + $0x10] sm:$0xff] %v1206
  %1215 = vst [vmem:[%s3 + $0x18] sm:$0xff] %v1207
  %1216 = vst [vmem:[%s3 + $0x20] sm:$0xff] %v1208
  %1217 = vst [vmem:[%s3 + $0x28] sm:$0xff] %v1209
  %1218 = vst [vmem:[%s3 + $0x30] sm:$0xff] %v1210
  %1219 = vst [vmem:[%s3 + $0x38] sm:$0xff] %v1211
  // Predicated region
  $region14: #{vae_forward.15} parent=0 // pred_check
    _
  $region15: #{vae_forward.15} parent=0 // pred_check_branch
    %1221 = sbr.rel (0) target = $region17
  $region16: #{vae_forward.15} parent=0 // pred_region
    _
  $region17: #{vae_forward.15} parent=0 // pred_fallthru
    _
  // Predicated region
  $region18: #{vae_forward.15} parent=0 // pred_check
    _
  $region19: #{vae_forward.15} parent=0 // pred_check_branch
    %1223 = sbr.rel (0) target = $region21
  $region20: #{vae_forward.15} parent=0 // pred_region
    _
  $region21: #{vae_forward.15} parent=0 // pred_fallthru
    _

// kernel: vae_forward.16
$region0: #{vae_forward.16}
  #allocation0 [shape = 'u32[]', space=smem, size = 0x4, offset = 0x4, fixed_abs, tag = 'smem constant byte address 0x4 - core index']
  #allocation1 [shape = 'u32[144,128]{1,0:T(1,128)}', space=vmem, size = 0x12000, scoped, tag = 'internal scratch']
  %s0 = inlined_call_operand.vmem [shape: bf16[32,576], index: 0, kind: input, shape index: {}]
  %s1 = inlined_call_operand.vmem [shape: bf16[576,512], index: 1, kind: input, shape index: {}]
  %s2 = inlined_call_operand.vmem [shape: f32[32,1], index: 2, kind: input, shape index: {}]
  %s3 = inlined_call_operand.vmem [shape: f32[32,512], index: 3, kind: output, shape index: {}]
  %s4 = sld [smem:[#allocation0]]
  $region22: #{vae_forward.16} parent=0
    _
  %s6 = ssub.s32 1, %s4
  %s7 = scalar_select 0, %s6, %s4
  // Predicated region
  $region2: #{vae_forward.16} parent=0 // pred_check
    _
  $region3: #{vae_forward.16} parent=0 // pred_check_branch
    %9 = sbr.rel (0) target = $region5
  $region4: #{vae_forward.16} parent=0 // pred_region
    _
  $region5: #{vae_forward.16} parent=0 // pred_fallthru
    _
  // Predicated region
  $region6: #{vae_forward.16} parent=0 // pred_check
    _
  $region7: #{vae_forward.16} parent=0 // pred_check_branch
    %11 = sbr.rel (0) target = $region9
  $region8: #{vae_forward.16} parent=0 // pred_region
    _
  $region9: #{vae_forward.16} parent=0 // pred_fallthru
    _
  // Predicated region
  $region10: #{vae_forward.16} parent=0 // pred_check
    _
  $region11: #{vae_forward.16} parent=0 // pred_check_branch
    %13 = sbr.rel (0) target = $region13
  $region12: #{vae_forward.16} parent=0 // pred_region
    _
  $region13: #{vae_forward.16} parent=0 // pred_fallthru
    _
  %v15 = vld [vmem:[%s0] sm:$0xff]
  %v16 = vld [vmem:[%s0 + $0x8] sm:$0xff]
  %v17 = vld [vmem:[%s0 + $0x10] sm:$0xf]
  %v18 = vld [vmem:[%s0 + $0x14] sm:$0xff]
  %v19 = vld [vmem:[%s0 + $0x1c] sm:$0xff]
  %v20 = vld [vmem:[%s0 + $0x24] sm:$0xf]
  %v21 = vld [vmem:[%s0 + $0x28] sm:$0xff]
  %v22 = vld [vmem:[%s0 + $0x30] sm:$0xff]
  %v23 = vld [vmem:[%s0 + $0x38] sm:$0xf]
  %v24 = vld [vmem:[%s0 + $0x3c] sm:$0xff]
  %v25 = vld [vmem:[%s0 + $0x44] sm:$0xff]
  %v26 = vld [vmem:[%s0 + $0x4c] sm:$0xf]
  %v27 = vld [vmem:[%s1] sm:$0xff]
  %v28 = vld [vmem:[%s1 + $0x8] sm:$0xff]
  %v29 = vld [vmem:[%s1 + $0x10] sm:$0xff]
  %v30 = vld [vmem:[%s1 + $0x18] sm:$0xff]
  %v31 = vld [vmem:[%s1 + $0x20] sm:$0xff]
  %v32 = vld [vmem:[%s1 + $0x28] sm:$0xff]
  %v33 = vld [vmem:[%s1 + $0x30] sm:$0xff]
  %v34 = vld [vmem:[%s1 + $0x38] sm:$0xff]
  %v35 = vld [vmem:[%s1 + $0x40] sm:$0xff]
  %v36 = vld [vmem:[%s1 + $0x48] sm:$0xff]
  %v37 = vld [vmem:[%s1 + $0x50] sm:$0xff]
  %v38 = vld [vmem:[%s1 + $0x58] sm:$0xff]
  %v39 = vld [vmem:[%s1 + $0x60] sm:$0xff]
  %v40 = vld [vmem:[%s1 + $0x68] sm:$0xff]
  %v41 = vld [vmem:[%s1 + $0x70] sm:$0xff]
  %v42 = vld [vmem:[%s1 + $0x78] sm:$0xff]
  %v43 = vld [vmem:[%s1 + $0x80] sm:$0xff]
  %v44 = vld [vmem:[%s1 + $0x88] sm:$0xff]
  %v45 = vld [vmem:[%s1 + $0x90] sm:$0xff]
  %v46 = vld [vmem:[%s1 + $0x98] sm:$0xff]
  %v47 = vld [vmem:[%s1 + $0xa0] sm:$0xff]
  %v48 = vld [vmem:[%s1 + $0xa8] sm:$0xff]
  %v49 = vld [vmem:[%s1 + $0xb0] sm:$0xff]
  %v50 = vld [vmem:[%s1 + $0xb8] sm:$0xff]
  %v51 = vld [vmem:[%s1 + $0xc0] sm:$0xff]
  %v52 = vld [vmem:[%s1 + $0xc8] sm:$0xff]
  %v53 = vld [vmem:[%s1 + $0xd0] sm:$0xff]
  %v54 = vld [vmem:[%s1 + $0xd8] sm:$0xff]
  %v55 = vld [vmem:[%s1 + $0xe0] sm:$0xff]
  %v56 = vld [vmem:[%s1 + $0xe8] sm:$0xff]
  %v57 = vld [vmem:[%s1 + $0xf0] sm:$0xff]
  %v58 = vld [vmem:[%s1 + $0xf8] sm:$0xff]
  %v59 = vld [vmem:[%s1 + $0x100] sm:$0xff]
  %v60 = vld [vmem:[%s1 + $0x108] sm:$0xff]
  %v61 = vld [vmem:[%s1 + $0x110] sm:$0xff]
  %v62 = vld [vmem:[%s1 + $0x118] sm:$0xff]
  %v63 = vld [vmem:[%s1 + $0x120] sm:$0xff]
  %v64 = vld [vmem:[%s1 + $0x128] sm:$0xff]
  %v65 = vld [vmem:[%s1 + $0x130] sm:$0xff]
  %v66 = vld [vmem:[%s1 + $0x138] sm:$0xff]
  %v67 = vld [vmem:[%s1 + $0x140] sm:$0xff]
  %v68 = vld [vmem:[%s1 + $0x148] sm:$0xff]
  %v69 = vld [vmem:[%s1 + $0x150] sm:$0xff]
  %v70 = vld [vmem:[%s1 + $0x158] sm:$0xff]
  %v71 = vld [vmem:[%s1 + $0x160] sm:$0xff]
  %v72 = vld [vmem:[%s1 + $0x168] sm:$0xff]
  %v73 = vld [vmem:[%s1 + $0x170] sm:$0xff]
  %v74 = vld [vmem:[%s1 + $0x178] sm:$0xff]
  %v75 = vld [vmem:[%s1 + $0x180] sm:$0xff]
  %v76 = vld [vmem:[%s1 + $0x188] sm:$0xff]
  %v77 = vld [vmem:[%s1 + $0x190] sm:$0xff]
  %v78 = vld [vmem:[%s1 + $0x198] sm:$0xff]
  %v79 = vld [vmem:[%s1 + $0x1a0] sm:$0xff]
  %v80 = vld [vmem:[%s1 + $0x1a8] sm:$0xff]
  %v81 = vld [vmem:[%s1 + $0x1b0] sm:$0xff]
  %v82 = vld [vmem:[%s1 + $0x1b8] sm:$0xff]
  %v83 = vld [vmem:[%s1 + $0x1c0] sm:$0xff]
  %v84 = vld [vmem:[%s1 + $0x1c8] sm:$0xff]
  %v85 = vld [vmem:[%s1 + $0x1d0] sm:$0xff]
  %v86 = vld [vmem:[%s1 + $0x1d8] sm:$0xff]
  %v87 = vld [vmem:[%s1 + $0x1e0] sm:$0xff]
  %v88 = vld [vmem:[%s1 + $0x1e8] sm:$0xff]
  %v89 = vld [vmem:[%s1 + $0x1f0] sm:$0xff]
  %v90 = vld [vmem:[%s1 + $0x1f8] sm:$0xff]
  %v91 = vld [vmem:[%s1 + $0x200] sm:$0xff]
  %v92 = vld [vmem:[%s1 + $0x208] sm:$0xff]
  %v93 = vld [vmem:[%s1 + $0x210] sm:$0xff]
  %v94 = vld [vmem:[%s1 + $0x218] sm:$0xff]
  %v95 = vld [vmem:[%s1 + $0x220] sm:$0xff]
  %v96 = vld [vmem:[%s1 + $0x228] sm:$0xff]
  %v97 = vld [vmem:[%s1 + $0x230] sm:$0xff]
  %v98 = vld [vmem:[%s1 + $0x238] sm:$0xff]
  %v99 = vld [vmem:[%s1 + $0x240] sm:$0xff]
  %v100 = vld [vmem:[%s1 + $0x248] sm:$0xff]
  %v101 = vld [vmem:[%s1 + $0x250] sm:$0xff]
  %v102 = vld [vmem:[%s1 + $0x258] sm:$0xff]
  %v103 = vld [vmem:[%s1 + $0x260] sm:$0xff]
  %v104 = vld [vmem:[%s1 + $0x268] sm:$0xff]
  %v105 = vld [vmem:[%s1 + $0x270] sm:$0xff]
  %v106 = vld [vmem:[%s1 + $0x278] sm:$0xff]
  %v107 = vld [vmem:[%s1 + $0x280] sm:$0xff]
  %v108 = vld [vmem:[%s1 + $0x288] sm:$0xff]
  %v109 = vld [vmem:[%s1 + $0x290] sm:$0xff]
  %v110 = vld [vmem:[%s1 + $0x298] sm:$0xff]
  %v111 = vld [vmem:[%s1 + $0x2a0] sm:$0xff]
  %v112 = vld [vmem:[%s1 + $0x2a8] sm:$0xff]
  %v113 = vld [vmem:[%s1 + $0x2b0] sm:$0xff]
  %v114 = vld [vmem:[%s1 + $0x2b8] sm:$0xff]
  %v115 = vld [vmem:[%s1 + $0x2c0] sm:$0xff]
  %v116 = vld [vmem:[%s1 + $0x2c8] sm:$0xff]
  %v117 = vld [vmem:[%s1 + $0x2d0] sm:$0xff]
  %v118 = vld [vmem:[%s1 + $0x2d8] sm:$0xff]
  %v119 = vld [vmem:[%s1 + $0x2e0] sm:$0xff]
  %v120 = vld [vmem:[%s1 + $0x2e8] sm:$0xff]
  %v121 = vld [vmem:[%s1 + $0x2f0] sm:$0xff]
  %v122 = vld [vmem:[%s1 + $0x2f8] sm:$0xff]
  %v123 = vld [vmem:[%s1 + $0x300] sm:$0xff]
  %v124 = vld [vmem:[%s1 + $0x308] sm:$0xff]
  %v125 = vld [vmem:[%s1 + $0x310] sm:$0xff]
  %v126 = vld [vmem:[%s1 + $0x318] sm:$0xff]
  %v127 = vld [vmem:[%s1 + $0x320] sm:$0xff]
  %v128 = vld [vmem:[%s1 + $0x328] sm:$0xff]
  %v129 = vld [vmem:[%s1 + $0x330] sm:$0xff]
  %v130 = vld [vmem:[%s1 + $0x338] sm:$0xff]
  %v131 = vld [vmem:[%s1 + $0x340] sm:$0xff]
  %v132 = vld [vmem:[%s1 + $0x348] sm:$0xff]
  %v133 = vld [vmem:[%s1 + $0x350] sm:$0xff]
  %v134 = vld [vmem:[%s1 + $0x358] sm:$0xff]
  %v135 = vld [vmem:[%s1 + $0x360] sm:$0xff]
  %v136 = vld [vmem:[%s1 + $0x368] sm:$0xff]
  %v137 = vld [vmem:[%s1 + $0x370] sm:$0xff]
  %v138 = vld [vmem:[%s1 + $0x378] sm:$0xff]
  %v139 = vld [vmem:[%s1 + $0x380] sm:$0xff]
  %v140 = vld [vmem:[%s1 + $0x388] sm:$0xff]
  %v141 = vld [vmem:[%s1 + $0x390] sm:$0xff]
  %v142 = vld [vmem:[%s1 + $0x398] sm:$0xff]
  %v143 = vld [vmem:[%s1 + $0x3a0] sm:$0xff]
  %v144 = vld [vmem:[%s1 + $0x3a8] sm:$0xff]
  %v145 = vld [vmem:[%s1 + $0x3b0] sm:$0xff]
  %v146 = vld [vmem:[%s1 + $0x3b8] sm:$0xff]
  %v147 = vld [vmem:[%s1 + $0x3c0] sm:$0xff]
  %v148 = vld [vmem:[%s1 + $0x3c8] sm:$0xff]
  %v149 = vld [vmem:[%s1 + $0x3d0] sm:$0xff]
  %v150 = vld [vmem:[%s1 + $0x3d8] sm:$0xff]
  %v151 = vld [vmem:[%s1 + $0x3e0] sm:$0xff]
  %v152 = vld [vmem:[%s1 + $0x3e8] sm:$0xff]
  %v153 = vld [vmem:[%s1 + $0x3f0] sm:$0xff]
  %v154 = vld [vmem:[%s1 + $0x3f8] sm:$0xff]
  %v155 = vld [vmem:[%s1 + $0x400] sm:$0xff]
  %v156 = vld [vmem:[%s1 + $0x408] sm:$0xff]
  %v157 = vld [vmem:[%s1 + $0x410] sm:$0xff]
  %v158 = vld [vmem:[%s1 + $0x418] sm:$0xff]
  %v159 = vld [vmem:[%s1 + $0x420] sm:$0xff]
  %v160 = vld [vmem:[%s1 + $0x428] sm:$0xff]
  %v161 = vld [vmem:[%s1 + $0x430] sm:$0xff]
  %v162 = vld [vmem:[%s1 + $0x438] sm:$0xff]
  %v163 = vld [vmem:[%s1 + $0x440] sm:$0xff]
  %v164 = vld [vmem:[%s1 + $0x448] sm:$0xff]
  %v165 = vld [vmem:[%s1 + $0x450] sm:$0xff]
  %v166 = vld [vmem:[%s1 + $0x458] sm:$0xff]
  %v167 = vld [vmem:[%s1 + $0x460] sm:$0xff]
  %v168 = vld [vmem:[%s1 + $0x468] sm:$0xff]
  %v169 = vld [vmem:[%s1 + $0x470] sm:$0xff]
  %v170 = vld [vmem:[%s1 + $0x478] sm:$0xff]
  %v171 = vld [vmem:[%s2] sm:$0xff]
  %v172 = vld [vmem:[%s2 + $0x8] sm:$0xff]
  %v173 = vld [vmem:[%s2 + $0x10] sm:$0xff]
  %v174 = vld [vmem:[%s2 + $0x18] sm:$0xff]
  %176 = vset.pattern.permute.xlu0 0
  %177 = vperm.xlu0 %176, %v171
  %v178 = vpop.permute.xlu0 %177
  %181 = vset.pattern.permute.xlu0 0
  %182 = vperm.xlu0 %181, %v172
  %v183 = vpop.permute.xlu0 %182
  %186 = vset.pattern.permute.xlu0 0
  %187 = vperm.xlu0 %186, %v173
  %v188 = vpop.permute.xlu0 %187
  %191 = vset.pattern.permute.xlu0 0
  %192 = vperm.xlu0 %191, %v174
  %v193 = vpop.permute.xlu0 %192
  %v207 = vunpack.c.l.b16 %v15
  %v208 = vunpack.c.h.b16 %v15
  %v209 = vunpack.c.l.b16 %v16
  %v210 = vunpack.c.h.b16 %v16
  %v211 = vunpack.c.l.b16 %v17
  %v212 = vunpack.c.l.b16 %v18
  %v213 = vunpack.c.h.b16 %v18
  %v214 = vunpack.c.l.b16 %v19
  %v215 = vunpack.c.h.b16 %v19
  %v216 = vunpack.c.l.b16 %v20
  %v217 = vunpack.c.l.b16 %v21
  %v218 = vunpack.c.h.b16 %v21
  %v219 = vunpack.c.l.b16 %v22
  %v220 = vunpack.c.h.b16 %v22
  %v221 = vunpack.c.l.b16 %v23
  %v222 = vunpack.c.l.b16 %v24
  %v223 = vunpack.c.h.b16 %v24
  %v224 = vunpack.c.l.b16 %v25
  %v225 = vunpack.c.h.b16 %v25
  %v226 = vunpack.c.l.b16 %v26
  %v227 = vpack.c.b16 %v212, %v207
  %v228 = vpack.c.b16 %v213, %v208
  %v229 = vpack.c.b16 %v214, %v209
  %v230 = vpack.c.b16 %v215, %v210
  %v231 = vpack.c.b16 %v216, %v211
  %v232 = vpack.c.b16 %v222, %v217
  %v233 = vpack.c.b16 %v223, %v218
  %v234 = vpack.c.b16 %v224, %v219
  %v235 = vpack.c.b16 %v225, %v220
  %v236 = vpack.c.b16 %v226, %v221
  %v389 = vunpack.c.l.b16 %v27
  %v390 = vunpack.c.h.b16 %v27
  %v391 = vunpack.c.l.b16 %v28
  %v392 = vunpack.c.h.b16 %v28
  %v393 = vunpack.c.l.b16 %v29
  %v394 = vunpack.c.h.b16 %v29
  %v395 = vunpack.c.l.b16 %v30
  %v396 = vunpack.c.h.b16 %v30
  %v397 = vunpack.c.l.b16 %v31
  %v398 = vunpack.c.h.b16 %v31
  %v399 = vunpack.c.l.b16 %v32
  %v400 = vunpack.c.h.b16 %v32
  %v401 = vunpack.c.l.b16 %v33
  %v402 = vunpack.c.h.b16 %v33
  %v403 = vunpack.c.l.b16 %v34
  %v404 = vunpack.c.h.b16 %v34
  %v405 = vunpack.c.l.b16 %v35
  %v406 = vunpack.c.h.b16 %v35
  %v407 = vunpack.c.l.b16 %v36
  %v408 = vunpack.c.h.b16 %v36
  %v409 = vunpack.c.l.b16 %v37
  %v410 = vunpack.c.h.b16 %v37
  %v411 = vunpack.c.l.b16 %v38
  %v412 = vunpack.c.h.b16 %v38
  %v413 = vunpack.c.l.b16 %v39
  %v414 = vunpack.c.h.b16 %v39
  %v415 = vunpack.c.l.b16 %v40
  %v416 = vunpack.c.h.b16 %v40
  %v417 = vunpack.c.l.b16 %v41
  %v418 = vunpack.c.h.b16 %v41
  %v419 = vunpack.c.l.b16 %v42
  %v420 = vunpack.c.h.b16 %v42
  %v421 = vunpack.c.l.b16 %v43
  %v422 = vunpack.c.h.b16 %v43
  %v423 = vunpack.c.l.b16 %v44
  %v424 = vunpack.c.h.b16 %v44
  %v425 = vunpack.c.l.b16 %v45
  %v426 = vunpack.c.h.b16 %v45
  %v427 = vunpack.c.l.b16 %v46
  %v428 = vunpack.c.h.b16 %v46
  %v429 = vunpack.c.l.b16 %v47
  %v430 = vunpack.c.h.b16 %v47
  %v431 = vunpack.c.l.b16 %v48
  %v432 = vunpack.c.h.b16 %v48
  %v433 = vunpack.c.l.b16 %v49
  %v434 = vunpack.c.h.b16 %v49
  %v435 = vunpack.c.l.b16 %v50
  %v436 = vunpack.c.h.b16 %v50
  %v437 = vunpack.c.l.b16 %v51
  %v438 = vunpack.c.h.b16 %v51
  %v439 = vunpack.c.l.b16 %v52
  %v440 = vunpack.c.h.b16 %v52
  %v441 = vunpack.c.l.b16 %v53
  %v442 = vunpack.c.h.b16 %v53
  %v443 = vunpack.c.l.b16 %v54
  %v444 = vunpack.c.h.b16 %v54
  %v445 = vunpack.c.l.b16 %v55
  %v446 = vunpack.c.h.b16 %v55
  %v447 = vunpack.c.l.b16 %v56
  %v448 = vunpack.c.h.b16 %v56
  %v449 = vunpack.c.l.b16 %v57
  %v450 = vunpack.c.h.b16 %v57
  %v451 = vunpack.c.l.b16 %v58
  %v452 = vunpack.c.h.b16 %v58
  %v453 = vunpack.c.l.b16 %v59
  %v454 = vunpack.c.h.b16 %v59
  %v455 = vunpack.c.l.b16 %v60
  %v456 = vunpack.c.h.b16 %v60
  %v457 = vunpack.c.l.b16 %v61
  %v458 = vunpack.c.h.b16 %v61
  %v459 = vunpack.c.l.b16 %v62
  %v460 = vunpack.c.h.b16 %v62
  %v461 = vunpack.c.l.b16 %v63
  %v462 = vunpack.c.h.b16 %v63
  %v463 = vunpack.c.l.b16 %v64
  %v464 = vunpack.c.h.b16 %v64
  %v465 = vunpack.c.l.b16 %v65
  %v466 = vunpack.c.h.b16 %v65
  %v467 = vunpack.c.l.b16 %v66
  %v468 = vunpack.c.h.b16 %v66
  %v469 = vunpack.c.l.b16 %v67
  %v470 = vunpack.c.h.b16 %v67
  %v471 = vunpack.c.l.b16 %v68
  %v472 = vunpack.c.h.b16 %v68
  %v473 = vunpack.c.l.b16 %v69
  %v474 = vunpack.c.h.b16 %v69
  %v475 = vunpack.c.l.b16 %v70
  %v476 = vunpack.c.h.b16 %v70
  %v477 = vunpack.c.l.b16 %v71
  %v478 = vunpack.c.h.b16 %v71
  %v479 = vunpack.c.l.b16 %v72
  %v480 = vunpack.c.h.b16 %v72
  %v481 = vunpack.c.l.b16 %v73
  %v482 = vunpack.c.h.b16 %v73
  %v483 = vunpack.c.l.b16 %v74
  %v484 = vunpack.c.h.b16 %v74
  %v485 = vunpack.c.l.b16 %v75
  %v486 = vunpack.c.h.b16 %v75
  %v487 = vunpack.c.l.b16 %v76
  %v488 = vunpack.c.h.b16 %v76
  %v489 = vunpack.c.l.b16 %v77
  %v490 = vunpack.c.h.b16 %v77
  %v491 = vunpack.c.l.b16 %v78
  %v492 = vunpack.c.h.b16 %v78
  %v493 = vunpack.c.l.b16 %v79
  %v494 = vunpack.c.h.b16 %v79
  %v495 = vunpack.c.l.b16 %v80
  %v496 = vunpack.c.h.b16 %v80
  %v497 = vunpack.c.l.b16 %v81
  %v498 = vunpack.c.h.b16 %v81
  %v499 = vunpack.c.l.b16 %v82
  %v500 = vunpack.c.h.b16 %v82
  %v501 = vunpack.c.l.b16 %v83
  %v502 = vunpack.c.h.b16 %v83
  %v503 = vunpack.c.l.b16 %v84
  %v504 = vunpack.c.h.b16 %v84
  %v505 = vunpack.c.l.b16 %v85
  %v506 = vunpack.c.h.b16 %v85
  %v507 = vunpack.c.l.b16 %v86
  %v508 = vunpack.c.h.b16 %v86
  %v509 = vunpack.c.l.b16 %v87
  %v510 = vunpack.c.h.b16 %v87
  %v511 = vunpack.c.l.b16 %v88
  %v512 = vunpack.c.h.b16 %v88
  %v513 = vunpack.c.l.b16 %v89
  %v514 = vunpack.c.h.b16 %v89
  %v515 = vunpack.c.l.b16 %v90
  %v516 = vunpack.c.h.b16 %v90
  %v517 = vunpack.c.l.b16 %v91
  %v518 = vunpack.c.h.b16 %v91
  %v519 = vunpack.c.l.b16 %v92
  %v520 = vunpack.c.h.b16 %v92
  %v521 = vunpack.c.l.b16 %v93
  %v522 = vunpack.c.h.b16 %v93
  %v523 = vunpack.c.l.b16 %v94
  %v524 = vunpack.c.h.b16 %v94
  %v525 = vunpack.c.l.b16 %v95
  %v526 = vunpack.c.h.b16 %v95
  %v527 = vunpack.c.l.b16 %v96
  %v528 = vunpack.c.h.b16 %v96
  %v529 = vunpack.c.l.b16 %v97
  %v530 = vunpack.c.h.b16 %v97
  %v531 = vunpack.c.l.b16 %v98
  %v532 = vunpack.c.h.b16 %v98
  %v533 = vunpack.c.l.b16 %v99
  %v534 = vunpack.c.h.b16 %v99
  %v535 = vunpack.c.l.b16 %v100
  %v536 = vunpack.c.h.b16 %v100
  %v537 = vunpack.c.l.b16 %v101
  %v538 = vunpack.c.h.b16 %v101
  %v539 = vunpack.c.l.b16 %v102
  %v540 = vunpack.c.h.b16 %v102
  %v541 = vunpack.c.l.b16 %v103
  %v542 = vunpack.c.h.b16 %v103
  %v543 = vunpack.c.l.b16 %v104
  %v544 = vunpack.c.h.b16 %v104
  %v545 = vunpack.c.l.b16 %v105
  %v546 = vunpack.c.h.b16 %v105
  %v547 = vunpack.c.l.b16 %v106
  %v548 = vunpack.c.h.b16 %v106
  %v549 = vunpack.c.l.b16 %v107
  %v550 = vunpack.c.h.b16 %v107
  %v551 = vunpack.c.l.b16 %v108
  %v552 = vunpack.c.h.b16 %v108
  %v553 = vunpack.c.l.b16 %v109
  %v554 = vunpack.c.h.b16 %v109
  %v555 = vunpack.c.l.b16 %v110
  %v556 = vunpack.c.h.b16 %v110
  %v557 = vunpack.c.l.b16 %v111
  %v558 = vunpack.c.h.b16 %v111
  %v559 = vunpack.c.l.b16 %v112
  %v560 = vunpack.c.h.b16 %v112
  %v561 = vunpack.c.l.b16 %v113
  %v562 = vunpack.c.h.b16 %v113
  %v563 = vunpack.c.l.b16 %v114
  %v564 = vunpack.c.h.b16 %v114
  %v565 = vunpack.c.l.b16 %v115
  %v566 = vunpack.c.h.b16 %v115
  %v567 = vunpack.c.l.b16 %v116
  %v568 = vunpack.c.h.b16 %v116
  %v569 = vunpack.c.l.b16 %v117
  %v570 = vunpack.c.h.b16 %v117
  %v571 = vunpack.c.l.b16 %v118
  %v572 = vunpack.c.h.b16 %v118
  %v573 = vunpack.c.l.b16 %v119
  %v574 = vunpack.c.h.b16 %v119
  %v575 = vunpack.c.l.b16 %v120
  %v576 = vunpack.c.h.b16 %v120
  %v577 = vunpack.c.l.b16 %v121
  %v578 = vunpack.c.h.b16 %v121
  %v579 = vunpack.c.l.b16 %v122
  %v580 = vunpack.c.h.b16 %v122
  %v581 = vunpack.c.l.b16 %v123
  %v582 = vunpack.c.h.b16 %v123
  %v583 = vunpack.c.l.b16 %v124
  %v584 = vunpack.c.h.b16 %v124
  %v585 = vunpack.c.l.b16 %v125
  %v586 = vunpack.c.h.b16 %v125
  %v587 = vunpack.c.l.b16 %v126
  %v588 = vunpack.c.h.b16 %v126
  %v589 = vunpack.c.l.b16 %v127
  %v590 = vunpack.c.h.b16 %v127
  %v591 = vunpack.c.l.b16 %v128
  %v592 = vunpack.c.h.b16 %v128
  %v593 = vunpack.c.l.b16 %v129
  %v594 = vunpack.c.h.b16 %v129
  %v595 = vunpack.c.l.b16 %v130
  %v596 = vunpack.c.h.b16 %v130
  %v597 = vunpack.c.l.b16 %v131
  %v598 = vunpack.c.h.b16 %v131
  %v599 = vunpack.c.l.b16 %v132
  %v600 = vunpack.c.h.b16 %v132
  %v601 = vunpack.c.l.b16 %v133
  %v602 = vunpack.c.h.b16 %v133
  %v603 = vunpack.c.l.b16 %v134
  %v604 = vunpack.c.h.b16 %v134
  %v605 = vunpack.c.l.b16 %v135
  %v606 = vunpack.c.h.b16 %v135
  %v607 = vunpack.c.l.b16 %v136
  %v608 = vunpack.c.h.b16 %v136
  %v609 = vunpack.c.l.b16 %v137
  %v610 = vunpack.c.h.b16 %v137
  %v611 = vunpack.c.l.b16 %v138
  %v612 = vunpack.c.h.b16 %v138
  %v613 = vunpack.c.l.b16 %v139
  %v614 = vunpack.c.h.b16 %v139
  %v615 = vunpack.c.l.b16 %v140
  %v616 = vunpack.c.h.b16 %v140
  %v617 = vunpack.c.l.b16 %v141
  %v618 = vunpack.c.h.b16 %v141
  %v619 = vunpack.c.l.b16 %v142
  %v620 = vunpack.c.h.b16 %v142
  %v621 = vunpack.c.l.b16 %v143
  %v622 = vunpack.c.h.b16 %v143
  %v623 = vunpack.c.l.b16 %v144
  %v624 = vunpack.c.h.b16 %v144
  %v625 = vunpack.c.l.b16 %v145
  %v626 = vunpack.c.h.b16 %v145
  %v627 = vunpack.c.l.b16 %v146
  %v628 = vunpack.c.h.b16 %v146
  %v629 = vunpack.c.l.b16 %v147
  %v630 = vunpack.c.h.b16 %v147
  %v631 = vunpack.c.l.b16 %v148
  %v632 = vunpack.c.h.b16 %v148
  %v633 = vunpack.c.l.b16 %v149
  %v634 = vunpack.c.h.b16 %v149
  %v635 = vunpack.c.l.b16 %v150
  %v636 = vunpack.c.h.b16 %v150
  %v637 = vunpack.c.l.b16 %v151
  %v638 = vunpack.c.h.b16 %v151
  %v639 = vunpack.c.l.b16 %v152
  %v640 = vunpack.c.h.b16 %v152
  %v641 = vunpack.c.l.b16 %v153
  %v642 = vunpack.c.h.b16 %v153
  %v643 = vunpack.c.l.b16 %v154
  %v644 = vunpack.c.h.b16 %v154
  %v645 = vunpack.c.l.b16 %v155
  %v646 = vunpack.c.h.b16 %v155
  %v647 = vunpack.c.l.b16 %v156
  %v648 = vunpack.c.h.b16 %v156
  %v649 = vunpack.c.l.b16 %v157
  %v650 = vunpack.c.h.b16 %v157
  %v651 = vunpack.c.l.b16 %v158
  %v652 = vunpack.c.h.b16 %v158
  %v653 = vunpack.c.l.b16 %v159
  %v654 = vunpack.c.h.b16 %v159
  %v655 = vunpack.c.l.b16 %v160
  %v656 = vunpack.c.h.b16 %v160
  %v657 = vunpack.c.l.b16 %v161
  %v658 = vunpack.c.h.b16 %v161
  %v659 = vunpack.c.l.b16 %v162
  %v660 = vunpack.c.h.b16 %v162
  %v661 = vunpack.c.l.b16 %v163
  %v662 = vunpack.c.h.b16 %v163
  %v663 = vunpack.c.l.b16 %v164
  %v664 = vunpack.c.h.b16 %v164
  %v665 = vunpack.c.l.b16 %v165
  %v666 = vunpack.c.h.b16 %v165
  %v667 = vunpack.c.l.b16 %v166
  %v668 = vunpack.c.h.b16 %v166
  %v669 = vunpack.c.l.b16 %v167
  %v670 = vunpack.c.h.b16 %v167
  %v671 = vunpack.c.l.b16 %v168
  %v672 = vunpack.c.h.b16 %v168
  %v673 = vunpack.c.l.b16 %v169
  %v674 = vunpack.c.h.b16 %v169
  %v675 = vunpack.c.l.b16 %v170
  %v676 = vunpack.c.h.b16 %v170
  %v677 = vpack.c.b16 %v393, %v389
  %v678 = vpack.c.b16 %v394, %v390
  %v679 = vpack.c.b16 %v395, %v391
  %v680 = vpack.c.b16 %v396, %v392
  %v681 = vpack.c.b16 %v401, %v397
  %v682 = vpack.c.b16 %v402, %v398
  %v683 = vpack.c.b16 %v403, %v399
  %v684 = vpack.c.b16 %v404, %v400
  %v685 = vpack.c.b16 %v409, %v405
  %v686 = vpack.c.b16 %v410, %v406
  %v687 = vpack.c.b16 %v411, %v407
  %v688 = vpack.c.b16 %v412, %v408
  %v689 = vpack.c.b16 %v417, %v413
  %v690 = vpack.c.b16 %v418, %v414
  %v691 = vpack.c.b16 %v419, %v415
  %v692 = vpack.c.b16 %v420, %v416
  %v693 = vpack.c.b16 %v425, %v421
  %v694 = vpack.c.b16 %v426, %v422
  %v695 = vpack.c.b16 %v427, %v423
  %v696 = vpack.c.b16 %v428, %v424
  %v697 = vpack.c.b16 %v433, %v429
  %v698 = vpack.c.b16 %v434, %v430
  %v699 = vpack.c.b16 %v435, %v431
  %v700 = vpack.c.b16 %v436, %v432
  %v701 = vpack.c.b16 %v441, %v437
  %v702 = vpack.c.b16 %v442, %v438
  %v703 = vpack.c.b16 %v443, %v439
  %v704 = vpack.c.b16 %v444, %v440
  %v705 = vpack.c.b16 %v449, %v445
  %v706 = vpack.c.b16 %v450, %v446
  %v707 = vpack.c.b16 %v451, %v447
  %v708 = vpack.c.b16 %v452, %v448
  %v709 = vpack.c.b16 %v457, %v453
  %v710 = vpack.c.b16 %v458, %v454
  %v711 = vpack.c.b16 %v459, %v455
  %v712 = vpack.c.b16 %v460, %v456
  %v713 = vpack.c.b16 %v465, %v461
  %v714 = vpack.c.b16 %v466, %v462
  %v715 = vpack.c.b16 %v467, %v463
  %v716 = vpack.c.b16 %v468, %v464
  %v717 = vpack.c.b16 %v473, %v469
  %v718 = vpack.c.b16 %v474, %v470
  %v719 = vpack.c.b16 %v475, %v471
  %v720 = vpack.c.b16 %v476, %v472
  %v721 = vpack.c.b16 %v481, %v477
  %v722 = vpack.c.b16 %v482, %v478
  %v723 = vpack.c.b16 %v483, %v479
  %v724 = vpack.c.b16 %v484, %v480
  %v725 = vpack.c.b16 %v489, %v485
  %v726 = vpack.c.b16 %v490, %v486
  %v727 = vpack.c.b16 %v491, %v487
  %v728 = vpack.c.b16 %v492, %v488
  %v729 = vpack.c.b16 %v497, %v493
  %v730 = vpack.c.b16 %v498, %v494
  %v731 = vpack.c.b16 %v499, %v495
  %v732 = vpack.c.b16 %v500, %v496
  %v733 = vpack.c.b16 %v505, %v501
  %v734 = vpack.c.b16 %v506, %v502
  %v735 = vpack.c.b16 %v507, %v503
  %v736 = vpack.c.b16 %v508, %v504
  %v737 = vpack.c.b16 %v513, %v509
  %v738 = vpack.c.b16 %v514, %v510
  %v739 = vpack.c.b16 %v515, %v511
  %v740 = vpack.c.b16 %v516, %v512
  %v741 = vpack.c.b16 %v521, %v517
  %v742 = vpack.c.b16 %v522, %v518
  %v743 = vpack.c.b16 %v523, %v519
  %v744 = vpack.c.b16 %v524, %v520
  %v745 = vpack.c.b16 %v529, %v525
  %v746 = vpack.c.b16 %v530, %v526
  %v747 = vpack.c.b16 %v531, %v527
  %v748 = vpack.c.b16 %v532, %v528
  %v749 = vpack.c.b16 %v537, %v533
  %v750 = vpack.c.b16 %v538, %v534
  %v751 = vpack.c.b16 %v539, %v535
  %v752 = vpack.c.b16 %v540, %v536
  %v753 = vpack.c.b16 %v545, %v541
  %v754 = vpack.c.b16 %v546, %v542
  %v755 = vpack.c.b16 %v547, %v543
  %v756 = vpack.c.b16 %v548, %v544
  %v757 = vpack.c.b16 %v553, %v549
  %v758 = vpack.c.b16 %v554, %v550
  %v759 = vpack.c.b16 %v555, %v551
  %v760 = vpack.c.b16 %v556, %v552
  %v761 = vpack.c.b16 %v561, %v557
  %v762 = vpack.c.b16 %v562, %v558
  %v763 = vpack.c.b16 %v563, %v559
  %v764 = vpack.c.b16 %v564, %v560
  %v765 = vpack.c.b16 %v569, %v565
  %v766 = vpack.c.b16 %v570, %v566
  %v767 = vpack.c.b16 %v571, %v567
  %v768 = vpack.c.b16 %v572, %v568
  %v769 = vpack.c.b16 %v577, %v573
  %v770 = vpack.c.b16 %v578, %v574
  %v771 = vpack.c.b16 %v579, %v575
  %v772 = vpack.c.b16 %v580, %v576
  %v773 = vpack.c.b16 %v585, %v581
  %v774 = vpack.c.b16 %v586, %v582
  %v775 = vpack.c.b16 %v587, %v583
  %v776 = vpack.c.b16 %v588, %v584
  %v777 = vpack.c.b16 %v593, %v589
  %v778 = vpack.c.b16 %v594, %v590
  %v779 = vpack.c.b16 %v595, %v591
  %v780 = vpack.c.b16 %v596, %v592
  %v781 = vpack.c.b16 %v601, %v597
  %v782 = vpack.c.b16 %v602, %v598
  %v783 = vpack.c.b16 %v603, %v599
  %v784 = vpack.c.b16 %v604, %v600
  %v785 = vpack.c.b16 %v609, %v605
  %v786 = vpack.c.b16 %v610, %v606
  %v787 = vpack.c.b16 %v611, %v607
  %v788 = vpack.c.b16 %v612, %v608
  %v789 = vpack.c.b16 %v617, %v613
  %v790 = vpack.c.b16 %v618, %v614
  %v791 = vpack.c.b16 %v619, %v615
  %v792 = vpack.c.b16 %v620, %v616
  %v793 = vpack.c.b16 %v625, %v621
  %v794 = vpack.c.b16 %v626, %v622
  %v795 = vpack.c.b16 %v627, %v623
  %v796 = vpack.c.b16 %v628, %v624
  %v797 = vpack.c.b16 %v633, %v629
  %v798 = vpack.c.b16 %v634, %v630
  %v799 = vpack.c.b16 %v635, %v631
  %v800 = vpack.c.b16 %v636, %v632
  %v801 = vpack.c.b16 %v641, %v637
  %v802 = vpack.c.b16 %v642, %v638
  %v803 = vpack.c.b16 %v643, %v639
  %v804 = vpack.c.b16 %v644, %v640
  %v805 = vpack.c.b16 %v649, %v645
  %v806 = vpack.c.b16 %v650, %v646
  %v807 = vpack.c.b16 %v651, %v647
  %v808 = vpack.c.b16 %v652, %v648
  %v809 = vpack.c.b16 %v657, %v653
  %v810 = vpack.c.b16 %v658, %v654
  %v811 = vpack.c.b16 %v659, %v655
  %v812 = vpack.c.b16 %v660, %v656
  %v813 = vpack.c.b16 %v665, %v661
  %v814 = vpack.c.b16 %v666, %v662
  %v815 = vpack.c.b16 %v667, %v663
  %v816 = vpack.c.b16 %v668, %v664
  %v817 = vpack.c.b16 %v673, %v669
  %v818 = vpack.c.b16 %v674, %v670
  %v819 = vpack.c.b16 %v675, %v671
  %v820 = vpack.c.b16 %v676, %v672
  %vm965 = vcmask 523264
  %v967 = vsel %vm965, %v231, 0
  %v970 = vsel %vm965, %v236, 0
  %972 = vmatprep.subr.bf16.mxu0 %v678
  %973 = vmatpush1.bf16.msra.mxu0 %v677
  %974 = vmatprep.subr.bf16.mxu0 %v682
  %975 = vmatpush1.bf16.msra.mxu0 %v681
  %976 = vmatprep.subr.bf16.mxu0 %v686
  %977 = vmatpush1.bf16.msra.mxu0 %v685
  %978 = vmatprep.subr.bf16.mxu0 %v690
  %979 = vmatpush1.bf16.msra.mxu0 %v689
  %980 = vmatprep.subr.bf16.mxu0 %v694
  %981 = vmatpush1.bf16.msra.mxu0 %v693
  %982 = vmatprep.subr.bf16.mxu0 %v698
  %983 = vmatpush1.bf16.msra.mxu0 %v697
  %984 = vmatprep.subr.bf16.mxu0 %v702
  %985 = vmatpush1.bf16.msra.mxu0 %v701
  %986 = vmatprep.subr.bf16.mxu0 %v706
  %987 = vmatpush1.bf16.msra.mxu0 %v705
  %988 = vmatprep.subr.bf16.mxu0 %v710
  %989 = vmatpush1.bf16.msra.mxu0 %v709
  %990 = vmatprep.subr.bf16.mxu0 %v714
  %991 = vmatpush1.bf16.msra.mxu0 %v713
  %992 = vmatprep.subr.bf16.mxu0 %v718
  %993 = vmatpush1.bf16.msra.mxu0 %v717
  %994 = vmatprep.subr.bf16.mxu0 %v722
  %995 = vmatpush1.bf16.msra.mxu0 %v721
  %996 = vmatprep.subr.bf16.mxu0 %v726
  %997 = vmatpush1.bf16.msra.mxu0 %v725
  %998 = vmatprep.subr.bf16.mxu0 %v730
  %999 = vmatpush1.bf16.msra.mxu0 %v729
  %1000 = vmatprep.subr.bf16.mxu0 %v734
  %1001 = vmatpush1.bf16.msra.mxu0 %v733
  %1002 = vmatprep.subr.bf16.mxu0 %v738
  %1003 = vmatpush1.bf16.msra.mxu0 %v737
  %1004 = vmatprep.mubr.bf16.mxu0 %v228
  %1005 = vmatmul.mubr.bf16.gmra.mrb[0].mxu0 %v227
  %v1006 = vpop.f32.mrb[0].mxu0
  %v1007 = vadd.f32 %v178, %v1006
  %v1008 = vpop.f32.mrb[0].mxu0
  %v1009 = vadd.f32 %v178, %v1008
  %v1010 = vpop.f32.mrb[0].mxu0
  %v1011 = vadd.f32 %v183, %v1010
  %v1012 = vpop.f32.mrb[0].mxu0
  %v1013 = vadd.f32 %v183, %v1012
  %1014 = vmatprep.mubr.bf16.mxu0 %v233
  %1015 = vmatmul.mubr.bf16.gmra.mrb[0].mxu0 %v232
  %v1016 = vpop.f32.mrb[0].mxu0
  %v1017 = vadd.f32 %v188, %v1016
  %v1018 = vpop.f32.mrb[0].mxu0
  %v1019 = vadd.f32 %v188, %v1018
  %v1020 = vpop.f32.mrb[0].mxu0
  %v1021 = vadd.f32 %v193, %v1020
  %v1022 = vpop.f32.mrb[0].mxu0
  %v1023 = vadd.f32 %v193, %v1022
  %1024 = vdwg.mxu0
  %1025 = vmatprep.subr.bf16.mxu0 %v742
  %1026 = vmatpush1.bf16.msra.mxu0 %v741
  %1027 = vmatprep.subr.bf16.mxu0 %v746
  %1028 = vmatpush1.bf16.msra.mxu0 %v745
  %1029 = vmatprep.subr.bf16.mxu0 %v750
  %1030 = vmatpush1.bf16.msra.mxu0 %v749
  %1031 = vmatprep.subr.bf16.mxu0 %v754
  %1032 = vmatpush1.bf16.msra.mxu0 %v753
  %1033 = vmatprep.subr.bf16.mxu0 %v758
  %1034 = vmatpush1.bf16.msra.mxu0 %v757
  %1035 = vmatprep.subr.bf16.mxu0 %v762
  %1036 = vmatpush1.bf16.msra.mxu0 %v761
  %1037 = vmatprep.subr.bf16.mxu0 %v766
  %1038 = vmatpush1.bf16.msra.mxu0 %v765
  %1039 = vmatprep.subr.bf16.mxu0 %v770
  %1040 = vmatpush1.bf16.msra.mxu0 %v769
  %1041 = vmatprep.subr.bf16.mxu0 %v774
  %1042 = vmatpush1.bf16.msra.mxu0 %v773
  %1043 = vmatprep.subr.bf16.mxu0 %v778
  %1044 = vmatpush1.bf16.msra.mxu0 %v777
  %1045 = vmatprep.subr.bf16.mxu0 %v782
  %1046 = vmatpush1.bf16.msra.mxu0 %v781
  %1047 = vmatprep.subr.bf16.mxu0 %v786
  %1048 = vmatpush1.bf16.msra.mxu0 %v785
  %1049 = vmatprep.subr.bf16.mxu0 %v790
  %1050 = vmatpush1.bf16.msra.mxu0 %v789
  %1051 = vmatprep.subr.bf16.mxu0 %v794
  %1052 = vmatpush1.bf16.msra.mxu0 %v793
  %1053 = vmatprep.subr.bf16.mxu0 %v798
  %1054 = vmatpush1.bf16.msra.mxu0 %v797
  %1055 = vmatprep.subr.bf16.mxu0 %v802
  %1056 = vmatpush1.bf16.msra.mxu0 %v801
  %1057 = vmatprep.mubr.bf16.mxu0 %v230
  %1058 = vmatmul.mubr.bf16.gmra.mrb[0].mxu0 %v229
  %v1059 = vpop.f32.mrb[0].mxu0
  %v1060 = vadd.f32 %v1007, %v1059
  %v1061 = vpop.f32.mrb[0].mxu0
  %v1062 = vadd.f32 %v1009, %v1061
  %v1063 = vpop.f32.mrb[0].mxu0
  %v1064 = vadd.f32 %v1011, %v1063
  %v1065 = vpop.f32.mrb[0].mxu0
  %v1066 = vadd.f32 %v1013, %v1065
  %1067 = vmatprep.mubr.bf16.mxu0 %v235
  %1068 = vmatmul.mubr.bf16.gmra.mrb[0].mxu0 %v234
  %v1069 = vpop.f32.mrb[0].mxu0
  %v1070 = vadd.f32 %v1017, %v1069
  %v1071 = vpop.f32.mrb[0].mxu0
  %v1072 = vadd.f32 %v1019, %v1071
  %v1073 = vpop.f32.mrb[0].mxu0
  %v1074 = vadd.f32 %v1021, %v1073
  %v1075 = vpop.f32.mrb[0].mxu0
  %v1076 = vadd.f32 %v1023, %v1075
  %1077 = vdwg.mxu0
  %1078 = vmatprep.subr.bf16.mxu0 %v806
  %1079 = vmatpush1.bf16.msra.mxu0 %v805
  %1080 = vmatprep.subr.bf16.mxu0 %v810
  %1081 = vmatpush1.bf16.msra.mxu0 %v809
  %1082 = vmatprep.subr.bf16.mxu0 %v814
  %1083 = vmatpush1.bf16.msra.mxu0 %v813
  %1084 = vmatprep.subr.bf16.mxu0 %v818
  %1085 = vmatpush1.bf16.msra.mxu0 %v817
  %1086 = vmatprep.subr.bf16.mxu0 0
  %1087 = vmatpush1.bf16.msra.mxu0 0
  %1088 = vmatprep.subr.bf16.mxu0 0
  %1089 = vmatpush1.bf16.msra.mxu0 0
  %1090 = vmatprep.subr.bf16.mxu0 0
  %1091 = vmatpush1.bf16.msra.mxu0 0
  %1092 = vmatprep.subr.bf16.mxu0 0
  %1093 = vmatpush1.bf16.msra.mxu0 0
  %1094 = vmatprep.subr.bf16.mxu0 0
  %1095 = vmatpush1.bf16.msra.mxu0 0
  %1096 = vmatprep.subr.bf16.mxu0 0
  %1097 = vmatpush1.bf16.msra.mxu0 0
  %1098 = vmatprep.subr.bf16.mxu0 0
  %1099 = vmatpush1.bf16.msra.mxu0 0
  %1100 = vmatprep.subr.bf16.mxu0 0
  %1101 = vmatpush1.bf16.msra.mxu0 0
  %1102 = vmatprep.subr.bf16.mxu0 0
  %1103 = vmatpush1.bf16.msra.mxu0 0
  %1104 = vmatprep.subr.bf16.mxu0 0
  %1105 = vmatpush1.bf16.msra.mxu0 0
  %1106 = vmatprep.subr.bf16.mxu0 0
  %1107 = vmatpush1.bf16.msra.mxu0 0
  %1108 = vmatprep.subr.bf16.mxu0 0
  %1109 = vmatpush1.bf16.msra.mxu0 0
  %1110 = vmatprep.mubr.bf16.mxu0 0
  %1111 = vmatmul.mubr.bf16.gmra.mrb[0].mxu0 %v967
  %v1112 = vpop.f32.mrb[0].mxu0
  %v1113 = vadd.f32 %v1060, %v1112
  %v1114 = vpop.f32.mrb[0].mxu0
  %v1115 = vadd.f32 %v1062, %v1114
  %v1116 = vpop.f32.mrb[0].mxu0
  %v1117 = vadd.f32 %v1064, %v1116
  %v1118 = vpop.f32.mrb[0].mxu0
  %v1119 = vadd.f32 %v1066, %v1118
  %1120 = vmatprep.mubr.bf16.mxu0 0
  %1121 = vmatmul.mubr.bf16.gmra.mrb[0].mxu0 %v970
  %v1122 = vpop.f32.mrb[0].mxu0
  %v1123 = vadd.f32 %v1070, %v1122
  %v1124 = vpop.f32.mrb[0].mxu0
  %v1125 = vadd.f32 %v1072, %v1124
  %v1126 = vpop.f32.mrb[0].mxu0
  %v1127 = vadd.f32 %v1074, %v1126
  %v1128 = vpop.f32.mrb[0].mxu0
  %v1129 = vadd.f32 %v1076, %v1128
  %1130 = vdwg.mxu0
  %1131 = vmatprep.subr.bf16.mxu0 %v680
  %1132 = vmatpush1.bf16.msra.mxu0 %v679
  %1133 = vmatprep.subr.bf16.mxu0 %v684
  %1134 = vmatpush1.bf16.msra.mxu0 %v683
  %1135 = vmatprep.subr.bf16.mxu0 %v688
  %1136 = vmatpush1.bf16.msra.mxu0 %v687
  %1137 = vmatprep.subr.bf16.mxu0 %v692
  %1138 = vmatpush1.bf16.msra.mxu0 %v691
  %1139 = vmatprep.subr.bf16.mxu0 %v696
  %1140 = vmatpush1.bf16.msra.mxu0 %v695
  %1141 = vmatprep.subr.bf16.mxu0 %v700
  %1142 = vmatpush1.bf16.msra.mxu0 %v699
  %1143 = vmatprep.subr.bf16.mxu0 %v704
  %1144 = vmatpush1.bf16.msra.mxu0 %v703
  %1145 = vmatprep.subr.bf16.mxu0 %v708
  %1146 = vmatpush1.bf16.msra.mxu0 %v707
  %1147 = vmatprep.subr.bf16.mxu0 %v712
  %1148 = vmatpush1.bf16.msra.mxu0 %v711
  %1149 = vmatprep.subr.bf16.mxu0 %v716
  %1150 = vmatpush1.bf16.msra.mxu0 %v715
  %1151 = vmatprep.subr.bf16.mxu0 %v720
  %1152 = vmatpush1.bf16.msra.mxu0 %v719
  %1153 = vmatprep.subr.bf16.mxu0 %v724
  %1154 = vmatpush1.bf16.msra.mxu0 %v723
  %1155 = vmatprep.subr.bf16.mxu0 %v728
  %1156 = vmatpush1.bf16.msra.mxu0 %v727
  %1157 = vmatprep.subr.bf16.mxu0 %v732
  %1158 = vmatpush1.bf16.msra.mxu0 %v731
  %1159 = vmatprep.subr.bf16.mxu0 %v736
  %1160 = vmatpush1.bf16.msra.mxu0 %v735
  %1161 = vmatprep.subr.bf16.mxu0 %v740
  %1162 = vmatpush1.bf16.msra.mxu0 %v739
  %1163 = vmatprep.mubr.bf16.mxu0 %v228
  %1164 = vmatmul.mubr.bf16.gmra.mrb[0].mxu0 %v227
  %v1165 = vpop.f32.mrb[0].mxu0
  %v1166 = vadd.f32 %v178, %v1165
  %v1167 = vpop.f32.mrb[0].mxu0
  %v1168 = vadd.f32 %v178, %v1167
  %v1169 = vpop.f32.mrb[0].mxu0
  %v1170 = vadd.f32 %v183, %v1169
  %v1171 = vpop.f32.mrb[0].mxu0
  %v1172 = vadd.f32 %v183, %v1171
  %1173 = vmatprep.mubr.bf16.mxu0 %v233
  %1174 = vmatmul.mubr.bf16.gmra.mrb[0].mxu0 %v232
  %v1175 = vpop.f32.mrb[0].mxu0
  %v1176 = vadd.f32 %v188, %v1175
  %v1177 = vpop.f32.mrb[0].mxu0
  %v1178 = vadd.f32 %v188, %v1177
  %v1179 = vpop.f32.mrb[0].mxu0
  %v1180 = vadd.f32 %v193, %v1179
  %v1181 = vpop.f32.mrb[0].mxu0
  %v1182 = vadd.f32 %v193, %v1181
  %1183 = vdwg.mxu0
  %1184 = vmatprep.subr.bf16.mxu0 %v744
  %1185 = vmatpush1.bf16.msra.mxu0 %v743
  %1186 = vmatprep.subr.bf16.mxu0 %v748
  %1187 = vmatpush1.bf16.msra.mxu0 %v747
  %1188 = vmatprep.subr.bf16.mxu0 %v752
  %1189 = vmatpush1.bf16.msra.mxu0 %v751
  %1190 = vmatprep.subr.bf16.mxu0 %v756
  %1191 = vmatpush1.bf16.msra.mxu0 %v755
  %1192 = vmatprep.subr.bf16.mxu0 %v760
  %1193 = vmatpush1.bf16.msra.mxu0 %v759
  %1194 = vmatprep.subr.bf16.mxu0 %v764
  %1195 = vmatpush1.bf16.msra.mxu0 %v763
  %1196 = vmatprep.subr.bf16.mxu0 %v768
  %1197 = vmatpush1.bf16.msra.mxu0 %v767
  %1198 = vmatprep.subr.bf16.mxu0 %v772
  %1199 = vmatpush1.bf16.msra.mxu0 %v771
  %1200 = vmatprep.subr.bf16.mxu0 %v776
  %1201 = vmatpush1.bf16.msra.mxu0 %v775
  %1202 = vmatprep.subr.bf16.mxu0 %v780
  %1203 = vmatpush1.bf16.msra.mxu0 %v779
  %1204 = vmatprep.subr.bf16.mxu0 %v784
  %1205 = vmatpush1.bf16.msra.mxu0 %v783
  %1206 = vmatprep.subr.bf16.mxu0 %v788
  %1207 = vmatpush1.bf16.msra.mxu0 %v787
  %1208 = vmatprep.subr.bf16.mxu0 %v792
  %1209 = vmatpush1.bf16.msra.mxu0 %v791
  %1210 = vmatprep.subr.bf16.mxu0 %v796
  %1211 = vmatpush1.bf16.msra.mxu0 %v795
  %1212 = vmatprep.subr.bf16.mxu0 %v800
  %1213 = vmatpush1.bf16.msra.mxu0 %v799
  %1214 = vmatprep.subr.bf16.mxu0 %v804
  %1215 = vmatpush1.bf16.msra.mxu0 %v803
  %1216 = vmatprep.mubr.bf16.mxu0 %v230
  %1217 = vmatmul.mubr.bf16.gmra.mrb[0].mxu0 %v229
  %v1218 = vpop.f32.mrb[0].mxu0
  %v1219 = vadd.f32 %v1166, %v1218
  %v1220 = vpop.f32.mrb[0].mxu0
  %v1221 = vadd.f32 %v1168, %v1220
  %v1222 = vpop.f32.mrb[0].mxu0
  %v1223 = vadd.f32 %v1170, %v1222
  %v1224 = vpop.f32.mrb[0].mxu0
  %v1225 = vadd.f32 %v1172, %v1224
  %1226 = vmatprep.mubr.bf16.mxu0 %v235
  %1227 = vmatmul.mubr.bf16.gmra.mrb[0].mxu0 %v234
  %v1228 = vpop.f32.mrb[0].mxu0
  %v1229 = vadd.f32 %v1176, %v1228
  %v1230 = vpop.f32.mrb[0].mxu0
  %v1231 = vadd.f32 %v1178, %v1230
  %v1232 = vpop.f32.mrb[0].mxu0
  %v1233 = vadd.f32 %v1180, %v1232
  %v1234 = vpop.f32.mrb[0].mxu0
  %v1235 = vadd.f32 %v1182, %v1234
  %1236 = vdwg.mxu0
  %1237 = vmatprep.subr.bf16.mxu0 %v808
  %1238 = vmatpush1.bf16.msra.mxu0 %v807
  %1239 = vmatprep.subr.bf16.mxu0 %v812
  %1240 = vmatpush1.bf16.msra.mxu0 %v811
  %1241 = vmatprep.subr.bf16.mxu0 %v816
  %1242 = vmatpush1.bf16.msra.mxu0 %v815
  %1243 = vmatprep.subr.bf16.mxu0 %v820
  %1244 = vmatpush1.bf16.msra.mxu0 %v819
  %1245 = vmatprep.subr.bf16.mxu0 0
  %1246 = vmatpush1.bf16.msra.mxu0 0
  %1247 = vmatprep.subr.bf16.mxu0 0
  %1248 = vmatpush1.bf16.msra.mxu0 0
  %1249 = vmatprep.subr.bf16.mxu0 0
  %1250 = vmatpush1.bf16.msra.mxu0 0
  %1251 = vmatprep.subr.bf16.mxu0 0
  %1252 = vmatpush1.bf16.msra.mxu0 0
  %1253 = vmatprep.subr.bf16.mxu0 0
  %1254 = vmatpush1.bf16.msra.mxu0 0
  %1255 = vmatprep.subr.bf16.mxu0 0
  %1256 = vmatpush1.bf16.msra.mxu0 0
  %1257 = vmatprep.subr.bf16.mxu0 0
  %1258 = vmatpush1.bf16.msra.mxu0 0
  %1259 = vmatprep.subr.bf16.mxu0 0
  %1260 = vmatpush1.bf16.msra.mxu0 0
  %1261 = vmatprep.subr.bf16.mxu0 0
  %1262 = vmatpush1.bf16.msra.mxu0 0
  %1263 = vmatprep.subr.bf16.mxu0 0
  %1264 = vmatpush1.bf16.msra.mxu0 0
  %1265 = vmatprep.subr.bf16.mxu0 0
  %1266 = vmatpush1.bf16.msra.mxu0 0
  %1267 = vmatprep.subr.bf16.mxu0 0
  %1268 = vmatpush1.bf16.msra.mxu0 0
  %1269 = vmatprep.mubr.bf16.mxu0 0
  %1270 = vmatmul.mubr.bf16.gmra.mrb[0].mxu0 %v967
  %v1271 = vpop.f32.mrb[0].mxu0
  %v1272 = vadd.f32 %v1219, %v1271
  %v1273 = vpop.f32.mrb[0].mxu0
  %v1274 = vadd.f32 %v1221, %v1273
  %v1275 = vpop.f32.mrb[0].mxu0
  %v1276 = vadd.f32 %v1223, %v1275
  %v1277 = vpop.f32.mrb[0].mxu0
  %v1278 = vadd.f32 %v1225, %v1277
  %1279 = vmatprep.mubr.bf16.mxu0 0
  %1280 = vmatmul.mubr.bf16.gmra.mrb[0].mxu0 %v970
  %v1281 = vpop.f32.mrb[0].mxu0
  %v1282 = vadd.f32 %v1229, %v1281
  %v1283 = vpop.f32.mrb[0].mxu0
  %v1284 = vadd.f32 %v1231, %v1283
  %v1285 = vpop.f32.mrb[0].mxu0
  %v1286 = vadd.f32 %v1233, %v1285
  %v1287 = vpop.f32.mrb[0].mxu0
  %v1288 = vadd.f32 %v1235, %v1287
  %1289 = vdwg.mxu0
  %vm1290 = vcmp.gt.f32.partialorder %v1113, 0.0
  %vm1291 = vcmp.gt.f32.partialorder %v1115, 0.0
  %vm1292 = vcmp.gt.f32.partialorder %v1272, 0.0
  %vm1293 = vcmp.gt.f32.partialorder %v1274, 0.0
  %vm1294 = vcmp.gt.f32.partialorder %v1117, 0.0
  %vm1295 = vcmp.gt.f32.partialorder %v1119, 0.0
  %vm1296 = vcmp.gt.f32.partialorder %v1276, 0.0
  %vm1297 = vcmp.gt.f32.partialorder %v1278, 0.0
  %vm1298 = vcmp.gt.f32.partialorder %v1123, 0.0
  %vm1299 = vcmp.gt.f32.partialorder %v1125, 0.0
  %vm1300 = vcmp.gt.f32.partialorder %v1282, 0.0
  %vm1301 = vcmp.gt.f32.partialorder %v1284, 0.0
  %vm1302 = vcmp.gt.f32.partialorder %v1127, 0.0
  %vm1303 = vcmp.gt.f32.partialorder %v1129, 0.0
  %vm1304 = vcmp.gt.f32.partialorder %v1286, 0.0
  %vm1305 = vcmp.gt.f32.partialorder %v1288, 0.0
  %v1306 = vmul.f32 %v1113, 0.2
  %v1307 = vmul.f32 %v1115, 0.2
  %v1308 = vmul.f32 %v1272, 0.2
  %v1309 = vmul.f32 %v1274, 0.2
  %v1310 = vmul.f32 %v1117, 0.2
  %v1311 = vmul.f32 %v1119, 0.2
  %v1312 = vmul.f32 %v1276, 0.2
  %v1313 = vmul.f32 %v1278, 0.2
  %v1314 = vmul.f32 %v1123, 0.2
  %v1315 = vmul.f32 %v1125, 0.2
  %v1316 = vmul.f32 %v1282, 0.2
  %v1317 = vmul.f32 %v1284, 0.2
  %v1318 = vmul.f32 %v1127, 0.2
  %v1319 = vmul.f32 %v1129, 0.2
  %v1320 = vmul.f32 %v1286, 0.2
  %v1321 = vmul.f32 %v1288, 0.2
  %v1322 = vsel %vm1290, %v1113, %v1306
  %v1323 = vsel %vm1291, %v1115, %v1307
  %v1324 = vsel %vm1292, %v1272, %v1308
  %v1325 = vsel %vm1293, %v1274, %v1309
  %v1326 = vsel %vm1294, %v1117, %v1310
  %v1327 = vsel %vm1295, %v1119, %v1311
  %v1328 = vsel %vm1296, %v1276, %v1312
  %v1329 = vsel %vm1297, %v1278, %v1313
  %v1330 = vsel %vm1298, %v1123, %v1314
  %v1331 = vsel %vm1299, %v1125, %v1315
  %v1332 = vsel %vm1300, %v1282, %v1316
  %v1333 = vsel %vm1301, %v1284, %v1317
  %v1334 = vsel %vm1302, %v1127, %v1318
  %v1335 = vsel %vm1303, %v1129, %v1319
  %v1336 = vsel %vm1304, %v1286, %v1320
  %v1337 = vsel %vm1305, %v1288, %v1321
  %1338 = vst [vmem:[%s3] sm:$0xff] %v1322
  %1339 = vst [vmem:[%s3 + $0x8] sm:$0xff] %v1323
  %1340 = vst [vmem:[%s3 + $0x10] sm:$0xff] %v1324
  %1341 = vst [vmem:[%s3 + $0x18] sm:$0xff] %v1325
  %1342 = vst [vmem:[%s3 + $0x20] sm:$0xff] %v1326
  %1343 = vst [vmem:[%s3 + $0x28] sm:$0xff] %v1327
  %1344 = vst [vmem:[%s3 + $0x30] sm:$0xff] %v1328
  %1345 = vst [vmem:[%s3 + $0x38] sm:$0xff] %v1329
  %1346 = vst [vmem:[%s3 + $0x40] sm:$0xff] %v1330
  %1347 = vst [vmem:[%s3 + $0x48] sm:$0xff] %v1331
  %1348 = vst [vmem:[%s3 + $0x50] sm:$0xff] %v1332
  %1349 = vst [vmem:[%s3 + $0x58] sm:$0xff] %v1333
  %1350 = vst [vmem:[%s3 + $0x60] sm:$0xff] %v1334
  %1351 = vst [vmem:[%s3 + $0x68] sm:$0xff] %v1335
  %1352 = vst [vmem:[%s3 + $0x70] sm:$0xff] %v1336
  %1353 = vst [vmem:[%s3 + $0x78] sm:$0xff] %v1337
  // Predicated region
  $region14: #{vae_forward.16} parent=0 // pred_check
    _
  $region15: #{vae_forward.16} parent=0 // pred_check_branch
    %1355 = sbr.rel (0) target = $region17
  $region16: #{vae_forward.16} parent=0 // pred_region
    _
  $region17: #{vae_forward.16} parent=0 // pred_fallthru
    _
  // Predicated region
  $region18: #{vae_forward.16} parent=0 // pred_check
    _
  $region19: #{vae_forward.16} parent=0 // pred_check_branch
    %1357 = sbr.rel (0) target = $region21
  $region20: #{vae_forward.16} parent=0 // pred_region
    _
  $region21: #{vae_forward.16} parent=0 // pred_fallthru
    _

// kernel: vae_forward.17
$region0: #{vae_forward.17}
  #allocation0 [shape = 'u32[]', space=smem, size = 0x4, offset = 0x4, fixed_abs, tag = 'smem constant byte address 0x4 - core index']
  #allocation1 [shape = 'u32[144,128]{1,0:T(1,128)}', space=vmem, size = 0x12000, scoped, tag = 'internal scratch']
  %s0 = inlined_call_operand.vmem [shape: bf16[3,288], index: 0, kind: input, shape index: {}]
  %s1 = inlined_call_operand.vmem [shape: bf16[288,2048], index: 1, kind: input, shape index: {}]
  %s2 = inlined_call_operand.vmem [shape: f32[3,1], index: 2, kind: input, shape index: {}]
  %s3 = inlined_call_operand.vmem [shape: f32[3,2048], index: 3, kind: output, shape index: {}]
  %s4 = sld [smem:[#allocation0]]
  $region22: #{vae_forward.17} parent=0
    _
  %s6 = ssub.s32 1, %s4
  %s7 = scalar_select 0, %s6, %s4
  // Predicated region
  $region2: #{vae_forward.17} parent=0 // pred_check
    _
  $region3: #{vae_forward.17} parent=0 // pred_check_branch
    %9 = sbr.rel (0) target = $region5
  $region4: #{vae_forward.17} parent=0 // pred_region
    _
  $region5: #{vae_forward.17} parent=0 // pred_fallthru
    _
  // Predicated region
  $region6: #{vae_forward.17} parent=0 // pred_check
    _
  $region7: #{vae_forward.17} parent=0 // pred_check_branch
    %11 = sbr.rel (0) target = $region9
  $region8: #{vae_forward.17} parent=0 // pred_region
    _
  $region9: #{vae_forward.17} parent=0 // pred_fallthru
    _
  // Predicated region
  $region10: #{vae_forward.17} parent=0 // pred_check
    _
  $region11: #{vae_forward.17} parent=0 // pred_check_branch
    %13 = sbr.rel (0) target = $region13
  $region12: #{vae_forward.17} parent=0 // pred_region
    _
  $region13: #{vae_forward.17} parent=0 // pred_fallthru
    _
  %v15 = vld [vmem:[%s0] sm:$0x3f]
  %v16 = vld [vmem:[%s1] sm:$0xff]
  %v17 = vld [vmem:[%s1 + $0x8] sm:$0xff]
  %v18 = vld [vmem:[%s1 + $0x10] sm:$0xff]
  %v19 = vld [vmem:[%s1 + $0x18] sm:$0xff]
  %v20 = vld [vmem:[%s1 + $0x20] sm:$0xff]
  %v21 = vld [vmem:[%s1 + $0x28] sm:$0xff]
  %v22 = vld [vmem:[%s1 + $0x30] sm:$0xff]
  %v23 = vld [vmem:[%s1 + $0x38] sm:$0xff]
  %v24 = vld [vmem:[%s1 + $0x40] sm:$0xff]
  %v25 = vld [vmem:[%s1 + $0x48] sm:$0xff]
  %v26 = vld [vmem:[%s1 + $0x50] sm:$0xff]
  %v27 = vld [vmem:[%s1 + $0x58] sm:$0xff]
  %v28 = vld [vmem:[%s1 + $0x60] sm:$0xff]
  %v29 = vld [vmem:[%s1 + $0x68] sm:$0xff]
  %v30 = vld [vmem:[%s1 + $0x70] sm:$0xff]
  %v31 = vld [vmem:[%s1 + $0x78] sm:$0xff]
  %v32 = vld [vmem:[%s1 + $0x80] sm:$0xff]
  %v33 = vld [vmem:[%s1 + $0x88] sm:$0xff]
  %v34 = vld [vmem:[%s1 + $0x90] sm:$0xff]
  %v35 = vld [vmem:[%s1 + $0x98] sm:$0xff]
  %v36 = vld [vmem:[%s1 + $0xa0] sm:$0xff]
  %v37 = vld [vmem:[%s1 + $0xa8] sm:$0xff]
  %v38 = vld [vmem:[%s1 + $0xb0] sm:$0xff]
  %v39 = vld [vmem:[%s1 + $0xb8] sm:$0xff]
  %v40 = vld [vmem:[%s1 + $0xc0] sm:$0xff]
  %v41 = vld [vmem:[%s1 + $0xc8] sm:$0xff]
  %v42 = vld [vmem:[%s1 + $0xd0] sm:$0xff]
  %v43 = vld [vmem:[%s1 + $0xd8] sm:$0xff]
  %v44 = vld [vmem:[%s1 + $0xe0] sm:$0xff]
  %v45 = vld [vmem:[%s1 + $0xe8] sm:$0xff]
  %v46 = vld [vmem:[%s1 + $0xf0] sm:$0xff]
  %v47 = vld [vmem:[%s1 + $0xf8] sm:$0xff]
  %v48 = vld [vmem:[%s1 + $0x100] sm:$0xff]
  %v49 = vld [vmem:[%s1 + $0x108] sm:$0xff]
  %v50 = vld [vmem:[%s1 + $0x110] sm:$0xff]
  %v51 = vld [vmem:[%s1 + $0x118] sm:$0xff]
  %v52 = vld [vmem:[%s1 + $0x120] sm:$0xff]
  %v53 = vld [vmem:[%s1 + $0x128] sm:$0xff]
  %v54 = vld [vmem:[%s1 + $0x130] sm:$0xff]
  %v55 = vld [vmem:[%s1 + $0x138] sm:$0xff]
  %v56 = vld [vmem:[%s1 + $0x140] sm:$0xff]
  %v57 = vld [vmem:[%s1 + $0x148] sm:$0xff]
  %v58 = vld [vmem:[%s1 + $0x150] sm:$0xff]
  %v59 = vld [vmem:[%s1 + $0x158] sm:$0xff]
  %v60 = vld [vmem:[%s1 + $0x160] sm:$0xff]
  %v61 = vld [vmem:[%s1 + $0x168] sm:$0xff]
  %v62 = vld [vmem:[%s1 + $0x170] sm:$0xff]
  %v63 = vld [vmem:[%s1 + $0x178] sm:$0xff]
  %v64 = vld [vmem:[%s1 + $0x180] sm:$0xff]
  %v65 = vld [vmem:[%s1 + $0x188] sm:$0xff]
  %v66 = vld [vmem:[%s1 + $0x190] sm:$0xff]
  %v67 = vld [vmem:[%s1 + $0x198] sm:$0xff]
  %v68 = vld [vmem:[%s1 + $0x1a0] sm:$0xff]
  %v69 = vld [vmem:[%s1 + $0x1a8] sm:$0xff]
  %v70 = vld [vmem:[%s1 + $0x1b0] sm:$0xff]
  %v71 = vld [vmem:[%s1 + $0x1b8] sm:$0xff]
  %v72 = vld [vmem:[%s1 + $0x1c0] sm:$0xff]
  %v73 = vld [vmem:[%s1 + $0x1c8] sm:$0xff]
  %v74 = vld [vmem:[%s1 + $0x1d0] sm:$0xff]
  %v75 = vld [vmem:[%s1 + $0x1d8] sm:$0xff]
  %v76 = vld [vmem:[%s1 + $0x1e0] sm:$0xff]
  %v77 = vld [vmem:[%s1 + $0x1e8] sm:$0xff]
  %v78 = vld [vmem:[%s1 + $0x1f0] sm:$0xff]
  %v79 = vld [vmem:[%s1 + $0x1f8] sm:$0xff]
  %v80 = vld [vmem:[%s1 + $0x200] sm:$0xff]
  %v81 = vld [vmem:[%s1 + $0x208] sm:$0xff]
  %v82 = vld [vmem:[%s1 + $0x210] sm:$0xff]
  %v83 = vld [vmem:[%s1 + $0x218] sm:$0xff]
  %v84 = vld [vmem:[%s1 + $0x220] sm:$0xff]
  %v85 = vld [vmem:[%s1 + $0x228] sm:$0xff]
  %v86 = vld [vmem:[%s1 + $0x230] sm:$0xff]
  %v87 = vld [vmem:[%s1 + $0x238] sm:$0xff]
  %v88 = vld [vmem:[%s1 + $0x240] sm:$0xff]
  %v89 = vld [vmem:[%s1 + $0x248] sm:$0xff]
  %v90 = vld [vmem:[%s1 + $0x250] sm:$0xff]
  %v91 = vld [vmem:[%s1 + $0x258] sm:$0xff]
  %v92 = vld [vmem:[%s1 + $0x260] sm:$0xff]
  %v93 = vld [vmem:[%s1 + $0x268] sm:$0xff]
  %v94 = vld [vmem:[%s1 + $0x270] sm:$0xff]
  %v95 = vld [vmem:[%s1 + $0x278] sm:$0xff]
  %v96 = vld [vmem:[%s1 + $0x280] sm:$0xff]
  %v97 = vld [vmem:[%s1 + $0x288] sm:$0xff]
  %v98 = vld [vmem:[%s1 + $0x290] sm:$0xff]
  %v99 = vld [vmem:[%s1 + $0x298] sm:$0xff]
  %v100 = vld [vmem:[%s1 + $0x2a0] sm:$0xff]
  %v101 = vld [vmem:[%s1 + $0x2a8] sm:$0xff]
  %v102 = vld [vmem:[%s1 + $0x2b0] sm:$0xff]
  %v103 = vld [vmem:[%s1 + $0x2b8] sm:$0xff]
  %v104 = vld [vmem:[%s1 + $0x2c0] sm:$0xff]
  %v105 = vld [vmem:[%s1 + $0x2c8] sm:$0xff]
  %v106 = vld [vmem:[%s1 + $0x2d0] sm:$0xff]
  %v107 = vld [vmem:[%s1 + $0x2d8] sm:$0xff]
  %v108 = vld [vmem:[%s1 + $0x2e0] sm:$0xff]
  %v109 = vld [vmem:[%s1 + $0x2e8] sm:$0xff]
  %v110 = vld [vmem:[%s1 + $0x2f0] sm:$0xff]
  %v111 = vld [vmem:[%s1 + $0x2f8] sm:$0xff]
  %v112 = vld [vmem:[%s1 + $0x300] sm:$0xff]
  %v113 = vld [vmem:[%s1 + $0x308] sm:$0xff]
  %v114 = vld [vmem:[%s1 + $0x310] sm:$0xff]
  %v115 = vld [vmem:[%s1 + $0x318] sm:$0xff]
  %v116 = vld [vmem:[%s1 + $0x320] sm:$0xff]
  %v117 = vld [vmem:[%s1 + $0x328] sm:$0xff]
  %v118 = vld [vmem:[%s1 + $0x330] sm:$0xff]
  %v119 = vld [vmem:[%s1 + $0x338] sm:$0xff]
  %v120 = vld [vmem:[%s1 + $0x340] sm:$0xff]
  %v121 = vld [vmem:[%s1 + $0x348] sm:$0xff]
  %v122 = vld [vmem:[%s1 + $0x350] sm:$0xff]
  %v123 = vld [vmem:[%s1 + $0x358] sm:$0xff]
  %v124 = vld [vmem:[%s1 + $0x360] sm:$0xff]
  %v125 = vld [vmem:[%s1 + $0x368] sm:$0xff]
  %v126 = vld [vmem:[%s1 + $0x370] sm:$0xff]
  %v127 = vld [vmem:[%s1 + $0x378] sm:$0xff]
  %v128 = vld [vmem:[%s1 + $0x380] sm:$0xff]
  %v129 = vld [vmem:[%s1 + $0x388] sm:$0xff]
  %v130 = vld [vmem:[%s1 + $0x390] sm:$0xff]
  %v131 = vld [vmem:[%s1 + $0x398] sm:$0xff]
  %v132 = vld [vmem:[%s1 + $0x3a0] sm:$0xff]
  %v133 = vld [vmem:[%s1 + $0x3a8] sm:$0xff]
  %v134 = vld [vmem:[%s1 + $0x3b0] sm:$0xff]
  %v135 = vld [vmem:[%s1 + $0x3b8] sm:$0xff]
  %v136 = vld [vmem:[%s1 + $0x3c0] sm:$0xff]
  %v137 = vld [vmem:[%s1 + $0x3c8] sm:$0xff]
  %v138 = vld [vmem:[%s1 + $0x3d0] sm:$0xff]
  %v139 = vld [vmem:[%s1 + $0x3d8] sm:$0xff]
  %v140 = vld [vmem:[%s1 + $0x3e0] sm:$0xff]
  %v141 = vld [vmem:[%s1 + $0x3e8] sm:$0xff]
  %v142 = vld [vmem:[%s1 + $0x3f0] sm:$0xff]
  %v143 = vld [vmem:[%s1 + $0x3f8] sm:$0xff]
  %v144 = vld [vmem:[%s1 + $0x400] sm:$0xff]
  %v145 = vld [vmem:[%s1 + $0x408] sm:$0xff]
  %v146 = vld [vmem:[%s1 + $0x410] sm:$0xff]
  %v147 = vld [vmem:[%s1 + $0x418] sm:$0xff]
  %v148 = vld [vmem:[%s1 + $0x420] sm:$0xff]
  %v149 = vld [vmem:[%s1 + $0x428] sm:$0xff]
  %v150 = vld [vmem:[%s1 + $0x430] sm:$0xff]
  %v151 = vld [vmem:[%s1 + $0x438] sm:$0xff]
  %v152 = vld [vmem:[%s1 + $0x440] sm:$0xff]
  %v153 = vld [vmem:[%s1 + $0x448] sm:$0xff]
  %v154 = vld [vmem:[%s1 + $0x450] sm:$0xff]
  %v155 = vld [vmem:[%s1 + $0x458] sm:$0xff]
  %v156 = vld [vmem:[%s1 + $0x460] sm:$0xff]
  %v157 = vld [vmem:[%s1 + $0x468] sm:$0xff]
  %v158 = vld [vmem:[%s1 + $0x470] sm:$0xff]
  %v159 = vld [vmem:[%s1 + $0x478] sm:$0xff]
  %v160 = vld [vmem:[%s1 + $0x480] sm:$0xff]
  %v161 = vld [vmem:[%s1 + $0x488] sm:$0xff]
  %v162 = vld [vmem:[%s1 + $0x490] sm:$0xff]
  %v163 = vld [vmem:[%s1 + $0x498] sm:$0xff]
  %v164 = vld [vmem:[%s1 + $0x4a0] sm:$0xff]
  %v165 = vld [vmem:[%s1 + $0x4a8] sm:$0xff]
  %v166 = vld [vmem:[%s1 + $0x4b0] sm:$0xff]
  %v167 = vld [vmem:[%s1 + $0x4b8] sm:$0xff]
  %v168 = vld [vmem:[%s1 + $0x4c0] sm:$0xff]
  %v169 = vld [vmem:[%s1 + $0x4c8] sm:$0xff]
  %v170 = vld [vmem:[%s1 + $0x4d0] sm:$0xff]
  %v171 = vld [vmem:[%s1 + $0x4d8] sm:$0xff]
  %v172 = vld [vmem:[%s1 + $0x4e0] sm:$0xff]
  %v173 = vld [vmem:[%s1 + $0x4e8] sm:$0xff]
  %v174 = vld [vmem:[%s1 + $0x4f0] sm:$0xff]
  %v175 = vld [vmem:[%s1 + $0x4f8] sm:$0xff]
  %v176 = vld [vmem:[%s1 + $0x500] sm:$0xff]
  %v177 = vld [vmem:[%s1 + $0x508] sm:$0xff]
  %v178 = vld [vmem:[%s1 + $0x510] sm:$0xff]
  %v179 = vld [vmem:[%s1 + $0x518] sm:$0xff]
  %v180 = vld [vmem:[%s1 + $0x520] sm:$0xff]
  %v181 = vld [vmem:[%s1 + $0x528] sm:$0xff]
  %v182 = vld [vmem:[%s1 + $0x530] sm:$0xff]
  %v183 = vld [vmem:[%s1 + $0x538] sm:$0xff]
  %v184 = vld [vmem:[%s1 + $0x540] sm:$0xff]
  %v185 = vld [vmem:[%s1 + $0x548] sm:$0xff]
  %v186 = vld [vmem:[%s1 + $0x550] sm:$0xff]
  %v187 = vld [vmem:[%s1 + $0x558] sm:$0xff]
  %v188 = vld [vmem:[%s1 + $0x560] sm:$0xff]
  %v189 = vld [vmem:[%s1 + $0x568] sm:$0xff]
  %v190 = vld [vmem:[%s1 + $0x570] sm:$0xff]
  %v191 = vld [vmem:[%s1 + $0x578] sm:$0xff]
  %v192 = vld [vmem:[%s1 + $0x580] sm:$0xff]
  %v193 = vld [vmem:[%s1 + $0x588] sm:$0xff]
  %v194 = vld [vmem:[%s1 + $0x590] sm:$0xff]
  %v195 = vld [vmem:[%s1 + $0x598] sm:$0xff]
  %v196 = vld [vmem:[%s1 + $0x5a0] sm:$0xff]
  %v197 = vld [vmem:[%s1 + $0x5a8] sm:$0xff]
  %v198 = vld [vmem:[%s1 + $0x5b0] sm:$0xff]
  %v199 = vld [vmem:[%s1 + $0x5b8] sm:$0xff]
  %v200 = vld [vmem:[%s1 + $0x5c0] sm:$0xff]
  %v201 = vld [vmem:[%s1 + $0x5c8] sm:$0xff]
  %v202 = vld [vmem:[%s1 + $0x5d0] sm:$0xff]
  %v203 = vld [vmem:[%s1 + $0x5d8] sm:$0xff]
  %v204 = vld [vmem:[%s1 + $0x5e0] sm:$0xff]
  %v205 = vld [vmem:[%s1 + $0x5e8] sm:$0xff]
  %v206 = vld [vmem:[%s1 + $0x5f0] sm:$0xff]
  %v207 = vld [vmem:[%s1 + $0x5f8] sm:$0xff]
  %v208 = vld [vmem:[%s1 + $0x600] sm:$0xff]
  %v209 = vld [vmem:[%s1 + $0x608] sm:$0xff]
  %v210 = vld [vmem:[%s1 + $0x610] sm:$0xff]
  %v211 = vld [vmem:[%s1 + $0x618] sm:$0xff]
  %v212 = vld [vmem:[%s1 + $0x620] sm:$0xff]
  %v213 = vld [vmem:[%s1 + $0x628] sm:$0xff]
  %v214 = vld [vmem:[%s1 + $0x630] sm:$0xff]
  %v215 = vld [vmem:[%s1 + $0x638] sm:$0xff]
  %v216 = vld [vmem:[%s1 + $0x640] sm:$0xff]
  %v217 = vld [vmem:[%s1 + $0x648] sm:$0xff]
  %v218 = vld [vmem:[%s1 + $0x650] sm:$0xff]
  %v219 = vld [vmem:[%s1 + $0x658] sm:$0xff]
  %v220 = vld [vmem:[%s1 + $0x660] sm:$0xff]
  %v221 = vld [vmem:[%s1 + $0x668] sm:$0xff]
  %v222 = vld [vmem:[%s1 + $0x670] sm:$0xff]
  %v223 = vld [vmem:[%s1 + $0x678] sm:$0xff]
  %v224 = vld [vmem:[%s1 + $0x680] sm:$0xff]
  %v225 = vld [vmem:[%s1 + $0x688] sm:$0xff]
  %v226 = vld [vmem:[%s1 + $0x690] sm:$0xff]
  %v227 = vld [vmem:[%s1 + $0x698] sm:$0xff]
  %v228 = vld [vmem:[%s1 + $0x6a0] sm:$0xff]
  %v229 = vld [vmem:[%s1 + $0x6a8] sm:$0xff]
  %v230 = vld [vmem:[%s1 + $0x6b0] sm:$0xff]
  %v231 = vld [vmem:[%s1 + $0x6b8] sm:$0xff]
  %v232 = vld [vmem:[%s1 + $0x6c0] sm:$0xff]
  %v233 = vld [vmem:[%s1 + $0x6c8] sm:$0xff]
  %v234 = vld [vmem:[%s1 + $0x6d0] sm:$0xff]
  %v235 = vld [vmem:[%s1 + $0x6d8] sm:$0xff]
  %v236 = vld [vmem:[%s1 + $0x6e0] sm:$0xff]
  %v237 = vld [vmem:[%s1 + $0x6e8] sm:$0xff]
  %v238 = vld [vmem:[%s1 + $0x6f0] sm:$0xff]
  %v239 = vld [vmem:[%s1 + $0x6f8] sm:$0xff]
  %v240 = vld [vmem:[%s1 + $0x700] sm:$0xff]
  %v241 = vld [vmem:[%s1 + $0x708] sm:$0xff]
  %v242 = vld [vmem:[%s1 + $0x710] sm:$0xff]
  %v243 = vld [vmem:[%s1 + $0x718] sm:$0xff]
  %v244 = vld [vmem:[%s1 + $0x720] sm:$0xff]
  %v245 = vld [vmem:[%s1 + $0x728] sm:$0xff]
  %v246 = vld [vmem:[%s1 + $0x730] sm:$0xff]
  %v247 = vld [vmem:[%s1 + $0x738] sm:$0xff]
  %v248 = vld [vmem:[%s1 + $0x740] sm:$0xff]
  %v249 = vld [vmem:[%s1 + $0x748] sm:$0xff]
  %v250 = vld [vmem:[%s1 + $0x750] sm:$0xff]
  %v251 = vld [vmem:[%s1 + $0x758] sm:$0xff]
  %v252 = vld [vmem:[%s1 + $0x760] sm:$0xff]
  %v253 = vld [vmem:[%s1 + $0x768] sm:$0xff]
  %v254 = vld [vmem:[%s1 + $0x770] sm:$0xff]
  %v255 = vld [vmem:[%s1 + $0x778] sm:$0xff]
  %v256 = vld [vmem:[%s1 + $0x780] sm:$0xff]
  %v257 = vld [vmem:[%s1 + $0x788] sm:$0xff]
  %v258 = vld [vmem:[%s1 + $0x790] sm:$0xff]
  %v259 = vld [vmem:[%s1 + $0x798] sm:$0xff]
  %v260 = vld [vmem:[%s1 + $0x7a0] sm:$0xff]
  %v261 = vld [vmem:[%s1 + $0x7a8] sm:$0xff]
  %v262 = vld [vmem:[%s1 + $0x7b0] sm:$0xff]
  %v263 = vld [vmem:[%s1 + $0x7b8] sm:$0xff]
  %v264 = vld [vmem:[%s1 + $0x7c0] sm:$0xff]
  %v265 = vld [vmem:[%s1 + $0x7c8] sm:$0xff]
  %v266 = vld [vmem:[%s1 + $0x7d0] sm:$0xff]
  %v267 = vld [vmem:[%s1 + $0x7d8] sm:$0xff]
  %v268 = vld [vmem:[%s1 + $0x7e0] sm:$0xff]
  %v269 = vld [vmem:[%s1 + $0x7e8] sm:$0xff]
  %v270 = vld [vmem:[%s1 + $0x7f0] sm:$0xff]
  %v271 = vld [vmem:[%s1 + $0x7f8] sm:$0xff]
  %v272 = vld [vmem:[%s1 + $0x800] sm:$0xff]
  %v273 = vld [vmem:[%s1 + $0x808] sm:$0xff]
  %v274 = vld [vmem:[%s1 + $0x810] sm:$0xff]
  %v275 = vld [vmem:[%s1 + $0x818] sm:$0xff]
  %v276 = vld [vmem:[%s1 + $0x820] sm:$0xff]
  %v277 = vld [vmem:[%s1 + $0x828] sm:$0xff]
  %v278 = vld [vmem:[%s1 + $0x830] sm:$0xff]
  %v279 = vld [vmem:[%s1 + $0x838] sm:$0xff]
  %v280 = vld [vmem:[%s1 + $0x840] sm:$0xff]
  %v281 = vld [vmem:[%s1 + $0x848] sm:$0xff]
  %v282 = vld [vmem:[%s1 + $0x850] sm:$0xff]
  %v283 = vld [vmem:[%s1 + $0x858] sm:$0xff]
  %v284 = vld [vmem:[%s1 + $0x860] sm:$0xff]
  %v285 = vld [vmem:[%s1 + $0x868] sm:$0xff]
  %v286 = vld [vmem:[%s1 + $0x870] sm:$0xff]
  %v287 = vld [vmem:[%s1 + $0x878] sm:$0xff]
  %v288 = vld [vmem:[%s1 + $0x880] sm:$0xff]
  %v289 = vld [vmem:[%s1 + $0x888] sm:$0xff]
  %v290 = vld [vmem:[%s1 + $0x890] sm:$0xff]
  %v291 = vld [vmem:[%s1 + $0x898] sm:$0xff]
  %v292 = vld [vmem:[%s1 + $0x8a0] sm:$0xff]
  %v293 = vld [vmem:[%s1 + $0x8a8] sm:$0xff]
  %v294 = vld [vmem:[%s1 + $0x8b0] sm:$0xff]
  %v295 = vld [vmem:[%s1 + $0x8b8] sm:$0xff]
  %v296 = vld [vmem:[%s1 + $0x8c0] sm:$0xff]
  %v297 = vld [vmem:[%s1 + $0x8c8] sm:$0xff]
  %v298 = vld [vmem:[%s1 + $0x8d0] sm:$0xff]
  %v299 = vld [vmem:[%s1 + $0x8d8] sm:$0xff]
  %v300 = vld [vmem:[%s1 + $0x8e0] sm:$0xff]
  %v301 = vld [vmem:[%s1 + $0x8e8] sm:$0xff]
  %v302 = vld [vmem:[%s1 + $0x8f0] sm:$0xff]
  %v303 = vld [vmem:[%s1 + $0x8f8] sm:$0xff]
  %v304 = vld [vmem:[%s2] sm:$0x7]
  %306 = vset.pattern.permute.xlu0 0
  %307 = vperm.xlu0 %306, %v304
  %v308 = vpop.permute.xlu0 %307
  %v311 = vcombine.high %v15, %v15
  %v313 = vunpack.c.l.s4 1983009808
  %v314 = vunpack.c.0.s8 %v313
  %v315 = vlaneseq
  %v316 = vshrl.u32 %v315, 7
  %v317 = vsub.s32 %v314, %v316
  %v318 = vrot.slane %v15, %v317
  %v320 = vunpack.c.l.s4 1983009808
  %v321 = vunpack.c.0.s8 %v320
  %v322 = vlaneseq
  %v323 = vshrl.u32 %v322, 7
  %v324 = vsub.s32 %v321, %v323
  %v325 = vrot.slane %v311, %v324
  %v326 = vcombine.high %v318, %v318
  %v617 = vunpack.c.l.b16 %v16
  %v618 = vunpack.c.h.b16 %v16
  %v619 = vunpack.c.l.b16 %v17
  %v620 = vunpack.c.h.b16 %v17
  %v621 = vunpack.c.l.b16 %v18
  %v622 = vunpack.c.h.b16 %v18
  %v623 = vunpack.c.l.b16 %v19
  %v624 = vunpack.c.h.b16 %v19
  %v625 = vunpack.c.l.b16 %v20
  %v626 = vunpack.c.h.b16 %v20
  %v627 = vunpack.c.l.b16 %v21
  %v628 = vunpack.c.h.b16 %v21
  %v629 = vunpack.c.l.b16 %v22
  %v630 = vunpack.c.h.b16 %v22
  %v631 = vunpack.c.l.b16 %v23
  %v632 = vunpack.c.h.b16 %v23
  %v633 = vunpack.c.l.b16 %v24
  %v634 = vunpack.c.h.b16 %v24
  %v635 = vunpack.c.l.b16 %v25
  %v636 = vunpack.c.h.b16 %v25
  %v637 = vunpack.c.l.b16 %v26
  %v638 = vunpack.c.h.b16 %v26
  %v639 = vunpack.c.l.b16 %v27
  %v640 = vunpack.c.h.b16 %v27
  %v641 = vunpack.c.l.b16 %v28
  %v642 = vunpack.c.h.b16 %v28
  %v643 = vunpack.c.l.b16 %v29
  %v644 = vunpack.c.h.b16 %v29
  %v645 = vunpack.c.l.b16 %v30
  %v646 = vunpack.c.h.b16 %v30
  %v647 = vunpack.c.l.b16 %v31
  %v648 = vunpack.c.h.b16 %v31
  %v649 = vunpack.c.l.b16 %v32
  %v650 = vunpack.c.h.b16 %v32
  %v651 = vunpack.c.l.b16 %v33
  %v652 = vunpack.c.h.b16 %v33
  %v653 = vunpack.c.l.b16 %v34
  %v654 = vunpack.c.h.b16 %v34
  %v655 = vunpack.c.l.b16 %v35
  %v656 = vunpack.c.h.b16 %v35
  %v657 = vunpack.c.l.b16 %v36
  %v658 = vunpack.c.h.b16 %v36
  %v659 = vunpack.c.l.b16 %v37
  %v660 = vunpack.c.h.b16 %v37
  %v661 = vunpack.c.l.b16 %v38
  %v662 = vunpack.c.h.b16 %v38
  %v663 = vunpack.c.l.b16 %v39
  %v664 = vunpack.c.h.b16 %v39
  %v665 = vunpack.c.l.b16 %v40
  %v666 = vunpack.c.h.b16 %v40
  %v667 = vunpack.c.l.b16 %v41
  %v668 = vunpack.c.h.b16 %v41
  %v669 = vunpack.c.l.b16 %v42
  %v670 = vunpack.c.h.b16 %v42
  %v671 = vunpack.c.l.b16 %v43
  %v672 = vunpack.c.h.b16 %v43
  %v673 = vunpack.c.l.b16 %v44
  %v674 = vunpack.c.h.b16 %v44
  %v675 = vunpack.c.l.b16 %v45
  %v676 = vunpack.c.h.b16 %v45
  %v677 = vunpack.c.l.b16 %v46
  %v678 = vunpack.c.h.b16 %v46
  %v679 = vunpack.c.l.b16 %v47
  %v680 = vunpack.c.h.b16 %v47
  %v681 = vunpack.c.l.b16 %v48
  %v682 = vunpack.c.h.b16 %v48
  %v683 = vunpack.c.l.b16 %v49
  %v684 = vunpack.c.h.b16 %v49
  %v685 = vunpack.c.l.b16 %v50
  %v686 = vunpack.c.h.b16 %v50
  %v687 = vunpack.c.l.b16 %v51
  %v688 = vunpack.c.h.b16 %v51
  %v689 = vunpack.c.l.b16 %v52
  %v690 = vunpack.c.h.b16 %v52
  %v691 = vunpack.c.l.b16 %v53
  %v692 = vunpack.c.h.b16 %v53
  %v693 = vunpack.c.l.b16 %v54
  %v694 = vunpack.c.h.b16 %v54
  %v695 = vunpack.c.l.b16 %v55
  %v696 = vunpack.c.h.b16 %v55
  %v697 = vunpack.c.l.b16 %v56
  %v698 = vunpack.c.h.b16 %v56
  %v699 = vunpack.c.l.b16 %v57
  %v700 = vunpack.c.h.b16 %v57
  %v701 = vunpack.c.l.b16 %v58
  %v702 = vunpack.c.h.b16 %v58
  %v703 = vunpack.c.l.b16 %v59
  %v704 = vunpack.c.h.b16 %v59
  %v705 = vunpack.c.l.b16 %v60
  %v706 = vunpack.c.h.b16 %v60
  %v707 = vunpack.c.l.b16 %v61
  %v708 = vunpack.c.h.b16 %v61
  %v709 = vunpack.c.l.b16 %v62
  %v710 = vunpack.c.h.b16 %v62
  %v711 = vunpack.c.l.b16 %v63
  %v712 = vunpack.c.h.b16 %v63
  %v713 = vunpack.c.l.b16 %v64
  %v714 = vunpack.c.h.b16 %v64
  %v715 = vunpack.c.l.b16 %v65
  %v716 = vunpack.c.h.b16 %v65
  %v717 = vunpack.c.l.b16 %v66
  %v718 = vunpack.c.h.b16 %v66
  %v719 = vunpack.c.l.b16 %v67
  %v720 = vunpack.c.h.b16 %v67
  %v721 = vunpack.c.l.b16 %v68
  %v722 = vunpack.c.h.b16 %v68
  %v723 = vunpack.c.l.b16 %v69
  %v724 = vunpack.c.h.b16 %v69
  %v725 = vunpack.c.l.b16 %v70
  %v726 = vunpack.c.h.b16 %v70
  %v727 = vunpack.c.l.b16 %v71
  %v728 = vunpack.c.h.b16 %v71
  %v729 = vunpack.c.l.b16 %v72
  %v730 = vunpack.c.h.b16 %v72
  %v731 = vunpack.c.l.b16 %v73
  %v732 = vunpack.c.h.b16 %v73
  %v733 = vunpack.c.l.b16 %v74
  %v734 = vunpack.c.h.b16 %v74
  %v735 = vunpack.c.l.b16 %v75
  %v736 = vunpack.c.h.b16 %v75
  %v737 = vunpack.c.l.b16 %v76
  %v738 = vunpack.c.h.b16 %v76
  %v739 = vunpack.c.l.b16 %v77
  %v740 = vunpack.c.h.b16 %v77
  %v741 = vunpack.c.l.b16 %v78
  %v742 = vunpack.c.h.b16 %v78
  %v743 = vunpack.c.l.b16 %v79
  %v744 = vunpack.c.h.b16 %v79
  %v745 = vunpack.c.l.b16 %v80
  %v746 = vunpack.c.h.b16 %v80
  %v747 = vunpack.c.l.b16 %v81
  %v748 = vunpack.c.h.b16 %v81
  %v749 = vunpack.c.l.b16 %v82
  %v750 = vunpack.c.h.b16 %v82
  %v751 = vunpack.c.l.b16 %v83
  %v752 = vunpack.c.h.b16 %v83
  %v753 = vunpack.c.l.b16 %v84
  %v754 = vunpack.c.h.b16 %v84
  %v755 = vunpack.c.l.b16 %v85
  %v756 = vunpack.c.h.b16 %v85
  %v757 = vunpack.c.l.b16 %v86
  %v758 = vunpack.c.h.b16 %v86
  %v759 = vunpack.c.l.b16 %v87
  %v760 = vunpack.c.h.b16 %v87
  %v761 = vunpack.c.l.b16 %v88
  %v762 = vunpack.c.h.b16 %v88
  %v763 = vunpack.c.l.b16 %v89
  %v764 = vunpack.c.h.b16 %v89
  %v765 = vunpack.c.l.b16 %v90
  %v766 = vunpack.c.h.b16 %v90
  %v767 = vunpack.c.l.b16 %v91
  %v768 = vunpack.c.h.b16 %v91
  %v769 = vunpack.c.l.b16 %v92
  %v770 = vunpack.c.h.b16 %v92
  %v771 = vunpack.c.l.b16 %v93
  %v772 = vunpack.c.h.b16 %v93
  %v773 = vunpack.c.l.b16 %v94
  %v774 = vunpack.c.h.b16 %v94
  %v775 = vunpack.c.l.b16 %v95
  %v776 = vunpack.c.h.b16 %v95
  %v777 = vunpack.c.l.b16 %v96
  %v778 = vunpack.c.h.b16 %v96
  %v779 = vunpack.c.l.b16 %v97
  %v780 = vunpack.c.h.b16 %v97
  %v781 = vunpack.c.l.b16 %v98
  %v782 = vunpack.c.h.b16 %v98
  %v783 = vunpack.c.l.b16 %v99
  %v784 = vunpack.c.h.b16 %v99
  %v785 = vunpack.c.l.b16 %v100
  %v786 = vunpack.c.h.b16 %v100
  %v787 = vunpack.c.l.b16 %v101
  %v788 = vunpack.c.h.b16 %v101
  %v789 = vunpack.c.l.b16 %v102
  %v790 = vunpack.c.h.b16 %v102
  %v791 = vunpack.c.l.b16 %v103
  %v792 = vunpack.c.h.b16 %v103
  %v793 = vunpack.c.l.b16 %v104
  %v794 = vunpack.c.h.b16 %v104
  %v795 = vunpack.c.l.b16 %v105
  %v796 = vunpack.c.h.b16 %v105
  %v797 = vunpack.c.l.b16 %v106
  %v798 = vunpack.c.h.b16 %v106
  %v799 = vunpack.c.l.b16 %v107
  %v800 = vunpack.c.h.b16 %v107
  %v801 = vunpack.c.l.b16 %v108
  %v802 = vunpack.c.h.b16 %v108
  %v803 = vunpack.c.l.b16 %v109
  %v804 = vunpack.c.h.b16 %v109
  %v805 = vunpack.c.l.b16 %v110
  %v806 = vunpack.c.h.b16 %v110
  %v807 = vunpack.c.l.b16 %v111
  %v808 = vunpack.c.h.b16 %v111
  %v809 = vunpack.c.l.b16 %v112
  %v810 = vunpack.c.h.b16 %v112
  %v811 = vunpack.c.l.b16 %v113
  %v812 = vunpack.c.h.b16 %v113
  %v813 = vunpack.c.l.b16 %v114
  %v814 = vunpack.c.h.b16 %v114
  %v815 = vunpack.c.l.b16 %v115
  %v816 = vunpack.c.h.b16 %v115
  %v817 = vunpack.c.l.b16 %v116
  %v818 = vunpack.c.h.b16 %v116
  %v819 = vunpack.c.l.b16 %v117
  %v820 = vunpack.c.h.b16 %v117
  %v821 = vunpack.c.l.b16 %v118
  %v822 = vunpack.c.h.b16 %v118
  %v823 = vunpack.c.l.b16 %v119
  %v824 = vunpack.c.h.b16 %v119
  %v825 = vunpack.c.l.b16 %v120
  %v826 = vunpack.c.h.b16 %v120
  %v827 = vunpack.c.l.b16 %v121
  %v828 = vunpack.c.h.b16 %v121
  %v829 = vunpack.c.l.b16 %v122
  %v830 = vunpack.c.h.b16 %v122
  %v831 = vunpack.c.l.b16 %v123
  %v832 = vunpack.c.h.b16 %v123
  %v833 = vunpack.c.l.b16 %v124
  %v834 = vunpack.c.h.b16 %v124
  %v835 = vunpack.c.l.b16 %v125
  %v836 = vunpack.c.h.b16 %v125
  %v837 = vunpack.c.l.b16 %v126
  %v838 = vunpack.c.h.b16 %v126
  %v839 = vunpack.c.l.b16 %v127
  %v840 = vunpack.c.h.b16 %v127
  %v841 = vunpack.c.l.b16 %v128
  %v842 = vunpack.c.h.b16 %v128
  %v843 = vunpack.c.l.b16 %v129
  %v844 = vunpack.c.h.b16 %v129
  %v845 = vunpack.c.l.b16 %v130
  %v846 = vunpack.c.h.b16 %v130
  %v847 = vunpack.c.l.b16 %v131
  %v848 = vunpack.c.h.b16 %v131
  %v849 = vunpack.c.l.b16 %v132
  %v850 = vunpack.c.h.b16 %v132
  %v851 = vunpack.c.l.b16 %v133
  %v852 = vunpack.c.h.b16 %v133
  %v853 = vunpack.c.l.b16 %v134
  %v854 = vunpack.c.h.b16 %v134
  %v855 = vunpack.c.l.b16 %v135
  %v856 = vunpack.c.h.b16 %v135
  %v857 = vunpack.c.l.b16 %v136
  %v858 = vunpack.c.h.b16 %v136
  %v859 = vunpack.c.l.b16 %v137
  %v860 = vunpack.c.h.b16 %v137
  %v861 = vunpack.c.l.b16 %v138
  %v862 = vunpack.c.h.b16 %v138
  %v863 = vunpack.c.l.b16 %v139
  %v864 = vunpack.c.h.b16 %v139
  %v865 = vunpack.c.l.b16 %v140
  %v866 = vunpack.c.h.b16 %v140
  %v867 = vunpack.c.l.b16 %v141
  %v868 = vunpack.c.h.b16 %v141
  %v869 = vunpack.c.l.b16 %v142
  %v870 = vunpack.c.h.b16 %v142
  %v871 = vunpack.c.l.b16 %v143
  %v872 = vunpack.c.h.b16 %v143
  %v873 = vunpack.c.l.b16 %v144
  %v874 = vunpack.c.h.b16 %v144
  %v875 = vunpack.c.l.b16 %v145
  %v876 = vunpack.c.h.b16 %v145
  %v877 = vunpack.c.l.b16 %v146
  %v878 = vunpack.c.h.b16 %v146
  %v879 = vunpack.c.l.b16 %v147
  %v880 = vunpack.c.h.b16 %v147
  %v881 = vunpack.c.l.b16 %v148
  %v882 = vunpack.c.h.b16 %v148
  %v883 = vunpack.c.l.b16 %v149
  %v884 = vunpack.c.h.b16 %v149
  %v885 = vunpack.c.l.b16 %v150
  %v886 = vunpack.c.h.b16 %v150
  %v887 = vunpack.c.l.b16 %v151
  %v888 = vunpack.c.h.b16 %v151
  %v889 = vunpack.c.l.b16 %v152
  %v890 = vunpack.c.h.b16 %v152
  %v891 = vunpack.c.l.b16 %v153
  %v892 = vunpack.c.h.b16 %v153
  %v893 = vunpack.c.l.b16 %v154
  %v894 = vunpack.c.h.b16 %v154
  %v895 = vunpack.c.l.b16 %v155
  %v896 = vunpack.c.h.b16 %v155
  %v897 = vunpack.c.l.b16 %v156
  %v898 = vunpack.c.h.b16 %v156
  %v899 = vunpack.c.l.b16 %v157
  %v900 = vunpack.c.h.b16 %v157
  %v901 = vunpack.c.l.b16 %v158
  %v902 = vunpack.c.h.b16 %v158
  %v903 = vunpack.c.l.b16 %v159
  %v904 = vunpack.c.h.b16 %v159
  %v905 = vunpack.c.l.b16 %v160
  %v906 = vunpack.c.h.b16 %v160
  %v907 = vunpack.c.l.b16 %v161
  %v908 = vunpack.c.h.b16 %v161
  %v909 = vunpack.c.l.b16 %v162
  %v910 = vunpack.c.h.b16 %v162
  %v911 = vunpack.c.l.b16 %v163
  %v912 = vunpack.c.h.b16 %v163
  %v913 = vunpack.c.l.b16 %v164
  %v914 = vunpack.c.h.b16 %v164
  %v915 = vunpack.c.l.b16 %v165
  %v916 = vunpack.c.h.b16 %v165
  %v917 = vunpack.c.l.b16 %v166
  %v918 = vunpack.c.h.b16 %v166
  %v919 = vunpack.c.l.b16 %v167
  %v920 = vunpack.c.h.b16 %v167
  %v921 = vunpack.c.l.b16 %v168
  %v922 = vunpack.c.h.b16 %v168
  %v923 = vunpack.c.l.b16 %v169
  %v924 = vunpack.c.h.b16 %v169
  %v925 = vunpack.c.l.b16 %v170
  %v926 = vunpack.c.h.b16 %v170
  %v927 = vunpack.c.l.b16 %v171
  %v928 = vunpack.c.h.b16 %v171
  %v929 = vunpack.c.l.b16 %v172
  %v930 = vunpack.c.h.b16 %v172
  %v931 = vunpack.c.l.b16 %v173
  %v932 = vunpack.c.h.b16 %v173
  %v933 = vunpack.c.l.b16 %v174
  %v934 = vunpack.c.h.b16 %v174
  %v935 = vunpack.c.l.b16 %v175
  %v936 = vunpack.c.h.b16 %v175
  %v937 = vunpack.c.l.b16 %v176
  %v938 = vunpack.c.h.b16 %v176
  %v939 = vunpack.c.l.b16 %v177
  %v940 = vunpack.c.h.b16 %v177
  %v941 = vunpack.c.l.b16 %v178
  %v942 = vunpack.c.h.b16 %v178
  %v943 = vunpack.c.l.b16 %v179
  %v944 = vunpack.c.h.b16 %v179
  %v945 = vunpack.c.l.b16 %v180
  %v946 = vunpack.c.h.b16 %v180
  %v947 = vunpack.c.l.b16 %v181
  %v948 = vunpack.c.h.b16 %v181
  %v949 = vunpack.c.l.b16 %v182
  %v950 = vunpack.c.h.b16 %v182
  %v951 = vunpack.c.l.b16 %v183
  %v952 = vunpack.c.h.b16 %v183
  %v953 = vunpack.c.l.b16 %v184
  %v954 = vunpack.c.h.b16 %v184
  %v955 = vunpack.c.l.b16 %v185
  %v956 = vunpack.c.h.b16 %v185
  %v957 = vunpack.c.l.b16 %v186
  %v958 = vunpack.c.h.b16 %v186
  %v959 = vunpack.c.l.b16 %v187
  %v960 = vunpack.c.h.b16 %v187
  %v961 = vunpack.c.l.b16 %v188
  %v962 = vunpack.c.h.b16 %v188
  %v963 = vunpack.c.l.b16 %v189
  %v964 = vunpack.c.h.b16 %v189
  %v965 = vunpack.c.l.b16 %v190
  %v966 = vunpack.c.h.b16 %v190
  %v967 = vunpack.c.l.b16 %v191
  %v968 = vunpack.c.h.b16 %v191
  %v969 = vunpack.c.l.b16 %v192
  %v970 = vunpack.c.h.b16 %v192
  %v971 = vunpack.c.l.b16 %v193
  %v972 = vunpack.c.h.b16 %v193
  %v973 = vunpack.c.l.b16 %v194
  %v974 = vunpack.c.h.b16 %v194
  %v975 = vunpack.c.l.b16 %v195
  %v976 = vunpack.c.h.b16 %v195
  %v977 = vunpack.c.l.b16 %v196
  %v978 = vunpack.c.h.b16 %v196
  %v979 = vunpack.c.l.b16 %v197
  %v980 = vunpack.c.h.b16 %v197
  %v981 = vunpack.c.l.b16 %v198
  %v982 = vunpack.c.h.b16 %v198
  %v983 = vunpack.c.l.b16 %v199
  %v984 = vunpack.c.h.b16 %v199
  %v985 = vunpack.c.l.b16 %v200
  %v986 = vunpack.c.h.b16 %v200
  %v987 = vunpack.c.l.b16 %v201
  %v988 = vunpack.c.h.b16 %v201
  %v989 = vunpack.c.l.b16 %v202
  %v990 = vunpack.c.h.b16 %v202
  %v991 = vunpack.c.l.b16 %v203
  %v992 = vunpack.c.h.b16 %v203
  %v993 = vunpack.c.l.b16 %v204
  %v994 = vunpack.c.h.b16 %v204
  %v995 = vunpack.c.l.b16 %v205
  %v996 = vunpack.c.h.b16 %v205
  %v997 = vunpack.c.l.b16 %v206
  %v998 = vunpack.c.h.b16 %v206
  %v999 = vunpack.c.l.b16 %v207
  %v1000 = vunpack.c.h.b16 %v207
  %v1001 = vunpack.c.l.b16 %v208
  %v1002 = vunpack.c.h.b16 %v208
  %v1003 = vunpack.c.l.b16 %v209
  %v1004 = vunpack.c.h.b16 %v209
  %v1005 = vunpack.c.l.b16 %v210
  %v1006 = vunpack.c.h.b16 %v210
  %v1007 = vunpack.c.l.b16 %v211
  %v1008 = vunpack.c.h.b16 %v211
  %v1009 = vunpack.c.l.b16 %v212
  %v1010 = vunpack.c.h.b16 %v212
  %v1011 = vunpack.c.l.b16 %v213
  %v1012 = vunpack.c.h.b16 %v213
  %v1013 = vunpack.c.l.b16 %v214
  %v1014 = vunpack.c.h.b16 %v214
  %v1015 = vunpack.c.l.b16 %v215
  %v1016 = vunpack.c.h.b16 %v215
  %v1017 = vunpack.c.l.b16 %v216
  %v1018 = vunpack.c.h.b16 %v216
  %v1019 = vunpack.c.l.b16 %v217
  %v1020 = vunpack.c.h.b16 %v217
  %v1021 = vunpack.c.l.b16 %v218
  %v1022 = vunpack.c.h.b16 %v218
  %v1023 = vunpack.c.l.b16 %v219
  %v1024 = vunpack.c.h.b16 %v219
  %v1025 = vunpack.c.l.b16 %v220
  %v1026 = vunpack.c.h.b16 %v220
  %v1027 = vunpack.c.l.b16 %v221
  %v1028 = vunpack.c.h.b16 %v221
  %v1029 = vunpack.c.l.b16 %v222
  %v1030 = vunpack.c.h.b16 %v222
  %v1031 = vunpack.c.l.b16 %v223
  %v1032 = vunpack.c.h.b16 %v223
  %v1033 = vunpack.c.l.b16 %v224
  %v1034 = vunpack.c.h.b16 %v224
  %v1035 = vunpack.c.l.b16 %v225
  %v1036 = vunpack.c.h.b16 %v225
  %v1037 = vunpack.c.l.b16 %v226
  %v1038 = vunpack.c.h.b16 %v226
  %v1039 = vunpack.c.l.b16 %v227
  %v1040 = vunpack.c.h.b16 %v227
  %v1041 = vunpack.c.l.b16 %v228
  %v1042 = vunpack.c.h.b16 %v228
  %v1043 = vunpack.c.l.b16 %v229
  %v1044 = vunpack.c.h.b16 %v229
  %v1045 = vunpack.c.l.b16 %v230
  %v1046 = vunpack.c.h.b16 %v230
  %v1047 = vunpack.c.l.b16 %v231
  %v1048 = vunpack.c.h.b16 %v231
  %v1049 = vunpack.c.l.b16 %v232
  %v1050 = vunpack.c.h.b16 %v232
  %v1051 = vunpack.c.l.b16 %v233
  %v1052 = vunpack.c.h.b16 %v233
  %v1053 = vunpack.c.l.b16 %v234
  %v1054 = vunpack.c.h.b16 %v234
  %v1055 = vunpack.c.l.b16 %v235
  %v1056 = vunpack.c.h.b16 %v235
  %v1057 = vunpack.c.l.b16 %v236
  %v1058 = vunpack.c.h.b16 %v236
  %v1059 = vunpack.c.l.b16 %v237
  %v1060 = vunpack.c.h.b16 %v237
  %v1061 = vunpack.c.l.b16 %v238
  %v1062 = vunpack.c.h.b16 %v238
  %v1063 = vunpack.c.l.b16 %v239
  %v1064 = vunpack.c.h.b16 %v239
  %v1065 = vunpack.c.l.b16 %v240
  %v1066 = vunpack.c.h.b16 %v240
  %v1067 = vunpack.c.l.b16 %v241
  %v1068 = vunpack.c.h.b16 %v241
  %v1069 = vunpack.c.l.b16 %v242
  %v1070 = vunpack.c.h.b16 %v242
  %v1071 = vunpack.c.l.b16 %v243
  %v1072 = vunpack.c.h.b16 %v243
  %v1073 = vunpack.c.l.b16 %v244
  %v1074 = vunpack.c.h.b16 %v244
  %v1075 = vunpack.c.l.b16 %v245
  %v1076 = vunpack.c.h.b16 %v245
  %v1077 = vunpack.c.l.b16 %v246
  %v1078 = vunpack.c.h.b16 %v246
  %v1079 = vunpack.c.l.b16 %v247
  %v1080 = vunpack.c.h.b16 %v247
  %v1081 = vunpack.c.l.b16 %v248
  %v1082 = vunpack.c.h.b16 %v248
  %v1083 = vunpack.c.l.b16 %v249
  %v1084 = vunpack.c.h.b16 %v249
  %v1085 = vunpack.c.l.b16 %v250
  %v1086 = vunpack.c.h.b16 %v250
  %v1087 = vunpack.c.l.b16 %v251
  %v1088 = vunpack.c.h.b16 %v251
  %v1089 = vunpack.c.l.b16 %v252
  %v1090 = vunpack.c.h.b16 %v252
  %v1091 = vunpack.c.l.b16 %v253
  %v1092 = vunpack.c.h.b16 %v253
  %v1093 = vunpack.c.l.b16 %v254
  %v1094 = vunpack.c.h.b16 %v254
  %v1095 = vunpack.c.l.b16 %v255
  %v1096 = vunpack.c.h.b16 %v255
  %v1097 = vunpack.c.l.b16 %v256
  %v1098 = vunpack.c.h.b16 %v256
  %v1099 = vunpack.c.l.b16 %v257
  %v1100 = vunpack.c.h.b16 %v257
  %v1101 = vunpack.c.l.b16 %v258
  %v1102 = vunpack.c.h.b16 %v258
  %v1103 = vunpack.c.l.b16 %v259
  %v1104 = vunpack.c.h.b16 %v259
  %v1105 = vunpack.c.l.b16 %v260
  %v1106 = vunpack.c.h.b16 %v260
  %v1107 = vunpack.c.l.b16 %v261
  %v1108 = vunpack.c.h.b16 %v261
  %v1109 = vunpack.c.l.b16 %v262
  %v1110 = vunpack.c.h.b16 %v262
  %v1111 = vunpack.c.l.b16 %v263
  %v1112 = vunpack.c.h.b16 %v263
  %v1113 = vunpack.c.l.b16 %v264
  %v1114 = vunpack.c.h.b16 %v264
  %v1115 = vunpack.c.l.b16 %v265
  %v1116 = vunpack.c.h.b16 %v265
  %v1117 = vunpack.c.l.b16 %v266
  %v1118 = vunpack.c.h.b16 %v266
  %v1119 = vunpack.c.l.b16 %v267
  %v1120 = vunpack.c.h.b16 %v267
  %v1121 = vunpack.c.l.b16 %v268
  %v1122 = vunpack.c.h.b16 %v268
  %v1123 = vunpack.c.l.b16 %v269
  %v1124 = vunpack.c.h.b16 %v269
  %v1125 = vunpack.c.l.b16 %v270
  %v1126 = vunpack.c.h.b16 %v270
  %v1127 = vunpack.c.l.b16 %v271
  %v1128 = vunpack.c.h.b16 %v271
  %v1129 = vunpack.c.l.b16 %v272
  %v1130 = vunpack.c.h.b16 %v272
  %v1131 = vunpack.c.l.b16 %v273
  %v1132 = vunpack.c.h.b16 %v273
  %v1133 = vunpack.c.l.b16 %v274
  %v1134 = vunpack.c.h.b16 %v274
  %v1135 = vunpack.c.l.b16 %v275
  %v1136 = vunpack.c.h.b16 %v275
  %v1137 = vunpack.c.l.b16 %v276
  %v1138 = vunpack.c.h.b16 %v276
  %v1139 = vunpack.c.l.b16 %v277
  %v1140 = vunpack.c.h.b16 %v277
  %v1141 = vunpack.c.l.b16 %v278
  %v1142 = vunpack.c.h.b16 %v278
  %v1143 = vunpack.c.l.b16 %v279
  %v1144 = vunpack.c.h.b16 %v279
  %v1145 = vunpack.c.l.b16 %v280
  %v1146 = vunpack.c.h.b16 %v280
  %v1147 = vunpack.c.l.b16 %v281
  %v1148 = vunpack.c.h.b16 %v281
  %v1149 = vunpack.c.l.b16 %v282
  %v1150 = vunpack.c.h.b16 %v282
  %v1151 = vunpack.c.l.b16 %v283
  %v1152 = vunpack.c.h.b16 %v283
  %v1153 = vunpack.c.l.b16 %v284
  %v1154 = vunpack.c.h.b16 %v284
  %v1155 = vunpack.c.l.b16 %v285
  %v1156 = vunpack.c.h.b16 %v285
  %v1157 = vunpack.c.l.b16 %v286
  %v1158 = vunpack.c.h.b16 %v286
  %v1159 = vunpack.c.l.b16 %v287
  %v1160 = vunpack.c.h.b16 %v287
  %v1161 = vunpack.c.l.b16 %v288
  %v1162 = vunpack.c.h.b16 %v288
  %v1163 = vunpack.c.l.b16 %v289
  %v1164 = vunpack.c.h.b16 %v289
  %v1165 = vunpack.c.l.b16 %v290
  %v1166 = vunpack.c.h.b16 %v290
  %v1167 = vunpack.c.l.b16 %v291
  %v1168 = vunpack.c.h.b16 %v291
  %v1169 = vunpack.c.l.b16 %v292
  %v1170 = vunpack.c.h.b16 %v292
  %v1171 = vunpack.c.l.b16 %v293
  %v1172 = vunpack.c.h.b16 %v293
  %v1173 = vunpack.c.l.b16 %v294
  %v1174 = vunpack.c.h.b16 %v294
  %v1175 = vunpack.c.l.b16 %v295
  %v1176 = vunpack.c.h.b16 %v295
  %v1177 = vunpack.c.l.b16 %v296
  %v1178 = vunpack.c.h.b16 %v296
  %v1179 = vunpack.c.l.b16 %v297
  %v1180 = vunpack.c.h.b16 %v297
  %v1181 = vunpack.c.l.b16 %v298
  %v1182 = vunpack.c.h.b16 %v298
  %v1183 = vunpack.c.l.b16 %v299
  %v1184 = vunpack.c.h.b16 %v299
  %v1185 = vunpack.c.l.b16 %v300
  %v1186 = vunpack.c.h.b16 %v300
  %v1187 = vunpack.c.l.b16 %v301
  %v1188 = vunpack.c.h.b16 %v301
  %v1189 = vunpack.c.l.b16 %v302
  %v1190 = vunpack.c.h.b16 %v302
  %v1191 = vunpack.c.l.b16 %v303
  %v1192 = vunpack.c.h.b16 %v303
  %v1193 = vpack.c.b16 %v633, %v617
  %v1194 = vpack.c.b16 %v634, %v618
  %v1195 = vpack.c.b16 %v635, %v619
  %v1196 = vpack.c.b16 %v636, %v620
  %v1197 = vpack.c.b16 %v637, %v621
  %v1198 = vpack.c.b16 %v638, %v622
  %v1199 = vpack.c.b16 %v639, %v623
  %v1200 = vpack.c.b16 %v640, %v624
  %v1201 = vpack.c.b16 %v641, %v625
  %v1202 = vpack.c.b16 %v642, %v626
  %v1203 = vpack.c.b16 %v643, %v627
  %v1204 = vpack.c.b16 %v644, %v628
  %v1205 = vpack.c.b16 %v645, %v629
  %v1206 = vpack.c.b16 %v646, %v630
  %v1207 = vpack.c.b16 %v647, %v631
  %v1208 = vpack.c.b16 %v648, %v632
  %v1209 = vpack.c.b16 %v665, %v649
  %v1210 = vpack.c.b16 %v666, %v650
  %v1211 = vpack.c.b16 %v667, %v651
  %v1212 = vpack.c.b16 %v668, %v652
  %v1213 = vpack.c.b16 %v669, %v653
  %v1214 = vpack.c.b16 %v670, %v654
  %v1215 = vpack.c.b16 %v671, %v655
  %v1216 = vpack.c.b16 %v672, %v656
  %v1217 = vpack.c.b16 %v673, %v657
  %v1218 = vpack.c.b16 %v674, %v658
  %v1219 = vpack.c.b16 %v675, %v659
  %v1220 = vpack.c.b16 %v676, %v660
  %v1221 = vpack.c.b16 %v677, %v661
  %v1222 = vpack.c.b16 %v678, %v662
  %v1223 = vpack.c.b16 %v679, %v663
  %v1224 = vpack.c.b16 %v680, %v664
  %v1225 = vpack.c.b16 %v697, %v681
  %v1226 = vpack.c.b16 %v698, %v682
  %v1227 = vpack.c.b16 %v699, %v683
  %v1228 = vpack.c.b16 %v700, %v684
  %v1229 = vpack.c.b16 %v701, %v685
  %v1230 = vpack.c.b16 %v702, %v686
  %v1231 = vpack.c.b16 %v703, %v687
  %v1232 = vpack.c.b16 %v704, %v688
  %v1233 = vpack.c.b16 %v705, %v689
  %v1234 = vpack.c.b16 %v706, %v690
  %v1235 = vpack.c.b16 %v707, %v691
  %v1236 = vpack.c.b16 %v708, %v692
  %v1237 = vpack.c.b16 %v709, %v693
  %v1238 = vpack.c.b16 %v710, %v694
  %v1239 = vpack.c.b16 %v711, %v695
  %v1240 = vpack.c.b16 %v712, %v696
  %v1241 = vpack.c.b16 %v729, %v713
  %v1242 = vpack.c.b16 %v730, %v714
  %v1243 = vpack.c.b16 %v731, %v715
  %v1244 = vpack.c.b16 %v732, %v716
  %v1245 = vpack.c.b16 %v733, %v717
  %v1246 = vpack.c.b16 %v734, %v718
  %v1247 = vpack.c.b16 %v735, %v719
  %v1248 = vpack.c.b16 %v736, %v720
  %v1249 = vpack.c.b16 %v737, %v721
  %v1250 = vpack.c.b16 %v738, %v722
  %v1251 = vpack.c.b16 %v739, %v723
  %v1252 = vpack.c.b16 %v740, %v724
  %v1253 = vpack.c.b16 %v741, %v725
  %v1254 = vpack.c.b16 %v742, %v726
  %v1255 = vpack.c.b16 %v743, %v727
  %v1256 = vpack.c.b16 %v744, %v728
  %v1257 = vpack.c.b16 %v761, %v745
  %v1258 = vpack.c.b16 %v762, %v746
  %v1259 = vpack.c.b16 %v763, %v747
  %v1260 = vpack.c.b16 %v764, %v748
  %v1261 = vpack.c.b16 %v765, %v749
  %v1262 = vpack.c.b16 %v766, %v750
  %v1263 = vpack.c.b16 %v767, %v751
  %v1264 = vpack.c.b16 %v768, %v752
  %v1265 = vpack.c.b16 %v769, %v753
  %v1266 = vpack.c.b16 %v770, %v754
  %v1267 = vpack.c.b16 %v771, %v755
  %v1268 = vpack.c.b16 %v772, %v756
  %v1269 = vpack.c.b16 %v773, %v757
  %v1270 = vpack.c.b16 %v774, %v758
  %v1271 = vpack.c.b16 %v775, %v759
  %v1272 = vpack.c.b16 %v776, %v760
  %v1273 = vpack.c.b16 %v793, %v777
  %v1274 = vpack.c.b16 %v794, %v778
  %v1275 = vpack.c.b16 %v795, %v779
  %v1276 = vpack.c.b16 %v796, %v780
  %v1277 = vpack.c.b16 %v797, %v781
  %v1278 = vpack.c.b16 %v798, %v782
  %v1279 = vpack.c.b16 %v799, %v783
  %v1280 = vpack.c.b16 %v800, %v784
  %v1281 = vpack.c.b16 %v801, %v785
  %v1282 = vpack.c.b16 %v802, %v786
  %v1283 = vpack.c.b16 %v803, %v787
  %v1284 = vpack.c.b16 %v804, %v788
  %v1285 = vpack.c.b16 %v805, %v789
  %v1286 = vpack.c.b16 %v806, %v790
  %v1287 = vpack.c.b16 %v807, %v791
  %v1288 = vpack.c.b16 %v808, %v792
  %v1289 = vpack.c.b16 %v825, %v809
  %v1290 = vpack.c.b16 %v826, %v810
  %v1291 = vpack.c.b16 %v827, %v811
  %v1292 = vpack.c.b16 %v828, %v812
  %v1293 = vpack.c.b16 %v829, %v813
  %v1294 = vpack.c.b16 %v830, %v814
  %v1295 = vpack.c.b16 %v831, %v815
  %v1296 = vpack.c.b16 %v832, %v816
  %v1297 = vpack.c.b16 %v833, %v817
  %v1298 = vpack.c.b16 %v834, %v818
  %v1299 = vpack.c.b16 %v835, %v819
  %v1300 = vpack.c.b16 %v836, %v820
  %v1301 = vpack.c.b16 %v837, %v821
  %v1302 = vpack.c.b16 %v838, %v822
  %v1303 = vpack.c.b16 %v839, %v823
  %v1304 = vpack.c.b16 %v840, %v824
  %v1305 = vpack.c.b16 %v857, %v841
  %v1306 = vpack.c.b16 %v858, %v842
  %v1307 = vpack.c.b16 %v859, %v843
  %v1308 = vpack.c.b16 %v860, %v844
  %v1309 = vpack.c.b16 %v861, %v845
  %v1310 = vpack.c.b16 %v862, %v846
  %v1311 = vpack.c.b16 %v863, %v847
  %v1312 = vpack.c.b16 %v864, %v848
  %v1313 = vpack.c.b16 %v865, %v849
  %v1314 = vpack.c.b16 %v866, %v850
  %v1315 = vpack.c.b16 %v867, %v851
  %v1316 = vpack.c.b16 %v868, %v852
  %v1317 = vpack.c.b16 %v869, %v853
  %v1318 = vpack.c.b16 %v870, %v854
  %v1319 = vpack.c.b16 %v871, %v855
  %v1320 = vpack.c.b16 %v872, %v856
  %v1321 = vpack.c.b16 %v889, %v873
  %v1322 = vpack.c.b16 %v890, %v874
  %v1323 = vpack.c.b16 %v891, %v875
  %v1324 = vpack.c.b16 %v892, %v876
  %v1325 = vpack.c.b16 %v893, %v877
  %v1326 = vpack.c.b16 %v894, %v878
  %v1327 = vpack.c.b16 %v895, %v879
  %v1328 = vpack.c.b16 %v896, %v880
  %v1329 = vpack.c.b16 %v897, %v881
  %v1330 = vpack.c.b16 %v898, %v882
  %v1331 = vpack.c.b16 %v899, %v883
  %v1332 = vpack.c.b16 %v900, %v884
  %v1333 = vpack.c.b16 %v901, %v885
  %v1334 = vpack.c.b16 %v902, %v886
  %v1335 = vpack.c.b16 %v903, %v887
  %v1336 = vpack.c.b16 %v904, %v888
  %v1337 = vpack.c.b16 %v921, %v905
  %v1338 = vpack.c.b16 %v922, %v906
  %v1339 = vpack.c.b16 %v923, %v907
  %v1340 = vpack.c.b16 %v924, %v908
  %v1341 = vpack.c.b16 %v925, %v909
  %v1342 = vpack.c.b16 %v926, %v910
  %v1343 = vpack.c.b16 %v927, %v911
  %v1344 = vpack.c.b16 %v928, %v912
  %v1345 = vpack.c.b16 %v929, %v913
  %v1346 = vpack.c.b16 %v930, %v914
  %v1347 = vpack.c.b16 %v931, %v915
  %v1348 = vpack.c.b16 %v932, %v916
  %v1349 = vpack.c.b16 %v933, %v917
  %v1350 = vpack.c.b16 %v934, %v918
  %v1351 = vpack.c.b16 %v935, %v919
  %v1352 = vpack.c.b16 %v936, %v920
  %v1353 = vpack.c.b16 %v953, %v937
  %v1354 = vpack.c.b16 %v954, %v938
  %v1355 = vpack.c.b16 %v955, %v939
  %v1356 = vpack.c.b16 %v956, %v940
  %v1357 = vpack.c.b16 %v957, %v941
  %v1358 = vpack.c.b16 %v958, %v942
  %v1359 = vpack.c.b16 %v959, %v943
  %v1360 = vpack.c.b16 %v960, %v944
  %v1361 = vpack.c.b16 %v961, %v945
  %v1362 = vpack.c.b16 %v962, %v946
  %v1363 = vpack.c.b16 %v963, %v947
  %v1364 = vpack.c.b16 %v964, %v948
  %v1365 = vpack.c.b16 %v965, %v949
  %v1366 = vpack.c.b16 %v966, %v950
  %v1367 = vpack.c.b16 %v967, %v951
  %v1368 = vpack.c.b16 %v968, %v952
  %v1369 = vpack.c.b16 %v985, %v969
  %v1370 = vpack.c.b16 %v986, %v970
  %v1371 = vpack.c.b16 %v987, %v971
  %v1372 = vpack.c.b16 %v988, %v972
  %v1373 = vpack.c.b16 %v989, %v973
  %v1374 = vpack.c.b16 %v990, %v974
  %v1375 = vpack.c.b16 %v991, %v975
  %v1376 = vpack.c.b16 %v992, %v976
  %v1377 = vpack.c.b16 %v993, %v977
  %v1378 = vpack.c.b16 %v994, %v978
  %v1379 = vpack.c.b16 %v995, %v979
  %v1380 = vpack.c.b16 %v996, %v980
  %v1381 = vpack.c.b16 %v997, %v981
  %v1382 = vpack.c.b16 %v998, %v982
  %v1383 = vpack.c.b16 %v999, %v983
  %v1384 = vpack.c.b16 %v1000, %v984
  %v1385 = vpack.c.b16 %v1017, %v1001
  %v1386 = vpack.c.b16 %v1018, %v1002
  %v1387 = vpack.c.b16 %v1019, %v1003
  %v1388 = vpack.c.b16 %v1020, %v1004
  %v1389 = vpack.c.b16 %v1021, %v1005
  %v1390 = vpack.c.b16 %v1022, %v1006
  %v1391 = vpack.c.b16 %v1023, %v1007
  %v1392 = vpack.c.b16 %v1024, %v1008
  %v1393 = vpack.c.b16 %v1025, %v1009
  %v1394 = vpack.c.b16 %v1026, %v1010
  %v1395 = vpack.c.b16 %v1027, %v1011
  %v1396 = vpack.c.b16 %v1028, %v1012
  %v1397 = vpack.c.b16 %v1029, %v1013
  %v1398 = vpack.c.b16 %v1030, %v1014
  %v1399 = vpack.c.b16 %v1031, %v1015
  %v1400 = vpack.c.b16 %v1032, %v1016
  %v1401 = vpack.c.b16 %v1049, %v1033
  %v1402 = vpack.c.b16 %v1050, %v1034
  %v1403 = vpack.c.b16 %v1051, %v1035
  %v1404 = vpack.c.b16 %v1052, %v1036
  %v1405 = vpack.c.b16 %v1053, %v1037
  %v1406 = vpack.c.b16 %v1054, %v1038
  %v1407 = vpack.c.b16 %v1055, %v1039
  %v1408 = vpack.c.b16 %v1056, %v1040
  %v1409 = vpack.c.b16 %v1057, %v1041
  %v1410 = vpack.c.b16 %v1058, %v1042
  %v1411 = vpack.c.b16 %v1059, %v1043
  %v1412 = vpack.c.b16 %v1060, %v1044
  %v1413 = vpack.c.b16 %v1061, %v1045
  %v1414 = vpack.c.b16 %v1062, %v1046
  %v1415 = vpack.c.b16 %v1063, %v1047
  %v1416 = vpack.c.b16 %v1064, %v1048
  %v1417 = vpack.c.b16 %v1081, %v1065
  %v1418 = vpack.c.b16 %v1082, %v1066
  %v1419 = vpack.c.b16 %v1083, %v1067
  %v1420 = vpack.c.b16 %v1084, %v1068
  %v1421 = vpack.c.b16 %v1085, %v1069
  %v1422 = vpack.c.b16 %v1086, %v1070
  %v1423 = vpack.c.b16 %v1087, %v1071
  %v1424 = vpack.c.b16 %v1088, %v1072
  %v1425 = vpack.c.b16 %v1089, %v1073
  %v1426 = vpack.c.b16 %v1090, %v1074
  %v1427 = vpack.c.b16 %v1091, %v1075
  %v1428 = vpack.c.b16 %v1092, %v1076
  %v1429 = vpack.c.b16 %v1093, %v1077
  %v1430 = vpack.c.b16 %v1094, %v1078
  %v1431 = vpack.c.b16 %v1095, %v1079
  %v1432 = vpack.c.b16 %v1096, %v1080
  %v1433 = vpack.c.b16 %v1113, %v1097
  %v1434 = vpack.c.b16 %v1114, %v1098
  %v1435 = vpack.c.b16 %v1115, %v1099
  %v1436 = vpack.c.b16 %v1116, %v1100
  %v1437 = vpack.c.b16 %v1117, %v1101
  %v1438 = vpack.c.b16 %v1118, %v1102
  %v1439 = vpack.c.b16 %v1119, %v1103
  %v1440 = vpack.c.b16 %v1120, %v1104
  %v1441 = vpack.c.b16 %v1121, %v1105
  %v1442 = vpack.c.b16 %v1122, %v1106
  %v1443 = vpack.c.b16 %v1123, %v1107
  %v1444 = vpack.c.b16 %v1124, %v1108
  %v1445 = vpack.c.b16 %v1125, %v1109
  %v1446 = vpack.c.b16 %v1126, %v1110
  %v1447 = vpack.c.b16 %v1127, %v1111
  %v1448 = vpack.c.b16 %v1128, %v1112
  %v1449 = vpack.c.b16 %v1145, %v1129
  %v1450 = vpack.c.b16 %v1146, %v1130
  %v1451 = vpack.c.b16 %v1147, %v1131
  %v1452 = vpack.c.b16 %v1148, %v1132
  %v1453 = vpack.c.b16 %v1149, %v1133
  %v1454 = vpack.c.b16 %v1150, %v1134
  %v1455 = vpack.c.b16 %v1151, %v1135
  %v1456 = vpack.c.b16 %v1152, %v1136
  %v1457 = vpack.c.b16 %v1153, %v1137
  %v1458 = vpack.c.b16 %v1154, %v1138
  %v1459 = vpack.c.b16 %v1155, %v1139
  %v1460 = vpack.c.b16 %v1156, %v1140
  %v1461 = vpack.c.b16 %v1157, %v1141
  %v1462 = vpack.c.b16 %v1158, %v1142
  %v1463 = vpack.c.b16 %v1159, %v1143
  %v1464 = vpack.c.b16 %v1160, %v1144
  %v1465 = vpack.c.b16 %v1177, %v1161
  %v1466 = vpack.c.b16 %v1178, %v1162
  %v1467 = vpack.c.b16 %v1179, %v1163
  %v1468 = vpack.c.b16 %v1180, %v1164
  %v1469 = vpack.c.b16 %v1181, %v1165
  %v1470 = vpack.c.b16 %v1182, %v1166
  %v1471 = vpack.c.b16 %v1183, %v1167
  %v1472 = vpack.c.b16 %v1184, %v1168
  %v1473 = vpack.c.b16 %v1185, %v1169
  %v1474 = vpack.c.b16 %v1186, %v1170
  %v1475 = vpack.c.b16 %v1187, %v1171
  %v1476 = vpack.c.b16 %v1188, %v1172
  %v1477 = vpack.c.b16 %v1189, %v1173
  %v1478 = vpack.c.b16 %v1190, %v1174
  %v1479 = vpack.c.b16 %v1191, %v1175
  %v1480 = vpack.c.b16 %v1192, %v1176
  %vm1769 = vcmask 261120
  %v1771 = vsel %vm1769, %v325, 0
  %1773 = vmatprep.subr.bf16.mxu0 %v1194
  %1774 = vmatpush1.bf16.msra.mxu0 %v1193
  %1775 = vmatprep.subr.bf16.mxu0 %v1210
  %1776 = vmatpush1.bf16.msra.mxu0 %v1209
  %1777 = vmatprep.subr.bf16.mxu0 %v1226
  %1778 = vmatpush1.bf16.msra.mxu0 %v1225
  %1779 = vmatprep.subr.bf16.mxu0 %v1242
  %1780 = vmatpush1.bf16.msra.mxu0 %v1241
  %1781 = vmatprep.subr.bf16.mxu0 %v1258
  %1782 = vmatpush1.bf16.msra.mxu0 %v1257
  %1783 = vmatprep.subr.bf16.mxu0 %v1274
  %1784 = vmatpush1.bf16.msra.mxu0 %v1273
  %1785 = vmatprep.subr.bf16.mxu0 %v1290
  %1786 = vmatpush1.bf16.msra.mxu0 %v1289
  %1787 = vmatprep.subr.bf16.mxu0 %v1306
  %1788 = vmatpush1.bf16.msra.mxu0 %v1305
  %1789 = vmatprep.subr.bf16.mxu0 %v1322
  %1790 = vmatpush1.bf16.msra.mxu0 %v1321
  %1791 = vmatprep.subr.bf16.mxu0 %v1338
  %1792 = vmatpush1.bf16.msra.mxu0 %v1337
  %1793 = vmatprep.subr.bf16.mxu0 %v1354
  %1794 = vmatpush1.bf16.msra.mxu0 %v1353
  %1795 = vmatprep.subr.bf16.mxu0 %v1370
  %1796 = vmatpush1.bf16.msra.mxu0 %v1369
  %1797 = vmatprep.subr.bf16.mxu0 %v1386
  %1798 = vmatpush1.bf16.msra.mxu0 %v1385
  %1799 = vmatprep.subr.bf16.mxu0 %v1402
  %1800 = vmatpush1.bf16.msra.mxu0 %v1401
  %1801 = vmatprep.subr.bf16.mxu0 %v1418
  %1802 = vmatpush1.bf16.msra.mxu0 %v1417
  %1803 = vmatprep.subr.bf16.mxu0 %v1434
  %1804 = vmatpush1.bf16.msra.mxu0 %v1433
  %1805 = vmatprep.mubr.bf16.mxu0 %v326
  %1806 = vmatmul.mubr.bf16.gmra.mrb[0].mxu0 %v318
  %v1807 = vpop.f32.mrb[0].mxu0
  %v1808 = vadd.f32 %v308, %v1807
  %v1809 = vpop.f32.mrb[0].mxu0
  %v1810 = vadd.f32 %v308, %v1809
  %v1811 = vpop.f32.mrb[0].mxu0
  %v1812 = vpop.f32.mrb[0].mxu0
  %1813 = vdwg.mxu0
  %1814 = vmatprep.subr.bf16.mxu0 %v1450
  %1815 = vmatpush1.bf16.msra.mxu0 %v1449
  %1816 = vmatprep.subr.bf16.mxu0 %v1466
  %1817 = vmatpush1.bf16.msra.mxu0 %v1465
  %1818 = vmatprep.subr.bf16.mxu0 0
  %1819 = vmatpush1.bf16.msra.mxu0 0
  %1820 = vmatprep.subr.bf16.mxu0 0
  %1821 = vmatpush1.bf16.msra.mxu0 0
  %1822 = vmatprep.subr.bf16.mxu0 0
  %1823 = vmatpush1.bf16.msra.mxu0 0
  %1824 = vmatprep.subr.bf16.mxu0 0
  %1825 = vmatpush1.bf16.msra.mxu0 0
  %1826 = vmatprep.subr.bf16.mxu0 0
  %1827 = vmatpush1.bf16.msra.mxu0 0
  %1828 = vmatprep.subr.bf16.mxu0 0
  %1829 = vmatpush1.bf16.msra.mxu0 0
  %1830 = vmatprep.subr.bf16.mxu0 0
  %1831 = vmatpush1.bf16.msra.mxu0 0
  %1832 = vmatprep.subr.bf16.mxu0 0
  %1833 = vmatpush1.bf16.msra.mxu0 0
  %1834 = vmatprep.subr.bf16.mxu0 0
  %1835 = vmatpush1.bf16.msra.mxu0 0
  %1836 = vmatprep.subr.bf16.mxu0 0
  %1837 = vmatpush1.bf16.msra.mxu0 0
  %1838 = vmatprep.subr.bf16.mxu0 0
  %1839 = vmatpush1.bf16.msra.mxu0 0
  %1840 = vmatprep.subr.bf16.mxu0 0
  %1841 = vmatpush1.bf16.msra.mxu0 0
  %1842 = vmatprep.subr.bf16.mxu0 0
  %1843 = vmatpush1.bf16.msra.mxu0 0
  %1844 = vmatprep.subr.bf16.mxu0 0
  %1845 = vmatpush1.bf16.msra.mxu0 0
  %1846 = vmatprep.mubr.bf16.mxu0 0
  %1847 = vmatmul.mubr.bf16.gmra.mrb[0].mxu0 %v1771
  %v1848 = vpop.f32.mrb[0].mxu0
  %v1849 = vadd.f32 %v1808, %v1848
  %v1850 = vpop.f32.mrb[0].mxu0
  %v1851 = vadd.f32 %v1810, %v1850
  %v1852 = vpop.f32.mrb[0].mxu0
  %v1853 = vpop.f32.mrb[0].mxu0
  %1854 = vdwg.mxu0
  %1855 = vmatprep.subr.bf16.mxu0 %v1196
  %1856 = vmatpush1.bf16.msra.mxu0 %v1195
  %1857 = vmatprep.subr.bf16.mxu0 %v1212
  %1858 = vmatpush1.bf16.msra.mxu0 %v1211
  %1859 = vmatprep.subr.bf16.mxu0 %v1228
  %1860 = vmatpush1.bf16.msra.mxu0 %v1227
  %1861 = vmatprep.subr.bf16.mxu0 %v1244
  %1862 = vmatpush1.bf16.msra.mxu0 %v1243
  %1863 = vmatprep.subr.bf16.mxu0 %v1260
  %1864 = vmatpush1.bf16.msra.mxu0 %v1259
  %1865 = vmatprep.subr.bf16.mxu0 %v1276
  %1866 = vmatpush1.bf16.msra.mxu0 %v1275
  %1867 = vmatprep.subr.bf16.mxu0 %v1292
  %1868 = vmatpush1.bf16.msra.mxu0 %v1291
  %1869 = vmatprep.subr.bf16.mxu0 %v1308
  %1870 = vmatpush1.bf16.msra.mxu0 %v1307
  %1871 = vmatprep.subr.bf16.mxu0 %v1324
  %1872 = vmatpush1.bf16.msra.mxu0 %v1323
  %1873 = vmatprep.subr.bf16.mxu0 %v1340
  %1874 = vmatpush1.bf16.msra.mxu0 %v1339
  %1875 = vmatprep.subr.bf16.mxu0 %v1356
  %1876 = vmatpush1.bf16.msra.mxu0 %v1355
  %1877 = vmatprep.subr.bf16.mxu0 %v1372
  %1878 = vmatpush1.bf16.msra.mxu0 %v1371
  %1879 = vmatprep.subr.bf16.mxu0 %v1388
  %1880 = vmatpush1.bf16.msra.mxu0 %v1387
  %1881 = vmatprep.subr.bf16.mxu0 %v1404
  %1882 = vmatpush1.bf16.msra.mxu0 %v1403
  %1883 = vmatprep.subr.bf16.mxu0 %v1420
  %1884 = vmatpush1.bf16.msra.mxu0 %v1419
  %1885 = vmatprep.subr.bf16.mxu0 %v1436
  %1886 = vmatpush1.bf16.msra.mxu0 %v1435
  %1887 = vmatprep.mubr.bf16.mxu0 %v326
  %1888 = vmatmul.mubr.bf16.gmra.mrb[0].mxu0 %v318
  %v1889 = vpop.f32.mrb[0].mxu0
  %v1890 = vadd.f32 %v308, %v1889
  %v1891 = vpop.f32.mrb[0].mxu0
  %v1892 = vadd.f32 %v308, %v1891
  %v1893 = vpop.f32.mrb[0].mxu0
  %v1894 = vpop.f32.mrb[0].mxu0
  %1895 = vdwg.mxu0
  %1896 = vmatprep.subr.bf16.mxu0 %v1452
  %1897 = vmatpush1.bf16.msra.mxu0 %v1451
  %1898 = vmatprep.subr.bf16.mxu0 %v1468
  %1899 = vmatpush1.bf16.msra.mxu0 %v1467
  %1900 = vmatprep.subr.bf16.mxu0 0
  %1901 = vmatpush1.bf16.msra.mxu0 0
  %1902 = vmatprep.subr.bf16.mxu0 0
  %1903 = vmatpush1.bf16.msra.mxu0 0
  %1904 = vmatprep.subr.bf16.mxu0 0
  %1905 = vmatpush1.bf16.msra.mxu0 0
  %1906 = vmatprep.subr.bf16.mxu0 0
  %1907 = vmatpush1.bf16.msra.mxu0 0
  %1908 = vmatprep.subr.bf16.mxu0 0
  %1909 = vmatpush1.bf16.msra.mxu0 0
  %1910 = vmatprep.subr.bf16.mxu0 0
  %1911 = vmatpush1.bf16.msra.mxu0 0
  %1912 = vmatprep.subr.bf16.mxu0 0
  %1913 = vmatpush1.bf16.msra.mxu0 0
  %1914 = vmatprep.subr.bf16.mxu0 0
  %1915 = vmatpush1.bf16.msra.mxu0 0
  %1916 = vmatprep.subr.bf16.mxu0 0
  %1917 = vmatpush1.bf16.msra.mxu0 0
  %1918 = vmatprep.subr.bf16.mxu0 0
  %1919 = vmatpush1.bf16.msra.mxu0 0
  %1920 = vmatprep.subr.bf16.mxu0 0
  %1921 = vmatpush1.bf16.msra.mxu0 0
  %1922 = vmatprep.subr.bf16.mxu0 0
  %1923 = vmatpush1.bf16.msra.mxu0 0
  %1924 = vmatprep.subr.bf16.mxu0 0
  %1925 = vmatpush1.bf16.msra.mxu0 0
  %1926 = vmatprep.subr.bf16.mxu0 0
  %1927 = vmatpush1.bf16.msra.mxu0 0
  %1928 = vmatprep.mubr.bf16.mxu0 0
  %1929 = vmatmul.mubr.bf16.gmra.mrb[0].mxu0 %v1771
  %v1930 = vpop.f32.mrb[0].mxu0
  %v1931 = vadd.f32 %v1890, %v1930
  %v1932 = vpop.f32.mrb[0].mxu0
  %v1933 = vadd.f32 %v1892, %v1932
  %v1934 = vpop.f32.mrb[0].mxu0
  %v1935 = vpop.f32.mrb[0].mxu0
  %1936 = vdwg.mxu0
  %1937 = vmatprep.subr.bf16.mxu0 %v1198
  %1938 = vmatpush1.bf16.msra.mxu0 %v1197
  %1939 = vmatprep.subr.bf16.mxu0 %v1214
  %1940 = vmatpush1.bf16.msra.mxu0 %v1213
  %1941 = vmatprep.subr.bf16.mxu0 %v1230
  %1942 = vmatpush1.bf16.msra.mxu0 %v1229
  %1943 = vmatprep.subr.bf16.mxu0 %v1246
  %1944 = vmatpush1.bf16.msra.mxu0 %v1245
  %1945 = vmatprep.subr.bf16.mxu0 %v1262
  %1946 = vmatpush1.bf16.msra.mxu0 %v1261
  %1947 = vmatprep.subr.bf16.mxu0 %v1278
  %1948 = vmatpush1.bf16.msra.mxu0 %v1277
  %1949 = vmatprep.subr.bf16.mxu0 %v1294
  %1950 = vmatpush1.bf16.msra.mxu0 %v1293
  %1951 = vmatprep.subr.bf16.mxu0 %v1310
  %1952 = vmatpush1.bf16.msra.mxu0 %v1309
  %1953 = vmatprep.subr.bf16.mxu0 %v1326
  %1954 = vmatpush1.bf16.msra.mxu0 %v1325
  %1955 = vmatprep.subr.bf16.mxu0 %v1342
  %1956 = vmatpush1.bf16.msra.mxu0 %v1341
  %1957 = vmatprep.subr.bf16.mxu0 %v1358
  %1958 = vmatpush1.bf16.msra.mxu0 %v1357
  %1959 = vmatprep.subr.bf16.mxu0 %v1374
  %1960 = vmatpush1.bf16.msra.mxu0 %v1373
  %1961 = vmatprep.subr.bf16.mxu0 %v1390
  %1962 = vmatpush1.bf16.msra.mxu0 %v1389
  %1963 = vmatprep.subr.bf16.mxu0 %v1406
  %1964 = vmatpush1.bf16.msra.mxu0 %v1405
  %1965 = vmatprep.subr.bf16.mxu0 %v1422
  %1966 = vmatpush1.bf16.msra.mxu0 %v1421
  %1967 = vmatprep.subr.bf16.mxu0 %v1438
  %1968 = vmatpush1.bf16.msra.mxu0 %v1437
  %1969 = vmatprep.mubr.bf16.mxu0 %v326
  %1970 = vmatmul.mubr.bf16.gmra.mrb[0].mxu0 %v318
  %v1971 = vpop.f32.mrb[0].mxu0
  %v1972 = vadd.f32 %v308, %v1971
  %v1973 = vpop.f32.mrb[0].mxu0
  %v1974 = vadd.f32 %v308, %v1973
  %v1975 = vpop.f32.mrb[0].mxu0
  %v1976 = vpop.f32.mrb[0].mxu0
  %1977 = vdwg.mxu0
  %1978 = vmatprep.subr.bf16.mxu0 %v1454
  %1979 = vmatpush1.bf16.msra.mxu0 %v1453
  %1980 = vmatprep.subr.bf16.mxu0 %v1470
  %1981 = vmatpush1.bf16.msra.mxu0 %v1469
  %1982 = vmatprep.subr.bf16.mxu0 0
  %1983 = vmatpush1.bf16.msra.mxu0 0
  %1984 = vmatprep.subr.bf16.mxu0 0
  %1985 = vmatpush1.bf16.msra.mxu0 0
  %1986 = vmatprep.subr.bf16.mxu0 0
  %1987 = vmatpush1.bf16.msra.mxu0 0
  %1988 = vmatprep.subr.bf16.mxu0 0
  %1989 = vmatpush1.bf16.msra.mxu0 0
  %1990 = vmatprep.subr.bf16.mxu0 0
  %1991 = vmatpush1.bf16.msra.mxu0 0
  %1992 = vmatprep.subr.bf16.mxu0 0
  %1993 = vmatpush1.bf16.msra.mxu0 0
  %1994 = vmatprep.subr.bf16.mxu0 0
  %1995 = vmatpush1.bf16.msra.mxu0 0
  %1996 = vmatprep.subr.bf16.mxu0 0
  %1997 = vmatpush1.bf16.msra.mxu0 0
  %1998 = vmatprep.subr.bf16.mxu0 0
  %1999 = vmatpush1.bf16.msra.mxu0 0
  %2000 = vmatprep.subr.bf16.mxu0 0
  %2001 = vmatpush1.bf16.msra.mxu0 0
  %2002 = vmatprep.subr.bf16.mxu0 0
  %2003 = vmatpush1.bf16.msra.mxu0 0
  %2004 = vmatprep.subr.bf16.mxu0 0
  %2005 = vmatpush1.bf16.msra.mxu0 0
  %2006 = vmatprep.subr.bf16.mxu0 0
  %2007 = vmatpush1.bf16.msra.mxu0 0
  %2008 = vmatprep.subr.bf16.mxu0 0
  %2009 = vmatpush1.bf16.msra.mxu0 0
  %2010 = vmatprep.mubr.bf16.mxu0 0
  %2011 = vmatmul.mubr.bf16.gmra.mrb[0].mxu0 %v1771
  %v2012 = vpop.f32.mrb[0].mxu0
  %v2013 = vadd.f32 %v1972, %v2012
  %v2014 = vpop.f32.mrb[0].mxu0
  %v2015 = vadd.f32 %v1974, %v2014
  %v2016 = vpop.f32.mrb[0].mxu0
  %v2017 = vpop.f32.mrb[0].mxu0
  %2018 = vdwg.mxu0
  %2019 = vmatprep.subr.bf16.mxu0 %v1200
  %2020 = vmatpush1.bf16.msra.mxu0 %v1199
  %2021 = vmatprep.subr.bf16.mxu0 %v1216
  %2022 = vmatpush1.bf16.msra.mxu0 %v1215
  %2023 = vmatprep.subr.bf16.mxu0 %v1232
  %2024 = vmatpush1.bf16.msra.mxu0 %v1231
  %2025 = vmatprep.subr.bf16.mxu0 %v1248
  %2026 = vmatpush1.bf16.msra.mxu0 %v1247
  %2027 = vmatprep.subr.bf16.mxu0 %v1264
  %2028 = vmatpush1.bf16.msra.mxu0 %v1263
  %2029 = vmatprep.subr.bf16.mxu0 %v1280
  %2030 = vmatpush1.bf16.msra.mxu0 %v1279
  %2031 = vmatprep.subr.bf16.mxu0 %v1296
  %2032 = vmatpush1.bf16.msra.mxu0 %v1295
  %2033 = vmatprep.subr.bf16.mxu0 %v1312
  %2034 = vmatpush1.bf16.msra.mxu0 %v1311
  %2035 = vmatprep.subr.bf16.mxu0 %v1328
  %2036 = vmatpush1.bf16.msra.mxu0 %v1327
  %2037 = vmatprep.subr.bf16.mxu0 %v1344
  %2038 = vmatpush1.bf16.msra.mxu0 %v1343
  %2039 = vmatprep.subr.bf16.mxu0 %v1360
  %2040 = vmatpush1.bf16.msra.mxu0 %v1359
  %2041 = vmatprep.subr.bf16.mxu0 %v1376
  %2042 = vmatpush1.bf16.msra.mxu0 %v1375
  %2043 = vmatprep.subr.bf16.mxu0 %v1392
  %2044 = vmatpush1.bf16.msra.mxu0 %v1391
  %2045 = vmatprep.subr.bf16.mxu0 %v1408
  %2046 = vmatpush1.bf16.msra.mxu0 %v1407
  %2047 = vmatprep.subr.bf16.mxu0 %v1424
  %2048 = vmatpush1.bf16.msra.mxu0 %v1423
  %2049 = vmatprep.subr.bf16.mxu0 %v1440
  %2050 = vmatpush1.bf16.msra.mxu0 %v1439
  %2051 = vmatprep.mubr.bf16.mxu0 %v326
  %2052 = vmatmul.mubr.bf16.gmra.mrb[0].mxu0 %v318
  %v2053 = vpop.f32.mrb[0].mxu0
  %v2054 = vadd.f32 %v308, %v2053
  %v2055 = vpop.f32.mrb[0].mxu0
  %v2056 = vadd.f32 %v308, %v2055
  %v2057 = vpop.f32.mrb[0].mxu0
  %v2058 = vpop.f32.mrb[0].mxu0
  %2059 = vdwg.mxu0
  %2060 = vmatprep.subr.bf16.mxu0 %v1456
  %2061 = vmatpush1.bf16.msra.mxu0 %v1455
  %2062 = vmatprep.subr.bf16.mxu0 %v1472
  %2063 = vmatpush1.bf16.msra.mxu0 %v1471
  %2064 = vmatprep.subr.bf16.mxu0 0
  %2065 = vmatpush1.bf16.msra.mxu0 0
  %2066 = vmatprep.subr.bf16.mxu0 0
  %2067 = vmatpush1.bf16.msra.mxu0 0
  %2068 = vmatprep.subr.bf16.mxu0 0
  %2069 = vmatpush1.bf16.msra.mxu0 0
  %2070 = vmatprep.subr.bf16.mxu0 0
  %2071 = vmatpush1.bf16.msra.mxu0 0
  %2072 = vmatprep.subr.bf16.mxu0 0
  %2073 = vmatpush1.bf16.msra.mxu0 0
  %2074 = vmatprep.subr.bf16.mxu0 0
  %2075 = vmatpush1.bf16.msra.mxu0 0
  %2076 = vmatprep.subr.bf16.mxu0 0
  %2077 = vmatpush1.bf16.msra.mxu0 0
  %2078 = vmatprep.subr.bf16.mxu0 0
  %2079 = vmatpush1.bf16.msra.mxu0 0
  %2080 = vmatprep.subr.bf16.mxu0 0
  %2081 = vmatpush1.bf16.msra.mxu0 0
  %2082 = vmatprep.subr.bf16.mxu0 0
  %2083 = vmatpush1.bf16.msra.mxu0 0
  %2084 = vmatprep.subr.bf16.mxu0 0
  %2085 = vmatpush1.bf16.msra.mxu0 0
  %2086 = vmatprep.subr.bf16.mxu0 0
  %2087 = vmatpush1.bf16.msra.mxu0 0
  %2088 = vmatprep.subr.bf16.mxu0 0
  %2089 = vmatpush1.bf16.msra.mxu0 0
  %2090 = vmatprep.subr.bf16.mxu0 0
  %2091 = vmatpush1.bf16.msra.mxu0 0
  %2092 = vmatprep.mubr.bf16.mxu0 0
  %2093 = vmatmul.mubr.bf16.gmra.mrb[0].mxu0 %v1771
  %v2094 = vpop.f32.mrb[0].mxu0
  %v2095 = vadd.f32 %v2054, %v2094
  %v2096 = vpop.f32.mrb[0].mxu0
  %v2097 = vadd.f32 %v2056, %v2096
  %v2098 = vpop.f32.mrb[0].mxu0
  %v2099 = vpop.f32.mrb[0].mxu0
  %2100 = vdwg.mxu0
  %2101 = vmatprep.subr.bf16.mxu0 %v1202
  %2102 = vmatpush1.bf16.msra.mxu0 %v1201
  %2103 = vmatprep.subr.bf16.mxu0 %v1218
  %2104 = vmatpush1.bf16.msra.mxu0 %v1217
  %2105 = vmatprep.subr.bf16.mxu0 %v1234
  %2106 = vmatpush1.bf16.msra.mxu0 %v1233
  %2107 = vmatprep.subr.bf16.mxu0 %v1250
  %2108 = vmatpush1.bf16.msra.mxu0 %v1249
  %2109 = vmatprep.subr.bf16.mxu0 %v1266
  %2110 = vmatpush1.bf16.msra.mxu0 %v1265
  %2111 = vmatprep.subr.bf16.mxu0 %v1282
  %2112 = vmatpush1.bf16.msra.mxu0 %v1281
  %2113 = vmatprep.subr.bf16.mxu0 %v1298
  %2114 = vmatpush1.bf16.msra.mxu0 %v1297
  %2115 = vmatprep.subr.bf16.mxu0 %v1314
  %2116 = vmatpush1.bf16.msra.mxu0 %v1313
  %2117 = vmatprep.subr.bf16.mxu0 %v1330
  %2118 = vmatpush1.bf16.msra.mxu0 %v1329
  %2119 = vmatprep.subr.bf16.mxu0 %v1346
  %2120 = vmatpush1.bf16.msra.mxu0 %v1345
  %2121 = vmatprep.subr.bf16.mxu0 %v1362
  %2122 = vmatpush1.bf16.msra.mxu0 %v1361
  %2123 = vmatprep.subr.bf16.mxu0 %v1378
  %2124 = vmatpush1.bf16.msra.mxu0 %v1377
  %2125 = vmatprep.subr.bf16.mxu0 %v1394
  %2126 = vmatpush1.bf16.msra.mxu0 %v1393
  %2127 = vmatprep.subr.bf16.mxu0 %v1410
  %2128 = vmatpush1.bf16.msra.mxu0 %v1409
  %2129 = vmatprep.subr.bf16.mxu0 %v1426
  %2130 = vmatpush1.bf16.msra.mxu0 %v1425
  %2131 = vmatprep.subr.bf16.mxu0 %v1442
  %2132 = vmatpush1.bf16.msra.mxu0 %v1441
  %2133 = vmatprep.mubr.bf16.mxu0 %v326
  %2134 = vmatmul.mubr.bf16.gmra.mrb[0].mxu0 %v318
  %v2135 = vpop.f32.mrb[0].mxu0
  %v2136 = vadd.f32 %v308, %v2135
  %v2137 = vpop.f32.mrb[0].mxu0
  %v2138 = vadd.f32 %v308, %v2137
  %v2139 = vpop.f32.mrb[0].mxu0
  %v2140 = vpop.f32.mrb[0].mxu0
  %2141 = vdwg.mxu0
  %2142 = vmatprep.subr.bf16.mxu0 %v1458
  %2143 = vmatpush1.bf16.msra.mxu0 %v1457
  %2144 = vmatprep.subr.bf16.mxu0 %v1474
  %2145 = vmatpush1.bf16.msra.mxu0 %v1473
  %2146 = vmatprep.subr.bf16.mxu0 0
  %2147 = vmatpush1.bf16.msra.mxu0 0
  %2148 = vmatprep.subr.bf16.mxu0 0
  %2149 = vmatpush1.bf16.msra.mxu0 0
  %2150 = vmatprep.subr.bf16.mxu0 0
  %2151 = vmatpush1.bf16.msra.mxu0 0
  %2152 = vmatprep.subr.bf16.mxu0 0
  %2153 = vmatpush1.bf16.msra.mxu0 0
  %2154 = vmatprep.subr.bf16.mxu0 0
  %2155 = vmatpush1.bf16.msra.mxu0 0
  %2156 = vmatprep.subr.bf16.mxu0 0
  %2157 = vmatpush1.bf16.msra.mxu0 0
  %2158 = vmatprep.subr.bf16.mxu0 0
  %2159 = vmatpush1.bf16.msra.mxu0 0
  %2160 = vmatprep.subr.bf16.mxu0 0
  %2161 = vmatpush1.bf16.msra.mxu0 0
  %2162 = vmatprep.subr.bf16.mxu0 0
  %2163 = vmatpush1.bf16.msra.mxu0 0
  %2164 = vmatprep.subr.bf16.mxu0 0
  %2165 = vmatpush1.bf16.msra.mxu0 0
  %2166 = vmatprep.subr.bf16.mxu0 0
  %2167 = vmatpush1.bf16.msra.mxu0 0
  %2168 = vmatprep.subr.bf16.mxu0 0
  %2169 = vmatpush1.bf16.msra.mxu0 0
  %2170 = vmatprep.subr.bf16.mxu0 0
  %2171 = vmatpush1.bf16.msra.mxu0 0
  %2172 = vmatprep.subr.bf16.mxu0 0
  %2173 = vmatpush1.bf16.msra.mxu0 0
  %2174 = vmatprep.mubr.bf16.mxu0 0
  %2175 = vmatmul.mubr.bf16.gmra.mrb[0].mxu0 %v1771
  %v2176 = vpop.f32.mrb[0].mxu0
  %v2177 = vadd.f32 %v2136, %v2176
  %v2178 = vpop.f32.mrb[0].mxu0
  %v2179 = vadd.f32 %v2138, %v2178
  %v2180 = vpop.f32.mrb[0].mxu0
  %v2181 = vpop.f32.mrb[0].mxu0
  %2182 = vdwg.mxu0
  %2183 = vmatprep.subr.bf16.mxu0 %v1204
  %2184 = vmatpush1.bf16.msra.mxu0 %v1203
  %2185 = vmatprep.subr.bf16.mxu0 %v1220
  %2186 = vmatpush1.bf16.msra.mxu0 %v1219
  %2187 = vmatprep.subr.bf16.mxu0 %v1236
  %2188 = vmatpush1.bf16.msra.mxu0 %v1235
  %2189 = vmatprep.subr.bf16.mxu0 %v1252
  %2190 = vmatpush1.bf16.msra.mxu0 %v1251
  %2191 = vmatprep.subr.bf16.mxu0 %v1268
  %2192 = vmatpush1.bf16.msra.mxu0 %v1267
  %2193 = vmatprep.subr.bf16.mxu0 %v1284
  %2194 = vmatpush1.bf16.msra.mxu0 %v1283
  %2195 = vmatprep.subr.bf16.mxu0 %v1300
  %2196 = vmatpush1.bf16.msra.mxu0 %v1299
  %2197 = vmatprep.subr.bf16.mxu0 %v1316
  %2198 = vmatpush1.bf16.msra.mxu0 %v1315
  %2199 = vmatprep.subr.bf16.mxu0 %v1332
  %2200 = vmatpush1.bf16.msra.mxu0 %v1331
  %2201 = vmatprep.subr.bf16.mxu0 %v1348
  %2202 = vmatpush1.bf16.msra.mxu0 %v1347
  %2203 = vmatprep.subr.bf16.mxu0 %v1364
  %2204 = vmatpush1.bf16.msra.mxu0 %v1363
  %2205 = vmatprep.subr.bf16.mxu0 %v1380
  %2206 = vmatpush1.bf16.msra.mxu0 %v1379
  %2207 = vmatprep.subr.bf16.mxu0 %v1396
  %2208 = vmatpush1.bf16.msra.mxu0 %v1395
  %2209 = vmatprep.subr.bf16.mxu0 %v1412
  %2210 = vmatpush1.bf16.msra.mxu0 %v1411
  %2211 = vmatprep.subr.bf16.mxu0 %v1428
  %2212 = vmatpush1.bf16.msra.mxu0 %v1427
  %2213 = vmatprep.subr.bf16.mxu0 %v1444
  %2214 = vmatpush1.bf16.msra.mxu0 %v1443
  %2215 = vmatprep.mubr.bf16.mxu0 %v326
  %2216 = vmatmul.mubr.bf16.gmra.mrb[0].mxu0 %v318
  %v2217 = vpop.f32.mrb[0].mxu0
  %v2218 = vadd.f32 %v308, %v2217
  %v2219 = vpop.f32.mrb[0].mxu0
  %v2220 = vadd.f32 %v308, %v2219
  %v2221 = vpop.f32.mrb[0].mxu0
  %v2222 = vpop.f32.mrb[0].mxu0
  %2223 = vdwg.mxu0
  %2224 = vmatprep.subr.bf16.mxu0 %v1460
  %2225 = vmatpush1.bf16.msra.mxu0 %v1459
  %2226 = vmatprep.subr.bf16.mxu0 %v1476
  %2227 = vmatpush1.bf16.msra.mxu0 %v1475
  %2228 = vmatprep.subr.bf16.mxu0 0
  %2229 = vmatpush1.bf16.msra.mxu0 0
  %2230 = vmatprep.subr.bf16.mxu0 0
  %2231 = vmatpush1.bf16.msra.mxu0 0
  %2232 = vmatprep.subr.bf16.mxu0 0
  %2233 = vmatpush1.bf16.msra.mxu0 0
  %2234 = vmatprep.subr.bf16.mxu0 0
  %2235 = vmatpush1.bf16.msra.mxu0 0
  %2236 = vmatprep.subr.bf16.mxu0 0
  %2237 = vmatpush1.bf16.msra.mxu0 0
  %2238 = vmatprep.subr.bf16.mxu0 0
  %2239 = vmatpush1.bf16.msra.mxu0 0
  %2240 = vmatprep.subr.bf16.mxu0 0
  %2241 = vmatpush1.bf16.msra.mxu0 0
  %2242 = vmatprep.subr.bf16.mxu0 0
  %2243 = vmatpush1.bf16.msra.mxu0 0
  %2244 = vmatprep.subr.bf16.mxu0 0
  %2245 = vmatpush1.bf16.msra.mxu0 0
  %2246 = vmatprep.subr.bf16.mxu0 0
  %2247 = vmatpush1.bf16.msra.mxu0 0
  %2248 = vmatprep.subr.bf16.mxu0 0
  %2249 = vmatpush1.bf16.msra.mxu0 0
  %2250 = vmatprep.subr.bf16.mxu0 0
  %2251 = vmatpush1.bf16.msra.mxu0 0
  %2252 = vmatprep.subr.bf16.mxu0 0
  %2253 = vmatpush1.bf16.msra.mxu0 0
  %2254 = vmatprep.subr.bf16.mxu0 0
  %2255 = vmatpush1.bf16.msra.mxu0 0
  %2256 = vmatprep.mubr.bf16.mxu0 0
  %2257 = vmatmul.mubr.bf16.gmra.mrb[0].mxu0 %v1771
  %v2258 = vpop.f32.mrb[0].mxu0
  %v2259 = vadd.f32 %v2218, %v2258
  %v2260 = vpop.f32.mrb[0].mxu0
  %v2261 = vadd.f32 %v2220, %v2260
  %v2262 = vpop.f32.mrb[0].mxu0
  %v2263 = vpop.f32.mrb[0].mxu0
  %2264 = vdwg.mxu0
  %2265 = vmatprep.subr.bf16.mxu0 %v1206
  %2266 = vmatpush1.bf16.msra.mxu0 %v1205
  %2267 = vmatprep.subr.bf16.mxu0 %v1222
  %2268 = vmatpush1.bf16.msra.mxu0 %v1221
  %2269 = vmatprep.subr.bf16.mxu0 %v1238
  %2270 = vmatpush1.bf16.msra.mxu0 %v1237
  %2271 = vmatprep.subr.bf16.mxu0 %v1254
  %2272 = vmatpush1.bf16.msra.mxu0 %v1253
  %2273 = vmatprep.subr.bf16.mxu0 %v1270
  %2274 = vmatpush1.bf16.msra.mxu0 %v1269
  %2275 = vmatprep.subr.bf16.mxu0 %v1286
  %2276 = vmatpush1.bf16.msra.mxu0 %v1285
  %2277 = vmatprep.subr.bf16.mxu0 %v1302
  %2278 = vmatpush1.bf16.msra.mxu0 %v1301
  %2279 = vmatprep.subr.bf16.mxu0 %v1318
  %2280 = vmatpush1.bf16.msra.mxu0 %v1317
  %2281 = vmatprep.subr.bf16.mxu0 %v1334
  %2282 = vmatpush1.bf16.msra.mxu0 %v1333
  %2283 = vmatprep.subr.bf16.mxu0 %v1350
  %2284 = vmatpush1.bf16.msra.mxu0 %v1349
  %2285 = vmatprep.subr.bf16.mxu0 %v1366
  %2286 = vmatpush1.bf16.msra.mxu0 %v1365
  %2287 = vmatprep.subr.bf16.mxu0 %v1382
  %2288 = vmatpush1.bf16.msra.mxu0 %v1381
  %2289 = vmatprep.subr.bf16.mxu0 %v1398
  %2290 = vmatpush1.bf16.msra.mxu0 %v1397
  %2291 = vmatprep.subr.bf16.mxu0 %v1414
  %2292 = vmatpush1.bf16.msra.mxu0 %v1413
  %2293 = vmatprep.subr.bf16.mxu0 %v1430
  %2294 = vmatpush1.bf16.msra.mxu0 %v1429
  %2295 = vmatprep.subr.bf16.mxu0 %v1446
  %2296 = vmatpush1.bf16.msra.mxu0 %v1445
  %2297 = vmatprep.mubr.bf16.mxu0 %v326
  %2298 = vmatmul.mubr.bf16.gmra.mrb[0].mxu0 %v318
  %v2299 = vpop.f32.mrb[0].mxu0
  %v2300 = vadd.f32 %v308, %v2299
  %v2301 = vpop.f32.mrb[0].mxu0
  %v2302 = vadd.f32 %v308, %v2301
  %v2303 = vpop.f32.mrb[0].mxu0
  %v2304 = vpop.f32.mrb[0].mxu0
  %2305 = vdwg.mxu0
  %2306 = vmatprep.subr.bf16.mxu0 %v1462
  %2307 = vmatpush1.bf16.msra.mxu0 %v1461
  %2308 = vmatprep.subr.bf16.mxu0 %v1478
  %2309 = vmatpush1.bf16.msra.mxu0 %v1477
  %2310 = vmatprep.subr.bf16.mxu0 0
  %2311 = vmatpush1.bf16.msra.mxu0 0
  %2312 = vmatprep.subr.bf16.mxu0 0
  %2313 = vmatpush1.bf16.msra.mxu0 0
  %2314 = vmatprep.subr.bf16.mxu0 0
  %2315 = vmatpush1.bf16.msra.mxu0 0
  %2316 = vmatprep.subr.bf16.mxu0 0
  %2317 = vmatpush1.bf16.msra.mxu0 0
  %2318 = vmatprep.subr.bf16.mxu0 0
  %2319 = vmatpush1.bf16.msra.mxu0 0
  %2320 = vmatprep.subr.bf16.mxu0 0
  %2321 = vmatpush1.bf16.msra.mxu0 0
  %2322 = vmatprep.subr.bf16.mxu0 0
  %2323 = vmatpush1.bf16.msra.mxu0 0
  %2324 = vmatprep.subr.bf16.mxu0 0
  %2325 = vmatpush1.bf16.msra.mxu0 0
  %2326 = vmatprep.subr.bf16.mxu0 0
  %2327 = vmatpush1.bf16.msra.mxu0 0
  %2328 = vmatprep.subr.bf16.mxu0 0
  %2329 = vmatpush1.bf16.msra.mxu0 0
  %2330 = vmatprep.subr.bf16.mxu0 0
  %2331 = vmatpush1.bf16.msra.mxu0 0
  %2332 = vmatprep.subr.bf16.mxu0 0
  %2333 = vmatpush1.bf16.msra.mxu0 0
  %2334 = vmatprep.subr.bf16.mxu0 0
  %2335 = vmatpush1.bf16.msra.mxu0 0
  %2336 = vmatprep.subr.bf16.mxu0 0
  %2337 = vmatpush1.bf16.msra.mxu0 0
  %2338 = vmatprep.mubr.bf16.mxu0 0
  %2339 = vmatmul.mubr.bf16.gmra.mrb[0].mxu0 %v1771
  %v2340 = vpop.f32.mrb[0].mxu0
  %v2341 = vadd.f32 %v2300, %v2340
  %v2342 = vpop.f32.mrb[0].mxu0
  %v2343 = vadd.f32 %v2302, %v2342
  %v2344 = vpop.f32.mrb[0].mxu0
  %v2345 = vpop.f32.mrb[0].mxu0
  %2346 = vdwg.mxu0
  %2347 = vmatprep.subr.bf16.mxu0 %v1208
  %2348 = vmatpush1.bf16.msra.mxu0 %v1207
  %2349 = vmatprep.subr.bf16.mxu0 %v1224
  %2350 = vmatpush1.bf16.msra.mxu0 %v1223
  %2351 = vmatprep.subr.bf16.mxu0 %v1240
  %2352 = vmatpush1.bf16.msra.mxu0 %v1239
  %2353 = vmatprep.subr.bf16.mxu0 %v1256
  %2354 = vmatpush1.bf16.msra.mxu0 %v1255
  %2355 = vmatprep.subr.bf16.mxu0 %v1272
  %2356 = vmatpush1.bf16.msra.mxu0 %v1271
  %2357 = vmatprep.subr.bf16.mxu0 %v1288
  %2358 = vmatpush1.bf16.msra.mxu0 %v1287
  %2359 = vmatprep.subr.bf16.mxu0 %v1304
  %2360 = vmatpush1.bf16.msra.mxu0 %v1303
  %2361 = vmatprep.subr.bf16.mxu0 %v1320
  %2362 = vmatpush1.bf16.msra.mxu0 %v1319
  %2363 = vmatprep.subr.bf16.mxu0 %v1336
  %2364 = vmatpush1.bf16.msra.mxu0 %v1335
  %2365 = vmatprep.subr.bf16.mxu0 %v1352
  %2366 = vmatpush1.bf16.msra.mxu0 %v1351
  %2367 = vmatprep.subr.bf16.mxu0 %v1368
  %2368 = vmatpush1.bf16.msra.mxu0 %v1367
  %2369 = vmatprep.subr.bf16.mxu0 %v1384
  %2370 = vmatpush1.bf16.msra.mxu0 %v1383
  %2371 = vmatprep.subr.bf16.mxu0 %v1400
  %2372 = vmatpush1.bf16.msra.mxu0 %v1399
  %2373 = vmatprep.subr.bf16.mxu0 %v1416
  %2374 = vmatpush1.bf16.msra.mxu0 %v1415
  %2375 = vmatprep.subr.bf16.mxu0 %v1432
  %2376 = vmatpush1.bf16.msra.mxu0 %v1431
  %2377 = vmatprep.subr.bf16.mxu0 %v1448
  %2378 = vmatpush1.bf16.msra.mxu0 %v1447
  %2379 = vmatprep.mubr.bf16.mxu0 %v326
  %2380 = vmatmul.mubr.bf16.gmra.mrb[0].mxu0 %v318
  %v2381 = vpop.f32.mrb[0].mxu0
  %v2382 = vadd.f32 %v308, %v2381
  %v2383 = vpop.f32.mrb[0].mxu0
  %v2384 = vadd.f32 %v308, %v2383
  %v2385 = vpop.f32.mrb[0].mxu0
  %v2386 = vpop.f32.mrb[0].mxu0
  %2387 = vdwg.mxu0
  %2388 = vmatprep.subr.bf16.mxu0 %v1464
  %2389 = vmatpush1.bf16.msra.mxu0 %v1463
  %2390 = vmatprep.subr.bf16.mxu0 %v1480
  %2391 = vmatpush1.bf16.msra.mxu0 %v1479
  %2392 = vmatprep.subr.bf16.mxu0 0
  %2393 = vmatpush1.bf16.msra.mxu0 0
  %2394 = vmatprep.subr.bf16.mxu0 0
  %2395 = vmatpush1.bf16.msra.mxu0 0
  %2396 = vmatprep.subr.bf16.mxu0 0
  %2397 = vmatpush1.bf16.msra.mxu0 0
  %2398 = vmatprep.subr.bf16.mxu0 0
  %2399 = vmatpush1.bf16.msra.mxu0 0
  %2400 = vmatprep.subr.bf16.mxu0 0
  %2401 = vmatpush1.bf16.msra.mxu0 0
  %2402 = vmatprep.subr.bf16.mxu0 0
  %2403 = vmatpush1.bf16.msra.mxu0 0
  %2404 = vmatprep.subr.bf16.mxu0 0
  %2405 = vmatpush1.bf16.msra.mxu0 0
  %2406 = vmatprep.subr.bf16.mxu0 0
  %2407 = vmatpush1.bf16.msra.mxu0 0
  %2408 = vmatprep.subr.bf16.mxu0 0
  %2409 = vmatpush1.bf16.msra.mxu0 0
  %2410 = vmatprep.subr.bf16.mxu0 0
  %2411 = vmatpush1.bf16.msra.mxu0 0
  %2412 = vmatprep.subr.bf16.mxu0 0
  %2413 = vmatpush1.bf16.msra.mxu0 0
  %2414 = vmatprep.subr.bf16.mxu0 0
  %2415 = vmatpush1.bf16.msra.mxu0 0
  %2416 = vmatprep.subr.bf16.mxu0 0
  %2417 = vmatpush1.bf16.msra.mxu0 0
  %2418 = vmatprep.subr.bf16.mxu0 0
  %2419 = vmatpush1.bf16.msra.mxu0 0
  %2420 = vmatprep.mubr.bf16.mxu0 0
  %2421 = vmatmul.mubr.bf16.gmra.mrb[0].mxu0 %v1771
  %v2422 = vpop.f32.mrb[0].mxu0
  %v2423 = vadd.f32 %v2382, %v2422
  %v2424 = vpop.f32.mrb[0].mxu0
  %v2425 = vadd.f32 %v2384, %v2424
  %v2426 = vpop.f32.mrb[0].mxu0
  %v2427 = vpop.f32.mrb[0].mxu0
  %2428 = vdwg.mxu0
  %v2429 = vxor.u32 %v1849, 2147483648
  %v2430 = vxor.u32 %v1851, 2147483648
  %v2431 = vxor.u32 %v1931, 2147483648
  %v2432 = vxor.u32 %v1933, 2147483648
  %v2433 = vxor.u32 %v2013, 2147483648
  %v2434 = vxor.u32 %v2015, 2147483648
  %v2435 = vxor.u32 %v2095, 2147483648
  %v2436 = vxor.u32 %v2097, 2147483648
  %v2437 = vxor.u32 %v2177, 2147483648
  %v2438 = vxor.u32 %v2179, 2147483648
  %v2439 = vxor.u32 %v2259, 2147483648
  %v2440 = vxor.u32 %v2261, 2147483648
  %v2441 = vxor.u32 %v2341, 2147483648
  %v2442 = vxor.u32 %v2343, 2147483648
  %v2443 = vxor.u32 %v2423, 2147483648
  %v2444 = vxor.u32 %v2425, 2147483648
  %v2445 = vmul.f32 %v2429, 1.442695
  %v2446 = vpow.pop %v2445
  %v2447 = vmul.f32 %v2430, 1.442695
  %v2448 = vpow.pop %v2447
  %v2449 = vmul.f32 %v2431, 1.442695
  %v2450 = vpow.pop %v2449
  %v2451 = vmul.f32 %v2432, 1.442695
  %v2452 = vpow.pop %v2451
  %v2453 = vmul.f32 %v2433, 1.442695
  %v2454 = vpow.pop %v2453
  %v2455 = vmul.f32 %v2434, 1.442695
  %v2456 = vpow.pop %v2455
  %v2457 = vmul.f32 %v2435, 1.442695
  %v2458 = vpow.pop %v2457
  %v2459 = vmul.f32 %v2436, 1.442695
  %v2460 = vpow.pop %v2459
  %v2461 = vmul.f32 %v2437, 1.442695
  %v2462 = vpow.pop %v2461
  %v2463 = vmul.f32 %v2438, 1.442695
  %v2464 = vpow.pop %v2463
  %v2465 = vmul.f32 %v2439, 1.442695
  %v2466 = vpow.pop %v2465
  %v2467 = vmul.f32 %v2440, 1.442695
  %v2468 = vpow.pop %v2467
  %v2469 = vmul.f32 %v2441, 1.442695
  %v2470 = vpow.pop %v2469
  %v2471 = vmul.f32 %v2442, 1.442695
  %v2472 = vpow.pop %v2471
  %v2473 = vmul.f32 %v2443, 1.442695
  %v2474 = vpow.pop %v2473
  %v2475 = vmul.f32 %v2444, 1.442695
  %v2476 = vpow.pop %v2475
  %v2477 = vadd.f32 %v2446, 1.0
  %v2478 = vadd.f32 %v2448, 1.0
  %v2479 = vadd.f32 %v2450, 1.0
  %v2480 = vadd.f32 %v2452, 1.0
  %v2481 = vadd.f32 %v2454, 1.0
  %v2482 = vadd.f32 %v2456, 1.0
  %v2483 = vadd.f32 %v2458, 1.0
  %v2484 = vadd.f32 %v2460, 1.0
  %v2485 = vadd.f32 %v2462, 1.0
  %v2486 = vadd.f32 %v2464, 1.0
  %v2487 = vadd.f32 %v2466, 1.0
  %v2488 = vadd.f32 %v2468, 1.0
  %v2489 = vadd.f32 %v2470, 1.0
  %v2490 = vadd.f32 %v2472, 1.0
  %v2491 = vadd.f32 %v2474, 1.0
  %v2492 = vadd.f32 %v2476, 1.0
  %v2493 = vrcp.pop %v2477
  %v2494 = vmul.f32 1.0, %v2493
  %v2495 = vrcp.pop %v2478
  %v2496 = vmul.f32 1.0, %v2495
  %v2497 = vrcp.pop %v2479
  %v2498 = vmul.f32 1.0, %v2497
  %v2499 = vrcp.pop %v2480
  %v2500 = vmul.f32 1.0, %v2499
  %v2501 = vrcp.pop %v2481
  %v2502 = vmul.f32 1.0, %v2501
  %v2503 = vrcp.pop %v2482
  %v2504 = vmul.f32 1.0, %v2503
  %v2505 = vrcp.pop %v2483
  %v2506 = vmul.f32 1.0, %v2505
  %v2507 = vrcp.pop %v2484
  %v2508 = vmul.f32 1.0, %v2507
  %v2509 = vrcp.pop %v2485
  %v2510 = vmul.f32 1.0, %v2509
  %v2511 = vrcp.pop %v2486
  %v2512 = vmul.f32 1.0, %v2511
  %v2513 = vrcp.pop %v2487
  %v2514 = vmul.f32 1.0, %v2513
  %v2515 = vrcp.pop %v2488
  %v2516 = vmul.f32 1.0, %v2515
  %v2517 = vrcp.pop %v2489
  %v2518 = vmul.f32 1.0, %v2517
  %v2519 = vrcp.pop %v2490
  %v2520 = vmul.f32 1.0, %v2519
  %v2521 = vrcp.pop %v2491
  %v2522 = vmul.f32 1.0, %v2521
  %v2523 = vrcp.pop %v2492
  %v2524 = vmul.f32 1.0, %v2523
  %v2541 = vcombine.low %v2494, %v2496
  %v2542 = vcombine.low %v2498, %v2500
  %v2543 = vcombine.low %v2502, %v2504
  %v2544 = vcombine.low %v2506, %v2508
  %v2545 = vcombine.low %v2510, %v2512
  %v2546 = vcombine.low %v2514, %v2516
  %v2547 = vcombine.low %v2518, %v2520
  %v2548 = vcombine.low %v2522, %v2524
  %2557 = vst [vmem:[%s3] sm:$0x77] %v2541
  %2558 = vst [vmem:[%s3 + $0x8] sm:$0x77] %v2542
  %2559 = vst [vmem:[%s3 + $0x10] sm:$0x77] %v2543
  %2560 = vst [vmem:[%s3 + $0x18] sm:$0x77] %v2544
  %2561 = vst [vmem:[%s3 + $0x20] sm:$0x77] %v2545
  %2562 = vst [vmem:[%s3 + $0x28] sm:$0x77] %v2546
  %2563 = vst [vmem:[%s3 + $0x30] sm:$0x77] %v2547
  %2564 = vst [vmem:[%s3 + $0x38] sm:$0x77] %v2548
  // Predicated region
  $region14: #{vae_forward.17} parent=0 // pred_check
    _
  $region15: #{vae_forward.17} parent=0 // pred_check_branch
    %2566 = sbr.rel (0) target = $region17
  $region16: #{vae_forward.17} parent=0 // pred_region
    _
  $region17: #{vae_forward.17} parent=0 // pred_fallthru
    _
  // Predicated region
  $region18: #{vae_forward.17} parent=0 // pred_check
    _
  $region19: #{vae_forward.17} parent=0 // pred_check_branch
    %2568 = sbr.rel (0) target = $region21
  $region20: #{vae_forward.17} parent=0 // pred_region
    _
  $region21: #{vae_forward.17} parent=0 // pred_fallthru
    _

</llo_original>
